<compile_context>
chip_gen: v6e
topology: v6e:2x2x1
jax: 0.10.0
libtpu: 0.0.40
codegen_flags: <defaults>
</compile_context>

<pallas_src>
import functools

import jax
import jax.numpy as jnp
from jax import lax
from jax.experimental import pallas as pl
from jax.experimental.pallas import tpu as pltpu


@functools.lru_cache(maxsize=None)
def _vmem_limit():
    """Scoped-VMEM budget: ~half of physical VMEM (leaves headroom for the
    compiler's own double-buffering / internal scratch). 64 MiB on 128-MiB
    parts (v5e/v6e), 32 MiB on v7x's 64-MiB TensorCores."""
    cap = 128 * 1024 * 1024
    try:
        info = pltpu.get_tpu_info()
        cap = int(getattr(info, "vmem_capacity_bytes", cap) or cap)
    except Exception:
        pass
    return int(min(max(cap // 2, 32 * 1024 * 1024), 100 * 1024 * 1024))


def _pick_tile(dim, target, multiple):
    """Largest tile <= target that divides `dim` and is a multiple of `multiple`.
    Falls back to the full dim (always a legal block extent)."""
    if dim <= target:
        return dim
    t = (target // multiple) * multiple
    while t >= multiple:
        if dim % t == 0:
            return t
        t -= multiple
    return dim


def _round_up(n, m):
    return -(-n // m) * m


# ----------------------------- Pallas kernels -----------------------------

def _linear_kernel(x_ref, w_ref, o_ref):
    """Plain linear (no bias), bf16 MXU with f32 accumulation. Weight resident."""
    o_ref[...] = jnp.dot(x_ref[...].astype(jnp.bfloat16), w_ref[...],
                         preferred_element_type=jnp.float32).astype(o_ref.dtype)


def _ln_linear_kernel(x_ref, g_ref, b_ref, w_ref, bias_ref, o_ref, *, activation):
    """Fused LayerNorm (f32, two-pass variance) + linear (bf16 MXU, f32 acc)
    + optional QuickGELU epilogue. The full (K, N) weight block is VMEM-resident."""
    x = x_ref[...]
    mu = jnp.mean(x, axis=-1, keepdims=True)
    xc = x - mu
    var = jnp.mean(xc * xc, axis=-1, keepdims=True)
    xn = xc * lax.rsqrt(var + 1e-5) * g_ref[...] + b_ref[...]
    y = jnp.dot(xn.astype(jnp.bfloat16), w_ref[...],
                preferred_element_type=jnp.float32) + bias_ref[...]
    if activation == "quick_gelu":
        y = y * jax.nn.sigmoid(1.702 * y)      # CLIP QuickGELU, f32 epilogue
    o_ref[...] = y.astype(o_ref.dtype)


def _ln_mlp_residual_kernel(x_ref, g_ref, b_ref, wfc_ref, bfc_ref,
                            wproj_ref, bproj_ref, o_ref):
    """Fused ln2 + c_fc + QuickGELU + c_proj + residual.
    Both weights stay VMEM-resident; the [tm, 4*width] hidden never hits HBM."""
    x = x_ref[...]                                             # f32 residual stream
    mu = jnp.mean(x, axis=-1, keepdims=True)
    xc = x - mu
    var = jnp.mean(xc * xc, axis=-1, keepdims=True)
    xn = xc * lax.rsqrt(var + 1e-5) * g_ref[...] + b_ref[...]
    h = jnp.dot(xn.astype(jnp.bfloat16), wfc_ref[...],
                preferred_element_type=jnp.float32) + bfc_ref[...]
    h = h * jax.nn.sigmoid(1.702 * h)
    y = jnp.dot(h.astype(jnp.bfloat16), wproj_ref[...],
                preferred_element_type=jnp.float32) + bproj_ref[...]
    o_ref[...] = x + y


def _layernorm_kernel(x_ref, g_ref, b_ref, o_ref):
    """Stand-alone LayerNorm (used only for ln_pre), two-pass variance, f32."""
    x = x_ref[...]
    mu = jnp.mean(x, axis=-1, keepdims=True)
    xc = x - mu
    var = jnp.mean(xc * xc, axis=-1, keepdims=True)
    o_ref[...] = xc * lax.rsqrt(var + 1e-5) * g_ref[...] + b_ref[...]


def _attn_out_residual_kernel(qkv_ref, wout_ref, bout_ref, res_ref, o_ref, *,
                              num_heads, head_dim, valid_len, causal):
    """Per-batch multi-head attention with out_proj + residual fused in.

    qkv_ref block: [1, L, 3*D] bf16 (Q|K|V concatenated, ln1+in_proj output,
    1/sqrt(head_dim) already folded into the Q weights).  The key-padding /
    causal mask is generated in-kernel from static params (no mask DMA).
    Each head's PV output is folded straight into the matching rows of the
    resident out_proj weight, so there is no head concat and the attention
    output never round-trips HBM before out_proj.
    """
    x = qkv_ref[0]                                    # [L, 3D] bf16
    L = x.shape[0]
    D = num_heads * head_dim

    need_mask = causal or (valid_len < L)
    if need_mask:
        col = lax.broadcasted_iota(jnp.int32, (L, L), 1)
        ok = col < valid_len                          # key-padding mask
        if causal:
            row = lax.broadcasted_iota(jnp.int32, (L, L), 0)
            ok = jnp.logical_and(ok, col <= row)      # torch: full(-inf).triu_(1)
        mask_bias = jnp.where(ok, jnp.float32(0.0), jnp.float32(-1e30))

    acc = res_ref[0] + bout_ref[...]                  # residual + out_proj bias, f32
    for h in range(num_heads):                        # static loop, heads stay in VMEM
        lo = h * head_dim
        q = x[:, lo:lo + head_dim]
        k = x[:, D + lo:D + lo + head_dim]
        v = x[:, 2 * D + lo:2 * D + lo + head_dim]
        s = lax.dot_general(q, k, (((1,), (1,)), ((), ())),
                            preferred_element_type=jnp.float32)
        if need_mask:
            s = s + mask_bias
        s = s - jnp.max(s, axis=-1, keepdims=True)    # f32 softmax epilogue
        p = jnp.exp(s)
        p = p * pl.reciprocal(jnp.sum(p, axis=-1, keepdims=True), approx=True)
        pv = jnp.dot(p.astype(jnp.bfloat16), v, preferred_element_type=jnp.float32)
        acc = acc + jnp.dot(pv.astype(jnp.bfloat16), wout_ref[lo:lo + head_dim, :],
                            preferred_element_type=jnp.float32)
    o_ref[0] = acc                                    # lane-dense [L, D] store


# ----------------------------- Pallas wrappers -----------------------------

def pallas_linear(x, w, out_dtype=jnp.float32):
    """x: [M, K] f32, w: [K, N] bf16 (VMEM-resident) -> [M, N]. Grid over M only."""
    M, K = x.shape
    N = w.shape[1]
    tm = _pick_tile(M, 512, 8)
    return pl.pallas_call(
        _linear_kernel,
        out_shape=jax.ShapeDtypeStruct((M, N), out_dtype),
        grid=(M // tm,),
        in_specs=[pl.BlockSpec((tm, K), lambda i: (i, 0)),
                  pl.BlockSpec((K, N), lambda i: (0, 0))],
        out_specs=pl.BlockSpec((tm, N), lambda i: (i, 0)),
        compiler_params=pltpu.CompilerParams(
            dimension_semantics=("parallel",), vmem_limit_bytes=_vmem_limit()),
    )(x, w)


def pallas_ln_linear(x, g, b, w, bias, activation=None, out_dtype=jnp.float32):
    """Fused LayerNorm + linear, weight VMEM-resident (tn = N, grid over M only).
    x: [M, K] f32, w: [K, N] bf16, bias: [N] f32."""
    # TODO(synk): for K*N*2 bytes that do not fit VMEM (not the case for any CLIP
    # width <= 1024) a j-tiled fallback with a cached-normalized-x scratch is needed.
    M, K = x.shape
    N = w.shape[1]
    tm = _pick_tile(M, 512, 8)
    kern = functools.partial(_ln_linear_kernel, activation=activation)
    return pl.pallas_call(
        kern,
        out_shape=jax.ShapeDtypeStruct((M, N), out_dtype),
        grid=(M // tm,),
        in_specs=[pl.BlockSpec((tm, K), lambda i: (i, 0)),
                  pl.BlockSpec((1, K), lambda i: (0, 0)),
                  pl.BlockSpec((1, K), lambda i: (0, 0)),
                  pl.BlockSpec((K, N), lambda i: (0, 0)),
                  pl.BlockSpec((1, N), lambda i: (0, 0))],
        out_specs=pl.BlockSpec((tm, N), lambda i: (i, 0)),
        compiler_params=pltpu.CompilerParams(
            dimension_semantics=("parallel",), vmem_limit_bytes=_vmem_limit()),
    )(x, g.reshape(1, K), b.reshape(1, K), w, bias.reshape(1, N))


def pallas_ln_mlp_residual(x, g, b, wfc, bfc, wproj, bproj):
    """out = x + proj(QuickGELU(fc(LN(x)))). Both weights VMEM-resident."""
    M, D = x.shape
    H = wfc.shape[1]
    tm = _pick_tile(M, 256, 8)        # keep the [tm, 4*width] f32 hidden modest (v7x)
    return pl.pallas_call(
        _ln_mlp_residual_kernel,
        out_shape=jax.ShapeDtypeStruct((M, D), jnp.float32),
        grid=(M // tm,),
        in_specs=[pl.BlockSpec((tm, D), lambda i: (i, 0)),
                  pl.BlockSpec((1, D), lambda i: (0, 0)),
                  pl.BlockSpec((1, D), lambda i: (0, 0)),
                  pl.BlockSpec((D, H), lambda i: (0, 0)),
                  pl.BlockSpec((1, H), lambda i: (0, 0)),
                  pl.BlockSpec((H, D), lambda i: (0, 0)),
                  pl.BlockSpec((1, D), lambda i: (0, 0))],
        out_specs=pl.BlockSpec((tm, D), lambda i: (i, 0)),
        compiler_params=pltpu.CompilerParams(
            dimension_semantics=("parallel",), vmem_limit_bytes=_vmem_limit()),
    )(x, g.reshape(1, D), b.reshape(1, D), wfc, bfc.reshape(1, H),
      wproj, bproj.reshape(1, D))


def pallas_layernorm(x, g, b):
    M, D = x.shape
    tm = _pick_tile(M, 512, 8)
    return pl.pallas_call(
        _layernorm_kernel,
        out_shape=jax.ShapeDtypeStruct((M, D), jnp.float32),
        grid=(M // tm,),
        in_specs=[pl.BlockSpec((tm, D), lambda i: (i, 0)),
                  pl.BlockSpec((1, D), lambda i: (0, 0)),
                  pl.BlockSpec((1, D), lambda i: (0, 0))],
        out_specs=pl.BlockSpec((tm, D), lambda i: (i, 0)),
        compiler_params=pltpu.CompilerParams(
            dimension_semantics=("parallel",), vmem_limit_bytes=_vmem_limit()),
    )(x, g.reshape(1, D), b.reshape(1, D))


def pallas_attention_out_residual(qkv, res, w_out, b_out, num_heads, valid_len, causal):
    """qkv: [B, L, 3D] bf16, res: [B, L, D] f32 -> res + attn(qkv) @ w_out + b_out."""
    B, L, threeD = qkv.shape
    D = threeD // 3
    head_dim = D // num_heads
    kern = functools.partial(_attn_out_residual_kernel, num_heads=num_heads,
                             head_dim=head_dim, valid_len=valid_len, causal=causal)
    # TODO(synk): on v7x (2 TensorCores) a (B, head_group) grid with an 'arbitrary'
    # accumulation axis over head groups would expose more parallel steps at B=1-2.
    return pl.pallas_call(
        kern,
        out_shape=jax.ShapeDtypeStruct((B, L, D), jnp.float32),
        grid=(B,),
        in_specs=[pl.BlockSpec((1, L, threeD), lambda bi: (bi, 0, 0)),
                  pl.BlockSpec((D, D), lambda bi: (0, 0)),
                  pl.BlockSpec((1, D), lambda bi: (0, 0)),
                  pl.BlockSpec((1, L, D), lambda bi: (bi, 0, 0))],
        out_specs=pl.BlockSpec((1, L, D), lambda bi: (bi, 0, 0)),
        compiler_params=pltpu.CompilerParams(
            dimension_semantics=("parallel",), vmem_limit_bytes=_vmem_limit()),
    )(qkv, w_out, b_out.reshape(1, D), res)


# ----------------------------- model forward -----------------------------

def residual_attention_block(x, p, n_heads, batch, seq, valid_len, causal):
    # x: [batch*seq, D] f32 residual stream.
    D = x.shape[-1]
    # ln1 + in_proj fused; qkv emitted bf16 (attention feeds the MXU in bf16 anyway).
    qkv = pallas_ln_linear(x, p["ln1_g"], p["ln1_b"],
                           p["in_proj_w_t"], p["in_proj_b"],
                           out_dtype=jnp.bfloat16)                     # [B*L, 3D] bf16
    # attention + out_proj + residual fused.
    x = pallas_attention_out_residual(qkv.reshape(batch, seq, 3 * D),
                                      x.reshape(batch, seq, D),
                                      p["out_proj_w_t"], p["out_proj_b"],
                                      n_heads, valid_len, causal)      # [B, L, D] f32
    x = x.reshape(batch * seq, D)
    # ln2 + fc + QuickGELU + proj + residual fused.
    x = pallas_ln_mlp_residual(x, p["ln2_g"], p["ln2_b"],
                               p["fc_w_t"], p["fc_b"], p["proj_w_t"], p["proj_b"])
    return x


def encode_image(image, params, cfg):
    p_sz = cfg["vision_patch_size"]
    stride = cfg["stride_size"]
    width = cfg["vision_width"]
    B = image.shape[0]
    vp = params["visual"]

    # conv1 (no bias) as patch extraction + weight-resident Pallas matmul.
    # NHWC output avoids the HBM transpose; feature order is channel-major,
    # matching torch conv weight.reshape(out, C*kh*kw).
    patches = lax.conv_general_dilated_patches(
        image, filter_shape=(p_sz, p_sz), window_strides=(stride, stride),
        padding="VALID", dimension_numbers=("NCHW", "OIHW", "NHWC"))   # [B, gh, gw, 3*p*p]
    gh, gw = patches.shape[1], patches.shape[2]
    N = gh * gw
    x = pallas_linear(patches.reshape(B * N, 3 * p_sz * p_sz),
                      vp["conv1_w_t"]).reshape(B, N, width)

    cls = jnp.broadcast_to(vp["class_embedding"].reshape(1, 1, width), (B, 1, width))
    x = jnp.concatenate([cls, x], axis=1) + vp["pos_embed"][None]      # [B, L, width]
    L = N + 1

    # Pad token axis to a multiple of 8 once; padded keys are masked in-kernel,
    # padded rows are dropped at the end.
    L_pad = _round_up(L, 8)
    if L_pad != L:
        x = jnp.pad(x, ((0, 0), (0, L_pad - L), (0, 0)))

    h = pallas_layernorm(x.reshape(B * L_pad, width), vp["ln_pre_g"], vp["ln_pre_b"])
    for blk in vp["blocks"]:
        h = residual_attention_block(h, blk, cfg["vision_heads"], B, L_pad,
                                     valid_len=L, causal=False)

    # fused ln_post + visual projection (no bias)
    feats = pallas_ln_linear(h, vp["ln_post_g"], vp["ln_post_b"], vp["proj"],
                             jnp.zeros((cfg["embed_dim"],), jnp.float32))
    return feats.reshape(B, L_pad, cfg["embed_dim"])[:, :L]


def encode_text(text, params, cfg):
    width = cfg["transformer_width"]
    B, L = text.shape

    # TODO(synk): token-embedding gather stays in XLA (no clean Pallas win at this size).
    x = jnp.take(params["token_embedding"], text, axis=0)
    x = x + params["positional_embedding"][None]

    L_pad = _round_up(L, 8)
    if L_pad != L:
        x = jnp.pad(x, ((0, 0), (0, L_pad - L), (0, 0)))

    h = x.reshape(B * L_pad, width)
    for blk in params["text_blocks"]:
        h = residual_attention_block(h, blk, cfg["transformer_heads"], B, L_pad,
                                     valid_len=L, causal=True)

    # fused ln_final + text_projection (no bias)
    feats = pallas_ln_linear(h, params["ln_final_g"], params["ln_final_b"],
                             params["text_projection"],
                             jnp.zeros((cfg["embed_dim"],), jnp.float32))
    return feats.reshape(B, L_pad, cfg["embed_dim"])[:, :L]


def clip_forward(image, text, params, cfg):
    image_features = encode_image(image, params, cfg)
    text_features = encode_text(text, params, cfg)
    return image_features, text_features


# ----------------------------- parameter init -----------------------------

def _normal(key, shape, std):
    return std * jax.random.normal(key, shape, dtype=jnp.float32)


def init_block_params(key, width, n_heads, attn_std, proj_std, fc_std):
    ks = jax.random.split(key, 4)
    bf16 = jnp.bfloat16
    head_dim = width // n_heads
    qscale = float(head_dim) ** -0.5
    # torch layout [3D, D]; fold 1/sqrt(head_dim) into the Q out-features.
    in_proj_w = _normal(ks[0], (3 * width, width), attn_std)
    in_proj_w = in_proj_w.at[:width].multiply(qscale)
    in_proj_b = jnp.zeros((3 * width,), jnp.float32)   # zero bias -> Q-scale is a no-op
    return {
        "ln1_g": jnp.ones((width,), jnp.float32),
        "ln1_b": jnp.zeros((width,), jnp.float32),
        "in_proj_w_t": in_proj_w.T.astype(bf16),
        "in_proj_b": in_proj_b,
        "out_proj_w_t": _normal(ks[1], (width, width), proj_std).T.astype(bf16),
        "out_proj_b": jnp.zeros((width,), jnp.float32),
        "ln2_g": jnp.ones((width,), jnp.float32),
        "ln2_b": jnp.zeros((width,), jnp.float32),
        "fc_w_t": _normal(ks[2], (4 * width, width), fc_std).T.astype(bf16),
        "fc_b": jnp.zeros((4 * width,), jnp.float32),
        "proj_w_t": _normal(ks[3], (width, 4 * width), proj_std).T.astype(bf16),
        "proj_b": jnp.zeros((width,), jnp.float32),
    }


def init_clip_params(key, cfg):
    vw = cfg["vision_width"]
    tw = cfg["transformer_width"]
    p_sz = cfg["vision_patch_size"]
    stride = cfg["stride_size"]
    res = cfg["image_resolution"]
    gh = (res - p_sz) // stride + 1
    gw = (res - p_sz) // stride + 1
    num_patches = gh * gw
    bf16 = jnp.bfloat16
    vision_heads = vw // 64

    keys = jax.random.split(key, 8)

    v_attn_std = vw ** -0.5
    v_proj_std = (vw ** -0.5) * ((2 * cfg["vision_layers"]) ** -0.5)
    v_fc_std = (2 * vw) ** -0.5
    t_attn_std = tw ** -0.5
    t_proj_std = (tw ** -0.5) * ((2 * cfg["transformer_layers"]) ** -0.5)
    t_fc_std = (2 * tw) ** -0.5

    vkeys = jax.random.split(keys[0], cfg["vision_layers"])
    tkeys = jax.random.split(keys[1], cfg["transformer_layers"])

    conv1_w = _normal(keys[2], (vw, 3, p_sz, p_sz), 0.02)    # torch layout [O, C, kh, kw]

    visual = {
        "conv1_w_t": conv1_w.reshape(vw, -1).T.astype(bf16),  # [3*p*p, vw]
        "class_embedding": _normal(keys[3], (vw,), vw ** -0.5),
        "pos_embed": _normal(keys[4], (num_patches + 1, vw), vw ** -0.5),
        "ln_pre_g": jnp.ones((vw,), jnp.float32),
        "ln_pre_b": jnp.zeros((vw,), jnp.float32),
        "ln_post_g": jnp.ones((vw,), jnp.float32),
        "ln_post_b": jnp.zeros((vw,), jnp.float32),
        "blocks": [init_block_params(k, vw, vision_heads, v_attn_std, v_proj_std, v_fc_std)
                   for k in vkeys],
        "proj": _normal(keys[5], (vw, cfg["embed_dim"]), vw ** -0.5).astype(bf16),
    }

    params = {
        "visual": visual,
        "token_embedding": _normal(keys[6], (cfg["vocab_size"], tw), 0.02),
        "positional_embedding": _normal(keys[7], (cfg["context_length"], tw), 0.01),
        "text_blocks": [init_block_params(k, tw, cfg["transformer_heads"],
                                          t_attn_std, t_proj_std, t_fc_std)
                        for k in tkeys],
        "ln_final_g": jnp.ones((tw,), jnp.float32),
        "ln_final_b": jnp.zeros((tw,), jnp.float32),
        "text_projection": _normal(jax.random.fold_in(key, 99),
                                   (tw, cfg["embed_dim"]), tw ** -0.5).astype(bf16),
    }
    return params


# ----------------------------- main -----------------------------

if __name__ == "__main__":
    cfg = dict(
        embed_dim=128,
        image_resolution=16,
        vision_layers=2,          # int -> VisionTransformer branch
        vision_width=128,
        vision_patch_size=8,
        stride_size=8,
        context_length=8,
        vocab_size=100,
        transformer_width=128,
        transformer_heads=4,
        transformer_layers=2,
    )
    cfg["vision_heads"] = cfg["vision_width"] // 64   # = 2

    key = jax.random.PRNGKey(0)
    pkey, ikey, tkey = jax.random.split(key, 3)
    params = init_clip_params(pkey, cfg)

    image = jax.random.normal(ikey, (2, 3, cfg["image_resolution"], cfg["image_resolution"]),
                              dtype=jnp.float32)
    text = jax.random.randint(tkey, (2, cfg["context_length"]), 0, cfg["vocab_size"],
                              dtype=jnp.int32)

    fwd = jax.jit(functools.partial(clip_forward, cfg=cfg))
    image_features, text_features = fwd(image, text, params)
    jax.block_until_ready((image_features, text_features))

    # image tokens: 2x2 grid + cls = 5; text tokens: context_length = 8
    assert image_features.shape == (2, 5, cfg["embed_dim"]), image_features.shape
    assert text_features.shape == (2, cfg["context_length"], cfg["embed_dim"]), text_features.shape
    assert bool(jnp.all(jnp.isfinite(image_features)))
    assert bool(jnp.all(jnp.isfinite(text_features)))

    print("KERNEL_OK")
</pallas_src>

<mosaic_0001>
module attributes {stable_mosaic.version = 11 : i64} {
  func.func @_ln_mlp_residual_kernel(%arg0: i32, %arg1: memref<16x128xf32, #tpu.memory_space<vmem>>, %arg2: memref<1x128xf32, #tpu.memory_space<vmem>>, %arg3: memref<1x128xf32, #tpu.memory_space<vmem>>, %arg4: memref<128x512xbf16, #tpu.memory_space<vmem>>, %arg5: memref<1x512xf32, #tpu.memory_space<vmem>>, %arg6: memref<512x128xbf16, #tpu.memory_space<vmem>>, %arg7: memref<1x128xf32, #tpu.memory_space<vmem>>, %arg8: memref<16x128xf32, #tpu.memory_space<vmem>>) attributes {dimension_semantics = [#tpu.dimension_semantics<parallel>], iteration_bounds = array<i64: 1>, scalar_prefetch = 0 : i64, scratch_operands = 0 : i64, tpu.core_type = #tpu.core_type<tc>, window_params = [{transform_indices = @transform_0, window_bounds = array<i64: 16, 128>}, {pipeline_mode = #tpu.pipeline_mode<synchronous>, transform_indices = @transform_1, window_bounds = array<i64: 1, 128>}, {pipeline_mode = #tpu.pipeline_mode<synchronous>, transform_indices = @transform_2, window_bounds = array<i64: 1, 128>}, {pipeline_mode = #tpu.pipeline_mode<synchronous>, transform_indices = @transform_3, window_bounds = array<i64: 128, 512>}, {pipeline_mode = #tpu.pipeline_mode<synchronous>, transform_indices = @transform_4, window_bounds = array<i64: 1, 512>}, {pipeline_mode = #tpu.pipeline_mode<synchronous>, transform_indices = @transform_5, window_bounds = array<i64: 512, 128>}, {pipeline_mode = #tpu.pipeline_mode<synchronous>, transform_indices = @transform_6, window_bounds = array<i64: 1, 128>}, {transform_indices = @transform_7, window_bounds = array<i64: 16, 128>}]} {
    %c0 = arith.constant 0 : index
    %c0_0 = arith.constant 0 : index
    %0 = vector.load %arg1[%c0, %c0_0] : memref<16x128xf32, #tpu.memory_space<vmem>>, vector<16x128xf32>
    %cst = arith.constant dense<0.000000e+00> : vector<16xf32>
    %1 = vector.multi_reduction <add>, %0, %cst [1] : vector<16x128xf32> to vector<16xf32>
    %2 = vector.shape_cast %1 : vector<16xf32> to vector<16x1xf32>
    %cst_1 = arith.constant 1.280000e+02 : f32
    %3 = vector.broadcast %cst_1 : f32 to vector<16x1xf32>
    %4 = arith.divf %2, %3 : vector<16x1xf32>
    %5 = vector.broadcast %4 : vector<16x1xf32> to vector<16x128xf32>
    %6 = arith.subf %0, %5 : vector<16x128xf32>
    %7 = arith.mulf %6, %6 : vector<16x128xf32>
    %cst_2 = arith.constant dense<0.000000e+00> : vector<16xf32>
    %8 = vector.multi_reduction <add>, %7, %cst_2 [1] : vector<16x128xf32> to vector<16xf32>
    %9 = vector.shape_cast %8 : vector<16xf32> to vector<16x1xf32>
    %cst_3 = arith.constant 1.280000e+02 : f32
    %10 = vector.broadcast %cst_3 : f32 to vector<16x1xf32>
    %11 = arith.divf %9, %10 : vector<16x1xf32>
    %cst_4 = arith.constant 9.99999974E-6 : f32
    %12 = vector.broadcast %cst_4 : f32 to vector<16x1xf32>
    %13 = arith.addf %11, %12 : vector<16x1xf32>
    %14 = math.rsqrt %13 : vector<16x1xf32>
    %15 = vector.broadcast %14 : vector<16x1xf32> to vector<16x128xf32>
    %16 = arith.mulf %6, %15 : vector<16x128xf32>
    %c0_5 = arith.constant 0 : index
    %c0_6 = arith.constant 0 : index
    %17 = vector.load %arg2[%c0_5, %c0_6] : memref<1x128xf32, #tpu.memory_space<vmem>>, vector<1x128xf32>
    %18 = vector.broadcast %17 : vector<1x128xf32> to vector<16x128xf32>
    %19 = arith.mulf %16, %18 : vector<16x128xf32>
    %c0_7 = arith.constant 0 : index
    %c0_8 = arith.constant 0 : index
    %20 = vector.load %arg3[%c0_7, %c0_8] : memref<1x128xf32, #tpu.memory_space<vmem>>, vector<1x128xf32>
    %21 = vector.broadcast %20 : vector<1x128xf32> to vector<16x128xf32>
    %22 = arith.addf %19, %21 : vector<16x128xf32>
    %23 = arith.truncf %22 : vector<16x128xf32> to vector<16x128xbf16>
    %c0_9 = arith.constant 0 : index
    %c0_10 = arith.constant 0 : index
    %24 = vector.load %arg4[%c0_9, %c0_10] : memref<128x512xbf16, #tpu.memory_space<vmem>>, vector<128x512xbf16>
    %cst_11 = arith.constant dense<0.000000e+00> : vector<16x512xf32>
    %25 = tpu.matmul %23, %24, %cst_11 {dimension_numbers = #tpu.dot_dimension_numbers<[1], [0], [0], [1], [0, 0, 1, 1], [], []>} : vector<16x128xbf16>, vector<128x512xbf16>, vector<16x512xf32> -> vector<16x512xf32>
    %c0_12 = arith.constant 0 : index
    %c0_13 = arith.constant 0 : index
    %26 = vector.load %arg5[%c0_12, %c0_13] : memref<1x512xf32, #tpu.memory_space<vmem>>, vector<1x512xf32>
    %27 = vector.broadcast %26 : vector<1x512xf32> to vector<16x512xf32>
    %28 = arith.addf %25, %27 : vector<16x512xf32>
    %cst_14 = arith.constant 1.702000e+00 : f32
    %29 = vector.broadcast %cst_14 : f32 to vector<16x512xf32>
    %30 = arith.mulf %29, %28 : vector<16x512xf32>
    %31 = arith.negf %30 : vector<16x512xf32>
    %32 = math.exp %31 : vector<16x512xf32>
    %cst_15 = arith.constant 1.000000e+00 : f32
    %33 = vector.broadcast %cst_15 : f32 to vector<16x512xf32>
    %34 = arith.addf %33, %32 : vector<16x512xf32>
    %35 = arith.divf %33, %34 : vector<16x512xf32>
    %36 = arith.mulf %28, %35 : vector<16x512xf32>
    %37 = arith.truncf %36 : vector<16x512xf32> to vector<16x512xbf16>
    %c0_16 = arith.constant 0 : index
    %c0_17 = arith.constant 0 : index
    %38 = vector.load %arg6[%c0_16, %c0_17] : memref<512x128xbf16, #tpu.memory_space<vmem>>, vector<512x128xbf16>
    %cst_18 = arith.constant dense<0.000000e+00> : vector<16x128xf32>
    %39 = tpu.matmul %37, %38, %cst_18 {dimension_numbers = #tpu.dot_dimension_numbers<[1], [0], [0], [1], [0, 0, 1, 1], [], []>} : vector<16x512xbf16>, vector<512x128xbf16>, vector<16x128xf32> -> vector<16x128xf32>
    %c0_19 = arith.constant 0 : index
    %c0_20 = arith.constant 0 : index
    %40 = vector.load %arg7[%c0_19, %c0_20] : memref<1x128xf32, #tpu.memory_space<vmem>>, vector<1x128xf32>
    %41 = vector.broadcast %40 : vector<1x128xf32> to vector<16x128xf32>
    %42 = arith.addf %39, %41 : vector<16x128xf32>
    %43 = arith.addf %0, %42 : vector<16x128xf32>
    %c0_21 = arith.constant 0 : index
    %c0_22 = arith.constant 0 : index
    %44 = vector.load %arg8[%c0_21, %c0_22] : memref<16x128xf32, #tpu.memory_space<vmem>>, vector<16x128xf32>
    tpu.vector_store %arg8[%c0_21, %c0_22], %43 {strides = array<i32>} : memref<16x128xf32, #tpu.memory_space<vmem>>, vector<16x128xf32>,
    return
  }
  func.func @transform_0(%arg0: i32) -> (i32, i32) {
    %c0_i32 = arith.constant 0 : i32
    %c0_i32_0 = arith.constant 0 : i32
    return %arg0, %c0_i32 : i32, i32
  }
  func.func @transform_1(%arg0: i32) -> (i32, i32) {
    %c0_i32 = arith.constant 0 : i32
    %c0_i32_0 = arith.constant 0 : i32
    %c0_i32_1 = arith.constant 0 : i32
    return %c0_i32, %c0_i32_0 : i32, i32
  }
  func.func @transform_2(%arg0: i32) -> (i32, i32) {
    %c0_i32 = arith.constant 0 : i32
    %c0_i32_0 = arith.constant 0 : i32
    %c0_i32_1 = arith.constant 0 : i32
    return %c0_i32, %c0_i32_0 : i32, i32
  }
  func.func @transform_3(%arg0: i32) -> (i32, i32) {
    %c0_i32 = arith.constant 0 : i32
    %c0_i32_0 = arith.constant 0 : i32
    %c0_i32_1 = arith.constant 0 : i32
    return %c0_i32, %c0_i32_0 : i32, i32
  }
  func.func @transform_4(%arg0: i32) -> (i32, i32) {
    %c0_i32 = arith.constant 0 : i32
    %c0_i32_0 = arith.constant 0 : i32
    %c0_i32_1 = arith.constant 0 : i32
    return %c0_i32, %c0_i32_0 : i32, i32
  }
  func.func @transform_5(%arg0: i32) -> (i32, i32) {
    %c0_i32 = arith.constant 0 : i32
    %c0_i32_0 = arith.constant 0 : i32
    %c0_i32_1 = arith.constant 0 : i32
    return %c0_i32, %c0_i32_0 : i32, i32
  }
  func.func @transform_6(%arg0: i32) -> (i32, i32) {
    %c0_i32 = arith.constant 0 : i32
    %c0_i32_0 = arith.constant 0 : i32
    %c0_i32_1 = arith.constant 0 : i32
    return %c0_i32, %c0_i32_0 : i32, i32
  }
  func.func @transform_7(%arg0: i32) -> (i32, i32) {
    %c0_i32 = arith.constant 0 : i32
    %c0_i32_0 = arith.constant 0 : i32
    return %arg0, %c0_i32 : i32, i32
  }
}

module attributes {stable_mosaic.version = 11 : i64} {
  func.func @_ln_linear_kernel(%arg0: i32, %arg1: memref<16x128xf32, #tpu.memory_space<vmem>>, %arg2: memref<1x128xf32, #tpu.memory_space<vmem>>, %arg3: memref<1x128xf32, #tpu.memory_space<vmem>>, %arg4: memref<128x384xbf16, #tpu.memory_space<vmem>>, %arg5: memref<1x384xf32, #tpu.memory_space<vmem>>, %arg6: memref<16x384xbf16, #tpu.memory_space<vmem>>) attributes {dimension_semantics = [#tpu.dimension_semantics<parallel>], iteration_bounds = array<i64: 1>, scalar_prefetch = 0 : i64, scratch_operands = 0 : i64, tpu.core_type = #tpu.core_type<tc>, window_params = [{transform_indices = @transform_0, window_bounds = array<i64: 16, 128>}, {pipeline_mode = #tpu.pipeline_mode<synchronous>, transform_indices = @transform_1, window_bounds = array<i64: 1, 128>}, {pipeline_mode = #tpu.pipeline_mode<synchronous>, transform_indices = @transform_2, window_bounds = array<i64: 1, 128>}, {pipeline_mode = #tpu.pipeline_mode<synchronous>, transform_indices = @transform_3, window_bounds = array<i64: 128, 384>}, {pipeline_mode = #tpu.pipeline_mode<synchronous>, transform_indices = @transform_4, window_bounds = array<i64: 1, 384>}, {transform_indices = @transform_5, window_bounds = array<i64: 16, 384>}]} {
    %c0 = arith.constant 0 : index
    %c0_0 = arith.constant 0 : index
    %0 = vector.load %arg1[%c0, %c0_0] : memref<16x128xf32, #tpu.memory_space<vmem>>, vector<16x128xf32>
    %cst = arith.constant dense<0.000000e+00> : vector<16xf32>
    %1 = vector.multi_reduction <add>, %0, %cst [1] : vector<16x128xf32> to vector<16xf32>
    %2 = vector.shape_cast %1 : vector<16xf32> to vector<16x1xf32>
    %cst_1 = arith.constant 1.280000e+02 : f32
    %3 = vector.broadcast %cst_1 : f32 to vector<16x1xf32>
    %4 = arith.divf %2, %3 : vector<16x1xf32>
    %5 = vector.broadcast %4 : vector<16x1xf32> to vector<16x128xf32>
    %6 = arith.subf %0, %5 : vector<16x128xf32>
    %7 = arith.mulf %6, %6 : vector<16x128xf32>
    %cst_2 = arith.constant dense<0.000000e+00> : vector<16xf32>
    %8 = vector.multi_reduction <add>, %7, %cst_2 [1] : vector<16x128xf32> to vector<16xf32>
    %9 = vector.shape_cast %8 : vector<16xf32> to vector<16x1xf32>
    %cst_3 = arith.constant 1.280000e+02 : f32
    %10 = vector.broadcast %cst_3 : f32 to vector<16x1xf32>
    %11 = arith.divf %9, %10 : vector<16x1xf32>
    %cst_4 = arith.constant 9.99999974E-6 : f32
    %12 = vector.broadcast %cst_4 : f32 to vector<16x1xf32>
    %13 = arith.addf %11, %12 : vector<16x1xf32>
    %14 = math.rsqrt %13 : vector<16x1xf32>
    %15 = vector.broadcast %14 : vector<16x1xf32> to vector<16x128xf32>
    %16 = arith.mulf %6, %15 : vector<16x128xf32>
    %c0_5 = arith.constant 0 : index
    %c0_6 = arith.constant 0 : index
    %17 = vector.load %arg2[%c0_5, %c0_6] : memref<1x128xf32, #tpu.memory_space<vmem>>, vector<1x128xf32>
    %18 = vector.broadcast %17 : vector<1x128xf32> to vector<16x128xf32>
    %19 = arith.mulf %16, %18 : vector<16x128xf32>
    %c0_7 = arith.constant 0 : index
    %c0_8 = arith.constant 0 : index
    %20 = vector.load %arg3[%c0_7, %c0_8] : memref<1x128xf32, #tpu.memory_space<vmem>>, vector<1x128xf32>
    %21 = vector.broadcast %20 : vector<1x128xf32> to vector<16x128xf32>
    %22 = arith.addf %19, %21 : vector<16x128xf32>
    %23 = arith.truncf %22 : vector<16x128xf32> to vector<16x128xbf16>
    %c0_9 = arith.constant 0 : index
    %c0_10 = arith.constant 0 : index
    %24 = vector.load %arg4[%c0_9, %c0_10] : memref<128x384xbf16, #tpu.memory_space<vmem>>, vector<128x384xbf16>
    %cst_11 = arith.constant dense<0.000000e+00> : vector<16x384xf32>
    %25 = tpu.matmul %23, %24, %cst_11 {dimension_numbers = #tpu.dot_dimension_numbers<[1], [0], [0], [1], [0, 0, 1, 1], [], []>} : vector<16x128xbf16>, vector<128x384xbf16>, vector<16x384xf32> -> vector<16x384xf32>
    %c0_12 = arith.constant 0 : index
    %c0_13 = arith.constant 0 : index
    %26 = vector.load %arg5[%c0_12, %c0_13] : memref<1x384xf32, #tpu.memory_space<vmem>>, vector<1x384xf32>
    %27 = vector.broadcast %26 : vector<1x384xf32> to vector<16x384xf32>
    %28 = arith.addf %25, %27 : vector<16x384xf32>
    %29 = arith.truncf %28 : vector<16x384xf32> to vector<16x384xbf16>
    %c0_14 = arith.constant 0 : index
    %c0_15 = arith.constant 0 : index
    %30 = vector.load %arg6[%c0_14, %c0_15] : memref<16x384xbf16, #tpu.memory_space<vmem>>, vector<16x384xbf16>
    tpu.vector_store %arg6[%c0_14, %c0_15], %29 {strides = array<i32>} : memref<16x384xbf16, #tpu.memory_space<vmem>>, vector<16x384xbf16>,
    return
  }
  func.func @transform_0(%arg0: i32) -> (i32, i32) {
    %c0_i32 = arith.constant 0 : i32
    %c0_i32_0 = arith.constant 0 : i32
    return %arg0, %c0_i32 : i32, i32
  }
  func.func @transform_1(%arg0: i32) -> (i32, i32) {
    %c0_i32 = arith.constant 0 : i32
    %c0_i32_0 = arith.constant 0 : i32
    %c0_i32_1 = arith.constant 0 : i32
    return %c0_i32, %c0_i32_0 : i32, i32
  }
  func.func @transform_2(%arg0: i32) -> (i32, i32) {
    %c0_i32 = arith.constant 0 : i32
    %c0_i32_0 = arith.constant 0 : i32
    %c0_i32_1 = arith.constant 0 : i32
    return %c0_i32, %c0_i32_0 : i32, i32
  }
  func.func @transform_3(%arg0: i32) -> (i32, i32) {
    %c0_i32 = arith.constant 0 : i32
    %c0_i32_0 = arith.constant 0 : i32
    %c0_i32_1 = arith.constant 0 : i32
    return %c0_i32, %c0_i32_0 : i32, i32
  }
  func.func @transform_4(%arg0: i32) -> (i32, i32) {
    %c0_i32 = arith.constant 0 : i32
    %c0_i32_0 = arith.constant 0 : i32
    %c0_i32_1 = arith.constant 0 : i32
    return %c0_i32, %c0_i32_0 : i32, i32
  }
  func.func @transform_5(%arg0: i32) -> (i32, i32) {
    %c0_i32 = arith.constant 0 : i32
    %c0_i32_0 = arith.constant 0 : i32
    return %arg0, %c0_i32 : i32, i32
  }
}

module attributes {stable_mosaic.version = 11 : i64} {
  func.func @_attn_out_residual_kernel(%arg0: i32, %arg1: memref<1x8x384xbf16, #tpu.memory_space<vmem>>, %arg2: memref<128x128xbf16, #tpu.memory_space<vmem>>, %arg3: memref<1x128xf32, #tpu.memory_space<vmem>>, %arg4: memref<1x8x128xf32, #tpu.memory_space<vmem>>, %arg5: memref<1x8x128xf32, #tpu.memory_space<vmem>>) attributes {dimension_semantics = [#tpu.dimension_semantics<parallel>], iteration_bounds = array<i64: 2>, scalar_prefetch = 0 : i64, scratch_operands = 0 : i64, tpu.core_type = #tpu.core_type<tc>, window_params = [{transform_indices = @transform_0, window_bounds = array<i64: 1, 8, 384>}, {pipeline_mode = #tpu.pipeline_mode<synchronous>, transform_indices = @transform_1, window_bounds = array<i64: 128, 128>}, {pipeline_mode = #tpu.pipeline_mode<synchronous>, transform_indices = @transform_2, window_bounds = array<i64: 1, 128>}, {transform_indices = @transform_3, window_bounds = array<i64: 1, 8, 128>}, {transform_indices = @transform_4, window_bounds = array<i64: 1, 8, 128>}]} {
    %c0 = arith.constant 0 : index
    %c0_0 = arith.constant 0 : index
    %c0_1 = arith.constant 0 : index
    %0 = vector.load %arg1[%c0, %c0_0, %c0_1] : memref<1x8x384xbf16, #tpu.memory_space<vmem>>, vector<1x8x384xbf16>
    %1 = vector.shape_cast %0 : vector<1x8x384xbf16> to vector<8x384xbf16>
    %2 = tpu.iota {dimensions = array<i32: 1>} : vector<8x8xi32>
    %c8_i32 = arith.constant 8 : i32
    %3 = vector.broadcast %c8_i32 : i32 to vector<8x8xi32>
    %4 = arith.cmpi slt, %2, %3 : vector<8x8xi32>
    %5 = tpu.iota {dimensions = array<i32: 0>} : vector<8x8xi32>
    %6 = arith.cmpi sle, %2, %5 : vector<8x8xi32>
    %7 = arith.andi %4, %6 : vector<8x8xi1>
    %cst = arith.constant 0.000000e+00 : f32
    %cst_2 = arith.constant -1.000000e+30 : f32
    %8 = vector.broadcast %cst : f32 to vector<8x8xf32>
    %9 = vector.broadcast %cst_2 : f32 to vector<8x8xf32>
    %10 = arith.select %7, %8, %9 : vector<8x8xi1>, vector<8x8xf32>
    %c0_3 = arith.constant 0 : index
    %c0_4 = arith.constant 0 : index
    %c0_5 = arith.constant 0 : index
    %11 = vector.load %arg4[%c0_3, %c0_4, %c0_5] : memref<1x8x128xf32, #tpu.memory_space<vmem>>, vector<1x8x128xf32>
    %12 = vector.shape_cast %11 : vector<1x8x128xf32> to vector<8x128xf32>
    %c0_6 = arith.constant 0 : index
    %c0_7 = arith.constant 0 : index
    %13 = vector.load %arg3[%c0_6, %c0_7] : memref<1x128xf32, #tpu.memory_space<vmem>>, vector<1x128xf32>
    %14 = vector.broadcast %13 : vector<1x128xf32> to vector<8x128xf32>
    %15 = arith.addf %12, %14 : vector<8x128xf32>
    %16 = vector.extract_strided_slice %1 {offsets = [0, 0], sizes = [8, 32], strides = [1, 1]} : vector<8x384xbf16> to vector<8x32xbf16>
    %17 = vector.extract_strided_slice %1 {offsets = [0, 128], sizes = [8, 32], strides = [1, 1]} : vector<8x384xbf16> to vector<8x32xbf16>
    %18 = vector.extract_strided_slice %1 {offsets = [0, 256], sizes = [8, 32], strides = [1, 1]} : vector<8x384xbf16> to vector<8x32xbf16>
    %cst_8 = arith.constant dense<0.000000e+00> : vector<8x8xf32>
    %19 = tpu.matmul %16, %17, %cst_8 {dimension_numbers = #tpu.dot_dimension_numbers<[1], [1], [0], [0], [0, 0, 1, 0], [], []>} : vector<8x32xbf16>, vector<8x32xbf16>, vector<8x8xf32> -> vector<8x8xf32>
    %20 = arith.addf %19, %10 : vector<8x8xf32>
    %cst_9 = arith.constant dense<0xFF800000> : vector<8xf32>
    %21 = vector.multi_reduction <maximumf>, %20, %cst_9 [1] : vector<8x8xf32> to vector<8xf32>
    %22 = vector.shape_cast %21 : vector<8xf32> to vector<8x1xf32>
    %23 = vector.broadcast %22 : vector<8x1xf32> to vector<8x8xf32>
    %24 = arith.subf %20, %23 : vector<8x8xf32>
    %25 = math.exp %24 : vector<8x8xf32>
    %cst_10 = arith.constant dense<0.000000e+00> : vector<8xf32>
    %26 = vector.multi_reduction <add>, %25, %cst_10 [1] : vector<8x8xf32> to vector<8xf32>
    %27 = vector.shape_cast %26 : vector<8xf32> to vector<8x1xf32>
    %28 = tpu.reciprocal %27 {approx = true} : vector<8x1xf32> -> vector<8x1xf32>
    %29 = vector.broadcast %28 : vector<8x1xf32> to vector<8x8xf32>
    %30 = arith.mulf %25, %29 : vector<8x8xf32>
    %31 = arith.truncf %30 : vector<8x8xf32> to vector<8x8xbf16>
    %cst_11 = arith.constant dense<0.000000e+00> : vector<8x32xf32>
    %32 = tpu.matmul %31, %18, %cst_11 {dimension_numbers = #tpu.dot_dimension_numbers<[1], [0], [0], [1], [0, 0, 1, 1], [], []>} : vector<8x8xbf16>, vector<8x32xbf16>, vector<8x32xf32> -> vector<8x32xf32>
    %33 = arith.truncf %32 : vector<8x32xf32> to vector<8x32xbf16>
    %c0_12 = arith.constant 0 : index
    %c0_13 = arith.constant 0 : index
    %34 = vector.load %arg2[%c0_12, %c0_13] : memref<128x128xbf16, #tpu.memory_space<vmem>>, vector<32x128xbf16>
    %cst_14 = arith.constant dense<0.000000e+00> : vector<8x128xf32>
    %35 = tpu.matmul %33, %34, %cst_14 {dimension_numbers = #tpu.dot_dimension_numbers<[1], [0], [0], [1], [0, 0, 1, 1], [], []>} : vector<8x32xbf16>, vector<32x128xbf16>, vector<8x128xf32> -> vector<8x128xf32>
    %36 = arith.addf %15, %35 : vector<8x128xf32>
    %37 = vector.extract_strided_slice %1 {offsets = [0, 32], sizes = [8, 32], strides = [1, 1]} : vector<8x384xbf16> to vector<8x32xbf16>
    %38 = vector.extract_strided_slice %1 {offsets = [0, 160], sizes = [8, 32], strides = [1, 1]} : vector<8x384xbf16> to vector<8x32xbf16>
    %39 = vector.extract_strided_slice %1 {offsets = [0, 288], sizes = [8, 32], strides = [1, 1]} : vector<8x384xbf16> to vector<8x32xbf16>
    %cst_15 = arith.constant dense<0.000000e+00> : vector<8x8xf32>
    %40 = tpu.matmul %37, %38, %cst_15 {dimension_numbers = #tpu.dot_dimension_numbers<[1], [1], [0], [0], [0, 0, 1, 0], [], []>} : vector<8x32xbf16>, vector<8x32xbf16>, vector<8x8xf32> -> vector<8x8xf32>
    %41 = arith.addf %40, %10 : vector<8x8xf32>
    %cst_16 = arith.constant dense<0xFF800000> : vector<8xf32>
    %42 = vector.multi_reduction <maximumf>, %41, %cst_16 [1] : vector<8x8xf32> to vector<8xf32>
    %43 = vector.shape_cast %42 : vector<8xf32> to vector<8x1xf32>
    %44 = vector.broadcast %43 : vector<8x1xf32> to vector<8x8xf32>
    %45 = arith.subf %41, %44 : vector<8x8xf32>
    %46 = math.exp %45 : vector<8x8xf32>
    %cst_17 = arith.constant dense<0.000000e+00> : vector<8xf32>
    %47 = vector.multi_reduction <add>, %46, %cst_17 [1] : vector<8x8xf32> to vector<8xf32>
    %48 = vector.shape_cast %47 : vector<8xf32> to vector<8x1xf32>
    %49 = tpu.reciprocal %48 {approx = true} : vector<8x1xf32> -> vector<8x1xf32>
    %50 = vector.broadcast %49 : vector<8x1xf32> to vector<8x8xf32>
    %51 = arith.mulf %46, %50 : vector<8x8xf32>
    %52 = arith.truncf %51 : vector<8x8xf32> to vector<8x8xbf16>
    %cst_18 = arith.constant dense<0.000000e+00> : vector<8x32xf32>
    %53 = tpu.matmul %52, %39, %cst_18 {dimension_numbers = #tpu.dot_dimension_numbers<[1], [0], [0], [1], [0, 0, 1, 1], [], []>} : vector<8x8xbf16>, vector<8x32xbf16>, vector<8x32xf32> -> vector<8x32xf32>
    %54 = arith.truncf %53 : vector<8x32xf32> to vector<8x32xbf16>
    %c32 = arith.constant 32 : index
    %c0_19 = arith.constant 0 : index
    %55 = vector.load %arg2[%c32, %c0_19] : memref<128x128xbf16, #tpu.memory_space<vmem>>, vector<32x128xbf16>
    %cst_20 = arith.constant dense<0.000000e+00> : vector<8x128xf32>
    %56 = tpu.matmul %54, %55, %cst_20 {dimension_numbers = #tpu.dot_dimension_numbers<[1], [0], [0], [1], [0, 0, 1, 1], [], []>} : vector<8x32xbf16>, vector<32x128xbf16>, vector<8x128xf32> -> vector<8x128xf32>
    %57 = arith.addf %36, %56 : vector<8x128xf32>
    %58 = vector.extract_strided_slice %1 {offsets = [0, 64], sizes = [8, 32], strides = [1, 1]} : vector<8x384xbf16> to vector<8x32xbf16>
    %59 = vector.extract_strided_slice %1 {offsets = [0, 192], sizes = [8, 32], strides = [1, 1]} : vector<8x384xbf16> to vector<8x32xbf16>
    %60 = vector.extract_strided_slice %1 {offsets = [0, 320], sizes = [8, 32], strides = [1, 1]} : vector<8x384xbf16> to vector<8x32xbf16>
    %cst_21 = arith.constant dense<0.000000e+00> : vector<8x8xf32>
    %61 = tpu.matmul %58, %59, %cst_21 {dimension_numbers = #tpu.dot_dimension_numbers<[1], [1], [0], [0], [0, 0, 1, 0], [], []>} : vector<8x32xbf16>, vector<8x32xbf16>, vector<8x8xf32> -> vector<8x8xf32>
    %62 = arith.addf %61, %10 : vector<8x8xf32>
    %cst_22 = arith.constant dense<0xFF800000> : vector<8xf32>
    %63 = vector.multi_reduction <maximumf>, %62, %cst_22 [1] : vector<8x8xf32> to vector<8xf32>
    %64 = vector.shape_cast %63 : vector<8xf32> to vector<8x1xf32>
    %65 = vector.broadcast %64 : vector<8x1xf32> to vector<8x8xf32>
    %66 = arith.subf %62, %65 : vector<8x8xf32>
    %67 = math.exp %66 : vector<8x8xf32>
    %cst_23 = arith.constant dense<0.000000e+00> : vector<8xf32>
    %68 = vector.multi_reduction <add>, %67, %cst_23 [1] : vector<8x8xf32> to vector<8xf32>
    %69 = vector.shape_cast %68 : vector<8xf32> to vector<8x1xf32>
    %70 = tpu.reciprocal %69 {approx = true} : vector<8x1xf32> -> vector<8x1xf32>
    %71 = vector.broadcast %70 : vector<8x1xf32> to vector<8x8xf32>
    %72 = arith.mulf %67, %71 : vector<8x8xf32>
    %73 = arith.truncf %72 : vector<8x8xf32> to vector<8x8xbf16>
    %cst_24 = arith.constant dense<0.000000e+00> : vector<8x32xf32>
    %74 = tpu.matmul %73, %60, %cst_24 {dimension_numbers = #tpu.dot_dimension_numbers<[1], [0], [0], [1], [0, 0, 1, 1], [], []>} : vector<8x8xbf16>, vector<8x32xbf16>, vector<8x32xf32> -> vector<8x32xf32>
    %75 = arith.truncf %74 : vector<8x32xf32> to vector<8x32xbf16>
    %c64 = arith.constant 64 : index
    %c0_25 = arith.constant 0 : index
    %76 = vector.load %arg2[%c64, %c0_25] : memref<128x128xbf16, #tpu.memory_space<vmem>>, vector<32x128xbf16>
    %cst_26 = arith.constant dense<0.000000e+00> : vector<8x128xf32>
    %77 = tpu.matmul %75, %76, %cst_26 {dimension_numbers = #tpu.dot_dimension_numbers<[1], [0], [0], [1], [0, 0, 1, 1], [], []>} : vector<8x32xbf16>, vector<32x128xbf16>, vector<8x128xf32> -> vector<8x128xf32>
    %78 = arith.addf %57, %77 : vector<8x128xf32>
    %79 = vector.extract_strided_slice %1 {offsets = [0, 96], sizes = [8, 32], strides = [1, 1]} : vector<8x384xbf16> to vector<8x32xbf16>
    %80 = vector.extract_strided_slice %1 {offsets = [0, 224], sizes = [8, 32], strides = [1, 1]} : vector<8x384xbf16> to vector<8x32xbf16>
    %81 = vector.extract_strided_slice %1 {offsets = [0, 352], sizes = [8, 32], strides = [1, 1]} : vector<8x384xbf16> to vector<8x32xbf16>
    %cst_27 = arith.constant dense<0.000000e+00> : vector<8x8xf32>
    %82 = tpu.matmul %79, %80, %cst_27 {dimension_numbers = #tpu.dot_dimension_numbers<[1], [1], [0], [0], [0, 0, 1, 0], [], []>} : vector<8x32xbf16>, vector<8x32xbf16>, vector<8x8xf32> -> vector<8x8xf32>
    %83 = arith.addf %82, %10 : vector<8x8xf32>
    %cst_28 = arith.constant dense<0xFF800000> : vector<8xf32>
    %84 = vector.multi_reduction <maximumf>, %83, %cst_28 [1] : vector<8x8xf32> to vector<8xf32>
    %85 = vector.shape_cast %84 : vector<8xf32> to vector<8x1xf32>
    %86 = vector.broadcast %85 : vector<8x1xf32> to vector<8x8xf32>
    %87 = arith.subf %83, %86 : vector<8x8xf32>
    %88 = math.exp %87 : vector<8x8xf32>
    %cst_29 = arith.constant dense<0.000000e+00> : vector<8xf32>
    %89 = vector.multi_reduction <add>, %88, %cst_29 [1] : vector<8x8xf32> to vector<8xf32>
    %90 = vector.shape_cast %89 : vector<8xf32> to vector<8x1xf32>
    %91 = tpu.reciprocal %90 {approx = true} : vector<8x1xf32> -> vector<8x1xf32>
    %92 = vector.broadcast %91 : vector<8x1xf32> to vector<8x8xf32>
    %93 = arith.mulf %88, %92 : vector<8x8xf32>
    %94 = arith.truncf %93 : vector<8x8xf32> to vector<8x8xbf16>
    %cst_30 = arith.constant dense<0.000000e+00> : vector<8x32xf32>
    %95 = tpu.matmul %94, %81, %cst_30 {dimension_numbers = #tpu.dot_dimension_numbers<[1], [0], [0], [1], [0, 0, 1, 1], [], []>} : vector<8x8xbf16>, vector<8x32xbf16>, vector<8x32xf32> -> vector<8x32xf32>
    %96 = arith.truncf %95 : vector<8x32xf32> to vector<8x32xbf16>
    %c96 = arith.constant 96 : index
    %c0_31 = arith.constant 0 : index
    %97 = vector.load %arg2[%c96, %c0_31] : memref<128x128xbf16, #tpu.memory_space<vmem>>, vector<32x128xbf16>
    %cst_32 = arith.constant dense<0.000000e+00> : vector<8x128xf32>
    %98 = tpu.matmul %96, %97, %cst_32 {dimension_numbers = #tpu.dot_dimension_numbers<[1], [0], [0], [1], [0, 0, 1, 1], [], []>} : vector<8x32xbf16>, vector<32x128xbf16>, vector<8x128xf32> -> vector<8x128xf32>
    %99 = arith.addf %78, %98 : vector<8x128xf32>
    %c0_33 = arith.constant 0 : index
    %c0_34 = arith.constant 0 : index
    %c0_35 = arith.constant 0 : index
    %100 = vector.load %arg5[%c0_33, %c0_34, %c0_35] : memref<1x8x128xf32, #tpu.memory_space<vmem>>, vector<1x8x128xf32>
    %101 = vector.shape_cast %100 : vector<1x8x128xf32> to vector<8x128xf32>
    %102 = vector.shape_cast %99 : vector<8x128xf32> to vector<1x8x128xf32>
    tpu.vector_store %arg5[%c0_33, %c0_34, %c0_35], %102 {strides = array<i32>} : memref<1x8x128xf32, #tpu.memory_space<vmem>>, vector<1x8x128xf32>,
    return
  }
  func.func @transform_0(%arg0: i32) -> (i32, i32, i32) {
    %c0_i32 = arith.constant 0 : i32
    %c0_i32_0 = arith.constant 0 : i32
    %c0_i32_1 = arith.constant 0 : i32
    return %arg0, %c0_i32, %c0_i32_0 : i32, i32, i32
  }
  func.func @transform_1(%arg0: i32) -> (i32, i32) {
    %c0_i32 = arith.constant 0 : i32
    %c0_i32_0 = arith.constant 0 : i32
    %c0_i32_1 = arith.constant 0 : i32
    return %c0_i32, %c0_i32_0 : i32, i32
  }
  func.func @transform_2(%arg0: i32) -> (i32, i32) {
    %c0_i32 = arith.constant 0 : i32
    %c0_i32_0 = arith.constant 0 : i32
    %c0_i32_1 = arith.constant 0 : i32
    return %c0_i32, %c0_i32_0 : i32, i32
  }
  func.func @transform_3(%arg0: i32) -> (i32, i32, i32) {
    %c0_i32 = arith.constant 0 : i32
    %c0_i32_0 = arith.constant 0 : i32
    %c0_i32_1 = arith.constant 0 : i32
    return %arg0, %c0_i32, %c0_i32_0 : i32, i32, i32
  }
  func.func @transform_4(%arg0: i32) -> (i32, i32, i32) {
    %c0_i32 = arith.constant 0 : i32
    %c0_i32_0 = arith.constant 0 : i32
    %c0_i32_1 = arith.constant 0 : i32
    return %arg0, %c0_i32, %c0_i32_0 : i32, i32, i32
  }
}

module attributes {stable_mosaic.version = 11 : i64} {
  func.func @_ln_linear_kernel(%arg0: i32, %arg1: memref<16x128xf32, #tpu.memory_space<vmem>>, %arg2: memref<1x128xf32, #tpu.memory_space<vmem>>, %arg3: memref<1x128xf32, #tpu.memory_space<vmem>>, %arg4: memref<128x384xbf16, #tpu.memory_space<vmem>>, %arg5: memref<1x384xf32, #tpu.memory_space<vmem>>, %arg6: memref<16x384xbf16, #tpu.memory_space<vmem>>) attributes {dimension_semantics = [#tpu.dimension_semantics<parallel>], iteration_bounds = array<i64: 1>, scalar_prefetch = 0 : i64, scratch_operands = 0 : i64, tpu.core_type = #tpu.core_type<tc>, window_params = [{transform_indices = @transform_0, window_bounds = array<i64: 16, 128>}, {pipeline_mode = #tpu.pipeline_mode<synchronous>, transform_indices = @transform_1, window_bounds = array<i64: 1, 128>}, {pipeline_mode = #tpu.pipeline_mode<synchronous>, transform_indices = @transform_2, window_bounds = array<i64: 1, 128>}, {pipeline_mode = #tpu.pipeline_mode<synchronous>, transform_indices = @transform_3, window_bounds = array<i64: 128, 384>}, {pipeline_mode = #tpu.pipeline_mode<synchronous>, transform_indices = @transform_4, window_bounds = array<i64: 1, 384>}, {transform_indices = @transform_5, window_bounds = array<i64: 16, 384>}]} {
    %c0 = arith.constant 0 : index
    %c0_0 = arith.constant 0 : index
    %0 = vector.load %arg1[%c0, %c0_0] : memref<16x128xf32, #tpu.memory_space<vmem>>, vector<16x128xf32>
    %cst = arith.constant dense<0.000000e+00> : vector<16xf32>
    %1 = vector.multi_reduction <add>, %0, %cst [1] : vector<16x128xf32> to vector<16xf32>
    %2 = vector.shape_cast %1 : vector<16xf32> to vector<16x1xf32>
    %cst_1 = arith.constant 1.280000e+02 : f32
    %3 = vector.broadcast %cst_1 : f32 to vector<16x1xf32>
    %4 = arith.divf %2, %3 : vector<16x1xf32>
    %5 = vector.broadcast %4 : vector<16x1xf32> to vector<16x128xf32>
    %6 = arith.subf %0, %5 : vector<16x128xf32>
    %7 = arith.mulf %6, %6 : vector<16x128xf32>
    %cst_2 = arith.constant dense<0.000000e+00> : vector<16xf32>
    %8 = vector.multi_reduction <add>, %7, %cst_2 [1] : vector<16x128xf32> to vector<16xf32>
    %9 = vector.shape_cast %8 : vector<16xf32> to vector<16x1xf32>
    %cst_3 = arith.constant 1.280000e+02 : f32
    %10 = vector.broadcast %cst_3 : f32 to vector<16x1xf32>
    %11 = arith.divf %9, %10 : vector<16x1xf32>
    %cst_4 = arith.constant 9.99999974E-6 : f32
    %12 = vector.broadcast %cst_4 : f32 to vector<16x1xf32>
    %13 = arith.addf %11, %12 : vector<16x1xf32>
    %14 = math.rsqrt %13 : vector<16x1xf32>
    %15 = vector.broadcast %14 : vector<16x1xf32> to vector<16x128xf32>
    %16 = arith.mulf %6, %15 : vector<16x128xf32>
    %c0_5 = arith.constant 0 : index
    %c0_6 = arith.constant 0 : index
    %17 = vector.load %arg2[%c0_5, %c0_6] : memref<1x128xf32, #tpu.memory_space<vmem>>, vector<1x128xf32>
    %18 = vector.broadcast %17 : vector<1x128xf32> to vector<16x128xf32>
    %19 = arith.mulf %16, %18 : vector<16x128xf32>
    %c0_7 = arith.constant 0 : index
    %c0_8 = arith.constant 0 : index
    %20 = vector.load %arg3[%c0_7, %c0_8] : memref<1x128xf32, #tpu.memory_space<vmem>>, vector<1x128xf32>
    %21 = vector.broadcast %20 : vector<1x128xf32> to vector<16x128xf32>
    %22 = arith.addf %19, %21 : vector<16x128xf32>
    %23 = arith.truncf %22 : vector<16x128xf32> to vector<16x128xbf16>
    %c0_9 = arith.constant 0 : index
    %c0_10 = arith.constant 0 : index
    %24 = vector.load %arg4[%c0_9, %c0_10] : memref<128x384xbf16, #tpu.memory_space<vmem>>, vector<128x384xbf16>
    %cst_11 = arith.constant dense<0.000000e+00> : vector<16x384xf32>
    %25 = tpu.matmul %23, %24, %cst_11 {dimension_numbers = #tpu.dot_dimension_numbers<[1], [0], [0], [1], [0, 0, 1, 1], [], []>} : vector<16x128xbf16>, vector<128x384xbf16>, vector<16x384xf32> -> vector<16x384xf32>
    %c0_12 = arith.constant 0 : index
    %c0_13 = arith.constant 0 : index
    %26 = vector.load %arg5[%c0_12, %c0_13] : memref<1x384xf32, #tpu.memory_space<vmem>>, vector<1x384xf32>
    %27 = vector.broadcast %26 : vector<1x384xf32> to vector<16x384xf32>
    %28 = arith.addf %25, %27 : vector<16x384xf32>
    %29 = arith.truncf %28 : vector<16x384xf32> to vector<16x384xbf16>
    %c0_14 = arith.constant 0 : index
    %c0_15 = arith.constant 0 : index
    %30 = vector.load %arg6[%c0_14, %c0_15] : memref<16x384xbf16, #tpu.memory_space<vmem>>, vector<16x384xbf16>
    tpu.vector_store %arg6[%c0_14, %c0_15], %29 {strides = array<i32>} : memref<16x384xbf16, #tpu.memory_space<vmem>>, vector<16x384xbf16>,
    return
  }
  func.func @transform_0(%arg0: i32) -> (i32, i32) {
    %c0_i32 = arith.constant 0 : i32
    %c0_i32_0 = arith.constant 0 : i32
    return %arg0, %c0_i32 : i32, i32
  }
  func.func @transform_1(%arg0: i32) -> (i32, i32) {
    %c0_i32 = arith.constant 0 : i32
    %c0_i32_0 = arith.constant 0 : i32
    %c0_i32_1 = arith.constant 0 : i32
    return %c0_i32, %c0_i32_0 : i32, i32
  }
  func.func @transform_2(%arg0: i32) -> (i32, i32) {
    %c0_i32 = arith.constant 0 : i32
    %c0_i32_0 = arith.constant 0 : i32
    %c0_i32_1 = arith.constant 0 : i32
    return %c0_i32, %c0_i32_0 : i32, i32
  }
  func.func @transform_3(%arg0: i32) -> (i32, i32) {
    %c0_i32 = arith.constant 0 : i32
    %c0_i32_0 = arith.constant 0 : i32
    %c0_i32_1 = arith.constant 0 : i32
    return %c0_i32, %c0_i32_0 : i32, i32
  }
  func.func @transform_4(%arg0: i32) -> (i32, i32) {
    %c0_i32 = arith.constant 0 : i32
    %c0_i32_0 = arith.constant 0 : i32
    %c0_i32_1 = arith.constant 0 : i32
    return %c0_i32, %c0_i32_0 : i32, i32
  }
  func.func @transform_5(%arg0: i32) -> (i32, i32) {
    %c0_i32 = arith.constant 0 : i32
    %c0_i32_0 = arith.constant 0 : i32
    return %arg0, %c0_i32 : i32, i32
  }
}

module attributes {stable_mosaic.version = 11 : i64} {
  func.func @_ln_mlp_residual_kernel(%arg0: i32, %arg1: memref<16x128xf32, #tpu.memory_space<vmem>>, %arg2: memref<1x128xf32, #tpu.memory_space<vmem>>, %arg3: memref<1x128xf32, #tpu.memory_space<vmem>>, %arg4: memref<128x512xbf16, #tpu.memory_space<vmem>>, %arg5: memref<1x512xf32, #tpu.memory_space<vmem>>, %arg6: memref<512x128xbf16, #tpu.memory_space<vmem>>, %arg7: memref<1x128xf32, #tpu.memory_space<vmem>>, %arg8: memref<16x128xf32, #tpu.memory_space<vmem>>) attributes {dimension_semantics = [#tpu.dimension_semantics<parallel>], iteration_bounds = array<i64: 1>, scalar_prefetch = 0 : i64, scratch_operands = 0 : i64, tpu.core_type = #tpu.core_type<tc>, window_params = [{transform_indices = @transform_0, window_bounds = array<i64: 16, 128>}, {pipeline_mode = #tpu.pipeline_mode<synchronous>, transform_indices = @transform_1, window_bounds = array<i64: 1, 128>}, {pipeline_mode = #tpu.pipeline_mode<synchronous>, transform_indices = @transform_2, window_bounds = array<i64: 1, 128>}, {pipeline_mode = #tpu.pipeline_mode<synchronous>, transform_indices = @transform_3, window_bounds = array<i64: 128, 512>}, {pipeline_mode = #tpu.pipeline_mode<synchronous>, transform_indices = @transform_4, window_bounds = array<i64: 1, 512>}, {pipeline_mode = #tpu.pipeline_mode<synchronous>, transform_indices = @transform_5, window_bounds = array<i64: 512, 128>}, {pipeline_mode = #tpu.pipeline_mode<synchronous>, transform_indices = @transform_6, window_bounds = array<i64: 1, 128>}, {transform_indices = @transform_7, window_bounds = array<i64: 16, 128>}]} {
    %c0 = arith.constant 0 : index
    %c0_0 = arith.constant 0 : index
    %0 = vector.load %arg1[%c0, %c0_0] : memref<16x128xf32, #tpu.memory_space<vmem>>, vector<16x128xf32>
    %cst = arith.constant dense<0.000000e+00> : vector<16xf32>
    %1 = vector.multi_reduction <add>, %0, %cst [1] : vector<16x128xf32> to vector<16xf32>
    %2 = vector.shape_cast %1 : vector<16xf32> to vector<16x1xf32>
    %cst_1 = arith.constant 1.280000e+02 : f32
    %3 = vector.broadcast %cst_1 : f32 to vector<16x1xf32>
    %4 = arith.divf %2, %3 : vector<16x1xf32>
    %5 = vector.broadcast %4 : vector<16x1xf32> to vector<16x128xf32>
    %6 = arith.subf %0, %5 : vector<16x128xf32>
    %7 = arith.mulf %6, %6 : vector<16x128xf32>
    %cst_2 = arith.constant dense<0.000000e+00> : vector<16xf32>
    %8 = vector.multi_reduction <add>, %7, %cst_2 [1] : vector<16x128xf32> to vector<16xf32>
    %9 = vector.shape_cast %8 : vector<16xf32> to vector<16x1xf32>
    %cst_3 = arith.constant 1.280000e+02 : f32
    %10 = vector.broadcast %cst_3 : f32 to vector<16x1xf32>
    %11 = arith.divf %9, %10 : vector<16x1xf32>
    %cst_4 = arith.constant 9.99999974E-6 : f32
    %12 = vector.broadcast %cst_4 : f32 to vector<16x1xf32>
    %13 = arith.addf %11, %12 : vector<16x1xf32>
    %14 = math.rsqrt %13 : vector<16x1xf32>
    %15 = vector.broadcast %14 : vector<16x1xf32> to vector<16x128xf32>
    %16 = arith.mulf %6, %15 : vector<16x128xf32>
    %c0_5 = arith.constant 0 : index
    %c0_6 = arith.constant 0 : index
    %17 = vector.load %arg2[%c0_5, %c0_6] : memref<1x128xf32, #tpu.memory_space<vmem>>, vector<1x128xf32>
    %18 = vector.broadcast %17 : vector<1x128xf32> to vector<16x128xf32>
    %19 = arith.mulf %16, %18 : vector<16x128xf32>
    %c0_7 = arith.constant 0 : index
    %c0_8 = arith.constant 0 : index
    %20 = vector.load %arg3[%c0_7, %c0_8] : memref<1x128xf32, #tpu.memory_space<vmem>>, vector<1x128xf32>
    %21 = vector.broadcast %20 : vector<1x128xf32> to vector<16x128xf32>
    %22 = arith.addf %19, %21 : vector<16x128xf32>
    %23 = arith.truncf %22 : vector<16x128xf32> to vector<16x128xbf16>
    %c0_9 = arith.constant 0 : index
    %c0_10 = arith.constant 0 : index
    %24 = vector.load %arg4[%c0_9, %c0_10] : memref<128x512xbf16, #tpu.memory_space<vmem>>, vector<128x512xbf16>
    %cst_11 = arith.constant dense<0.000000e+00> : vector<16x512xf32>
    %25 = tpu.matmul %23, %24, %cst_11 {dimension_numbers = #tpu.dot_dimension_numbers<[1], [0], [0], [1], [0, 0, 1, 1], [], []>} : vector<16x128xbf16>, vector<128x512xbf16>, vector<16x512xf32> -> vector<16x512xf32>
    %c0_12 = arith.constant 0 : index
    %c0_13 = arith.constant 0 : index
    %26 = vector.load %arg5[%c0_12, %c0_13] : memref<1x512xf32, #tpu.memory_space<vmem>>, vector<1x512xf32>
    %27 = vector.broadcast %26 : vector<1x512xf32> to vector<16x512xf32>
    %28 = arith.addf %25, %27 : vector<16x512xf32>
    %cst_14 = arith.constant 1.702000e+00 : f32
    %29 = vector.broadcast %cst_14 : f32 to vector<16x512xf32>
    %30 = arith.mulf %29, %28 : vector<16x512xf32>
    %31 = arith.negf %30 : vector<16x512xf32>
    %32 = math.exp %31 : vector<16x512xf32>
    %cst_15 = arith.constant 1.000000e+00 : f32
    %33 = vector.broadcast %cst_15 : f32 to vector<16x512xf32>
    %34 = arith.addf %33, %32 : vector<16x512xf32>
    %35 = arith.divf %33, %34 : vector<16x512xf32>
    %36 = arith.mulf %28, %35 : vector<16x512xf32>
    %37 = arith.truncf %36 : vector<16x512xf32> to vector<16x512xbf16>
    %c0_16 = arith.constant 0 : index
    %c0_17 = arith.constant 0 : index
    %38 = vector.load %arg6[%c0_16, %c0_17] : memref<512x128xbf16, #tpu.memory_space<vmem>>, vector<512x128xbf16>
    %cst_18 = arith.constant dense<0.000000e+00> : vector<16x128xf32>
    %39 = tpu.matmul %37, %38, %cst_18 {dimension_numbers = #tpu.dot_dimension_numbers<[1], [0], [0], [1], [0, 0, 1, 1], [], []>} : vector<16x512xbf16>, vector<512x128xbf16>, vector<16x128xf32> -> vector<16x128xf32>
    %c0_19 = arith.constant 0 : index
    %c0_20 = arith.constant 0 : index
    %40 = vector.load %arg7[%c0_19, %c0_20] : memref<1x128xf32, #tpu.memory_space<vmem>>, vector<1x128xf32>
    %41 = vector.broadcast %40 : vector<1x128xf32> to vector<16x128xf32>
    %42 = arith.addf %39, %41 : vector<16x128xf32>
    %43 = arith.addf %0, %42 : vector<16x128xf32>
    %c0_21 = arith.constant 0 : index
    %c0_22 = arith.constant 0 : index
    %44 = vector.load %arg8[%c0_21, %c0_22] : memref<16x128xf32, #tpu.memory_space<vmem>>, vector<16x128xf32>
    tpu.vector_store %arg8[%c0_21, %c0_22], %43 {strides = array<i32>} : memref<16x128xf32, #tpu.memory_space<vmem>>, vector<16x128xf32>,
    return
  }
  func.func @transform_0(%arg0: i32) -> (i32, i32) {
    %c0_i32 = arith.constant 0 : i32
    %c0_i32_0 = arith.constant 0 : i32
    return %arg0, %c0_i32 : i32, i32
  }
  func.func @transform_1(%arg0: i32) -> (i32, i32) {
    %c0_i32 = arith.constant 0 : i32
    %c0_i32_0 = arith.constant 0 : i32
    %c0_i32_1 = arith.constant 0 : i32
    return %c0_i32, %c0_i32_0 : i32, i32
  }
  func.func @transform_2(%arg0: i32) -> (i32, i32) {
    %c0_i32 = arith.constant 0 : i32
    %c0_i32_0 = arith.constant 0 : i32
    %c0_i32_1 = arith.constant 0 : i32
    return %c0_i32, %c0_i32_0 : i32, i32
  }
  func.func @transform_3(%arg0: i32) -> (i32, i32) {
    %c0_i32 = arith.constant 0 : i32
    %c0_i32_0 = arith.constant 0 : i32
    %c0_i32_1 = arith.constant 0 : i32
    return %c0_i32, %c0_i32_0 : i32, i32
  }
  func.func @transform_4(%arg0: i32) -> (i32, i32) {
    %c0_i32 = arith.constant 0 : i32
    %c0_i32_0 = arith.constant 0 : i32
    %c0_i32_1 = arith.constant 0 : i32
    return %c0_i32, %c0_i32_0 : i32, i32
  }
  func.func @transform_5(%arg0: i32) -> (i32, i32) {
    %c0_i32 = arith.constant 0 : i32
    %c0_i32_0 = arith.constant 0 : i32
    %c0_i32_1 = arith.constant 0 : i32
    return %c0_i32, %c0_i32_0 : i32, i32
  }
  func.func @transform_6(%arg0: i32) -> (i32, i32) {
    %c0_i32 = arith.constant 0 : i32
    %c0_i32_0 = arith.constant 0 : i32
    %c0_i32_1 = arith.constant 0 : i32
    return %c0_i32, %c0_i32_0 : i32, i32
  }
  func.func @transform_7(%arg0: i32) -> (i32, i32) {
    %c0_i32 = arith.constant 0 : i32
    %c0_i32_0 = arith.constant 0 : i32
    return %arg0, %c0_i32 : i32, i32
  }
}

module attributes {stable_mosaic.version = 11 : i64} {
  func.func @_attn_out_residual_kernel(%arg0: i32, %arg1: memref<1x8x384xbf16, #tpu.memory_space<vmem>>, %arg2: memref<128x128xbf16, #tpu.memory_space<vmem>>, %arg3: memref<1x128xf32, #tpu.memory_space<vmem>>, %arg4: memref<1x8x128xf32, #tpu.memory_space<vmem>>, %arg5: memref<1x8x128xf32, #tpu.memory_space<vmem>>) attributes {dimension_semantics = [#tpu.dimension_semantics<parallel>], iteration_bounds = array<i64: 2>, scalar_prefetch = 0 : i64, scratch_operands = 0 : i64, tpu.core_type = #tpu.core_type<tc>, window_params = [{transform_indices = @transform_0, window_bounds = array<i64: 1, 8, 384>}, {pipeline_mode = #tpu.pipeline_mode<synchronous>, transform_indices = @transform_1, window_bounds = array<i64: 128, 128>}, {pipeline_mode = #tpu.pipeline_mode<synchronous>, transform_indices = @transform_2, window_bounds = array<i64: 1, 128>}, {transform_indices = @transform_3, window_bounds = array<i64: 1, 8, 128>}, {transform_indices = @transform_4, window_bounds = array<i64: 1, 8, 128>}]} {
    %c0 = arith.constant 0 : index
    %c0_0 = arith.constant 0 : index
    %c0_1 = arith.constant 0 : index
    %0 = vector.load %arg1[%c0, %c0_0, %c0_1] : memref<1x8x384xbf16, #tpu.memory_space<vmem>>, vector<1x8x384xbf16>
    %1 = vector.shape_cast %0 : vector<1x8x384xbf16> to vector<8x384xbf16>
    %2 = tpu.iota {dimensions = array<i32: 1>} : vector<8x8xi32>
    %c8_i32 = arith.constant 8 : i32
    %3 = vector.broadcast %c8_i32 : i32 to vector<8x8xi32>
    %4 = arith.cmpi slt, %2, %3 : vector<8x8xi32>
    %5 = tpu.iota {dimensions = array<i32: 0>} : vector<8x8xi32>
    %6 = arith.cmpi sle, %2, %5 : vector<8x8xi32>
    %7 = arith.andi %4, %6 : vector<8x8xi1>
    %cst = arith.constant 0.000000e+00 : f32
    %cst_2 = arith.constant -1.000000e+30 : f32
    %8 = vector.broadcast %cst : f32 to vector<8x8xf32>
    %9 = vector.broadcast %cst_2 : f32 to vector<8x8xf32>
    %10 = arith.select %7, %8, %9 : vector<8x8xi1>, vector<8x8xf32>
    %c0_3 = arith.constant 0 : index
    %c0_4 = arith.constant 0 : index
    %c0_5 = arith.constant 0 : index
    %11 = vector.load %arg4[%c0_3, %c0_4, %c0_5] : memref<1x8x128xf32, #tpu.memory_space<vmem>>, vector<1x8x128xf32>
    %12 = vector.shape_cast %11 : vector<1x8x128xf32> to vector<8x128xf32>
    %c0_6 = arith.constant 0 : index
    %c0_7 = arith.constant 0 : index
    %13 = vector.load %arg3[%c0_6, %c0_7] : memref<1x128xf32, #tpu.memory_space<vmem>>, vector<1x128xf32>
    %14 = vector.broadcast %13 : vector<1x128xf32> to vector<8x128xf32>
    %15 = arith.addf %12, %14 : vector<8x128xf32>
    %16 = vector.extract_strided_slice %1 {offsets = [0, 0], sizes = [8, 32], strides = [1, 1]} : vector<8x384xbf16> to vector<8x32xbf16>
    %17 = vector.extract_strided_slice %1 {offsets = [0, 128], sizes = [8, 32], strides = [1, 1]} : vector<8x384xbf16> to vector<8x32xbf16>
    %18 = vector.extract_strided_slice %1 {offsets = [0, 256], sizes = [8, 32], strides = [1, 1]} : vector<8x384xbf16> to vector<8x32xbf16>
    %cst_8 = arith.constant dense<0.000000e+00> : vector<8x8xf32>
    %19 = tpu.matmul %16, %17, %cst_8 {dimension_numbers = #tpu.dot_dimension_numbers<[1], [1], [0], [0], [0, 0, 1, 0], [], []>} : vector<8x32xbf16>, vector<8x32xbf16>, vector<8x8xf32> -> vector<8x8xf32>
    %20 = arith.addf %19, %10 : vector<8x8xf32>
    %cst_9 = arith.constant dense<0xFF800000> : vector<8xf32>
    %21 = vector.multi_reduction <maximumf>, %20, %cst_9 [1] : vector<8x8xf32> to vector<8xf32>
    %22 = vector.shape_cast %21 : vector<8xf32> to vector<8x1xf32>
    %23 = vector.broadcast %22 : vector<8x1xf32> to vector<8x8xf32>
    %24 = arith.subf %20, %23 : vector<8x8xf32>
    %25 = math.exp %24 : vector<8x8xf32>
    %cst_10 = arith.constant dense<0.000000e+00> : vector<8xf32>
    %26 = vector.multi_reduction <add>, %25, %cst_10 [1] : vector<8x8xf32> to vector<8xf32>
    %27 = vector.shape_cast %26 : vector<8xf32> to vector<8x1xf32>
    %28 = tpu.reciprocal %27 {approx = true} : vector<8x1xf32> -> vector<8x1xf32>
    %29 = vector.broadcast %28 : vector<8x1xf32> to vector<8x8xf32>
    %30 = arith.mulf %25, %29 : vector<8x8xf32>
    %31 = arith.truncf %30 : vector<8x8xf32> to vector<8x8xbf16>
    %cst_11 = arith.constant dense<0.000000e+00> : vector<8x32xf32>
    %32 = tpu.matmul %31, %18, %cst_11 {dimension_numbers = #tpu.dot_dimension_numbers<[1], [0], [0], [1], [0, 0, 1, 1], [], []>} : vector<8x8xbf16>, vector<8x32xbf16>, vector<8x32xf32> -> vector<8x32xf32>
    %33 = arith.truncf %32 : vector<8x32xf32> to vector<8x32xbf16>
    %c0_12 = arith.constant 0 : index
    %c0_13 = arith.constant 0 : index
    %34 = vector.load %arg2[%c0_12, %c0_13] : memref<128x128xbf16, #tpu.memory_space<vmem>>, vector<32x128xbf16>
    %cst_14 = arith.constant dense<0.000000e+00> : vector<8x128xf32>
    %35 = tpu.matmul %33, %34, %cst_14 {dimension_numbers = #tpu.dot_dimension_numbers<[1], [0], [0], [1], [0, 0, 1, 1], [], []>} : vector<8x32xbf16>, vector<32x128xbf16>, vector<8x128xf32> -> vector<8x128xf32>
    %36 = arith.addf %15, %35 : vector<8x128xf32>
    %37 = vector.extract_strided_slice %1 {offsets = [0, 32], sizes = [8, 32], strides = [1, 1]} : vector<8x384xbf16> to vector<8x32xbf16>
    %38 = vector.extract_strided_slice %1 {offsets = [0, 160], sizes = [8, 32], strides = [1, 1]} : vector<8x384xbf16> to vector<8x32xbf16>
    %39 = vector.extract_strided_slice %1 {offsets = [0, 288], sizes = [8, 32], strides = [1, 1]} : vector<8x384xbf16> to vector<8x32xbf16>
    %cst_15 = arith.constant dense<0.000000e+00> : vector<8x8xf32>
    %40 = tpu.matmul %37, %38, %cst_15 {dimension_numbers = #tpu.dot_dimension_numbers<[1], [1], [0], [0], [0, 0, 1, 0], [], []>} : vector<8x32xbf16>, vector<8x32xbf16>, vector<8x8xf32> -> vector<8x8xf32>
    %41 = arith.addf %40, %10 : vector<8x8xf32>
    %cst_16 = arith.constant dense<0xFF800000> : vector<8xf32>
    %42 = vector.multi_reduction <maximumf>, %41, %cst_16 [1] : vector<8x8xf32> to vector<8xf32>
    %43 = vector.shape_cast %42 : vector<8xf32> to vector<8x1xf32>
    %44 = vector.broadcast %43 : vector<8x1xf32> to vector<8x8xf32>
    %45 = arith.subf %41, %44 : vector<8x8xf32>
    %46 = math.exp %45 : vector<8x8xf32>
    %cst_17 = arith.constant dense<0.000000e+00> : vector<8xf32>
    %47 = vector.multi_reduction <add>, %46, %cst_17 [1] : vector<8x8xf32> to vector<8xf32>
    %48 = vector.shape_cast %47 : vector<8xf32> to vector<8x1xf32>
    %49 = tpu.reciprocal %48 {approx = true} : vector<8x1xf32> -> vector<8x1xf32>
    %50 = vector.broadcast %49 : vector<8x1xf32> to vector<8x8xf32>
    %51 = arith.mulf %46, %50 : vector<8x8xf32>
    %52 = arith.truncf %51 : vector<8x8xf32> to vector<8x8xbf16>
    %cst_18 = arith.constant dense<0.000000e+00> : vector<8x32xf32>
    %53 = tpu.matmul %52, %39, %cst_18 {dimension_numbers = #tpu.dot_dimension_numbers<[1], [0], [0], [1], [0, 0, 1, 1], [], []>} : vector<8x8xbf16>, vector<8x32xbf16>, vector<8x32xf32> -> vector<8x32xf32>
    %54 = arith.truncf %53 : vector<8x32xf32> to vector<8x32xbf16>
    %c32 = arith.constant 32 : index
    %c0_19 = arith.constant 0 : index
    %55 = vector.load %arg2[%c32, %c0_19] : memref<128x128xbf16, #tpu.memory_space<vmem>>, vector<32x128xbf16>
    %cst_20 = arith.constant dense<0.000000e+00> : vector<8x128xf32>
    %56 = tpu.matmul %54, %55, %cst_20 {dimension_numbers = #tpu.dot_dimension_numbers<[1], [0], [0], [1], [0, 0, 1, 1], [], []>} : vector<8x32xbf16>, vector<32x128xbf16>, vector<8x128xf32> -> vector<8x128xf32>
    %57 = arith.addf %36, %56 : vector<8x128xf32>
    %58 = vector.extract_strided_slice %1 {offsets = [0, 64], sizes = [8, 32], strides = [1, 1]} : vector<8x384xbf16> to vector<8x32xbf16>
    %59 = vector.extract_strided_slice %1 {offsets = [0, 192], sizes = [8, 32], strides = [1, 1]} : vector<8x384xbf16> to vector<8x32xbf16>
    %60 = vector.extract_strided_slice %1 {offsets = [0, 320], sizes = [8, 32], strides = [1, 1]} : vector<8x384xbf16> to vector<8x32xbf16>
    %cst_21 = arith.constant dense<0.000000e+00> : vector<8x8xf32>
    %61 = tpu.matmul %58, %59, %cst_21 {dimension_numbers = #tpu.dot_dimension_numbers<[1], [1], [0], [0], [0, 0, 1, 0], [], []>} : vector<8x32xbf16>, vector<8x32xbf16>, vector<8x8xf32> -> vector<8x8xf32>
    %62 = arith.addf %61, %10 : vector<8x8xf32>
    %cst_22 = arith.constant dense<0xFF800000> : vector<8xf32>
    %63 = vector.multi_reduction <maximumf>, %62, %cst_22 [1] : vector<8x8xf32> to vector<8xf32>
    %64 = vector.shape_cast %63 : vector<8xf32> to vector<8x1xf32>
    %65 = vector.broadcast %64 : vector<8x1xf32> to vector<8x8xf32>
    %66 = arith.subf %62, %65 : vector<8x8xf32>
    %67 = math.exp %66 : vector<8x8xf32>
    %cst_23 = arith.constant dense<0.000000e+00> : vector<8xf32>
    %68 = vector.multi_reduction <add>, %67, %cst_23 [1] : vector<8x8xf32> to vector<8xf32>
    %69 = vector.shape_cast %68 : vector<8xf32> to vector<8x1xf32>
    %70 = tpu.reciprocal %69 {approx = true} : vector<8x1xf32> -> vector<8x1xf32>
    %71 = vector.broadcast %70 : vector<8x1xf32> to vector<8x8xf32>
    %72 = arith.mulf %67, %71 : vector<8x8xf32>
    %73 = arith.truncf %72 : vector<8x8xf32> to vector<8x8xbf16>
    %cst_24 = arith.constant dense<0.000000e+00> : vector<8x32xf32>
    %74 = tpu.matmul %73, %60, %cst_24 {dimension_numbers = #tpu.dot_dimension_numbers<[1], [0], [0], [1], [0, 0, 1, 1], [], []>} : vector<8x8xbf16>, vector<8x32xbf16>, vector<8x32xf32> -> vector<8x32xf32>
    %75 = arith.truncf %74 : vector<8x32xf32> to vector<8x32xbf16>
    %c64 = arith.constant 64 : index
    %c0_25 = arith.constant 0 : index
    %76 = vector.load %arg2[%c64, %c0_25] : memref<128x128xbf16, #tpu.memory_space<vmem>>, vector<32x128xbf16>
    %cst_26 = arith.constant dense<0.000000e+00> : vector<8x128xf32>
    %77 = tpu.matmul %75, %76, %cst_26 {dimension_numbers = #tpu.dot_dimension_numbers<[1], [0], [0], [1], [0, 0, 1, 1], [], []>} : vector<8x32xbf16>, vector<32x128xbf16>, vector<8x128xf32> -> vector<8x128xf32>
    %78 = arith.addf %57, %77 : vector<8x128xf32>
    %79 = vector.extract_strided_slice %1 {offsets = [0, 96], sizes = [8, 32], strides = [1, 1]} : vector<8x384xbf16> to vector<8x32xbf16>
    %80 = vector.extract_strided_slice %1 {offsets = [0, 224], sizes = [8, 32], strides = [1, 1]} : vector<8x384xbf16> to vector<8x32xbf16>
    %81 = vector.extract_strided_slice %1 {offsets = [0, 352], sizes = [8, 32], strides = [1, 1]} : vector<8x384xbf16> to vector<8x32xbf16>
    %cst_27 = arith.constant dense<0.000000e+00> : vector<8x8xf32>
    %82 = tpu.matmul %79, %80, %cst_27 {dimension_numbers = #tpu.dot_dimension_numbers<[1], [1], [0], [0], [0, 0, 1, 0], [], []>} : vector<8x32xbf16>, vector<8x32xbf16>, vector<8x8xf32> -> vector<8x8xf32>
    %83 = arith.addf %82, %10 : vector<8x8xf32>
    %cst_28 = arith.constant dense<0xFF800000> : vector<8xf32>
    %84 = vector.multi_reduction <maximumf>, %83, %cst_28 [1] : vector<8x8xf32> to vector<8xf32>
    %85 = vector.shape_cast %84 : vector<8xf32> to vector<8x1xf32>
    %86 = vector.broadcast %85 : vector<8x1xf32> to vector<8x8xf32>
    %87 = arith.subf %83, %86 : vector<8x8xf32>
    %88 = math.exp %87 : vector<8x8xf32>
    %cst_29 = arith.constant dense<0.000000e+00> : vector<8xf32>
    %89 = vector.multi_reduction <add>, %88, %cst_29 [1] : vector<8x8xf32> to vector<8xf32>
    %90 = vector.shape_cast %89 : vector<8xf32> to vector<8x1xf32>
    %91 = tpu.reciprocal %90 {approx = true} : vector<8x1xf32> -> vector<8x1xf32>
    %92 = vector.broadcast %91 : vector<8x1xf32> to vector<8x8xf32>
    %93 = arith.mulf %88, %92 : vector<8x8xf32>
    %94 = arith.truncf %93 : vector<8x8xf32> to vector<8x8xbf16>
    %cst_30 = arith.constant dense<0.000000e+00> : vector<8x32xf32>
    %95 = tpu.matmul %94, %81, %cst_30 {dimension_numbers = #tpu.dot_dimension_numbers<[1], [0], [0], [1], [0, 0, 1, 1], [], []>} : vector<8x8xbf16>, vector<8x32xbf16>, vector<8x32xf32> -> vector<8x32xf32>
    %96 = arith.truncf %95 : vector<8x32xf32> to vector<8x32xbf16>
    %c96 = arith.constant 96 : index
    %c0_31 = arith.constant 0 : index
    %97 = vector.load %arg2[%c96, %c0_31] : memref<128x128xbf16, #tpu.memory_space<vmem>>, vector<32x128xbf16>
    %cst_32 = arith.constant dense<0.000000e+00> : vector<8x128xf32>
    %98 = tpu.matmul %96, %97, %cst_32 {dimension_numbers = #tpu.dot_dimension_numbers<[1], [0], [0], [1], [0, 0, 1, 1], [], []>} : vector<8x32xbf16>, vector<32x128xbf16>, vector<8x128xf32> -> vector<8x128xf32>
    %99 = arith.addf %78, %98 : vector<8x128xf32>
    %c0_33 = arith.constant 0 : index
    %c0_34 = arith.constant 0 : index
    %c0_35 = arith.constant 0 : index
    %100 = vector.load %arg5[%c0_33, %c0_34, %c0_35] : memref<1x8x128xf32, #tpu.memory_space<vmem>>, vector<1x8x128xf32>
    %101 = vector.shape_cast %100 : vector<1x8x128xf32> to vector<8x128xf32>
    %102 = vector.shape_cast %99 : vector<8x128xf32> to vector<1x8x128xf32>
    tpu.vector_store %arg5[%c0_33, %c0_34, %c0_35], %102 {strides = array<i32>} : memref<1x8x128xf32, #tpu.memory_space<vmem>>, vector<1x8x128xf32>,
    return
  }
  func.func @transform_0(%arg0: i32) -> (i32, i32, i32) {
    %c0_i32 = arith.constant 0 : i32
    %c0_i32_0 = arith.constant 0 : i32
    %c0_i32_1 = arith.constant 0 : i32
    return %arg0, %c0_i32, %c0_i32_0 : i32, i32, i32
  }
  func.func @transform_1(%arg0: i32) -> (i32, i32) {
    %c0_i32 = arith.constant 0 : i32
    %c0_i32_0 = arith.constant 0 : i32
    %c0_i32_1 = arith.constant 0 : i32
    return %c0_i32, %c0_i32_0 : i32, i32
  }
  func.func @transform_2(%arg0: i32) -> (i32, i32) {
    %c0_i32 = arith.constant 0 : i32
    %c0_i32_0 = arith.constant 0 : i32
    %c0_i32_1 = arith.constant 0 : i32
    return %c0_i32, %c0_i32_0 : i32, i32
  }
  func.func @transform_3(%arg0: i32) -> (i32, i32, i32) {
    %c0_i32 = arith.constant 0 : i32
    %c0_i32_0 = arith.constant 0 : i32
    %c0_i32_1 = arith.constant 0 : i32
    return %arg0, %c0_i32, %c0_i32_0 : i32, i32, i32
  }
  func.func @transform_4(%arg0: i32) -> (i32, i32, i32) {
    %c0_i32 = arith.constant 0 : i32
    %c0_i32_0 = arith.constant 0 : i32
    %c0_i32_1 = arith.constant 0 : i32
    return %arg0, %c0_i32, %c0_i32_0 : i32, i32, i32
  }
}

module attributes {stable_mosaic.version = 11 : i64} {
  func.func @_ln_linear_kernel(%arg0: i32, %arg1: memref<16x128xf32, #tpu.memory_space<vmem>>, %arg2: memref<1x128xf32, #tpu.memory_space<vmem>>, %arg3: memref<1x128xf32, #tpu.memory_space<vmem>>, %arg4: memref<128x128xbf16, #tpu.memory_space<vmem>>, %arg5: memref<1x128xf32, #tpu.memory_space<vmem>>, %arg6: memref<16x128xf32, #tpu.memory_space<vmem>>) attributes {dimension_semantics = [#tpu.dimension_semantics<parallel>], iteration_bounds = array<i64: 1>, scalar_prefetch = 0 : i64, scratch_operands = 0 : i64, tpu.core_type = #tpu.core_type<tc>, window_params = [{transform_indices = @transform_0, window_bounds = array<i64: 16, 128>}, {pipeline_mode = #tpu.pipeline_mode<synchronous>, transform_indices = @transform_1, window_bounds = array<i64: 1, 128>}, {pipeline_mode = #tpu.pipeline_mode<synchronous>, transform_indices = @transform_2, window_bounds = array<i64: 1, 128>}, {pipeline_mode = #tpu.pipeline_mode<synchronous>, transform_indices = @transform_3, window_bounds = array<i64: 128, 128>}, {pipeline_mode = #tpu.pipeline_mode<synchronous>, transform_indices = @transform_4, window_bounds = array<i64: 1, 128>}, {transform_indices = @transform_5, window_bounds = array<i64: 16, 128>}]} {
    %c0 = arith.constant 0 : index
    %c0_0 = arith.constant 0 : index
    %0 = vector.load %arg1[%c0, %c0_0] : memref<16x128xf32, #tpu.memory_space<vmem>>, vector<16x128xf32>
    %cst = arith.constant dense<0.000000e+00> : vector<16xf32>
    %1 = vector.multi_reduction <add>, %0, %cst [1] : vector<16x128xf32> to vector<16xf32>
    %2 = vector.shape_cast %1 : vector<16xf32> to vector<16x1xf32>
    %cst_1 = arith.constant 1.280000e+02 : f32
    %3 = vector.broadcast %cst_1 : f32 to vector<16x1xf32>
    %4 = arith.divf %2, %3 : vector<16x1xf32>
    %5 = vector.broadcast %4 : vector<16x1xf32> to vector<16x128xf32>
    %6 = arith.subf %0, %5 : vector<16x128xf32>
    %7 = arith.mulf %6, %6 : vector<16x128xf32>
    %cst_2 = arith.constant dense<0.000000e+00> : vector<16xf32>
    %8 = vector.multi_reduction <add>, %7, %cst_2 [1] : vector<16x128xf32> to vector<16xf32>
    %9 = vector.shape_cast %8 : vector<16xf32> to vector<16x1xf32>
    %cst_3 = arith.constant 1.280000e+02 : f32
    %10 = vector.broadcast %cst_3 : f32 to vector<16x1xf32>
    %11 = arith.divf %9, %10 : vector<16x1xf32>
    %cst_4 = arith.constant 9.99999974E-6 : f32
    %12 = vector.broadcast %cst_4 : f32 to vector<16x1xf32>
    %13 = arith.addf %11, %12 : vector<16x1xf32>
    %14 = math.rsqrt %13 : vector<16x1xf32>
    %15 = vector.broadcast %14 : vector<16x1xf32> to vector<16x128xf32>
    %16 = arith.mulf %6, %15 : vector<16x128xf32>
    %c0_5 = arith.constant 0 : index
    %c0_6 = arith.constant 0 : index
    %17 = vector.load %arg2[%c0_5, %c0_6] : memref<1x128xf32, #tpu.memory_space<vmem>>, vector<1x128xf32>
    %18 = vector.broadcast %17 : vector<1x128xf32> to vector<16x128xf32>
    %19 = arith.mulf %16, %18 : vector<16x128xf32>
    %c0_7 = arith.constant 0 : index
    %c0_8 = arith.constant 0 : index
    %20 = vector.load %arg3[%c0_7, %c0_8] : memref<1x128xf32, #tpu.memory_space<vmem>>, vector<1x128xf32>
    %21 = vector.broadcast %20 : vector<1x128xf32> to vector<16x128xf32>
    %22 = arith.addf %19, %21 : vector<16x128xf32>
    %23 = arith.truncf %22 : vector<16x128xf32> to vector<16x128xbf16>
    %c0_9 = arith.constant 0 : index
    %c0_10 = arith.constant 0 : index
    %24 = vector.load %arg4[%c0_9, %c0_10] : memref<128x128xbf16, #tpu.memory_space<vmem>>, vector<128x128xbf16>
    %cst_11 = arith.constant dense<0.000000e+00> : vector<16x128xf32>
    %25 = tpu.matmul %23, %24, %cst_11 {dimension_numbers = #tpu.dot_dimension_numbers<[1], [0], [0], [1], [0, 0, 1, 1], [], []>} : vector<16x128xbf16>, vector<128x128xbf16>, vector<16x128xf32> -> vector<16x128xf32>
    %c0_12 = arith.constant 0 : index
    %c0_13 = arith.constant 0 : index
    %26 = vector.load %arg5[%c0_12, %c0_13] : memref<1x128xf32, #tpu.memory_space<vmem>>, vector<1x128xf32>
    %27 = vector.broadcast %26 : vector<1x128xf32> to vector<16x128xf32>
    %28 = arith.addf %25, %27 : vector<16x128xf32>
    %c0_14 = arith.constant 0 : index
    %c0_15 = arith.constant 0 : index
    %29 = vector.load %arg6[%c0_14, %c0_15] : memref<16x128xf32, #tpu.memory_space<vmem>>, vector<16x128xf32>
    tpu.vector_store %arg6[%c0_14, %c0_15], %28 {strides = array<i32>} : memref<16x128xf32, #tpu.memory_space<vmem>>, vector<16x128xf32>,
    return
  }
  func.func @transform_0(%arg0: i32) -> (i32, i32) {
    %c0_i32 = arith.constant 0 : i32
    %c0_i32_0 = arith.constant 0 : i32
    return %arg0, %c0_i32 : i32, i32
  }
  func.func @transform_1(%arg0: i32) -> (i32, i32) {
    %c0_i32 = arith.constant 0 : i32
    %c0_i32_0 = arith.constant 0 : i32
    %c0_i32_1 = arith.constant 0 : i32
    return %c0_i32, %c0_i32_0 : i32, i32
  }
  func.func @transform_2(%arg0: i32) -> (i32, i32) {
    %c0_i32 = arith.constant 0 : i32
    %c0_i32_0 = arith.constant 0 : i32
    %c0_i32_1 = arith.constant 0 : i32
    return %c0_i32, %c0_i32_0 : i32, i32
  }
  func.func @transform_3(%arg0: i32) -> (i32, i32) {
    %c0_i32 = arith.constant 0 : i32
    %c0_i32_0 = arith.constant 0 : i32
    %c0_i32_1 = arith.constant 0 : i32
    return %c0_i32, %c0_i32_0 : i32, i32
  }
  func.func @transform_4(%arg0: i32) -> (i32, i32) {
    %c0_i32 = arith.constant 0 : i32
    %c0_i32_0 = arith.constant 0 : i32
    %c0_i32_1 = arith.constant 0 : i32
    return %c0_i32, %c0_i32_0 : i32, i32
  }
  func.func @transform_5(%arg0: i32) -> (i32, i32) {
    %c0_i32 = arith.constant 0 : i32
    %c0_i32_0 = arith.constant 0 : i32
    return %arg0, %c0_i32 : i32, i32
  }
}

module attributes {stable_mosaic.version = 11 : i64} {
  func.func @_linear_kernel(%arg0: i32, %arg1: memref<8x192xf32, #tpu.memory_space<vmem>>, %arg2: memref<192x128xbf16, #tpu.memory_space<vmem>>, %arg3: memref<8x128xf32, #tpu.memory_space<vmem>>) attributes {dimension_semantics = [#tpu.dimension_semantics<parallel>], iteration_bounds = array<i64: 1>, scalar_prefetch = 0 : i64, scratch_operands = 0 : i64, tpu.core_type = #tpu.core_type<tc>, window_params = [{transform_indices = @transform_0, window_bounds = array<i64: 8, 192>}, {pipeline_mode = #tpu.pipeline_mode<synchronous>, transform_indices = @transform_1, window_bounds = array<i64: 192, 128>}, {transform_indices = @transform_2, window_bounds = array<i64: 8, 128>}]} {
    %c0 = arith.constant 0 : index
    %c0_0 = arith.constant 0 : index
    %0 = vector.load %arg1[%c0, %c0_0] : memref<8x192xf32, #tpu.memory_space<vmem>>, vector<8x192xf32>
    %1 = arith.truncf %0 : vector<8x192xf32> to vector<8x192xbf16>
    %c0_1 = arith.constant 0 : index
    %c0_2 = arith.constant 0 : index
    %2 = vector.load %arg2[%c0_1, %c0_2] : memref<192x128xbf16, #tpu.memory_space<vmem>>, vector<192x128xbf16>
    %cst = arith.constant dense<0.000000e+00> : vector<8x128xf32>
    %3 = tpu.matmul %1, %2, %cst {dimension_numbers = #tpu.dot_dimension_numbers<[1], [0], [0], [1], [0, 0, 1, 1], [], []>} : vector<8x192xbf16>, vector<192x128xbf16>, vector<8x128xf32> -> vector<8x128xf32>
    %c0_3 = arith.constant 0 : index
    %c0_4 = arith.constant 0 : index
    %4 = vector.load %arg3[%c0_3, %c0_4] : memref<8x128xf32, #tpu.memory_space<vmem>>, vector<8x128xf32>
    tpu.vector_store %arg3[%c0_3, %c0_4], %3 {strides = array<i32>} : memref<8x128xf32, #tpu.memory_space<vmem>>, vector<8x128xf32>,
    return
  }
  func.func @transform_0(%arg0: i32) -> (i32, i32) {
    %c0_i32 = arith.constant 0 : i32
    %c0_i32_0 = arith.constant 0 : i32
    return %arg0, %c0_i32 : i32, i32
  }
  func.func @transform_1(%arg0: i32) -> (i32, i32) {
    %c0_i32 = arith.constant 0 : i32
    %c0_i32_0 = arith.constant 0 : i32
    %c0_i32_1 = arith.constant 0 : i32
    return %c0_i32, %c0_i32_0 : i32, i32
  }
  func.func @transform_2(%arg0: i32) -> (i32, i32) {
    %c0_i32 = arith.constant 0 : i32
    %c0_i32_0 = arith.constant 0 : i32
    return %arg0, %c0_i32 : i32, i32
  }
}

module attributes {stable_mosaic.version = 11 : i64} {
  func.func @_layernorm_kernel(%arg0: i32, %arg1: memref<16x128xf32, #tpu.memory_space<vmem>>, %arg2: memref<1x128xf32, #tpu.memory_space<vmem>>, %arg3: memref<1x128xf32, #tpu.memory_space<vmem>>, %arg4: memref<16x128xf32, #tpu.memory_space<vmem>>) attributes {dimension_semantics = [#tpu.dimension_semantics<parallel>], iteration_bounds = array<i64: 1>, scalar_prefetch = 0 : i64, scratch_operands = 0 : i64, tpu.core_type = #tpu.core_type<tc>, window_params = [{transform_indices = @transform_0, window_bounds = array<i64: 16, 128>}, {pipeline_mode = #tpu.pipeline_mode<synchronous>, transform_indices = @transform_1, window_bounds = array<i64: 1, 128>}, {pipeline_mode = #tpu.pipeline_mode<synchronous>, transform_indices = @transform_2, window_bounds = array<i64: 1, 128>}, {transform_indices = @transform_3, window_bounds = array<i64: 16, 128>}]} {
    %c0 = arith.constant 0 : index
    %c0_0 = arith.constant 0 : index
    %0 = vector.load %arg1[%c0, %c0_0] : memref<16x128xf32, #tpu.memory_space<vmem>>, vector<16x128xf32>
    %cst = arith.constant dense<0.000000e+00> : vector<16xf32>
    %1 = vector.multi_reduction <add>, %0, %cst [1] : vector<16x128xf32> to vector<16xf32>
    %2 = vector.shape_cast %1 : vector<16xf32> to vector<16x1xf32>
    %cst_1 = arith.constant 1.280000e+02 : f32
    %3 = vector.broadcast %cst_1 : f32 to vector<16x1xf32>
    %4 = arith.divf %2, %3 : vector<16x1xf32>
    %5 = vector.broadcast %4 : vector<16x1xf32> to vector<16x128xf32>
    %6 = arith.subf %0, %5 : vector<16x128xf32>
    %7 = arith.mulf %6, %6 : vector<16x128xf32>
    %cst_2 = arith.constant dense<0.000000e+00> : vector<16xf32>
    %8 = vector.multi_reduction <add>, %7, %cst_2 [1] : vector<16x128xf32> to vector<16xf32>
    %9 = vector.shape_cast %8 : vector<16xf32> to vector<16x1xf32>
    %cst_3 = arith.constant 1.280000e+02 : f32
    %10 = vector.broadcast %cst_3 : f32 to vector<16x1xf32>
    %11 = arith.divf %9, %10 : vector<16x1xf32>
    %cst_4 = arith.constant 9.99999974E-6 : f32
    %12 = vector.broadcast %cst_4 : f32 to vector<16x1xf32>
    %13 = arith.addf %11, %12 : vector<16x1xf32>
    %14 = math.rsqrt %13 : vector<16x1xf32>
    %15 = vector.broadcast %14 : vector<16x1xf32> to vector<16x128xf32>
    %16 = arith.mulf %6, %15 : vector<16x128xf32>
    %c0_5 = arith.constant 0 : index
    %c0_6 = arith.constant 0 : index
    %17 = vector.load %arg2[%c0_5, %c0_6] : memref<1x128xf32, #tpu.memory_space<vmem>>, vector<1x128xf32>
    %18 = vector.broadcast %17 : vector<1x128xf32> to vector<16x128xf32>
    %19 = arith.mulf %16, %18 : vector<16x128xf32>
    %c0_7 = arith.constant 0 : index
    %c0_8 = arith.constant 0 : index
    %20 = vector.load %arg3[%c0_7, %c0_8] : memref<1x128xf32, #tpu.memory_space<vmem>>, vector<1x128xf32>
    %21 = vector.broadcast %20 : vector<1x128xf32> to vector<16x128xf32>
    %22 = arith.addf %19, %21 : vector<16x128xf32>
    %c0_9 = arith.constant 0 : index
    %c0_10 = arith.constant 0 : index
    %23 = vector.load %arg4[%c0_9, %c0_10] : memref<16x128xf32, #tpu.memory_space<vmem>>, vector<16x128xf32>
    tpu.vector_store %arg4[%c0_9, %c0_10], %22 {strides = array<i32>} : memref<16x128xf32, #tpu.memory_space<vmem>>, vector<16x128xf32>,
    return
  }
  func.func @transform_0(%arg0: i32) -> (i32, i32) {
    %c0_i32 = arith.constant 0 : i32
    %c0_i32_0 = arith.constant 0 : i32
    return %arg0, %c0_i32 : i32, i32
  }
  func.func @transform_1(%arg0: i32) -> (i32, i32) {
    %c0_i32 = arith.constant 0 : i32
    %c0_i32_0 = arith.constant 0 : i32
    %c0_i32_1 = arith.constant 0 : i32
    return %c0_i32, %c0_i32_0 : i32, i32
  }
  func.func @transform_2(%arg0: i32) -> (i32, i32) {
    %c0_i32 = arith.constant 0 : i32
    %c0_i32_0 = arith.constant 0 : i32
    %c0_i32_1 = arith.constant 0 : i32
    return %c0_i32, %c0_i32_0 : i32, i32
  }
  func.func @transform_3(%arg0: i32) -> (i32, i32) {
    %c0_i32 = arith.constant 0 : i32
    %c0_i32_0 = arith.constant 0 : i32
    return %arg0, %c0_i32 : i32, i32
  }
}

module attributes {stable_mosaic.version = 11 : i64} {
  func.func @_attn_out_residual_kernel(%arg0: i32, %arg1: memref<1x8x384xbf16, #tpu.memory_space<vmem>>, %arg2: memref<128x128xbf16, #tpu.memory_space<vmem>>, %arg3: memref<1x128xf32, #tpu.memory_space<vmem>>, %arg4: memref<1x8x128xf32, #tpu.memory_space<vmem>>, %arg5: memref<1x8x128xf32, #tpu.memory_space<vmem>>) attributes {dimension_semantics = [#tpu.dimension_semantics<parallel>], iteration_bounds = array<i64: 2>, scalar_prefetch = 0 : i64, scratch_operands = 0 : i64, tpu.core_type = #tpu.core_type<tc>, window_params = [{transform_indices = @transform_0, window_bounds = array<i64: 1, 8, 384>}, {pipeline_mode = #tpu.pipeline_mode<synchronous>, transform_indices = @transform_1, window_bounds = array<i64: 128, 128>}, {pipeline_mode = #tpu.pipeline_mode<synchronous>, transform_indices = @transform_2, window_bounds = array<i64: 1, 128>}, {transform_indices = @transform_3, window_bounds = array<i64: 1, 8, 128>}, {transform_indices = @transform_4, window_bounds = array<i64: 1, 8, 128>}]} {
    %c0 = arith.constant 0 : index
    %c0_0 = arith.constant 0 : index
    %c0_1 = arith.constant 0 : index
    %0 = vector.load %arg1[%c0, %c0_0, %c0_1] : memref<1x8x384xbf16, #tpu.memory_space<vmem>>, vector<1x8x384xbf16>
    %1 = vector.shape_cast %0 : vector<1x8x384xbf16> to vector<8x384xbf16>
    %2 = tpu.iota {dimensions = array<i32: 1>} : vector<8x8xi32>
    %c5_i32 = arith.constant 5 : i32
    %3 = vector.broadcast %c5_i32 : i32 to vector<8x8xi32>
    %4 = arith.cmpi slt, %2, %3 : vector<8x8xi32>
    %cst = arith.constant 0.000000e+00 : f32
    %cst_2 = arith.constant -1.000000e+30 : f32
    %5 = vector.broadcast %cst : f32 to vector<8x8xf32>
    %6 = vector.broadcast %cst_2 : f32 to vector<8x8xf32>
    %7 = arith.select %4, %5, %6 : vector<8x8xi1>, vector<8x8xf32>
    %c0_3 = arith.constant 0 : index
    %c0_4 = arith.constant 0 : index
    %c0_5 = arith.constant 0 : index
    %8 = vector.load %arg4[%c0_3, %c0_4, %c0_5] : memref<1x8x128xf32, #tpu.memory_space<vmem>>, vector<1x8x128xf32>
    %9 = vector.shape_cast %8 : vector<1x8x128xf32> to vector<8x128xf32>
    %c0_6 = arith.constant 0 : index
    %c0_7 = arith.constant 0 : index
    %10 = vector.load %arg3[%c0_6, %c0_7] : memref<1x128xf32, #tpu.memory_space<vmem>>, vector<1x128xf32>
    %11 = vector.broadcast %10 : vector<1x128xf32> to vector<8x128xf32>
    %12 = arith.addf %9, %11 : vector<8x128xf32>
    %13 = vector.extract_strided_slice %1 {offsets = [0, 0], sizes = [8, 64], strides = [1, 1]} : vector<8x384xbf16> to vector<8x64xbf16>
    %14 = vector.extract_strided_slice %1 {offsets = [0, 128], sizes = [8, 64], strides = [1, 1]} : vector<8x384xbf16> to vector<8x64xbf16>
    %15 = vector.extract_strided_slice %1 {offsets = [0, 256], sizes = [8, 64], strides = [1, 1]} : vector<8x384xbf16> to vector<8x64xbf16>
    %cst_8 = arith.constant dense<0.000000e+00> : vector<8x8xf32>
    %16 = tpu.matmul %13, %14, %cst_8 {dimension_numbers = #tpu.dot_dimension_numbers<[1], [1], [0], [0], [0, 0, 1, 0], [], []>} : vector<8x64xbf16>, vector<8x64xbf16>, vector<8x8xf32> -> vector<8x8xf32>
    %17 = arith.addf %16, %7 : vector<8x8xf32>
    %cst_9 = arith.constant dense<0xFF800000> : vector<8xf32>
    %18 = vector.multi_reduction <maximumf>, %17, %cst_9 [1] : vector<8x8xf32> to vector<8xf32>
    %19 = vector.shape_cast %18 : vector<8xf32> to vector<8x1xf32>
    %20 = vector.broadcast %19 : vector<8x1xf32> to vector<8x8xf32>
    %21 = arith.subf %17, %20 : vector<8x8xf32>
    %22 = math.exp %21 : vector<8x8xf32>
    %cst_10 = arith.constant dense<0.000000e+00> : vector<8xf32>
    %23 = vector.multi_reduction <add>, %22, %cst_10 [1] : vector<8x8xf32> to vector<8xf32>
    %24 = vector.shape_cast %23 : vector<8xf32> to vector<8x1xf32>
    %25 = tpu.reciprocal %24 {approx = true} : vector<8x1xf32> -> vector<8x1xf32>
    %26 = vector.broadcast %25 : vector<8x1xf32> to vector<8x8xf32>
    %27 = arith.mulf %22, %26 : vector<8x8xf32>
    %28 = arith.truncf %27 : vector<8x8xf32> to vector<8x8xbf16>
    %cst_11 = arith.constant dense<0.000000e+00> : vector<8x64xf32>
    %29 = tpu.matmul %28, %15, %cst_11 {dimension_numbers = #tpu.dot_dimension_numbers<[1], [0], [0], [1], [0, 0, 1, 1], [], []>} : vector<8x8xbf16>, vector<8x64xbf16>, vector<8x64xf32> -> vector<8x64xf32>
    %30 = arith.truncf %29 : vector<8x64xf32> to vector<8x64xbf16>
    %c0_12 = arith.constant 0 : index
    %c0_13 = arith.constant 0 : index
    %31 = vector.load %arg2[%c0_12, %c0_13] : memref<128x128xbf16, #tpu.memory_space<vmem>>, vector<64x128xbf16>
    %cst_14 = arith.constant dense<0.000000e+00> : vector<8x128xf32>
    %32 = tpu.matmul %30, %31, %cst_14 {dimension_numbers = #tpu.dot_dimension_numbers<[1], [0], [0], [1], [0, 0, 1, 1], [], []>} : vector<8x64xbf16>, vector<64x128xbf16>, vector<8x128xf32> -> vector<8x128xf32>
    %33 = arith.addf %12, %32 : vector<8x128xf32>
    %34 = vector.extract_strided_slice %1 {offsets = [0, 64], sizes = [8, 64], strides = [1, 1]} : vector<8x384xbf16> to vector<8x64xbf16>
    %35 = vector.extract_strided_slice %1 {offsets = [0, 192], sizes = [8, 64], strides = [1, 1]} : vector<8x384xbf16> to vector<8x64xbf16>
    %36 = vector.extract_strided_slice %1 {offsets = [0, 320], sizes = [8, 64], strides = [1, 1]} : vector<8x384xbf16> to vector<8x64xbf16>
    %cst_15 = arith.constant dense<0.000000e+00> : vector<8x8xf32>
    %37 = tpu.matmul %34, %35, %cst_15 {dimension_numbers = #tpu.dot_dimension_numbers<[1], [1], [0], [0], [0, 0, 1, 0], [], []>} : vector<8x64xbf16>, vector<8x64xbf16>, vector<8x8xf32> -> vector<8x8xf32>
    %38 = arith.addf %37, %7 : vector<8x8xf32>
    %cst_16 = arith.constant dense<0xFF800000> : vector<8xf32>
    %39 = vector.multi_reduction <maximumf>, %38, %cst_16 [1] : vector<8x8xf32> to vector<8xf32>
    %40 = vector.shape_cast %39 : vector<8xf32> to vector<8x1xf32>
    %41 = vector.broadcast %40 : vector<8x1xf32> to vector<8x8xf32>
    %42 = arith.subf %38, %41 : vector<8x8xf32>
    %43 = math.exp %42 : vector<8x8xf32>
    %cst_17 = arith.constant dense<0.000000e+00> : vector<8xf32>
    %44 = vector.multi_reduction <add>, %43, %cst_17 [1] : vector<8x8xf32> to vector<8xf32>
    %45 = vector.shape_cast %44 : vector<8xf32> to vector<8x1xf32>
    %46 = tpu.reciprocal %45 {approx = true} : vector<8x1xf32> -> vector<8x1xf32>
    %47 = vector.broadcast %46 : vector<8x1xf32> to vector<8x8xf32>
    %48 = arith.mulf %43, %47 : vector<8x8xf32>
    %49 = arith.truncf %48 : vector<8x8xf32> to vector<8x8xbf16>
    %cst_18 = arith.constant dense<0.000000e+00> : vector<8x64xf32>
    %50 = tpu.matmul %49, %36, %cst_18 {dimension_numbers = #tpu.dot_dimension_numbers<[1], [0], [0], [1], [0, 0, 1, 1], [], []>} : vector<8x8xbf16>, vector<8x64xbf16>, vector<8x64xf32> -> vector<8x64xf32>
    %51 = arith.truncf %50 : vector<8x64xf32> to vector<8x64xbf16>
    %c64 = arith.constant 64 : index
    %c0_19 = arith.constant 0 : index
    %52 = vector.load %arg2[%c64, %c0_19] : memref<128x128xbf16, #tpu.memory_space<vmem>>, vector<64x128xbf16>
    %cst_20 = arith.constant dense<0.000000e+00> : vector<8x128xf32>
    %53 = tpu.matmul %51, %52, %cst_20 {dimension_numbers = #tpu.dot_dimension_numbers<[1], [0], [0], [1], [0, 0, 1, 1], [], []>} : vector<8x64xbf16>, vector<64x128xbf16>, vector<8x128xf32> -> vector<8x128xf32>
    %54 = arith.addf %33, %53 : vector<8x128xf32>
    %c0_21 = arith.constant 0 : index
    %c0_22 = arith.constant 0 : index
    %c0_23 = arith.constant 0 : index
    %55 = vector.load %arg5[%c0_21, %c0_22, %c0_23] : memref<1x8x128xf32, #tpu.memory_space<vmem>>, vector<1x8x128xf32>
    %56 = vector.shape_cast %55 : vector<1x8x128xf32> to vector<8x128xf32>
    %57 = vector.shape_cast %54 : vector<8x128xf32> to vector<1x8x128xf32>
    tpu.vector_store %arg5[%c0_21, %c0_22, %c0_23], %57 {strides = array<i32>} : memref<1x8x128xf32, #tpu.memory_space<vmem>>, vector<1x8x128xf32>,
    return
  }
  func.func @transform_0(%arg0: i32) -> (i32, i32, i32) {
    %c0_i32 = arith.constant 0 : i32
    %c0_i32_0 = arith.constant 0 : i32
    %c0_i32_1 = arith.constant 0 : i32
    return %arg0, %c0_i32, %c0_i32_0 : i32, i32, i32
  }
  func.func @transform_1(%arg0: i32) -> (i32, i32) {
    %c0_i32 = arith.constant 0 : i32
    %c0_i32_0 = arith.constant 0 : i32
    %c0_i32_1 = arith.constant 0 : i32
    return %c0_i32, %c0_i32_0 : i32, i32
  }
  func.func @transform_2(%arg0: i32) -> (i32, i32) {
    %c0_i32 = arith.constant 0 : i32
    %c0_i32_0 = arith.constant 0 : i32
    %c0_i32_1 = arith.constant 0 : i32
    return %c0_i32, %c0_i32_0 : i32, i32
  }
  func.func @transform_3(%arg0: i32) -> (i32, i32, i32) {
    %c0_i32 = arith.constant 0 : i32
    %c0_i32_0 = arith.constant 0 : i32
    %c0_i32_1 = arith.constant 0 : i32
    return %arg0, %c0_i32, %c0_i32_0 : i32, i32, i32
  }
  func.func @transform_4(%arg0: i32) -> (i32, i32, i32) {
    %c0_i32 = arith.constant 0 : i32
    %c0_i32_0 = arith.constant 0 : i32
    %c0_i32_1 = arith.constant 0 : i32
    return %arg0, %c0_i32, %c0_i32_0 : i32, i32, i32
  }
}

module attributes {stable_mosaic.version = 11 : i64} {
  func.func @_ln_linear_kernel(%arg0: i32, %arg1: memref<16x128xf32, #tpu.memory_space<vmem>>, %arg2: memref<1x128xf32, #tpu.memory_space<vmem>>, %arg3: memref<1x128xf32, #tpu.memory_space<vmem>>, %arg4: memref<128x128xbf16, #tpu.memory_space<vmem>>, %arg5: memref<1x128xf32, #tpu.memory_space<vmem>>, %arg6: memref<16x128xf32, #tpu.memory_space<vmem>>) attributes {dimension_semantics = [#tpu.dimension_semantics<parallel>], iteration_bounds = array<i64: 1>, scalar_prefetch = 0 : i64, scratch_operands = 0 : i64, tpu.core_type = #tpu.core_type<tc>, window_params = [{transform_indices = @transform_0, window_bounds = array<i64: 16, 128>}, {pipeline_mode = #tpu.pipeline_mode<synchronous>, transform_indices = @transform_1, window_bounds = array<i64: 1, 128>}, {pipeline_mode = #tpu.pipeline_mode<synchronous>, transform_indices = @transform_2, window_bounds = array<i64: 1, 128>}, {pipeline_mode = #tpu.pipeline_mode<synchronous>, transform_indices = @transform_3, window_bounds = array<i64: 128, 128>}, {pipeline_mode = #tpu.pipeline_mode<synchronous>, transform_indices = @transform_4, window_bounds = array<i64: 1, 128>}, {transform_indices = @transform_5, window_bounds = array<i64: 16, 128>}]} {
    %c0 = arith.constant 0 : index
    %c0_0 = arith.constant 0 : index
    %0 = vector.load %arg1[%c0, %c0_0] : memref<16x128xf32, #tpu.memory_space<vmem>>, vector<16x128xf32>
    %cst = arith.constant dense<0.000000e+00> : vector<16xf32>
    %1 = vector.multi_reduction <add>, %0, %cst [1] : vector<16x128xf32> to vector<16xf32>
    %2 = vector.shape_cast %1 : vector<16xf32> to vector<16x1xf32>
    %cst_1 = arith.constant 1.280000e+02 : f32
    %3 = vector.broadcast %cst_1 : f32 to vector<16x1xf32>
    %4 = arith.divf %2, %3 : vector<16x1xf32>
    %5 = vector.broadcast %4 : vector<16x1xf32> to vector<16x128xf32>
    %6 = arith.subf %0, %5 : vector<16x128xf32>
    %7 = arith.mulf %6, %6 : vector<16x128xf32>
    %cst_2 = arith.constant dense<0.000000e+00> : vector<16xf32>
    %8 = vector.multi_reduction <add>, %7, %cst_2 [1] : vector<16x128xf32> to vector<16xf32>
    %9 = vector.shape_cast %8 : vector<16xf32> to vector<16x1xf32>
    %cst_3 = arith.constant 1.280000e+02 : f32
    %10 = vector.broadcast %cst_3 : f32 to vector<16x1xf32>
    %11 = arith.divf %9, %10 : vector<16x1xf32>
    %cst_4 = arith.constant 9.99999974E-6 : f32
    %12 = vector.broadcast %cst_4 : f32 to vector<16x1xf32>
    %13 = arith.addf %11, %12 : vector<16x1xf32>
    %14 = math.rsqrt %13 : vector<16x1xf32>
    %15 = vector.broadcast %14 : vector<16x1xf32> to vector<16x128xf32>
    %16 = arith.mulf %6, %15 : vector<16x128xf32>
    %c0_5 = arith.constant 0 : index
    %c0_6 = arith.constant 0 : index
    %17 = vector.load %arg2[%c0_5, %c0_6] : memref<1x128xf32, #tpu.memory_space<vmem>>, vector<1x128xf32>
    %18 = vector.broadcast %17 : vector<1x128xf32> to vector<16x128xf32>
    %19 = arith.mulf %16, %18 : vector<16x128xf32>
    %c0_7 = arith.constant 0 : index
    %c0_8 = arith.constant 0 : index
    %20 = vector.load %arg3[%c0_7, %c0_8] : memref<1x128xf32, #tpu.memory_space<vmem>>, vector<1x128xf32>
    %21 = vector.broadcast %20 : vector<1x128xf32> to vector<16x128xf32>
    %22 = arith.addf %19, %21 : vector<16x128xf32>
    %23 = arith.truncf %22 : vector<16x128xf32> to vector<16x128xbf16>
    %c0_9 = arith.constant 0 : index
    %c0_10 = arith.constant 0 : index
    %24 = vector.load %arg4[%c0_9, %c0_10] : memref<128x128xbf16, #tpu.memory_space<vmem>>, vector<128x128xbf16>
    %cst_11 = arith.constant dense<0.000000e+00> : vector<16x128xf32>
    %25 = tpu.matmul %23, %24, %cst_11 {dimension_numbers = #tpu.dot_dimension_numbers<[1], [0], [0], [1], [0, 0, 1, 1], [], []>} : vector<16x128xbf16>, vector<128x128xbf16>, vector<16x128xf32> -> vector<16x128xf32>
    %c0_12 = arith.constant 0 : index
    %c0_13 = arith.constant 0 : index
    %26 = vector.load %arg5[%c0_12, %c0_13] : memref<1x128xf32, #tpu.memory_space<vmem>>, vector<1x128xf32>
    %27 = vector.broadcast %26 : vector<1x128xf32> to vector<16x128xf32>
    %28 = arith.addf %25, %27 : vector<16x128xf32>
    %c0_14 = arith.constant 0 : index
    %c0_15 = arith.constant 0 : index
    %29 = vector.load %arg6[%c0_14, %c0_15] : memref<16x128xf32, #tpu.memory_space<vmem>>, vector<16x128xf32>
    tpu.vector_store %arg6[%c0_14, %c0_15], %28 {strides = array<i32>} : memref<16x128xf32, #tpu.memory_space<vmem>>, vector<16x128xf32>,
    return
  }
  func.func @transform_0(%arg0: i32) -> (i32, i32) {
    %c0_i32 = arith.constant 0 : i32
    %c0_i32_0 = arith.constant 0 : i32
    return %arg0, %c0_i32 : i32, i32
  }
  func.func @transform_1(%arg0: i32) -> (i32, i32) {
    %c0_i32 = arith.constant 0 : i32
    %c0_i32_0 = arith.constant 0 : i32
    %c0_i32_1 = arith.constant 0 : i32
    return %c0_i32, %c0_i32_0 : i32, i32
  }
  func.func @transform_2(%arg0: i32) -> (i32, i32) {
    %c0_i32 = arith.constant 0 : i32
    %c0_i32_0 = arith.constant 0 : i32
    %c0_i32_1 = arith.constant 0 : i32
    return %c0_i32, %c0_i32_0 : i32, i32
  }
  func.func @transform_3(%arg0: i32) -> (i32, i32) {
    %c0_i32 = arith.constant 0 : i32
    %c0_i32_0 = arith.constant 0 : i32
    %c0_i32_1 = arith.constant 0 : i32
    return %c0_i32, %c0_i32_0 : i32, i32
  }
  func.func @transform_4(%arg0: i32) -> (i32, i32) {
    %c0_i32 = arith.constant 0 : i32
    %c0_i32_0 = arith.constant 0 : i32
    %c0_i32_1 = arith.constant 0 : i32
    return %c0_i32, %c0_i32_0 : i32, i32
  }
  func.func @transform_5(%arg0: i32) -> (i32, i32) {
    %c0_i32 = arith.constant 0 : i32
    %c0_i32_0 = arith.constant 0 : i32
    return %arg0, %c0_i32 : i32, i32
  }
}

</mosaic_0001>

<llo_original>
// kernel: clip_forward.25
$region0: #{clip_forward.25}
  #allocation0 [shape = 'u32[]', space=smem, size = 0x4, offset = 0x4, fixed_abs, tag = 'smem constant byte address 0x4 - core index']
  #allocation1 [shape = 'u32[144,128]{1,0:T(1,128)}', space=vmem, size = 0x12000, scoped, tag = 'internal scratch']
  %s0 = inlined_call_operand.vmem [shape: f32[16,128], index: 0, kind: input, shape index: {}]
  %s1 = inlined_call_operand.hbm [shape: f32[1,128], index: 1, kind: input, shape index: {}]
  %s2 = inlined_call_operand.hbm [shape: f32[1,128], index: 2, kind: input, shape index: {}]
  %s3 = inlined_call_operand.vmem [shape: bf16[128,384], index: 3, kind: input, shape index: {}]
  %s4 = inlined_call_operand.vmem [shape: f32[1,384], index: 4, kind: input, shape index: {}]
  %s5 = inlined_call_operand.vmem [shape: bf16[16,384], index: 5, kind: output, shape index: {}]
  %s6 = sld [smem:[#allocation0]]
  $region38: #{clip_forward.25} parent=0
    _
  %s8 = ssub.s32 1, %s6
  %s9 = scalar_select 0, %s8, %s6
  $region1: #{clip_forward.25} parent=0
    #allocation2 [shape = 'u8[512]{0}', space=vmem, size = 0x400, scoped, tag = 'input window, operand 1, single buffered']
    #allocation3 [shape = 's32[1]{0}', space=sflag, size = 0x4, scoped, tag = 'scoped memory for clip_forward.25']
    #allocation4 [shape = 'u8[512]{0}', space=vmem, size = 0x400, scoped, tag = 'input window, operand 2, single buffered']
    #allocation5 [shape = 's32[1]{0}', space=sflag, size = 0x4, scoped, tag = 'scoped memory for clip_forward.25']
    %10 = vsyncpa [#allocation3], 0
    %11 = vsyncpa [#allocation5], 0
    // Predicated region
    $region2: #{clip_forward.25} parent=1 // pred_check
      _
    $region3: #{clip_forward.25} parent=1 // pred_check_branch
      %13 = sbr.rel (0) target = $region5
    $region4: #{clip_forward.25} parent=1 // pred_region
      _
    $region5: #{clip_forward.25} parent=1 // pred_fallthru
      _
    // Predicated region
    $region6: #{clip_forward.25} parent=1 // pred_check
      _
    $region7: #{clip_forward.25} parent=1 // pred_check_branch
      %15 = sbr.rel (0) target = $region9
    $region8: #{clip_forward.25} parent=1 // pred_region
      %s17 = ssub.s32 16, 16
      %18 = vsyncadd [#allocation3], %s17
      %s20 = sshll.u32 [#allocation2], 4
      %s21 = int_to_ptr.vmem [resolvable:$true] %s20
      %23 = dma.hbm_to_vmem [thread:$0]  %s1, 16, %s21, [#allocation3]
    $region9: #{clip_forward.25} parent=1 // pred_fallthru
      _
    // Predicated region
    $region10: #{clip_forward.25} parent=1 // pred_check
      _
    $region11: #{clip_forward.25} parent=1 // pred_check_branch
      %25 = sbr.rel (0) target = $region13
    $region12: #{clip_forward.25} parent=1 // pred_region
      %s27 = ssub.s32 16, 16
      %28 = vsyncadd [#allocation5], %s27
      %s30 = sshll.u32 [#allocation4], 4
      %s31 = int_to_ptr.vmem [resolvable:$true] %s30
      %33 = dma.hbm_to_vmem [thread:$0]  %s2, 16, %s31, [#allocation5]
    $region13: #{clip_forward.25} parent=1 // pred_fallthru
      _
    // Predicated region
    $region14: #{clip_forward.25} parent=1 // pred_check
      _
    $region15: #{clip_forward.25} parent=1 // pred_check_branch
      %35 = sbr.rel (0) target = $region17
    $region16: #{clip_forward.25} parent=1 // pred_region
      _
    $region17: #{clip_forward.25} parent=1 // pred_fallthru
      _
    // Predicated region
    $region18: #{clip_forward.25} parent=1 // pred_check
      _
    $region19: #{clip_forward.25} parent=1 // pred_check_branch
      %37 = sbr.rel (0) target = $region21
    $region20: #{clip_forward.25} parent=1 // pred_region
      _
    $region21: #{clip_forward.25} parent=1 // pred_fallthru
      _
    // Predicated region
    $region22: #{clip_forward.25} parent=1 // pred_check
      _
    $region23: #{clip_forward.25} parent=1 // pred_check_branch
      %39 = sbr.rel (0) target = $region25
    $region24: #{clip_forward.25} parent=1 // pred_region
      %40 = dma.done [#allocation3], 16
    $region25: #{clip_forward.25} parent=1 // pred_fallthru
      _
    // Predicated region
    $region26: #{clip_forward.25} parent=1 // pred_check
      _
    $region27: #{clip_forward.25} parent=1 // pred_check_branch
      %42 = sbr.rel (0) target = $region29
    $region28: #{clip_forward.25} parent=1 // pred_region
      %43 = dma.done [#allocation5], 16
    $region29: #{clip_forward.25} parent=1 // pred_fallthru
      _
    %v45 = vld [vmem:[%s0] sm:$0xff]
    %v46 = vld [vmem:[%s0 + $0x8] sm:$0xff]
    %47 = vadd.xlane.f32.xlu0 %v45
    %v48 = vpop.xlane.xlu0 %47
    %49 = vadd.xlane.f32.xlu0 %v46
    %v50 = vpop.xlane.xlu0 %49
    %v51 = vrcp.pop 128.0
    %v52 = vmul.f32 %v48, %v51
    %v53 = vmul.f32 %v50, %v51
    %v54 = vsub.f32 %v45, %v52
    %v55 = vsub.f32 %v46, %v53
    %v56 = vmul.f32 %v54, %v54
    %v57 = vmul.f32 %v55, %v55
    %58 = vadd.xlane.f32.xlu0 %v56
    %v59 = vpop.xlane.xlu0 %58
    %60 = vadd.xlane.f32.xlu0 %v57
    %v61 = vpop.xlane.xlu0 %60
    %v62 = vmul.f32 %v59, %v51
    %v63 = vmul.f32 %v61, %v51
    %v64 = vadd.f32 %v62, 1e-05
    %v65 = vadd.f32 %v63, 1e-05
    %v66 = vrsqrt.pop %v64
    %v67 = vrsqrt.pop %v65
    %v68 = vmul.f32 %v54, %v66
    %v69 = vmul.f32 %v55, %v67
    %v70 = vld [vmem:[#allocation2] sm:$0x1]
    %v72 = vlaneseq
    %v73 = vshrl.u32 %v72, 7
    %v74 = vsub.s32 0, %v73
    %v75 = vrot.slane %v70, %v74
    %v77 = vmul.f32 %v68, %v75
    %v78 = vmul.f32 %v69, %v75
    %v79 = vld [vmem:[#allocation4] sm:$0x1]
    %v81 = vlaneseq
    %v82 = vshrl.u32 %v81, 7
    %v83 = vsub.s32 0, %v82
    %v84 = vrot.slane %v79, %v83
    %v86 = vadd.f32 %v77, %v84
    %v87 = vadd.f32 %v78, %v84
    %v88 = vpack.c.bf16 %v87, %v86
    %v89 = vld [vmem:[%s3] sm:$0xff]
    %v90 = vld [vmem:[%s3 + $0x8] sm:$0xf]
    %v91 = vld [vmem:[%s3 + $0xc] sm:$0xff]
    %v92 = vld [vmem:[%s3 + $0x14] sm:$0xf]
    %v93 = vld [vmem:[%s3 + $0x18] sm:$0xff]
    %v94 = vld [vmem:[%s3 + $0x20] sm:$0xf]
    %v95 = vld [vmem:[%s3 + $0x24] sm:$0xff]
    %v96 = vld [vmem:[%s3 + $0x2c] sm:$0xf]
    %v97 = vld [vmem:[%s3 + $0x30] sm:$0xff]
    %v98 = vld [vmem:[%s3 + $0x38] sm:$0xf]
    %v99 = vld [vmem:[%s3 + $0x3c] sm:$0xff]
    %v100 = vld [vmem:[%s3 + $0x44] sm:$0xf]
    %v101 = vld [vmem:[%s3 + $0x48] sm:$0xff]
    %v102 = vld [vmem:[%s3 + $0x50] sm:$0xf]
    %v103 = vld [vmem:[%s3 + $0x54] sm:$0xff]
    %v104 = vld [vmem:[%s3 + $0x5c] sm:$0xf]
    %v105 = vld [vmem:[%s3 + $0x60] sm:$0xff]
    %v106 = vld [vmem:[%s3 + $0x68] sm:$0xf]
    %v107 = vld [vmem:[%s3 + $0x6c] sm:$0xff]
    %v108 = vld [vmem:[%s3 + $0x74] sm:$0xf]
    %v109 = vld [vmem:[%s3 + $0x78] sm:$0xff]
    %v110 = vld [vmem:[%s3 + $0x80] sm:$0xf]
    %v111 = vld [vmem:[%s3 + $0x84] sm:$0xff]
    %v112 = vld [vmem:[%s3 + $0x8c] sm:$0xf]
    %v113 = vld [vmem:[%s3 + $0x90] sm:$0xff]
    %v114 = vld [vmem:[%s3 + $0x98] sm:$0xf]
    %v115 = vld [vmem:[%s3 + $0x9c] sm:$0xff]
    %v116 = vld [vmem:[%s3 + $0xa4] sm:$0xf]
    %v117 = vld [vmem:[%s3 + $0xa8] sm:$0xff]
    %v118 = vld [vmem:[%s3 + $0xb0] sm:$0xf]
    %v119 = vld [vmem:[%s3 + $0xb4] sm:$0xff]
    %v120 = vld [vmem:[%s3 + $0xbc] sm:$0xf]
    %v121 = vld [vmem:[%s4] sm:$0x7]
    %v123 = vlaneseq
    %v124 = vshrl.u32 %v123, 7
    %v125 = vsub.s32 0, %v124
    %v126 = vrot.slane %v121, %v125
    %v127 = vlaneseq
    %v128 = vshrl.u32 %v127, 7
    %v129 = vsub.s32 1, %v128
    %v130 = vrot.slane %v121, %v129
    %v131 = vlaneseq
    %v132 = vshrl.u32 %v131, 7
    %v133 = vsub.s32 2, %v132
    %v134 = vrot.slane %v121, %v133
    %v170 = vunpack.c.l.b16 %v89
    %v171 = vunpack.c.h.b16 %v89
    %v172 = vunpack.c.l.b16 %v90
    %v173 = vunpack.c.l.b16 %v91
    %v174 = vunpack.c.h.b16 %v91
    %v175 = vunpack.c.l.b16 %v92
    %v176 = vunpack.c.l.b16 %v93
    %v177 = vunpack.c.h.b16 %v93
    %v178 = vunpack.c.l.b16 %v94
    %v179 = vunpack.c.l.b16 %v95
    %v180 = vunpack.c.h.b16 %v95
    %v181 = vunpack.c.l.b16 %v96
    %v182 = vunpack.c.l.b16 %v97
    %v183 = vunpack.c.h.b16 %v97
    %v184 = vunpack.c.l.b16 %v98
    %v185 = vunpack.c.l.b16 %v99
    %v186 = vunpack.c.h.b16 %v99
    %v187 = vunpack.c.l.b16 %v100
    %v188 = vunpack.c.l.b16 %v101
    %v189 = vunpack.c.h.b16 %v101
    %v190 = vunpack.c.l.b16 %v102
    %v191 = vunpack.c.l.b16 %v103
    %v192 = vunpack.c.h.b16 %v103
    %v193 = vunpack.c.l.b16 %v104
    %v194 = vunpack.c.l.b16 %v105
    %v195 = vunpack.c.h.b16 %v105
    %v196 = vunpack.c.l.b16 %v106
    %v197 = vunpack.c.l.b16 %v107
    %v198 = vunpack.c.h.b16 %v107
    %v199 = vunpack.c.l.b16 %v108
    %v200 = vunpack.c.l.b16 %v109
    %v201 = vunpack.c.h.b16 %v109
    %v202 = vunpack.c.l.b16 %v110
    %v203 = vunpack.c.l.b16 %v111
    %v204 = vunpack.c.h.b16 %v111
    %v205 = vunpack.c.l.b16 %v112
    %v206 = vunpack.c.l.b16 %v113
    %v207 = vunpack.c.h.b16 %v113
    %v208 = vunpack.c.l.b16 %v114
    %v209 = vunpack.c.l.b16 %v115
    %v210 = vunpack.c.h.b16 %v115
    %v211 = vunpack.c.l.b16 %v116
    %v212 = vunpack.c.l.b16 %v117
    %v213 = vunpack.c.h.b16 %v117
    %v214 = vunpack.c.l.b16 %v118
    %v215 = vunpack.c.l.b16 %v119
    %v216 = vunpack.c.h.b16 %v119
    %v217 = vunpack.c.l.b16 %v120
    %v218 = vpack.c.b16 %v173, %v170
    %v219 = vpack.c.b16 %v174, %v171
    %v220 = vpack.c.b16 %v175, %v172
    %v221 = vpack.c.b16 %v179, %v176
    %v222 = vpack.c.b16 %v180, %v177
    %v223 = vpack.c.b16 %v181, %v178
    %v224 = vpack.c.b16 %v185, %v182
    %v225 = vpack.c.b16 %v186, %v183
    %v226 = vpack.c.b16 %v187, %v184
    %v227 = vpack.c.b16 %v191, %v188
    %v228 = vpack.c.b16 %v192, %v189
    %v229 = vpack.c.b16 %v193, %v190
    %v230 = vpack.c.b16 %v197, %v194
    %v231 = vpack.c.b16 %v198, %v195
    %v232 = vpack.c.b16 %v199, %v196
    %v233 = vpack.c.b16 %v203, %v200
    %v234 = vpack.c.b16 %v204, %v201
    %v235 = vpack.c.b16 %v205, %v202
    %v236 = vpack.c.b16 %v209, %v206
    %v237 = vpack.c.b16 %v210, %v207
    %v238 = vpack.c.b16 %v211, %v208
    %v239 = vpack.c.b16 %v215, %v212
    %v240 = vpack.c.b16 %v216, %v213
    %v241 = vpack.c.b16 %v217, %v214
    %266 = vmatprep.subr.bf16.mxu0 %v240
    %267 = vmatpush1.bf16.msra.mxu0 %v239
    %268 = vmatprep.subr.bf16.mxu0 %v237
    %269 = vmatpush1.bf16.msra.mxu0 %v236
    %270 = vmatprep.subr.bf16.mxu0 %v234
    %271 = vmatpush1.bf16.msra.mxu0 %v233
    %272 = vmatprep.subr.bf16.mxu0 %v231
    %273 = vmatpush1.bf16.msra.mxu0 %v230
    %274 = vmatprep.subr.bf16.mxu0 %v228
    %275 = vmatpush1.bf16.msra.mxu0 %v227
    %276 = vmatprep.subr.bf16.mxu0 %v225
    %277 = vmatpush1.bf16.msra.mxu0 %v224
    %278 = vmatprep.subr.bf16.mxu0 %v222
    %279 = vmatpush1.bf16.msra.mxu0 %v221
    %280 = vmatprep.subr.bf16.mxu0 %v219
    %281 = vmatpush1.bf16.msra.mxu0 %v218
    %282 = vmatprep.subr.bf16.mxu0 0
    %283 = vmatpush2.bf16.msra.mxu0 0
    %284 = vmatprep.subr.bf16.mxu0 0
    %285 = vmatpush2.bf16.msra.mxu0 0
    %286 = vmatprep.subr.bf16.mxu0 0
    %287 = vmatpush2.bf16.msra.mxu0 0
    %288 = vmatprep.subr.bf16.mxu0 0
    %289 = vmatpush2.bf16.msra.mxu0 0
    %290 = vmatprep.subr.bf16.mxu0 0
    %291 = vmatpush2.bf16.msra.mxu0 0
    %292 = vmatprep.subr.bf16.mxu0 0
    %293 = vmatpush2.bf16.msra.mxu0 0
    %294 = vmatprep.subr.bf16.mxu0 0
    %295 = vmatpush2.bf16.msra.mxu0 0
    %296 = vmatprep.subr.bf16.mxu0 0
    %297 = vmatpush2.bf16.msra.mxu0 0
    %298 = vmatprep.mubr.bf16.mxu0 0
    %299 = vmatmul.mubr.bf16.gmra.mxu0 %v88
    %v300 = vpop.f32.mrf.mxu0
    %v301 = vadd.f32 %v126, %v300
    %v302 = vpop.f32.mrf.mxu0
    %v303 = vadd.f32 %v130, %v302
    %v304 = vpop.f32.mrf.mxu0
    %v305 = vadd.f32 %v126, %v304
    %v306 = vpop.f32.mrf.mxu0
    %v307 = vadd.f32 %v130, %v306
    %308 = vdwg.mxu0
    %309 = vmatprep.subr.bf16.mxu0 0
    %310 = vmatpush1.bf16.msra.mxu0 %v241
    %311 = vmatprep.subr.bf16.mxu0 0
    %312 = vmatpush1.bf16.msra.mxu0 %v238
    %313 = vmatprep.subr.bf16.mxu0 0
    %314 = vmatpush1.bf16.msra.mxu0 %v235
    %315 = vmatprep.subr.bf16.mxu0 0
    %316 = vmatpush1.bf16.msra.mxu0 %v232
    %317 = vmatprep.subr.bf16.mxu0 0
    %318 = vmatpush1.bf16.msra.mxu0 %v229
    %319 = vmatprep.subr.bf16.mxu0 0
    %320 = vmatpush1.bf16.msra.mxu0 %v226
    %321 = vmatprep.subr.bf16.mxu0 0
    %322 = vmatpush1.bf16.msra.mxu0 %v223
    %323 = vmatprep.subr.bf16.mxu0 0
    %324 = vmatpush1.bf16.msra.mxu0 %v220
    %325 = vmatprep.subr.bf16.mxu0 0
    %326 = vmatpush2.bf16.msra.mxu0 0
    %327 = vmatprep.subr.bf16.mxu0 0
    %328 = vmatpush2.bf16.msra.mxu0 0
    %329 = vmatprep.subr.bf16.mxu0 0
    %330 = vmatpush2.bf16.msra.mxu0 0
    %331 = vmatprep.subr.bf16.mxu0 0
    %332 = vmatpush2.bf16.msra.mxu0 0
    %333 = vmatprep.subr.bf16.mxu0 0
    %334 = vmatpush2.bf16.msra.mxu0 0
    %335 = vmatprep.subr.bf16.mxu0 0
    %336 = vmatpush2.bf16.msra.mxu0 0
    %337 = vmatprep.subr.bf16.mxu0 0
    %338 = vmatpush2.bf16.msra.mxu0 0
    %339 = vmatprep.subr.bf16.mxu0 0
    %340 = vmatpush2.bf16.msra.mxu0 0
    %341 = vmatprep.mubr.bf16.mxu0 0
    %342 = vmatmul.mubr.bf16.gmra.mxu0 %v88
    %v343 = vpop.f32.mrf.mxu0
    %v344 = vadd.f32 %v134, %v343
    %v345 = vpop.f32.mrf.mxu0
    %v346 = vpop.f32.mrf.mxu0
    %v347 = vadd.f32 %v134, %v346
    %v348 = vpop.f32.mrf.mxu0
    %349 = vdwg.mxu0
    %v350 = vpack.c.bf16 %v305, %v301
    %v351 = vpack.c.bf16 %v307, %v303
    %v352 = vpack.c.bf16 %v347, %v344
    %v356 = vunpack.c.l.b16 %v350
    %v357 = vunpack.c.l.b16 %v351
    %v358 = vunpack.c.l.b16 %v352
    %v359 = vunpack.c.h.b16 %v350
    %v360 = vunpack.c.h.b16 %v351
    %v361 = vunpack.c.h.b16 %v352
    %v362 = vpack.c.b16 %v357, %v356
    %v363 = vpack.c.b16 %v358, %v358
    %v364 = vpack.c.b16 %v360, %v359
    %v365 = vpack.c.b16 %v361, %v361
    %370 = vst [vmem:[%s5] sm:$0xff] %v362
    %371 = vst [vmem:[%s5 + $0x8] sm:$0xf] %v363
    %372 = vst [vmem:[%s5 + $0xc] sm:$0xff] %v364
    %373 = vst [vmem:[%s5 + $0x14] sm:$0xf] %v365
    // Predicated region
    $region30: #{clip_forward.25} parent=1 // pred_check
      _
    $region31: #{clip_forward.25} parent=1 // pred_check_branch
      %375 = sbr.rel (0) target = $region33
    $region32: #{clip_forward.25} parent=1 // pred_region
      _
    $region33: #{clip_forward.25} parent=1 // pred_fallthru
      _
    // Predicated region
    $region34: #{clip_forward.25} parent=1 // pred_check
      _
    $region35: #{clip_forward.25} parent=1 // pred_check_branch
      %377 = sbr.rel (0) target = $region37
    $region36: #{clip_forward.25} parent=1 // pred_region
      _
    $region37: #{clip_forward.25} parent=1 // pred_fallthru
      _
    %378 = vsyncpa [#allocation3], 1
    %379 = vsyncpa [#allocation5], 1

// kernel: clip_forward.28
$region0: #{clip_forward.28}
  #allocation0 [shape = 'u32[]', space=smem, size = 0x4, offset = 0x4, fixed_abs, tag = 'smem constant byte address 0x4 - core index']
  #allocation1 [shape = 'u32[144,128]{1,0:T(1,128)}', space=vmem, size = 0x12000, scoped, tag = 'internal scratch']
  %s0 = inlined_call_operand.vmem [shape: f32[16,128], index: 0, kind: input, shape index: {}]
  %s1 = inlined_call_operand.vmem [shape: f32[1,128], index: 1, kind: input, shape index: {}]
  %s2 = inlined_call_operand.vmem [shape: f32[1,128], index: 2, kind: input, shape index: {}]
  %s3 = inlined_call_operand.vmem [shape: bf16[128,384], index: 3, kind: input, shape index: {}]
  %s4 = inlined_call_operand.vmem [shape: f32[1,384], index: 4, kind: input, shape index: {}]
  %s5 = inlined_call_operand.vmem [shape: bf16[16,384], index: 5, kind: output, shape index: {}]
  %s6 = sld [smem:[#allocation0]]
  $region30: #{clip_forward.28} parent=0
    _
  %s8 = ssub.s32 1, %s6
  %s9 = scalar_select 0, %s8, %s6
  // Predicated region
  $region2: #{clip_forward.28} parent=0 // pred_check
    _
  $region3: #{clip_forward.28} parent=0 // pred_check_branch
    %11 = sbr.rel (0) target = $region5
  $region4: #{clip_forward.28} parent=0 // pred_region
    _
  $region5: #{clip_forward.28} parent=0 // pred_fallthru
    _
  // Predicated region
  $region6: #{clip_forward.28} parent=0 // pred_check
    _
  $region7: #{clip_forward.28} parent=0 // pred_check_branch
    %13 = sbr.rel (0) target = $region9
  $region8: #{clip_forward.28} parent=0 // pred_region
    _
  $region9: #{clip_forward.28} parent=0 // pred_fallthru
    _
  // Predicated region
  $region10: #{clip_forward.28} parent=0 // pred_check
    _
  $region11: #{clip_forward.28} parent=0 // pred_check_branch
    %15 = sbr.rel (0) target = $region13
  $region12: #{clip_forward.28} parent=0 // pred_region
    _
  $region13: #{clip_forward.28} parent=0 // pred_fallthru
    _
  // Predicated region
  $region14: #{clip_forward.28} parent=0 // pred_check
    _
  $region15: #{clip_forward.28} parent=0 // pred_check_branch
    %17 = sbr.rel (0) target = $region17
  $region16: #{clip_forward.28} parent=0 // pred_region
    _
  $region17: #{clip_forward.28} parent=0 // pred_fallthru
    _
  // Predicated region
  $region18: #{clip_forward.28} parent=0 // pred_check
    _
  $region19: #{clip_forward.28} parent=0 // pred_check_branch
    %19 = sbr.rel (0) target = $region21
  $region20: #{clip_forward.28} parent=0 // pred_region
    _
  $region21: #{clip_forward.28} parent=0 // pred_fallthru
    _
  %v21 = vld [vmem:[%s0] sm:$0xff]
  %v22 = vld [vmem:[%s0 + $0x8] sm:$0xff]
  %23 = vadd.xlane.f32.xlu0 %v21
  %v24 = vpop.xlane.xlu0 %23
  %25 = vadd.xlane.f32.xlu0 %v22
  %v26 = vpop.xlane.xlu0 %25
  %v27 = vrcp.pop 128.0
  %v28 = vmul.f32 %v24, %v27
  %v29 = vmul.f32 %v26, %v27
  %v30 = vsub.f32 %v21, %v28
  %v31 = vsub.f32 %v22, %v29
  %v32 = vmul.f32 %v30, %v30
  %v33 = vmul.f32 %v31, %v31
  %34 = vadd.xlane.f32.xlu0 %v32
  %v35 = vpop.xlane.xlu0 %34
  %36 = vadd.xlane.f32.xlu0 %v33
  %v37 = vpop.xlane.xlu0 %36
  %v38 = vmul.f32 %v35, %v27
  %v39 = vmul.f32 %v37, %v27
  %v40 = vadd.f32 %v38, 1e-05
  %v41 = vadd.f32 %v39, 1e-05
  %v42 = vrsqrt.pop %v40
  %v43 = vrsqrt.pop %v41
  %v44 = vmul.f32 %v30, %v42
  %v45 = vmul.f32 %v31, %v43
  %v46 = vld [vmem:[%s1] sm:$0x1]
  %v48 = vlaneseq
  %v49 = vshrl.u32 %v48, 7
  %v50 = vsub.s32 0, %v49
  %v51 = vrot.slane %v46, %v50
  %v53 = vmul.f32 %v44, %v51
  %v54 = vmul.f32 %v45, %v51
  %v55 = vld [vmem:[%s2] sm:$0x1]
  %v57 = vlaneseq
  %v58 = vshrl.u32 %v57, 7
  %v59 = vsub.s32 0, %v58
  %v60 = vrot.slane %v55, %v59
  %v62 = vadd.f32 %v53, %v60
  %v63 = vadd.f32 %v54, %v60
  %v64 = vpack.c.bf16 %v63, %v62
  %v65 = vld [vmem:[%s3] sm:$0xff]
  %v66 = vld [vmem:[%s3 + $0x8] sm:$0xf]
  %v67 = vld [vmem:[%s3 + $0xc] sm:$0xff]
  %v68 = vld [vmem:[%s3 + $0x14] sm:$0xf]
  %v69 = vld [vmem:[%s3 + $0x18] sm:$0xff]
  %v70 = vld [vmem:[%s3 + $0x20] sm:$0xf]
  %v71 = vld [vmem:[%s3 + $0x24] sm:$0xff]
  %v72 = vld [vmem:[%s3 + $0x2c] sm:$0xf]
  %v73 = vld [vmem:[%s3 + $0x30] sm:$0xff]
  %v74 = vld [vmem:[%s3 + $0x38] sm:$0xf]
  %v75 = vld [vmem:[%s3 + $0x3c] sm:$0xff]
  %v76 = vld [vmem:[%s3 + $0x44] sm:$0xf]
  %v77 = vld [vmem:[%s3 + $0x48] sm:$0xff]
  %v78 = vld [vmem:[%s3 + $0x50] sm:$0xf]
  %v79 = vld [vmem:[%s3 + $0x54] sm:$0xff]
  %v80 = vld [vmem:[%s3 + $0x5c] sm:$0xf]
  %v81 = vld [vmem:[%s3 + $0x60] sm:$0xff]
  %v82 = vld [vmem:[%s3 + $0x68] sm:$0xf]
  %v83 = vld [vmem:[%s3 + $0x6c] sm:$0xff]
  %v84 = vld [vmem:[%s3 + $0x74] sm:$0xf]
  %v85 = vld [vmem:[%s3 + $0x78] sm:$0xff]
  %v86 = vld [vmem:[%s3 + $0x80] sm:$0xf]
  %v87 = vld [vmem:[%s3 + $0x84] sm:$0xff]
  %v88 = vld [vmem:[%s3 + $0x8c] sm:$0xf]
  %v89 = vld [vmem:[%s3 + $0x90] sm:$0xff]
  %v90 = vld [vmem:[%s3 + $0x98] sm:$0xf]
  %v91 = vld [vmem:[%s3 + $0x9c] sm:$0xff]
  %v92 = vld [vmem:[%s3 + $0xa4] sm:$0xf]
  %v93 = vld [vmem:[%s3 + $0xa8] sm:$0xff]
  %v94 = vld [vmem:[%s3 + $0xb0] sm:$0xf]
  %v95 = vld [vmem:[%s3 + $0xb4] sm:$0xff]
  %v96 = vld [vmem:[%s3 + $0xbc] sm:$0xf]
  %v97 = vld [vmem:[%s4] sm:$0x7]
  %v99 = vlaneseq
  %v100 = vshrl.u32 %v99, 7
  %v101 = vsub.s32 0, %v100
  %v102 = vrot.slane %v97, %v101
  %v103 = vlaneseq
  %v104 = vshrl.u32 %v103, 7
  %v105 = vsub.s32 1, %v104
  %v106 = vrot.slane %v97, %v105
  %v107 = vlaneseq
  %v108 = vshrl.u32 %v107, 7
  %v109 = vsub.s32 2, %v108
  %v110 = vrot.slane %v97, %v109
  %v146 = vunpack.c.l.b16 %v65
  %v147 = vunpack.c.h.b16 %v65
  %v148 = vunpack.c.l.b16 %v66
  %v149 = vunpack.c.l.b16 %v67
  %v150 = vunpack.c.h.b16 %v67
  %v151 = vunpack.c.l.b16 %v68
  %v152 = vunpack.c.l.b16 %v69
  %v153 = vunpack.c.h.b16 %v69
  %v154 = vunpack.c.l.b16 %v70
  %v155 = vunpack.c.l.b16 %v71
  %v156 = vunpack.c.h.b16 %v71
  %v157 = vunpack.c.l.b16 %v72
  %v158 = vunpack.c.l.b16 %v73
  %v159 = vunpack.c.h.b16 %v73
  %v160 = vunpack.c.l.b16 %v74
  %v161 = vunpack.c.l.b16 %v75
  %v162 = vunpack.c.h.b16 %v75
  %v163 = vunpack.c.l.b16 %v76
  %v164 = vunpack.c.l.b16 %v77
  %v165 = vunpack.c.h.b16 %v77
  %v166 = vunpack.c.l.b16 %v78
  %v167 = vunpack.c.l.b16 %v79
  %v168 = vunpack.c.h.b16 %v79
  %v169 = vunpack.c.l.b16 %v80
  %v170 = vunpack.c.l.b16 %v81
  %v171 = vunpack.c.h.b16 %v81
  %v172 = vunpack.c.l.b16 %v82
  %v173 = vunpack.c.l.b16 %v83
  %v174 = vunpack.c.h.b16 %v83
  %v175 = vunpack.c.l.b16 %v84
  %v176 = vunpack.c.l.b16 %v85
  %v177 = vunpack.c.h.b16 %v85
  %v178 = vunpack.c.l.b16 %v86
  %v179 = vunpack.c.l.b16 %v87
  %v180 = vunpack.c.h.b16 %v87
  %v181 = vunpack.c.l.b16 %v88
  %v182 = vunpack.c.l.b16 %v89
  %v183 = vunpack.c.h.b16 %v89
  %v184 = vunpack.c.l.b16 %v90
  %v185 = vunpack.c.l.b16 %v91
  %v186 = vunpack.c.h.b16 %v91
  %v187 = vunpack.c.l.b16 %v92
  %v188 = vunpack.c.l.b16 %v93
  %v189 = vunpack.c.h.b16 %v93
  %v190 = vunpack.c.l.b16 %v94
  %v191 = vunpack.c.l.b16 %v95
  %v192 = vunpack.c.h.b16 %v95
  %v193 = vunpack.c.l.b16 %v96
  %v194 = vpack.c.b16 %v149, %v146
  %v195 = vpack.c.b16 %v150, %v147
  %v196 = vpack.c.b16 %v151, %v148
  %v197 = vpack.c.b16 %v155, %v152
  %v198 = vpack.c.b16 %v156, %v153
  %v199 = vpack.c.b16 %v157, %v154
  %v200 = vpack.c.b16 %v161, %v158
  %v201 = vpack.c.b16 %v162, %v159
  %v202 = vpack.c.b16 %v163, %v160
  %v203 = vpack.c.b16 %v167, %v164
  %v204 = vpack.c.b16 %v168, %v165
  %v205 = vpack.c.b16 %v169, %v166
  %v206 = vpack.c.b16 %v173, %v170
  %v207 = vpack.c.b16 %v174, %v171
  %v208 = vpack.c.b16 %v175, %v172
  %v209 = vpack.c.b16 %v179, %v176
  %v210 = vpack.c.b16 %v180, %v177
  %v211 = vpack.c.b16 %v181, %v178
  %v212 = vpack.c.b16 %v185, %v182
  %v213 = vpack.c.b16 %v186, %v183
  %v214 = vpack.c.b16 %v187, %v184
  %v215 = vpack.c.b16 %v191, %v188
  %v216 = vpack.c.b16 %v192, %v189
  %v217 = vpack.c.b16 %v193, %v190
  %242 = vmatprep.subr.bf16.mxu0 %v216
  %243 = vmatpush1.bf16.msra.mxu0 %v215
  %244 = vmatprep.subr.bf16.mxu0 %v213
  %245 = vmatpush1.bf16.msra.mxu0 %v212
  %246 = vmatprep.subr.bf16.mxu0 %v210
  %247 = vmatpush1.bf16.msra.mxu0 %v209
  %248 = vmatprep.subr.bf16.mxu0 %v207
  %249 = vmatpush1.bf16.msra.mxu0 %v206
  %250 = vmatprep.subr.bf16.mxu0 %v204
  %251 = vmatpush1.bf16.msra.mxu0 %v203
  %252 = vmatprep.subr.bf16.mxu0 %v201
  %253 = vmatpush1.bf16.msra.mxu0 %v200
  %254 = vmatprep.subr.bf16.mxu0 %v198
  %255 = vmatpush1.bf16.msra.mxu0 %v197
  %256 = vmatprep.subr.bf16.mxu0 %v195
  %257 = vmatpush1.bf16.msra.mxu0 %v194
  %258 = vmatprep.subr.bf16.mxu0 0
  %259 = vmatpush2.bf16.msra.mxu0 0
  %260 = vmatprep.subr.bf16.mxu0 0
  %261 = vmatpush2.bf16.msra.mxu0 0
  %262 = vmatprep.subr.bf16.mxu0 0
  %263 = vmatpush2.bf16.msra.mxu0 0
  %264 = vmatprep.subr.bf16.mxu0 0
  %265 = vmatpush2.bf16.msra.mxu0 0
  %266 = vmatprep.subr.bf16.mxu0 0
  %267 = vmatpush2.bf16.msra.mxu0 0
  %268 = vmatprep.subr.bf16.mxu0 0
  %269 = vmatpush2.bf16.msra.mxu0 0
  %270 = vmatprep.subr.bf16.mxu0 0
  %271 = vmatpush2.bf16.msra.mxu0 0
  %272 = vmatprep.subr.bf16.mxu0 0
  %273 = vmatpush2.bf16.msra.mxu0 0
  %274 = vmatprep.mubr.bf16.mxu0 0
  %275 = vmatmul.mubr.bf16.gmra.mxu0 %v64
  %v276 = vpop.f32.mrf.mxu0
  %v277 = vadd.f32 %v102, %v276
  %v278 = vpop.f32.mrf.mxu0
  %v279 = vadd.f32 %v106, %v278
  %v280 = vpop.f32.mrf.mxu0
  %v281 = vadd.f32 %v102, %v280
  %v282 = vpop.f32.mrf.mxu0
  %v283 = vadd.f32 %v106, %v282
  %284 = vdwg.mxu0
  %285 = vmatprep.subr.bf16.mxu0 0
  %286 = vmatpush1.bf16.msra.mxu0 %v217
  %287 = vmatprep.subr.bf16.mxu0 0
  %288 = vmatpush1.bf16.msra.mxu0 %v214
  %289 = vmatprep.subr.bf16.mxu0 0
  %290 = vmatpush1.bf16.msra.mxu0 %v211
  %291 = vmatprep.subr.bf16.mxu0 0
  %292 = vmatpush1.bf16.msra.mxu0 %v208
  %293 = vmatprep.subr.bf16.mxu0 0
  %294 = vmatpush1.bf16.msra.mxu0 %v205
  %295 = vmatprep.subr.bf16.mxu0 0
  %296 = vmatpush1.bf16.msra.mxu0 %v202
  %297 = vmatprep.subr.bf16.mxu0 0
  %298 = vmatpush1.bf16.msra.mxu0 %v199
  %299 = vmatprep.subr.bf16.mxu0 0
  %300 = vmatpush1.bf16.msra.mxu0 %v196
  %301 = vmatprep.subr.bf16.mxu0 0
  %302 = vmatpush2.bf16.msra.mxu0 0
  %303 = vmatprep.subr.bf16.mxu0 0
  %304 = vmatpush2.bf16.msra.mxu0 0
  %305 = vmatprep.subr.bf16.mxu0 0
  %306 = vmatpush2.bf16.msra.mxu0 0
  %307 = vmatprep.subr.bf16.mxu0 0
  %308 = vmatpush2.bf16.msra.mxu0 0
  %309 = vmatprep.subr.bf16.mxu0 0
  %310 = vmatpush2.bf16.msra.mxu0 0
  %311 = vmatprep.subr.bf16.mxu0 0
  %312 = vmatpush2.bf16.msra.mxu0 0
  %313 = vmatprep.subr.bf16.mxu0 0
  %314 = vmatpush2.bf16.msra.mxu0 0
  %315 = vmatprep.subr.bf16.mxu0 0
  %316 = vmatpush2.bf16.msra.mxu0 0
  %317 = vmatprep.mubr.bf16.mxu0 0
  %318 = vmatmul.mubr.bf16.gmra.mxu0 %v64
  %v319 = vpop.f32.mrf.mxu0
  %v320 = vadd.f32 %v110, %v319
  %v321 = vpop.f32.mrf.mxu0
  %v322 = vpop.f32.mrf.mxu0
  %v323 = vadd.f32 %v110, %v322
  %v324 = vpop.f32.mrf.mxu0
  %325 = vdwg.mxu0
  %v326 = vpack.c.bf16 %v281, %v277
  %v327 = vpack.c.bf16 %v283, %v279
  %v328 = vpack.c.bf16 %v323, %v320
  %v332 = vunpack.c.l.b16 %v326
  %v333 = vunpack.c.l.b16 %v327
  %v334 = vunpack.c.l.b16 %v328
  %v335 = vunpack.c.h.b16 %v326
  %v336 = vunpack.c.h.b16 %v327
  %v337 = vunpack.c.h.b16 %v328
  %v338 = vpack.c.b16 %v333, %v332
  %v339 = vpack.c.b16 %v334, %v334
  %v340 = vpack.c.b16 %v336, %v335
  %v341 = vpack.c.b16 %v337, %v337
  %346 = vst [vmem:[%s5] sm:$0xff] %v338
  %347 = vst [vmem:[%s5 + $0x8] sm:$0xf] %v339
  %348 = vst [vmem:[%s5 + $0xc] sm:$0xff] %v340
  %349 = vst [vmem:[%s5 + $0x14] sm:$0xf] %v341
  // Predicated region
  $region22: #{clip_forward.28} parent=0 // pred_check
    _
  $region23: #{clip_forward.28} parent=0 // pred_check_branch
    %351 = sbr.rel (0) target = $region25
  $region24: #{clip_forward.28} parent=0 // pred_region
    _
  $region25: #{clip_forward.28} parent=0 // pred_fallthru
    _
  // Predicated region
  $region26: #{clip_forward.28} parent=0 // pred_check
    _
  $region27: #{clip_forward.28} parent=0 // pred_check_branch
    %353 = sbr.rel (0) target = $region29
  $region28: #{clip_forward.28} parent=0 // pred_region
    _
  $region29: #{clip_forward.28} parent=0 // pred_fallthru
    _

// kernel: clip_forward.26
$region0: #{clip_forward.26}
  #allocation0 [shape = 'u32[]', space=smem, size = 0x4, offset = 0x4, fixed_abs, tag = 'smem constant byte address 0x4 - core index']
  #allocation1 [shape = 'u32[144,128]{1,0:T(1,128)}', space=vmem, size = 0x12000, scoped, tag = 'internal scratch']
  %s0 = inlined_call_operand.vmem [shape: bf16[2,8,384], index: 0, kind: input, shape index: {}]
  %s1 = inlined_call_operand.hbm [shape: bf16[128,128], index: 1, kind: input, shape index: {}]
  %s2 = inlined_call_operand.hbm [shape: f32[1,128], index: 2, kind: input, shape index: {}]
  %s3 = inlined_call_operand.vmem [shape: f32[2,8,128], index: 3, kind: input, shape index: {}]
  %s4 = inlined_call_operand.vmem [shape: f32[2,8,128], index: 4, kind: output, shape index: {}]
  %s5 = sld [smem:[#allocation0]]
  $region57: #{clip_forward.26} parent=0
    _
  %s7 = ssub.s32 1, %s5
  %s8 = scalar_select 0, %s7, %s5
  $region1: #{clip_forward.26} parent=0
    #allocation2 [shape = 'u8[32768]{0}', space=vmem, size = 0x8000, scoped, tag = 'input window, operand 1, single buffered']
    #allocation3 [shape = 's32[2]{0}', space=sflag, size = 0x8, scoped, tag = 'scoped memory for clip_forward.26']
    #allocation4 [shape = 'u8[512]{0}', space=vmem, size = 0x400, scoped, tag = 'input window, operand 2, single buffered']
    #allocation5 [shape = 's32[1]{0}', space=sflag, size = 0x4, scoped, tag = 'scoped memory for clip_forward.26']
    %9 = vsyncpa [#allocation3], 0
    %10 = vsyncpa [#allocation5], 0
    loop: start=0, step=1, limit=4
    $region2: #{clip_forward.26} parent=1 // loop_pre_header
      _
    $region3: #{clip_forward.26} parent=1 // loop_header
      %s12 = sphi 0, %s16
      %p13 = scmp.ge.s32.totalorder %s12, 4
      %s22 = sphi 0, %s24
      %s25 = sphi 0, %s22
      %s26 = sphi 0, %s25
      %s42 = sphi 0, %s26
      %s46 = sphi 0, %s46
      %s48 = sphi 0, %s46
      %s49 = sphi 0, %s48
      %s63 = sphi 0, %s49
      %s67 = sphi 0, %s67
      %s69 = sphi 0, %s67
      %s70 = sphi 0, %s69
      %s84 = sphi 0, %s70
      %s90 = sphi 0, %s92
      %s93 = sphi 0, %s90
      %s94 = sphi 0, %s93
      %s110 = sphi 0, %s94
      %s116 = sphi 0, %s118
      %s119 = sphi 0, %s116
      %s120 = sphi 0, %s119
      %s136 = sphi 0, %s120
    $region4: #{clip_forward.26} parent=1 // loop_header_branch
      %15 = sbr.rel (%p13) target = $region8
    $region5: #{clip_forward.26} parent=1 // loop_body
      %s17 = ssub.s32 %s12, 1
      %s18 = ssub.s32 %s12, 2
      %s19 = sadd.s32 %s12, 1
      %s20 = ssub.s32 %s12, %s19
      %p21 = scmp.eq.s32.totalorder %s20, 0
      %s23 = sadd.s32 %s22, 1
      %s24 = scalar_select %p21, %s22, %s23
      %p27 = pneg %p21
      %p28 = scmp.eq.s32.totalorder %s12, 1
      %p29 = por %p27, %p28
      %p30 = scmp.ne.s32.totalorder %s22, %s25
      %p31 = scmp.eq.s32.totalorder %s12, 0
      %p32 = por %p30, %p31
      %p33 = scmp.ne.s32.totalorder %s22, %s25
      %p34 = scmp.eq.s32.totalorder %s17, 1
      %p35 = por %p33, %p34
      %p36 = scmp.ne.s32.totalorder %s25, %s26
      %p37 = scmp.eq.s32.totalorder %s17, 0
      %p38 = por %p36, %p37
      %p39 = scmp.ne.s32.totalorder %s25, %s26
      %p40 = scmp.eq.s32.totalorder %s18, 1
      %p41 = por %p39, %p40
      %p43 = scmp.ne.s32.totalorder %s26, %s42
      %p44 = scmp.eq.s32.totalorder %s18, 0
      %p45 = por %p43, %p44
      %s47 = sadd.s32 %s46, 1
      %p50 = scmp.eq.s32.totalorder %s12, 1
      %p51 = scmp.ne.s32.totalorder %s46, %s48
      %p52 = scmp.eq.s32.totalorder %s12, 0
      %p53 = por %p51, %p52
      %p54 = scmp.ne.s32.totalorder %s46, %s48
      %p55 = scmp.eq.s32.totalorder %s17, 1
      %p56 = por %p54, %p55
      %p57 = scmp.ne.s32.totalorder %s48, %s49
      %p58 = scmp.eq.s32.totalorder %s17, 0
      %p59 = por %p57, %p58
      %p60 = scmp.ne.s32.totalorder %s48, %s49
      %p61 = scmp.eq.s32.totalorder %s18, 1
      %p62 = por %p60, %p61
      %p64 = scmp.ne.s32.totalorder %s49, %s63
      %p65 = scmp.eq.s32.totalorder %s18, 0
      %p66 = por %p64, %p65
      %s68 = sadd.s32 %s67, 1
      %p71 = scmp.eq.s32.totalorder %s12, 1
      %p72 = scmp.ne.s32.totalorder %s67, %s69
      %p73 = scmp.eq.s32.totalorder %s12, 0
      %p74 = por %p72, %p73
      %p75 = scmp.ne.s32.totalorder %s67, %s69
      %p76 = scmp.eq.s32.totalorder %s17, 1
      %p77 = por %p75, %p76
      %p78 = scmp.ne.s32.totalorder %s69, %s70
      %p79 = scmp.eq.s32.totalorder %s17, 0
      %p80 = por %p78, %p79
      %p81 = scmp.ne.s32.totalorder %s69, %s70
      %p82 = scmp.eq.s32.totalorder %s18, 1
      %p83 = por %p81, %p82
      %p85 = scmp.ne.s32.totalorder %s70, %s84
      %p86 = scmp.eq.s32.totalorder %s18, 0
      %p87 = por %p85, %p86
      %s88 = ssub.s32 %s12, %s19
      %p89 = scmp.eq.s32.totalorder %s88, 0
      %s91 = sadd.s32 %s90, 1
      %s92 = scalar_select %p89, %s90, %s91
      %p95 = pneg %p89
      %p96 = scmp.eq.s32.totalorder %s12, 1
      %p97 = por %p95, %p96
      %p98 = scmp.ne.s32.totalorder %s90, %s93
      %p99 = scmp.eq.s32.totalorder %s12, 0
      %p100 = por %p98, %p99
      %p101 = scmp.ne.s32.totalorder %s90, %s93
      %p102 = scmp.eq.s32.totalorder %s17, 1
      %p103 = por %p101, %p102
      %p104 = scmp.ne.s32.totalorder %s93, %s94
      %p105 = scmp.eq.s32.totalorder %s17, 0
      %p106 = por %p104, %p105
      %p107 = scmp.ne.s32.totalorder %s93, %s94
      %p108 = scmp.eq.s32.totalorder %s18, 1
      %p109 = por %p107, %p108
      %p111 = scmp.ne.s32.totalorder %s94, %s110
      %p112 = scmp.eq.s32.totalorder %s18, 0
      %p113 = por %p111, %p112
      %s114 = ssub.s32 %s12, %s19
      %p115 = scmp.eq.s32.totalorder %s114, 0
      %s117 = sadd.s32 %s116, 1
      %s118 = scalar_select %p115, %s116, %s117
      %p121 = pneg %p115
      %p122 = scmp.eq.s32.totalorder %s12, 1
      %p123 = por %p121, %p122
      %p124 = scmp.ne.s32.totalorder %s116, %s119
      %p125 = scmp.eq.s32.totalorder %s12, 0
      %p126 = por %p124, %p125
      %p127 = scmp.ne.s32.totalorder %s116, %s119
      %p128 = scmp.eq.s32.totalorder %s17, 1
      %p129 = por %p127, %p128
      %p130 = scmp.ne.s32.totalorder %s119, %s120
      %p131 = scmp.eq.s32.totalorder %s17, 0
      %p132 = por %p130, %p131
      %p133 = scmp.ne.s32.totalorder %s119, %s120
      %p134 = scmp.eq.s32.totalorder %s18, 1
      %p135 = por %p133, %p134
      %p137 = scmp.ne.s32.totalorder %s120, %s136
      %p138 = scmp.eq.s32.totalorder %s18, 0
      %p139 = por %p137, %p138
      %p140 = scmp.le.s32.totalorder 1, %s12
      %p141 = scmp.lt.s32.totalorder %s12, 3
      %p142 = pnand %p140, %p141
      %p143 = pneg %p142
      // Predicated region
      $region9: #{clip_forward.26} parent=5 // pred_check
        _
      $region10: #{clip_forward.26} parent=5 // pred_check_branch
        %145 = sbr.rel (%p142) target = $region12
      $region11: #{clip_forward.26} parent=5 // pred_region
        %s146 = ssub.s32 %s12, 1
        // Predicated region
        $region13: #{clip_forward.26} parent=11 // pred_check
          %p147 = pneg %p59
        $region14: #{clip_forward.26} parent=11 // pred_check_branch
          %149 = sbr.rel (%p147) target = $region16
        $region15: #{clip_forward.26} parent=11 // pred_region
          %s151 = ssub.s32 1024, 1024
          %152 = vsyncadd [#allocation3], %s151
          %s153 = sshll.u32 [#allocation2], 4
          %s154 = int_to_ptr.vmem [resolvable:$true] %s153
          %159 = dma.hbm_to_vmem [thread:$0]  %s1, 1024, %s154, [#allocation3], 64, 64, 4
        $region16: #{clip_forward.26} parent=11 // pred_fallthru
          _
        // Predicated region
        $region17: #{clip_forward.26} parent=11 // pred_check
          %p160 = pneg %p80
        $region18: #{clip_forward.26} parent=11 // pred_check_branch
          %162 = sbr.rel (%p160) target = $region20
        $region19: #{clip_forward.26} parent=11 // pred_region
          %s164 = ssub.s32 16, 16
          %165 = vsyncadd [#allocation5], %s164
          %s167 = sshll.u32 [#allocation4], 4
          %s168 = int_to_ptr.vmem [resolvable:$true] %s167
          %170 = dma.hbm_to_vmem [thread:$0]  %s2, 16, %s168, [#allocation5]
        $region20: #{clip_forward.26} parent=11 // pred_fallthru
          _
      $region12: #{clip_forward.26} parent=5 // pred_fallthru
        _
      %p171 = scmp.lt.s32.totalorder %s12, 2
      // Predicated region
      $region21: #{clip_forward.26} parent=5 // pred_check
        %p172 = pneg %p171
      $region22: #{clip_forward.26} parent=5 // pred_check_branch
        %174 = sbr.rel (%p172) target = $region24
      $region23: #{clip_forward.26} parent=5 // pred_region
        // Predicated region
        $region25: #{clip_forward.26} parent=23 // pred_check
          %p175 = pneg %p32
        $region26: #{clip_forward.26} parent=23 // pred_check_branch
          %177 = sbr.rel (%p175) target = $region28
        $region27: #{clip_forward.26} parent=23 // pred_region
          %p178 = scmp.lt.s32.totalorder %s12, 1
          %s179 = scalar_select %p178, %s12, 1
          %s180 = smul.addr %s179, 3
          %s181 = smul.addr %s180, 4
          %s182 = scalar_lea.vmem %s0, %s181
        $region28: #{clip_forward.26} parent=23 // pred_fallthru
          _
        // Predicated region
        $region29: #{clip_forward.26} parent=23 // pred_check
          %p183 = pneg %p100
        $region30: #{clip_forward.26} parent=23 // pred_check_branch
          %185 = sbr.rel (%p183) target = $region32
        $region31: #{clip_forward.26} parent=23 // pred_region
          %p186 = scmp.lt.s32.totalorder %s12, 1
          %s187 = scalar_select %p186, %s12, 1
          %s188 = smul.addr %s187, 8
          %s189 = scalar_lea.vmem %s3, %s188
        $region32: #{clip_forward.26} parent=23 // pred_fallthru
          _
      $region24: #{clip_forward.26} parent=5 // pred_fallthru
        _
      %p190 = scmp.le.s32.totalorder 1, %s12
      %p191 = scmp.lt.s32.totalorder %s12, 3
      %p192 = pnand %p190, %p191
      %p193 = pneg %p192
      // Predicated region
      $region33: #{clip_forward.26} parent=5 // pred_check
        _
      $region34: #{clip_forward.26} parent=5 // pred_check_branch
        %195 = sbr.rel (%p192) target = $region36
      $region35: #{clip_forward.26} parent=5 // pred_region
        %s196 = ssub.s32 %s12, 1
        // Predicated region
        $region37: #{clip_forward.26} parent=35 // pred_check
          %p197 = pneg %p59
        $region38: #{clip_forward.26} parent=35 // pred_check_branch
          %199 = sbr.rel (%p197) target = $region40
        $region39: #{clip_forward.26} parent=35 // pred_region
          %200 = dma.done [#allocation3], 1024
        $region40: #{clip_forward.26} parent=35 // pred_fallthru
          _
        // Predicated region
        $region41: #{clip_forward.26} parent=35 // pred_check
          %p201 = pneg %p80
        $region42: #{clip_forward.26} parent=35 // pred_check_branch
          %203 = sbr.rel (%p201) target = $region44
        $region43: #{clip_forward.26} parent=35 // pred_region
          %204 = dma.done [#allocation5], 16
        $region44: #{clip_forward.26} parent=35 // pred_fallthru
          _
        %p205 = scmp.lt.s32.totalorder %s17, 1
        %s206 = scalar_select %p205, %s17, 1
        %s207 = smul.addr %s206, 3
        %s208 = smul.addr %s207, 4
        %s209 = scalar_lea.vmem %s0, %s208
        %p210 = pneg %p38
        %p211 = pneg %p35
        %p212 = pneg %p59
        %p213 = pneg %p56
        %p214 = pneg %p80
        %p215 = pneg %p77
        %p216 = scmp.lt.s32.totalorder %s17, 1
        %s217 = scalar_select %p216, %s17, 1
        %s218 = smul.addr %s217, 8
        %s219 = scalar_lea.vmem %s3, %s218
        %p220 = pneg %p106
        %p221 = pneg %p103
        %p222 = pneg %p132
        %p223 = pneg %p129
        %p224 = scmp.lt.s32.totalorder %s17, 1
        %s225 = scalar_select %p224, %s17, 1
        %s226 = smul.addr %s225, 8
        %s227 = scalar_lea.vmem %s4, %s226
        %p228 = scmp.lt.s32.totalorder %s17, 1
        %s229 = scalar_select %p228, %s17, 1
        %s230 = smul.addr %s229, 3
        %s231 = smul.addr %s230, 4
        %s232 = scalar_lea.vmem %s0, %s231
        %p233 = scmp.lt.s32.totalorder %s17, 1
        %s234 = scalar_select %p233, %s17, 1
        %s235 = smul.addr %s234, 8
        %s236 = scalar_lea.vmem %s3, %s235
        %p237 = scmp.lt.s32.totalorder %s17, 1
        %s238 = scalar_select %p237, %s17, 1
        %s239 = smul.addr %s238, 8
        %s240 = scalar_lea.vmem %s4, %s239
        %v242 = vld [vmem:[%s232] sm:$0xff]
        %v243 = vld [vmem:[%s232 + $0x8] sm:$0xf]
        %v244 = vlaneseq
        %v245 = vand.u32 %v244, 127
        %vm246 = vcmp.lt.s32.totalorder %v245, 8
        %v247 = vlaneseq
        %v248 = vshrl.u32 %v247, 7
        %vm249 = vcmp.le.s32.totalorder %v245, %v248
        %vm250 = vmand %vm246, %vm249
        %v251 = vsel %vm250, 0.0, -1e+30
        %v252 = vld [vmem:[%s236] sm:$0xff]
        %v253 = vld [vmem:[#allocation4] sm:$0x1]
        %v255 = vlaneseq
        %v256 = vshrl.u32 %v255, 7
        %v257 = vsub.s32 0, %v256
        %v258 = vrot.slane %v253, %v257
        %v260 = vadd.f32 %v252, %v258
        %v262 = vunpack.c.h.b16 %v242
        %v263 = vpack.c.b16 %v262, %v262
        %vm264 = vcmask 261120
        %v266 = vsel %vm264, %v242, 0
        %v269 = vsel %vm264, %v263, 0
        %271 = vmatprep.subr.bf16.mxu0 0
        %272 = vmatpush1.bf16.xpose.msra.mxu0 0
        %273 = vmatprep.subr.bf16.mxu0 0
        %274 = vmatpush1.bf16.xpose.msra.mxu0 0
        %275 = vmatprep.subr.bf16.mxu0 0
        %276 = vmatpush1.bf16.xpose.msra.mxu0 0
        %277 = vmatprep.subr.bf16.mxu0 0
        %278 = vmatpush1.bf16.xpose.msra.mxu0 0
        %279 = vmatprep.subr.bf16.mxu0 0
        %280 = vmatpush1.bf16.xpose.msra.mxu0 0
        %281 = vmatprep.subr.bf16.mxu0 0
        %282 = vmatpush1.bf16.xpose.msra.mxu0 0
        %283 = vmatprep.subr.bf16.mxu0 0
        %284 = vmatpush1.bf16.xpose.msra.mxu0 0
        %285 = vmatprep.subr.bf16.mxu0 0
        %286 = vmatpush1.bf16.xpose.msra.mxu0 %v269
        %287 = vmatprep.subr.bf16.mxu0 0
        %288 = vmatpush2.bf16.xpose.msra.mxu0 0
        %289 = vmatprep.subr.bf16.mxu0 0
        %290 = vmatpush2.bf16.xpose.msra.mxu0 0
        %291 = vmatprep.subr.bf16.mxu0 0
        %292 = vmatpush2.bf16.xpose.msra.mxu0 0
        %293 = vmatprep.subr.bf16.mxu0 0
        %294 = vmatpush2.bf16.xpose.msra.mxu0 0
        %295 = vmatprep.subr.bf16.mxu0 0
        %296 = vmatpush2.bf16.xpose.msra.mxu0 0
        %297 = vmatprep.subr.bf16.mxu0 0
        %298 = vmatpush2.bf16.xpose.msra.mxu0 0
        %299 = vmatprep.subr.bf16.mxu0 0
        %300 = vmatpush2.bf16.xpose.msra.mxu0 0
        %301 = vmatprep.subr.bf16.mxu0 0
        %302 = vmatpush2.bf16.xpose.msra.mxu0 0
        %303 = vmatprep.mubr.bf16.mxu0 0
        %304 = vmatmul.mubr.bf16.gmra.mxu0 %v266
        %v305 = vpop.f32.mrf.mxu0
        %v306 = vadd.f32 %v251, %v305
        %v307 = vpop.f32.mrf.mxu0
        %v308 = vpop.f32.mrf.mxu0
        %v309 = vpop.f32.mrf.mxu0
        %310 = vdwg.mxu0
        %vm311 = vcmask 64512
        %v312 = vsel %vm311, %v306, -inf
        %313 = vmax.xlane.f32.xlu0 %v312
        %v314 = vpop.xlane.xlu0 %313
        %v315 = vsub.f32 %v306, %v314
        %v316 = vmul.f32 %v315, 1.442695
        %v317 = vpow.pop %v316
        %v318 = vsel %vm311, %v317, 0.0
        %319 = vadd.xlane.f32.xlu0 %v318
        %v320 = vpop.xlane.xlu0 %319
        %v321 = vrcp.pop %v320
        %v322 = vmul.f32 %v317, %v321
        %v323 = vpack.c.bf16 %v322, %v322
        %v325 = vsel %vm311, %v323, 0
        %vm327 = vcmask 1043456
        %v329 = vsel %vm327, %v243, 0
        %331 = vmatprep.subr.bf16.mxu0 0
        %332 = vmatpush1.bf16.msra.mxu0 0
        %333 = vmatprep.subr.bf16.mxu0 0
        %334 = vmatpush1.bf16.msra.mxu0 0
        %335 = vmatprep.subr.bf16.mxu0 0
        %336 = vmatpush1.bf16.msra.mxu0 0
        %337 = vmatprep.subr.bf16.mxu0 0
        %338 = vmatpush1.bf16.msra.mxu0 0
        %339 = vmatprep.subr.bf16.mxu0 0
        %340 = vmatpush1.bf16.msra.mxu0 0
        %341 = vmatprep.subr.bf16.mxu0 0
        %342 = vmatpush1.bf16.msra.mxu0 0
        %343 = vmatprep.subr.bf16.mxu0 0
        %344 = vmatpush1.bf16.msra.mxu0 0
        %345 = vmatprep.subr.bf16.mxu0 0
        %346 = vmatpush1.bf16.msra.mxu0 %v329
        %347 = vmatprep.subr.bf16.mxu0 0
        %348 = vmatpush2.bf16.msra.mxu0 0
        %349 = vmatprep.subr.bf16.mxu0 0
        %350 = vmatpush2.bf16.msra.mxu0 0
        %351 = vmatprep.subr.bf16.mxu0 0
        %352 = vmatpush2.bf16.msra.mxu0 0
        %353 = vmatprep.subr.bf16.mxu0 0
        %354 = vmatpush2.bf16.msra.mxu0 0
        %355 = vmatprep.subr.bf16.mxu0 0
        %356 = vmatpush2.bf16.msra.mxu0 0
        %357 = vmatprep.subr.bf16.mxu0 0
        %358 = vmatpush2.bf16.msra.mxu0 0
        %359 = vmatprep.subr.bf16.mxu0 0
        %360 = vmatpush2.bf16.msra.mxu0 0
        %361 = vmatprep.subr.bf16.mxu0 0
        %362 = vmatpush2.bf16.msra.mxu0 0
        %363 = vmatprep.mubr.bf16.mxu0 0
        %364 = vmatmul.mubr.bf16.gmra.mxu0 %v325
        %v365 = vpop.f32.mrf.mxu0
        %v366 = vadd.f32 0.0, %v365
        %v367 = vpop.f32.mrf.mxu0
        %v368 = vpop.f32.mrf.mxu0
        %v369 = vpop.f32.mrf.mxu0
        %370 = vdwg.mxu0
        %v371 = vpack.c.bf16 %v366, %v366
        %v372 = vld [vmem:[#allocation2] sm:$0xf]
        %v373 = vld [vmem:[#allocation2 + $0x4] sm:$0xf]
        %v374 = vld [vmem:[#allocation2 + $0x8] sm:$0xf]
        %v375 = vld [vmem:[#allocation2 + $0xc] sm:$0xf]
        %v380 = vunpack.c.l.b16 %v372
        %v381 = vunpack.c.l.b16 %v373
        %v382 = vunpack.c.l.b16 %v374
        %v383 = vunpack.c.l.b16 %v375
        %v384 = vpack.c.b16 %v381, %v380
        %v385 = vpack.c.b16 %v383, %v382
        %v389 = vsel %vm264, %v371, 0
        %391 = vmatprep.subr.bf16.mxu0 0
        %392 = vmatpush1.bf16.msra.mxu0 0
        %393 = vmatprep.subr.bf16.mxu0 0
        %394 = vmatpush1.bf16.msra.mxu0 0
        %395 = vmatprep.subr.bf16.mxu0 0
        %396 = vmatpush1.bf16.msra.mxu0 0
        %397 = vmatprep.subr.bf16.mxu0 0
        %398 = vmatpush1.bf16.msra.mxu0 0
        %399 = vmatprep.subr.bf16.mxu0 0
        %400 = vmatpush1.bf16.msra.mxu0 0
        %401 = vmatprep.subr.bf16.mxu0 0
        %402 = vmatpush1.bf16.msra.mxu0 0
        %403 = vmatprep.subr.bf16.mxu0 0
        %404 = vmatpush1.bf16.msra.mxu0 %v385
        %405 = vmatprep.subr.bf16.mxu0 0
        %406 = vmatpush1.bf16.msra.mxu0 %v384
        %407 = vmatprep.subr.bf16.mxu0 0
        %408 = vmatpush2.bf16.msra.mxu0 0
        %409 = vmatprep.subr.bf16.mxu0 0
        %410 = vmatpush2.bf16.msra.mxu0 0
        %411 = vmatprep.subr.bf16.mxu0 0
        %412 = vmatpush2.bf16.msra.mxu0 0
        %413 = vmatprep.subr.bf16.mxu0 0
        %414 = vmatpush2.bf16.msra.mxu0 0
        %415 = vmatprep.subr.bf16.mxu0 0
        %416 = vmatpush2.bf16.msra.mxu0 0
        %417 = vmatprep.subr.bf16.mxu0 0
        %418 = vmatpush2.bf16.msra.mxu0 0
        %419 = vmatprep.subr.bf16.mxu0 0
        %420 = vmatpush2.bf16.msra.mxu0 0
        %421 = vmatprep.subr.bf16.mxu0 0
        %422 = vmatpush2.bf16.msra.mxu0 0
        %423 = vmatprep.mubr.bf16.mxu0 0
        %424 = vmatmul.mubr.bf16.gmra.mxu0 %v389
        %v425 = vpop.f32.mrf.mxu0
        %v426 = vadd.f32 0.0, %v425
        %v427 = vpop.f32.mrf.mxu0
        %v428 = vpop.f32.mrf.mxu0
        %v429 = vpop.f32.mrf.mxu0
        %430 = vdwg.mxu0
        %v431 = vadd.f32 %v260, %v426
        %v432 = vunpack.c.l.b16 %v242
        %v433 = vpack.c.b16 %v432, %v432
        %434 = vrot.lane.b32.xlu0 %v433, 96
        %v435 = vpop.permute.xlu0 %434
        %436 = vrot.lane.b32.xlu0 %v263, 96
        %v437 = vpop.permute.xlu0 %436
        %v439 = vsel %vm264, %v435, 0
        %v442 = vsel %vm264, %v437, 0
        %444 = vmatprep.subr.bf16.mxu0 0
        %445 = vmatpush1.bf16.xpose.msra.mxu0 0
        %446 = vmatprep.subr.bf16.mxu0 0
        %447 = vmatpush1.bf16.xpose.msra.mxu0 0
        %448 = vmatprep.subr.bf16.mxu0 0
        %449 = vmatpush1.bf16.xpose.msra.mxu0 0
        %450 = vmatprep.subr.bf16.mxu0 0
        %451 = vmatpush1.bf16.xpose.msra.mxu0 0
        %452 = vmatprep.subr.bf16.mxu0 0
        %453 = vmatpush1.bf16.xpose.msra.mxu0 0
        %454 = vmatprep.subr.bf16.mxu0 0
        %455 = vmatpush1.bf16.xpose.msra.mxu0 0
        %456 = vmatprep.subr.bf16.mxu0 0
        %457 = vmatpush1.bf16.xpose.msra.mxu0 0
        %458 = vmatprep.subr.bf16.mxu0 0
        %459 = vmatpush1.bf16.xpose.msra.mxu0 %v442
        %460 = vmatprep.subr.bf16.mxu0 0
        %461 = vmatpush2.bf16.xpose.msra.mxu0 0
        %462 = vmatprep.subr.bf16.mxu0 0
        %463 = vmatpush2.bf16.xpose.msra.mxu0 0
        %464 = vmatprep.subr.bf16.mxu0 0
        %465 = vmatpush2.bf16.xpose.msra.mxu0 0
        %466 = vmatprep.subr.bf16.mxu0 0
        %467 = vmatpush2.bf16.xpose.msra.mxu0 0
        %468 = vmatprep.subr.bf16.mxu0 0
        %469 = vmatpush2.bf16.xpose.msra.mxu0 0
        %470 = vmatprep.subr.bf16.mxu0 0
        %471 = vmatpush2.bf16.xpose.msra.mxu0 0
        %472 = vmatprep.subr.bf16.mxu0 0
        %473 = vmatpush2.bf16.xpose.msra.mxu0 0
        %474 = vmatprep.subr.bf16.mxu0 0
        %475 = vmatpush2.bf16.xpose.msra.mxu0 0
        %476 = vmatprep.mubr.bf16.mxu0 0
        %477 = vmatmul.mubr.bf16.gmra.mxu0 %v439
        %v478 = vpop.f32.mrf.mxu0
        %v479 = vadd.f32 %v251, %v478
        %v480 = vpop.f32.mrf.mxu0
        %v481 = vpop.f32.mrf.mxu0
        %v482 = vpop.f32.mrf.mxu0
        %483 = vdwg.mxu0
        %v484 = vsel %vm311, %v479, -inf
        %485 = vmax.xlane.f32.xlu0 %v484
        %v486 = vpop.xlane.xlu0 %485
        %v487 = vsub.f32 %v479, %v486
        %v488 = vmul.f32 %v487, 1.442695
        %v489 = vpow.pop %v488
        %v490 = vsel %vm311, %v489, 0.0
        %491 = vadd.xlane.f32.xlu0 %v490
        %v492 = vpop.xlane.xlu0 %491
        %v493 = vrcp.pop %v492
        %v494 = vmul.f32 %v489, %v493
        %v495 = vpack.c.bf16 %v494, %v494
        %v497 = vunpack.c.l.b16 %v243
        %v498 = vpack.c.b16 %v497, %v497
        %499 = vrot.lane.b32.xlu0 %v498, 96
        %v500 = vpop.permute.xlu0 %499
        %v502 = vsel %vm311, %v495, 0
        %v505 = vsel %vm327, %v500, 0
        %507 = vmatprep.subr.bf16.mxu0 0
        %508 = vmatpush1.bf16.msra.mxu0 0
        %509 = vmatprep.subr.bf16.mxu0 0
        %510 = vmatpush1.bf16.msra.mxu0 0
        %511 = vmatprep.subr.bf16.mxu0 0
        %512 = vmatpush1.bf16.msra.mxu0 0
        %513 = vmatprep.subr.bf16.mxu0 0
        %514 = vmatpush1.bf16.msra.mxu0 0
        %515 = vmatprep.subr.bf16.mxu0 0
        %516 = vmatpush1.bf16.msra.mxu0 0
        %517 = vmatprep.subr.bf16.mxu0 0
        %518 = vmatpush1.bf16.msra.mxu0 0
        %519 = vmatprep.subr.bf16.mxu0 0
        %520 = vmatpush1.bf16.msra.mxu0 0
        %521 = vmatprep.subr.bf16.mxu0 0
        %522 = vmatpush1.bf16.msra.mxu0 %v505
        %523 = vmatprep.subr.bf16.mxu0 0
        %524 = vmatpush2.bf16.msra.mxu0 0
        %525 = vmatprep.subr.bf16.mxu0 0
        %526 = vmatpush2.bf16.msra.mxu0 0
        %527 = vmatprep.subr.bf16.mxu0 0
        %528 = vmatpush2.bf16.msra.mxu0 0
        %529 = vmatprep.subr.bf16.mxu0 0
        %530 = vmatpush2.bf16.msra.mxu0 0
        %531 = vmatprep.subr.bf16.mxu0 0
        %532 = vmatpush2.bf16.msra.mxu0 0
        %533 = vmatprep.subr.bf16.mxu0 0
        %534 = vmatpush2.bf16.msra.mxu0 0
        %535 = vmatprep.subr.bf16.mxu0 0
        %536 = vmatpush2.bf16.msra.mxu0 0
        %537 = vmatprep.subr.bf16.mxu0 0
        %538 = vmatpush2.bf16.msra.mxu0 0
        %539 = vmatprep.mubr.bf16.mxu0 0
        %540 = vmatmul.mubr.bf16.gmra.mxu0 %v502
        %v541 = vpop.f32.mrf.mxu0
        %v542 = vadd.f32 0.0, %v541
        %v543 = vpop.f32.mrf.mxu0
        %v544 = vpop.f32.mrf.mxu0
        %v545 = vpop.f32.mrf.mxu0
        %546 = vdwg.mxu0
        %v547 = vpack.c.bf16 %v542, %v542
        %v548 = vld [vmem:[#allocation2 + $0x10] sm:$0xf]
        %v549 = vld [vmem:[#allocation2 + $0x14] sm:$0xf]
        %v550 = vld [vmem:[#allocation2 + $0x18] sm:$0xf]
        %v551 = vld [vmem:[#allocation2 + $0x1c] sm:$0xf]
        %v556 = vunpack.c.l.b16 %v548
        %v557 = vunpack.c.l.b16 %v549
        %v558 = vunpack.c.l.b16 %v550
        %v559 = vunpack.c.l.b16 %v551
        %v560 = vpack.c.b16 %v557, %v556
        %v561 = vpack.c.b16 %v559, %v558
        %v565 = vsel %vm264, %v547, 0
        %567 = vmatprep.subr.bf16.mxu0 0
        %568 = vmatpush1.bf16.msra.mxu0 0
        %569 = vmatprep.subr.bf16.mxu0 0
        %570 = vmatpush1.bf16.msra.mxu0 0
        %571 = vmatprep.subr.bf16.mxu0 0
        %572 = vmatpush1.bf16.msra.mxu0 0
        %573 = vmatprep.subr.bf16.mxu0 0
        %574 = vmatpush1.bf16.msra.mxu0 0
        %575 = vmatprep.subr.bf16.mxu0 0
        %576 = vmatpush1.bf16.msra.mxu0 0
        %577 = vmatprep.subr.bf16.mxu0 0
        %578 = vmatpush1.bf16.msra.mxu0 0
        %579 = vmatprep.subr.bf16.mxu0 0
        %580 = vmatpush1.bf16.msra.mxu0 %v561
        %581 = vmatprep.subr.bf16.mxu0 0
        %582 = vmatpush1.bf16.msra.mxu0 %v560
        %583 = vmatprep.subr.bf16.mxu0 0
        %584 = vmatpush2.bf16.msra.mxu0 0
        %585 = vmatprep.subr.bf16.mxu0 0
        %586 = vmatpush2.bf16.msra.mxu0 0
        %587 = vmatprep.subr.bf16.mxu0 0
        %588 = vmatpush2.bf16.msra.mxu0 0
        %589 = vmatprep.subr.bf16.mxu0 0
        %590 = vmatpush2.bf16.msra.mxu0 0
        %591 = vmatprep.subr.bf16.mxu0 0
        %592 = vmatpush2.bf16.msra.mxu0 0
        %593 = vmatprep.subr.bf16.mxu0 0
        %594 = vmatpush2.bf16.msra.mxu0 0
        %595 = vmatprep.subr.bf16.mxu0 0
        %596 = vmatpush2.bf16.msra.mxu0 0
        %597 = vmatprep.subr.bf16.mxu0 0
        %598 = vmatpush2.bf16.msra.mxu0 0
        %599 = vmatprep.mubr.bf16.mxu0 0
        %600 = vmatmul.mubr.bf16.gmra.mxu0 %v565
        %v601 = vpop.f32.mrf.mxu0
        %v602 = vadd.f32 0.0, %v601
        %v603 = vpop.f32.mrf.mxu0
        %v604 = vpop.f32.mrf.mxu0
        %v605 = vpop.f32.mrf.mxu0
        %606 = vdwg.mxu0
        %v607 = vadd.f32 %v431, %v602
        %608 = vrot.lane.b32.xlu0 %v433, 64
        %v609 = vpop.permute.xlu0 %608
        %610 = vrot.lane.b32.xlu0 %v263, 64
        %v611 = vpop.permute.xlu0 %610
        %v613 = vsel %vm264, %v609, 0
        %v616 = vsel %vm264, %v611, 0
        %618 = vmatprep.subr.bf16.mxu0 0
        %619 = vmatpush1.bf16.xpose.msra.mxu0 0
        %620 = vmatprep.subr.bf16.mxu0 0
        %621 = vmatpush1.bf16.xpose.msra.mxu0 0
        %622 = vmatprep.subr.bf16.mxu0 0
        %623 = vmatpush1.bf16.xpose.msra.mxu0 0
        %624 = vmatprep.subr.bf16.mxu0 0
        %625 = vmatpush1.bf16.xpose.msra.mxu0 0
        %626 = vmatprep.subr.bf16.mxu0 0
        %627 = vmatpush1.bf16.xpose.msra.mxu0 0
        %628 = vmatprep.subr.bf16.mxu0 0
        %629 = vmatpush1.bf16.xpose.msra.mxu0 0
        %630 = vmatprep.subr.bf16.mxu0 0
        %631 = vmatpush1.bf16.xpose.msra.mxu0 0
        %632 = vmatprep.subr.bf16.mxu0 0
        %633 = vmatpush1.bf16.xpose.msra.mxu0 %v616
        %634 = vmatprep.subr.bf16.mxu0 0
        %635 = vmatpush2.bf16.xpose.msra.mxu0 0
        %636 = vmatprep.subr.bf16.mxu0 0
        %637 = vmatpush2.bf16.xpose.msra.mxu0 0
        %638 = vmatprep.subr.bf16.mxu0 0
        %639 = vmatpush2.bf16.xpose.msra.mxu0 0
        %640 = vmatprep.subr.bf16.mxu0 0
        %641 = vmatpush2.bf16.xpose.msra.mxu0 0
        %642 = vmatprep.subr.bf16.mxu0 0
        %643 = vmatpush2.bf16.xpose.msra.mxu0 0
        %644 = vmatprep.subr.bf16.mxu0 0
        %645 = vmatpush2.bf16.xpose.msra.mxu0 0
        %646 = vmatprep.subr.bf16.mxu0 0
        %647 = vmatpush2.bf16.xpose.msra.mxu0 0
        %648 = vmatprep.subr.bf16.mxu0 0
        %649 = vmatpush2.bf16.xpose.msra.mxu0 0
        %650 = vmatprep.mubr.bf16.mxu0 0
        %651 = vmatmul.mubr.bf16.gmra.mxu0 %v613
        %v652 = vpop.f32.mrf.mxu0
        %v653 = vadd.f32 %v251, %v652
        %v654 = vpop.f32.mrf.mxu0
        %v655 = vpop.f32.mrf.mxu0
        %v656 = vpop.f32.mrf.mxu0
        %657 = vdwg.mxu0
        %v658 = vsel %vm311, %v653, -inf
        %659 = vmax.xlane.f32.xlu0 %v658
        %v660 = vpop.xlane.xlu0 %659
        %v661 = vsub.f32 %v653, %v660
        %v662 = vmul.f32 %v661, 1.442695
        %v663 = vpow.pop %v662
        %v664 = vsel %vm311, %v663, 0.0
        %665 = vadd.xlane.f32.xlu0 %v664
        %v666 = vpop.xlane.xlu0 %665
        %v667 = vrcp.pop %v666
        %v668 = vmul.f32 %v663, %v667
        %v669 = vpack.c.bf16 %v668, %v668
        %670 = vrot.lane.b32.xlu0 %v498, 64
        %v671 = vpop.permute.xlu0 %670
        %v673 = vsel %vm311, %v669, 0
        %v676 = vsel %vm327, %v671, 0
        %678 = vmatprep.subr.bf16.mxu0 0
        %679 = vmatpush1.bf16.msra.mxu0 0
        %680 = vmatprep.subr.bf16.mxu0 0
        %681 = vmatpush1.bf16.msra.mxu0 0
        %682 = vmatprep.subr.bf16.mxu0 0
        %683 = vmatpush1.bf16.msra.mxu0 0
        %684 = vmatprep.subr.bf16.mxu0 0
        %685 = vmatpush1.bf16.msra.mxu0 0
        %686 = vmatprep.subr.bf16.mxu0 0
        %687 = vmatpush1.bf16.msra.mxu0 0
        %688 = vmatprep.subr.bf16.mxu0 0
        %689 = vmatpush1.bf16.msra.mxu0 0
        %690 = vmatprep.subr.bf16.mxu0 0
        %691 = vmatpush1.bf16.msra.mxu0 0
        %692 = vmatprep.subr.bf16.mxu0 0
        %693 = vmatpush1.bf16.msra.mxu0 %v676
        %694 = vmatprep.subr.bf16.mxu0 0
        %695 = vmatpush2.bf16.msra.mxu0 0
        %696 = vmatprep.subr.bf16.mxu0 0
        %697 = vmatpush2.bf16.msra.mxu0 0
        %698 = vmatprep.subr.bf16.mxu0 0
        %699 = vmatpush2.bf16.msra.mxu0 0
        %700 = vmatprep.subr.bf16.mxu0 0
        %701 = vmatpush2.bf16.msra.mxu0 0
        %702 = vmatprep.subr.bf16.mxu0 0
        %703 = vmatpush2.bf16.msra.mxu0 0
        %704 = vmatprep.subr.bf16.mxu0 0
        %705 = vmatpush2.bf16.msra.mxu0 0
        %706 = vmatprep.subr.bf16.mxu0 0
        %707 = vmatpush2.bf16.msra.mxu0 0
        %708 = vmatprep.subr.bf16.mxu0 0
        %709 = vmatpush2.bf16.msra.mxu0 0
        %710 = vmatprep.mubr.bf16.mxu0 0
        %711 = vmatmul.mubr.bf16.gmra.mxu0 %v673
        %v712 = vpop.f32.mrf.mxu0
        %v713 = vadd.f32 0.0, %v712
        %v714 = vpop.f32.mrf.mxu0
        %v715 = vpop.f32.mrf.mxu0
        %v716 = vpop.f32.mrf.mxu0
        %717 = vdwg.mxu0
        %v718 = vpack.c.bf16 %v713, %v713
        %v719 = vld [vmem:[#allocation2 + $0x20] sm:$0xf]
        %v720 = vld [vmem:[#allocation2 + $0x24] sm:$0xf]
        %v721 = vld [vmem:[#allocation2 + $0x28] sm:$0xf]
        %v722 = vld [vmem:[#allocation2 + $0x2c] sm:$0xf]
        %v727 = vunpack.c.l.b16 %v719
        %v728 = vunpack.c.l.b16 %v720
        %v729 = vunpack.c.l.b16 %v721
        %v730 = vunpack.c.l.b16 %v722
        %v731 = vpack.c.b16 %v728, %v727
        %v732 = vpack.c.b16 %v730, %v729
        %v736 = vsel %vm264, %v718, 0
        %738 = vmatprep.subr.bf16.mxu0 0
        %739 = vmatpush1.bf16.msra.mxu0 0
        %740 = vmatprep.subr.bf16.mxu0 0
        %741 = vmatpush1.bf16.msra.mxu0 0
        %742 = vmatprep.subr.bf16.mxu0 0
        %743 = vmatpush1.bf16.msra.mxu0 0
        %744 = vmatprep.subr.bf16.mxu0 0
        %745 = vmatpush1.bf16.msra.mxu0 0
        %746 = vmatprep.subr.bf16.mxu0 0
        %747 = vmatpush1.bf16.msra.mxu0 0
        %748 = vmatprep.subr.bf16.mxu0 0
        %749 = vmatpush1.bf16.msra.mxu0 0
        %750 = vmatprep.subr.bf16.mxu0 0
        %751 = vmatpush1.bf16.msra.mxu0 %v732
        %752 = vmatprep.subr.bf16.mxu0 0
        %753 = vmatpush1.bf16.msra.mxu0 %v731
        %754 = vmatprep.subr.bf16.mxu0 0
        %755 = vmatpush2.bf16.msra.mxu0 0
        %756 = vmatprep.subr.bf16.mxu0 0
        %757 = vmatpush2.bf16.msra.mxu0 0
        %758 = vmatprep.subr.bf16.mxu0 0
        %759 = vmatpush2.bf16.msra.mxu0 0
        %760 = vmatprep.subr.bf16.mxu0 0
        %761 = vmatpush2.bf16.msra.mxu0 0
        %762 = vmatprep.subr.bf16.mxu0 0
        %763 = vmatpush2.bf16.msra.mxu0 0
        %764 = vmatprep.subr.bf16.mxu0 0
        %765 = vmatpush2.bf16.msra.mxu0 0
        %766 = vmatprep.subr.bf16.mxu0 0
        %767 = vmatpush2.bf16.msra.mxu0 0
        %768 = vmatprep.subr.bf16.mxu0 0
        %769 = vmatpush2.bf16.msra.mxu0 0
        %770 = vmatprep.mubr.bf16.mxu0 0
        %771 = vmatmul.mubr.bf16.gmra.mxu0 %v736
        %v772 = vpop.f32.mrf.mxu0
        %v773 = vadd.f32 0.0, %v772
        %v774 = vpop.f32.mrf.mxu0
        %v775 = vpop.f32.mrf.mxu0
        %v776 = vpop.f32.mrf.mxu0
        %777 = vdwg.mxu0
        %v778 = vadd.f32 %v607, %v773
        %779 = vrot.lane.b32.xlu0 %v433, 32
        %v780 = vpop.permute.xlu0 %779
        %781 = vrot.lane.b32.xlu0 %v263, 32
        %v782 = vpop.permute.xlu0 %781
        %v784 = vsel %vm264, %v780, 0
        %v787 = vsel %vm264, %v782, 0
        %789 = vmatprep.subr.bf16.mxu0 0
        %790 = vmatpush1.bf16.xpose.msra.mxu0 0
        %791 = vmatprep.subr.bf16.mxu0 0
        %792 = vmatpush1.bf16.xpose.msra.mxu0 0
        %793 = vmatprep.subr.bf16.mxu0 0
        %794 = vmatpush1.bf16.xpose.msra.mxu0 0
        %795 = vmatprep.subr.bf16.mxu0 0
        %796 = vmatpush1.bf16.xpose.msra.mxu0 0
        %797 = vmatprep.subr.bf16.mxu0 0
        %798 = vmatpush1.bf16.xpose.msra.mxu0 0
        %799 = vmatprep.subr.bf16.mxu0 0
        %800 = vmatpush1.bf16.xpose.msra.mxu0 0
        %801 = vmatprep.subr.bf16.mxu0 0
        %802 = vmatpush1.bf16.xpose.msra.mxu0 0
        %803 = vmatprep.subr.bf16.mxu0 0
        %804 = vmatpush1.bf16.xpose.msra.mxu0 %v787
        %805 = vmatprep.subr.bf16.mxu0 0
        %806 = vmatpush2.bf16.xpose.msra.mxu0 0
        %807 = vmatprep.subr.bf16.mxu0 0
        %808 = vmatpush2.bf16.xpose.msra.mxu0 0
        %809 = vmatprep.subr.bf16.mxu0 0
        %810 = vmatpush2.bf16.xpose.msra.mxu0 0
        %811 = vmatprep.subr.bf16.mxu0 0
        %812 = vmatpush2.bf16.xpose.msra.mxu0 0
        %813 = vmatprep.subr.bf16.mxu0 0
        %814 = vmatpush2.bf16.xpose.msra.mxu0 0
        %815 = vmatprep.subr.bf16.mxu0 0
        %816 = vmatpush2.bf16.xpose.msra.mxu0 0
        %817 = vmatprep.subr.bf16.mxu0 0
        %818 = vmatpush2.bf16.xpose.msra.mxu0 0
        %819 = vmatprep.subr.bf16.mxu0 0
        %820 = vmatpush2.bf16.xpose.msra.mxu0 0
        %821 = vmatprep.mubr.bf16.mxu0 0
        %822 = vmatmul.mubr.bf16.gmra.mxu0 %v784
        %v823 = vpop.f32.mrf.mxu0
        %v824 = vadd.f32 %v251, %v823
        %v825 = vpop.f32.mrf.mxu0
        %v826 = vpop.f32.mrf.mxu0
        %v827 = vpop.f32.mrf.mxu0
        %828 = vdwg.mxu0
        %v829 = vsel %vm311, %v824, -inf
        %830 = vmax.xlane.f32.xlu0 %v829
        %v831 = vpop.xlane.xlu0 %830
        %v832 = vsub.f32 %v824, %v831
        %v833 = vmul.f32 %v832, 1.442695
        %v834 = vpow.pop %v833
        %v835 = vsel %vm311, %v834, 0.0
        %836 = vadd.xlane.f32.xlu0 %v835
        %v837 = vpop.xlane.xlu0 %836
        %v838 = vrcp.pop %v837
        %v839 = vmul.f32 %v834, %v838
        %v840 = vpack.c.bf16 %v839, %v839
        %841 = vrot.lane.b32.xlu0 %v498, 32
        %v842 = vpop.permute.xlu0 %841
        %v844 = vsel %vm311, %v840, 0
        %v847 = vsel %vm327, %v842, 0
        %849 = vmatprep.subr.bf16.mxu0 0
        %850 = vmatpush1.bf16.msra.mxu0 0
        %851 = vmatprep.subr.bf16.mxu0 0
        %852 = vmatpush1.bf16.msra.mxu0 0
        %853 = vmatprep.subr.bf16.mxu0 0
        %854 = vmatpush1.bf16.msra.mxu0 0
        %855 = vmatprep.subr.bf16.mxu0 0
        %856 = vmatpush1.bf16.msra.mxu0 0
        %857 = vmatprep.subr.bf16.mxu0 0
        %858 = vmatpush1.bf16.msra.mxu0 0
        %859 = vmatprep.subr.bf16.mxu0 0
        %860 = vmatpush1.bf16.msra.mxu0 0
        %861 = vmatprep.subr.bf16.mxu0 0
        %862 = vmatpush1.bf16.msra.mxu0 0
        %863 = vmatprep.subr.bf16.mxu0 0
        %864 = vmatpush1.bf16.msra.mxu0 %v847
        %865 = vmatprep.subr.bf16.mxu0 0
        %866 = vmatpush2.bf16.msra.mxu0 0
        %867 = vmatprep.subr.bf16.mxu0 0
        %868 = vmatpush2.bf16.msra.mxu0 0
        %869 = vmatprep.subr.bf16.mxu0 0
        %870 = vmatpush2.bf16.msra.mxu0 0
        %871 = vmatprep.subr.bf16.mxu0 0
        %872 = vmatpush2.bf16.msra.mxu0 0
        %873 = vmatprep.subr.bf16.mxu0 0
        %874 = vmatpush2.bf16.msra.mxu0 0
        %875 = vmatprep.subr.bf16.mxu0 0
        %876 = vmatpush2.bf16.msra.mxu0 0
        %877 = vmatprep.subr.bf16.mxu0 0
        %878 = vmatpush2.bf16.msra.mxu0 0
        %879 = vmatprep.subr.bf16.mxu0 0
        %880 = vmatpush2.bf16.msra.mxu0 0
        %881 = vmatprep.mubr.bf16.mxu0 0
        %882 = vmatmul.mubr.bf16.gmra.mxu0 %v844
        %v883 = vpop.f32.mrf.mxu0
        %v884 = vadd.f32 0.0, %v883
        %v885 = vpop.f32.mrf.mxu0
        %v886 = vpop.f32.mrf.mxu0
        %v887 = vpop.f32.mrf.mxu0
        %888 = vdwg.mxu0
        %v889 = vpack.c.bf16 %v884, %v884
        %v890 = vld [vmem:[#allocation2 + $0x30] sm:$0xf]
        %v891 = vld [vmem:[#allocation2 + $0x34] sm:$0xf]
        %v892 = vld [vmem:[#allocation2 + $0x38] sm:$0xf]
        %v893 = vld [vmem:[#allocation2 + $0x3c] sm:$0xf]
        %v898 = vunpack.c.l.b16 %v890
        %v899 = vunpack.c.l.b16 %v891
        %v900 = vunpack.c.l.b16 %v892
        %v901 = vunpack.c.l.b16 %v893
        %v902 = vpack.c.b16 %v899, %v898
        %v903 = vpack.c.b16 %v901, %v900
        %v907 = vsel %vm264, %v889, 0
        %909 = vmatprep.subr.bf16.mxu0 0
        %910 = vmatpush1.bf16.msra.mxu0 0
        %911 = vmatprep.subr.bf16.mxu0 0
        %912 = vmatpush1.bf16.msra.mxu0 0
        %913 = vmatprep.subr.bf16.mxu0 0
        %914 = vmatpush1.bf16.msra.mxu0 0
        %915 = vmatprep.subr.bf16.mxu0 0
        %916 = vmatpush1.bf16.msra.mxu0 0
        %917 = vmatprep.subr.bf16.mxu0 0
        %918 = vmatpush1.bf16.msra.mxu0 0
        %919 = vmatprep.subr.bf16.mxu0 0
        %920 = vmatpush1.bf16.msra.mxu0 0
        %921 = vmatprep.subr.bf16.mxu0 0
        %922 = vmatpush1.bf16.msra.mxu0 %v903
        %923 = vmatprep.subr.bf16.mxu0 0
        %924 = vmatpush1.bf16.msra.mxu0 %v902
        %925 = vmatprep.subr.bf16.mxu0 0
        %926 = vmatpush2.bf16.msra.mxu0 0
        %927 = vmatprep.subr.bf16.mxu0 0
        %928 = vmatpush2.bf16.msra.mxu0 0
        %929 = vmatprep.subr.bf16.mxu0 0
        %930 = vmatpush2.bf16.msra.mxu0 0
        %931 = vmatprep.subr.bf16.mxu0 0
        %932 = vmatpush2.bf16.msra.mxu0 0
        %933 = vmatprep.subr.bf16.mxu0 0
        %934 = vmatpush2.bf16.msra.mxu0 0
        %935 = vmatprep.subr.bf16.mxu0 0
        %936 = vmatpush2.bf16.msra.mxu0 0
        %937 = vmatprep.subr.bf16.mxu0 0
        %938 = vmatpush2.bf16.msra.mxu0 0
        %939 = vmatprep.subr.bf16.mxu0 0
        %940 = vmatpush2.bf16.msra.mxu0 0
        %941 = vmatprep.mubr.bf16.mxu0 0
        %942 = vmatmul.mubr.bf16.gmra.mxu0 %v907
        %v943 = vpop.f32.mrf.mxu0
        %v944 = vadd.f32 0.0, %v943
        %v945 = vpop.f32.mrf.mxu0
        %v946 = vpop.f32.mrf.mxu0
        %v947 = vpop.f32.mrf.mxu0
        %948 = vdwg.mxu0
        %v949 = vadd.f32 %v778, %v944
        %950 = vst [vmem:[%s240] sm:$0xff] %v949
        %p951 = scmp.lt.s32.totalorder %s17, 1
        %s952 = scalar_select %p951, %s17, 1
        %s953 = smul.addr %s952, 8
        %s954 = scalar_lea.vmem %s4, %s953
        // Predicated region
        $region45: #{clip_forward.26} parent=35 // pred_check
          %p955 = pneg %p129
        $region46: #{clip_forward.26} parent=35 // pred_check_branch
          %957 = sbr.rel (%p955) target = $region48
        $region47: #{clip_forward.26} parent=35 // pred_region
          _
        $region48: #{clip_forward.26} parent=35 // pred_fallthru
          _
      $region36: #{clip_forward.26} parent=5 // pred_fallthru
        _
      %p958 = scmp.le.s32.totalorder 2, %s12
      // Predicated region
      $region49: #{clip_forward.26} parent=5 // pred_check
        %p959 = pneg %p958
      $region50: #{clip_forward.26} parent=5 // pred_check_branch
        %961 = sbr.rel (%p959) target = $region52
      $region51: #{clip_forward.26} parent=5 // pred_region
        %s962 = ssub.s32 %s12, 2
        // Predicated region
        $region53: #{clip_forward.26} parent=51 // pred_check
          %p963 = pneg %p135
        $region54: #{clip_forward.26} parent=51 // pred_check_branch
          %965 = sbr.rel (%p963) target = $region56
        $region55: #{clip_forward.26} parent=51 // pred_region
          %p966 = scmp.lt.s32.totalorder %s18, 1
          %s967 = scalar_select %p966, %s18, 1
          %s968 = smul.addr %s967, 8
          %s969 = scalar_lea.vmem %s4, %s968
        $region56: #{clip_forward.26} parent=51 // pred_fallthru
          _
      $region52: #{clip_forward.26} parent=5 // pred_fallthru
        _
    $region6: #{clip_forward.26} parent=1 // loop_footer
      %s16 = sadd.s32 1, %s12
    $region7: #{clip_forward.26} parent=1 // loop_footer_branch
      %11 = sbr.rel target = $region3
    $region8: #{clip_forward.26} parent=1 // loop_exit
      _
    %970 = vsyncpa [#allocation3], 1
    %s971 = scalar_lea.sflag [#allocation3], 1
    %972 = vsyncpa %s971, 1
    %973 = vsyncpa [#allocation5], 1

// kernel: clip_forward.27
$region0: #{clip_forward.27}
  #allocation0 [shape = 'u32[]', space=smem, size = 0x4, offset = 0x4, fixed_abs, tag = 'smem constant byte address 0x4 - core index']
  #allocation1 [shape = 'u32[144,128]{1,0:T(1,128)}', space=vmem, size = 0x12000, scoped, tag = 'internal scratch']
  %s0 = inlined_call_operand.vmem [shape: f32[16,128], index: 0, kind: input, shape index: {}]
  %s1 = inlined_call_operand.hbm [shape: f32[1,128], index: 1, kind: input, shape index: {}]
  %s2 = inlined_call_operand.hbm [shape: f32[1,128], index: 2, kind: input, shape index: {}]
  %s3 = inlined_call_operand.vmem [shape: bf16[128,512], index: 3, kind: input, shape index: {}]
  %s4 = inlined_call_operand.hbm [shape: f32[1,512], index: 4, kind: input, shape index: {}]
  %s5 = inlined_call_operand.vmem [shape: bf16[512,128], index: 5, kind: input, shape index: {}]
  %s6 = inlined_call_operand.vmem [shape: f32[1,128], index: 6, kind: input, shape index: {}]
  %s7 = inlined_call_operand.vmem [shape: f32[16,128], index: 7, kind: output, shape index: {}]
  %s8 = sld [smem:[#allocation0]]
  $region50: #{clip_forward.27} parent=0
    _
  %s10 = ssub.s32 1, %s8
  %s11 = scalar_select 0, %s10, %s8
  $region1: #{clip_forward.27} parent=0
    #allocation2 [shape = 'u8[512]{0}', space=vmem, size = 0x400, scoped, tag = 'input window, operand 1, single buffered']
    #allocation3 [shape = 's32[1]{0}', space=sflag, size = 0x4, scoped, tag = 'scoped memory for clip_forward.27']
    #allocation4 [shape = 'u8[512]{0}', space=vmem, size = 0x400, scoped, tag = 'input window, operand 2, single buffered']
    #allocation5 [shape = 's32[1]{0}', space=sflag, size = 0x4, scoped, tag = 'scoped memory for clip_forward.27']
    #allocation6 [shape = 'u8[2048]{0}', space=vmem, size = 0x800, scoped, tag = 'input window, operand 4, single buffered']
    %12 = vsyncpa [#allocation3], 0
    %13 = vsyncpa [#allocation5], 0
    // Predicated region
    $region2: #{clip_forward.27} parent=1 // pred_check
      _
    $region3: #{clip_forward.27} parent=1 // pred_check_branch
      %15 = sbr.rel (0) target = $region5
    $region4: #{clip_forward.27} parent=1 // pred_region
      _
    $region5: #{clip_forward.27} parent=1 // pred_fallthru
      _
    // Predicated region
    $region6: #{clip_forward.27} parent=1 // pred_check
      _
    $region7: #{clip_forward.27} parent=1 // pred_check_branch
      %17 = sbr.rel (0) target = $region9
    $region8: #{clip_forward.27} parent=1 // pred_region
      %s19 = ssub.s32 16, 16
      %20 = vsyncadd [#allocation3], %s19
      %s22 = sshll.u32 [#allocation2], 4
      %s23 = int_to_ptr.vmem [resolvable:$true] %s22
      %25 = dma.hbm_to_vmem [thread:$0]  %s1, 16, %s23, [#allocation3]
    $region9: #{clip_forward.27} parent=1 // pred_fallthru
      _
    // Predicated region
    $region10: #{clip_forward.27} parent=1 // pred_check
      _
    $region11: #{clip_forward.27} parent=1 // pred_check_branch
      %27 = sbr.rel (0) target = $region13
    $region12: #{clip_forward.27} parent=1 // pred_region
      %s29 = ssub.s32 16, 16
      %30 = vsyncadd [#allocation5], %s29
      %s32 = sshll.u32 [#allocation4], 4
      %s33 = int_to_ptr.vmem [resolvable:$true] %s32
      %35 = dma.hbm_to_vmem [thread:$0]  %s2, 16, %s33, [#allocation5]
    $region13: #{clip_forward.27} parent=1 // pred_fallthru
      _
    // Predicated region
    $region14: #{clip_forward.27} parent=1 // pred_check
      _
    $region15: #{clip_forward.27} parent=1 // pred_check_branch
      %37 = sbr.rel (0) target = $region17
    $region16: #{clip_forward.27} parent=1 // pred_region
      _
    $region17: #{clip_forward.27} parent=1 // pred_fallthru
      _
    // Predicated region
    $region18: #{clip_forward.27} parent=1 // pred_check
      _
    $region19: #{clip_forward.27} parent=1 // pred_check_branch
      %39 = sbr.rel (0) target = $region21
    $region20: #{clip_forward.27} parent=1 // pred_region
      %s41 = ssub.s32 64, 64
      %42 = vsyncadd [#allocation5], %s41
      %s44 = sshll.u32 [#allocation6], 4
      %s45 = int_to_ptr.vmem [resolvable:$true] %s44
      %47 = dma.hbm_to_vmem [thread:$0]  %s4, 64, %s45, [#allocation5]
    $region21: #{clip_forward.27} parent=1 // pred_fallthru
      _
    // Predicated region
    $region22: #{clip_forward.27} parent=1 // pred_check
      _
    $region23: #{clip_forward.27} parent=1 // pred_check_branch
      %49 = sbr.rel (0) target = $region25
    $region24: #{clip_forward.27} parent=1 // pred_region
      _
    $region25: #{clip_forward.27} parent=1 // pred_fallthru
      _
    // Predicated region
    $region26: #{clip_forward.27} parent=1 // pred_check
      _
    $region27: #{clip_forward.27} parent=1 // pred_check_branch
      %51 = sbr.rel (0) target = $region29
    $region28: #{clip_forward.27} parent=1 // pred_region
      _
    $region29: #{clip_forward.27} parent=1 // pred_fallthru
      _
    // Predicated region
    $region30: #{clip_forward.27} parent=1 // pred_check
      _
    $region31: #{clip_forward.27} parent=1 // pred_check_branch
      %53 = sbr.rel (0) target = $region33
    $region32: #{clip_forward.27} parent=1 // pred_region
      %54 = dma.done [#allocation3], 16
    $region33: #{clip_forward.27} parent=1 // pred_fallthru
      _
    // Predicated region
    $region34: #{clip_forward.27} parent=1 // pred_check
      _
    $region35: #{clip_forward.27} parent=1 // pred_check_branch
      %56 = sbr.rel (0) target = $region37
    $region36: #{clip_forward.27} parent=1 // pred_region
      %57 = dma.done [#allocation5], 16
    $region37: #{clip_forward.27} parent=1 // pred_fallthru
      _
    // Predicated region
    $region38: #{clip_forward.27} parent=1 // pred_check
      _
    $region39: #{clip_forward.27} parent=1 // pred_check_branch
      %59 = sbr.rel (0) target = $region41
    $region40: #{clip_forward.27} parent=1 // pred_region
      %60 = dma.done [#allocation5], 64
    $region41: #{clip_forward.27} parent=1 // pred_fallthru
      _
    %v62 = vld [vmem:[%s0] sm:$0xff]
    %v63 = vld [vmem:[%s0 + $0x8] sm:$0xff]
    %64 = vadd.xlane.f32.xlu0 %v62
    %v65 = vpop.xlane.xlu0 %64
    %66 = vadd.xlane.f32.xlu0 %v63
    %v67 = vpop.xlane.xlu0 %66
    %v68 = vrcp.pop 128.0
    %v69 = vmul.f32 %v65, %v68
    %v70 = vmul.f32 %v67, %v68
    %v71 = vsub.f32 %v62, %v69
    %v72 = vsub.f32 %v63, %v70
    %v73 = vmul.f32 %v71, %v71
    %v74 = vmul.f32 %v72, %v72
    %75 = vadd.xlane.f32.xlu0 %v73
    %v76 = vpop.xlane.xlu0 %75
    %77 = vadd.xlane.f32.xlu0 %v74
    %v78 = vpop.xlane.xlu0 %77
    %v79 = vmul.f32 %v76, %v68
    %v80 = vmul.f32 %v78, %v68
    %v81 = vadd.f32 %v79, 1e-05
    %v82 = vadd.f32 %v80, 1e-05
    %v83 = vrsqrt.pop %v81
    %v84 = vrsqrt.pop %v82
    %v85 = vmul.f32 %v71, %v83
    %v86 = vmul.f32 %v72, %v84
    %v87 = vld [vmem:[#allocation2] sm:$0x1]
    %v89 = vlaneseq
    %v90 = vshrl.u32 %v89, 7
    %v91 = vsub.s32 0, %v90
    %v92 = vrot.slane %v87, %v91
    %v94 = vmul.f32 %v85, %v92
    %v95 = vmul.f32 %v86, %v92
    %v96 = vld [vmem:[#allocation4] sm:$0x1]
    %v98 = vlaneseq
    %v99 = vshrl.u32 %v98, 7
    %v100 = vsub.s32 0, %v99
    %v101 = vrot.slane %v96, %v100
    %v103 = vadd.f32 %v94, %v101
    %v104 = vadd.f32 %v95, %v101
    %v105 = vpack.c.bf16 %v104, %v103
    %v106 = vld [vmem:[%s3] sm:$0xff]
    %v107 = vld [vmem:[%s3 + $0x8] sm:$0xff]
    %v108 = vld [vmem:[%s3 + $0x10] sm:$0xff]
    %v109 = vld [vmem:[%s3 + $0x18] sm:$0xff]
    %v110 = vld [vmem:[%s3 + $0x20] sm:$0xff]
    %v111 = vld [vmem:[%s3 + $0x28] sm:$0xff]
    %v112 = vld [vmem:[%s3 + $0x30] sm:$0xff]
    %v113 = vld [vmem:[%s3 + $0x38] sm:$0xff]
    %v114 = vld [vmem:[%s3 + $0x40] sm:$0xff]
    %v115 = vld [vmem:[%s3 + $0x48] sm:$0xff]
    %v116 = vld [vmem:[%s3 + $0x50] sm:$0xff]
    %v117 = vld [vmem:[%s3 + $0x58] sm:$0xff]
    %v118 = vld [vmem:[%s3 + $0x60] sm:$0xff]
    %v119 = vld [vmem:[%s3 + $0x68] sm:$0xff]
    %v120 = vld [vmem:[%s3 + $0x70] sm:$0xff]
    %v121 = vld [vmem:[%s3 + $0x78] sm:$0xff]
    %v122 = vld [vmem:[%s3 + $0x80] sm:$0xff]
    %v123 = vld [vmem:[%s3 + $0x88] sm:$0xff]
    %v124 = vld [vmem:[%s3 + $0x90] sm:$0xff]
    %v125 = vld [vmem:[%s3 + $0x98] sm:$0xff]
    %v126 = vld [vmem:[%s3 + $0xa0] sm:$0xff]
    %v127 = vld [vmem:[%s3 + $0xa8] sm:$0xff]
    %v128 = vld [vmem:[%s3 + $0xb0] sm:$0xff]
    %v129 = vld [vmem:[%s3 + $0xb8] sm:$0xff]
    %v130 = vld [vmem:[%s3 + $0xc0] sm:$0xff]
    %v131 = vld [vmem:[%s3 + $0xc8] sm:$0xff]
    %v132 = vld [vmem:[%s3 + $0xd0] sm:$0xff]
    %v133 = vld [vmem:[%s3 + $0xd8] sm:$0xff]
    %v134 = vld [vmem:[%s3 + $0xe0] sm:$0xff]
    %v135 = vld [vmem:[%s3 + $0xe8] sm:$0xff]
    %v136 = vld [vmem:[%s3 + $0xf0] sm:$0xff]
    %v137 = vld [vmem:[%s3 + $0xf8] sm:$0xff]
    %v138 = vld [vmem:[#allocation6] sm:$0xf]
    %v140 = vlaneseq
    %v141 = vshrl.u32 %v140, 7
    %v142 = vsub.s32 0, %v141
    %v143 = vrot.slane %v138, %v142
    %v144 = vlaneseq
    %v145 = vshrl.u32 %v144, 7
    %v146 = vsub.s32 1, %v145
    %v147 = vrot.slane %v138, %v146
    %v148 = vlaneseq
    %v149 = vshrl.u32 %v148, 7
    %v150 = vsub.s32 2, %v149
    %v151 = vrot.slane %v138, %v150
    %v152 = vlaneseq
    %v153 = vshrl.u32 %v152, 7
    %v154 = vsub.s32 3, %v153
    %v155 = vrot.slane %v138, %v154
    %v192 = vunpack.c.l.b16 %v106
    %v193 = vunpack.c.h.b16 %v106
    %v194 = vunpack.c.l.b16 %v107
    %v195 = vunpack.c.h.b16 %v107
    %v196 = vunpack.c.l.b16 %v108
    %v197 = vunpack.c.h.b16 %v108
    %v198 = vunpack.c.l.b16 %v109
    %v199 = vunpack.c.h.b16 %v109
    %v200 = vunpack.c.l.b16 %v110
    %v201 = vunpack.c.h.b16 %v110
    %v202 = vunpack.c.l.b16 %v111
    %v203 = vunpack.c.h.b16 %v111
    %v204 = vunpack.c.l.b16 %v112
    %v205 = vunpack.c.h.b16 %v112
    %v206 = vunpack.c.l.b16 %v113
    %v207 = vunpack.c.h.b16 %v113
    %v208 = vunpack.c.l.b16 %v114
    %v209 = vunpack.c.h.b16 %v114
    %v210 = vunpack.c.l.b16 %v115
    %v211 = vunpack.c.h.b16 %v115
    %v212 = vunpack.c.l.b16 %v116
    %v213 = vunpack.c.h.b16 %v116
    %v214 = vunpack.c.l.b16 %v117
    %v215 = vunpack.c.h.b16 %v117
    %v216 = vunpack.c.l.b16 %v118
    %v217 = vunpack.c.h.b16 %v118
    %v218 = vunpack.c.l.b16 %v119
    %v219 = vunpack.c.h.b16 %v119
    %v220 = vunpack.c.l.b16 %v120
    %v221 = vunpack.c.h.b16 %v120
    %v222 = vunpack.c.l.b16 %v121
    %v223 = vunpack.c.h.b16 %v121
    %v224 = vunpack.c.l.b16 %v122
    %v225 = vunpack.c.h.b16 %v122
    %v226 = vunpack.c.l.b16 %v123
    %v227 = vunpack.c.h.b16 %v123
    %v228 = vunpack.c.l.b16 %v124
    %v229 = vunpack.c.h.b16 %v124
    %v230 = vunpack.c.l.b16 %v125
    %v231 = vunpack.c.h.b16 %v125
    %v232 = vunpack.c.l.b16 %v126
    %v233 = vunpack.c.h.b16 %v126
    %v234 = vunpack.c.l.b16 %v127
    %v235 = vunpack.c.h.b16 %v127
    %v236 = vunpack.c.l.b16 %v128
    %v237 = vunpack.c.h.b16 %v128
    %v238 = vunpack.c.l.b16 %v129
    %v239 = vunpack.c.h.b16 %v129
    %v240 = vunpack.c.l.b16 %v130
    %v241 = vunpack.c.h.b16 %v130
    %v242 = vunpack.c.l.b16 %v131
    %v243 = vunpack.c.h.b16 %v131
    %v244 = vunpack.c.l.b16 %v132
    %v245 = vunpack.c.h.b16 %v132
    %v246 = vunpack.c.l.b16 %v133
    %v247 = vunpack.c.h.b16 %v133
    %v248 = vunpack.c.l.b16 %v134
    %v249 = vunpack.c.h.b16 %v134
    %v250 = vunpack.c.l.b16 %v135
    %v251 = vunpack.c.h.b16 %v135
    %v252 = vunpack.c.l.b16 %v136
    %v253 = vunpack.c.h.b16 %v136
    %v254 = vunpack.c.l.b16 %v137
    %v255 = vunpack.c.h.b16 %v137
    %v256 = vpack.c.b16 %v196, %v192
    %v257 = vpack.c.b16 %v197, %v193
    %v258 = vpack.c.b16 %v198, %v194
    %v259 = vpack.c.b16 %v199, %v195
    %v260 = vpack.c.b16 %v204, %v200
    %v261 = vpack.c.b16 %v205, %v201
    %v262 = vpack.c.b16 %v206, %v202
    %v263 = vpack.c.b16 %v207, %v203
    %v264 = vpack.c.b16 %v212, %v208
    %v265 = vpack.c.b16 %v213, %v209
    %v266 = vpack.c.b16 %v214, %v210
    %v267 = vpack.c.b16 %v215, %v211
    %v268 = vpack.c.b16 %v220, %v216
    %v269 = vpack.c.b16 %v221, %v217
    %v270 = vpack.c.b16 %v222, %v218
    %v271 = vpack.c.b16 %v223, %v219
    %v272 = vpack.c.b16 %v228, %v224
    %v273 = vpack.c.b16 %v229, %v225
    %v274 = vpack.c.b16 %v230, %v226
    %v275 = vpack.c.b16 %v231, %v227
    %v276 = vpack.c.b16 %v236, %v232
    %v277 = vpack.c.b16 %v237, %v233
    %v278 = vpack.c.b16 %v238, %v234
    %v279 = vpack.c.b16 %v239, %v235
    %v280 = vpack.c.b16 %v244, %v240
    %v281 = vpack.c.b16 %v245, %v241
    %v282 = vpack.c.b16 %v246, %v242
    %v283 = vpack.c.b16 %v247, %v243
    %v284 = vpack.c.b16 %v252, %v248
    %v285 = vpack.c.b16 %v253, %v249
    %v286 = vpack.c.b16 %v254, %v250
    %v287 = vpack.c.b16 %v255, %v251
    %320 = vmatprep.subr.bf16.mxu0 %v285
    %321 = vmatpush1.bf16.msra.mxu0 %v284
    %322 = vmatprep.subr.bf16.mxu0 %v281
    %323 = vmatpush1.bf16.msra.mxu0 %v280
    %324 = vmatprep.subr.bf16.mxu0 %v277
    %325 = vmatpush1.bf16.msra.mxu0 %v276
    %326 = vmatprep.subr.bf16.mxu0 %v273
    %327 = vmatpush1.bf16.msra.mxu0 %v272
    %328 = vmatprep.subr.bf16.mxu0 %v269
    %329 = vmatpush1.bf16.msra.mxu0 %v268
    %330 = vmatprep.subr.bf16.mxu0 %v265
    %331 = vmatpush1.bf16.msra.mxu0 %v264
    %332 = vmatprep.subr.bf16.mxu0 %v261
    %333 = vmatpush1.bf16.msra.mxu0 %v260
    %334 = vmatprep.subr.bf16.mxu0 %v257
    %335 = vmatpush1.bf16.msra.mxu0 %v256
    %336 = vmatprep.subr.bf16.mxu0 0
    %337 = vmatpush2.bf16.msra.mxu0 0
    %338 = vmatprep.subr.bf16.mxu0 0
    %339 = vmatpush2.bf16.msra.mxu0 0
    %340 = vmatprep.subr.bf16.mxu0 0
    %341 = vmatpush2.bf16.msra.mxu0 0
    %342 = vmatprep.subr.bf16.mxu0 0
    %343 = vmatpush2.bf16.msra.mxu0 0
    %344 = vmatprep.subr.bf16.mxu0 0
    %345 = vmatpush2.bf16.msra.mxu0 0
    %346 = vmatprep.subr.bf16.mxu0 0
    %347 = vmatpush2.bf16.msra.mxu0 0
    %348 = vmatprep.subr.bf16.mxu0 0
    %349 = vmatpush2.bf16.msra.mxu0 0
    %350 = vmatprep.subr.bf16.mxu0 0
    %351 = vmatpush2.bf16.msra.mxu0 0
    %352 = vmatprep.mubr.bf16.mxu0 0
    %353 = vmatmul.mubr.bf16.gmra.mxu0 %v105
    %v354 = vpop.f32.mrf.mxu0
    %v355 = vadd.f32 %v143, %v354
    %v356 = vpop.f32.mrf.mxu0
    %v357 = vadd.f32 %v147, %v356
    %v358 = vpop.f32.mrf.mxu0
    %v359 = vadd.f32 %v143, %v358
    %v360 = vpop.f32.mrf.mxu0
    %v361 = vadd.f32 %v147, %v360
    %362 = vdwg.mxu0
    %363 = vmatprep.subr.bf16.mxu0 %v287
    %364 = vmatpush1.bf16.msra.mxu0 %v286
    %365 = vmatprep.subr.bf16.mxu0 %v283
    %366 = vmatpush1.bf16.msra.mxu0 %v282
    %367 = vmatprep.subr.bf16.mxu0 %v279
    %368 = vmatpush1.bf16.msra.mxu0 %v278
    %369 = vmatprep.subr.bf16.mxu0 %v275
    %370 = vmatpush1.bf16.msra.mxu0 %v274
    %371 = vmatprep.subr.bf16.mxu0 %v271
    %372 = vmatpush1.bf16.msra.mxu0 %v270
    %373 = vmatprep.subr.bf16.mxu0 %v267
    %374 = vmatpush1.bf16.msra.mxu0 %v266
    %375 = vmatprep.subr.bf16.mxu0 %v263
    %376 = vmatpush1.bf16.msra.mxu0 %v262
    %377 = vmatprep.subr.bf16.mxu0 %v259
    %378 = vmatpush1.bf16.msra.mxu0 %v258
    %379 = vmatprep.subr.bf16.mxu0 0
    %380 = vmatpush2.bf16.msra.mxu0 0
    %381 = vmatprep.subr.bf16.mxu0 0
    %382 = vmatpush2.bf16.msra.mxu0 0
    %383 = vmatprep.subr.bf16.mxu0 0
    %384 = vmatpush2.bf16.msra.mxu0 0
    %385 = vmatprep.subr.bf16.mxu0 0
    %386 = vmatpush2.bf16.msra.mxu0 0
    %387 = vmatprep.subr.bf16.mxu0 0
    %388 = vmatpush2.bf16.msra.mxu0 0
    %389 = vmatprep.subr.bf16.mxu0 0
    %390 = vmatpush2.bf16.msra.mxu0 0
    %391 = vmatprep.subr.bf16.mxu0 0
    %392 = vmatpush2.bf16.msra.mxu0 0
    %393 = vmatprep.subr.bf16.mxu0 0
    %394 = vmatpush2.bf16.msra.mxu0 0
    %395 = vmatprep.mubr.bf16.mxu0 0
    %396 = vmatmul.mubr.bf16.gmra.mxu0 %v105
    %v397 = vpop.f32.mrf.mxu0
    %v398 = vadd.f32 %v151, %v397
    %v399 = vpop.f32.mrf.mxu0
    %v400 = vadd.f32 %v155, %v399
    %v401 = vpop.f32.mrf.mxu0
    %v402 = vadd.f32 %v151, %v401
    %v403 = vpop.f32.mrf.mxu0
    %v404 = vadd.f32 %v155, %v403
    %405 = vdwg.mxu0
    %v406 = vmul.f32 %v355, 1.702
    %v407 = vmul.f32 %v357, 1.702
    %v408 = vmul.f32 %v398, 1.702
    %v409 = vmul.f32 %v400, 1.702
    %v410 = vmul.f32 %v359, 1.702
    %v411 = vmul.f32 %v361, 1.702
    %v412 = vmul.f32 %v402, 1.702
    %v413 = vmul.f32 %v404, 1.702
    %v414 = vxor.u32 %v406, 2147483648
    %v415 = vxor.u32 %v407, 2147483648
    %v416 = vxor.u32 %v408, 2147483648
    %v417 = vxor.u32 %v409, 2147483648
    %v418 = vxor.u32 %v410, 2147483648
    %v419 = vxor.u32 %v411, 2147483648
    %v420 = vxor.u32 %v412, 2147483648
    %v421 = vxor.u32 %v413, 2147483648
    %v422 = vmul.f32 %v414, 1.442695
    %v423 = vpow.pop %v422
    %v424 = vmul.f32 %v415, 1.442695
    %v425 = vpow.pop %v424
    %v426 = vmul.f32 %v416, 1.442695
    %v427 = vpow.pop %v426
    %v428 = vmul.f32 %v417, 1.442695
    %v429 = vpow.pop %v428
    %v430 = vmul.f32 %v418, 1.442695
    %v431 = vpow.pop %v430
    %v432 = vmul.f32 %v419, 1.442695
    %v433 = vpow.pop %v432
    %v434 = vmul.f32 %v420, 1.442695
    %v435 = vpow.pop %v434
    %v436 = vmul.f32 %v421, 1.442695
    %v437 = vpow.pop %v436
    %v438 = vadd.f32 %v423, 1.0
    %v439 = vadd.f32 %v425, 1.0
    %v440 = vadd.f32 %v427, 1.0
    %v441 = vadd.f32 %v429, 1.0
    %v442 = vadd.f32 %v431, 1.0
    %v443 = vadd.f32 %v433, 1.0
    %v444 = vadd.f32 %v435, 1.0
    %v445 = vadd.f32 %v437, 1.0
    %v446 = vrcp.pop %v438
    %v447 = vmul.f32 1.0, %v446
    %v448 = vrcp.pop %v439
    %v449 = vmul.f32 1.0, %v448
    %v450 = vrcp.pop %v440
    %v451 = vmul.f32 1.0, %v450
    %v452 = vrcp.pop %v441
    %v453 = vmul.f32 1.0, %v452
    %v454 = vrcp.pop %v442
    %v455 = vmul.f32 1.0, %v454
    %v456 = vrcp.pop %v443
    %v457 = vmul.f32 1.0, %v456
    %v458 = vrcp.pop %v444
    %v459 = vmul.f32 1.0, %v458
    %v460 = vrcp.pop %v445
    %v461 = vmul.f32 1.0, %v460
    %v462 = vmul.f32 %v355, %v447
    %v463 = vmul.f32 %v357, %v449
    %v464 = vmul.f32 %v398, %v451
    %v465 = vmul.f32 %v400, %v453
    %v466 = vmul.f32 %v359, %v455
    %v467 = vmul.f32 %v361, %v457
    %v468 = vmul.f32 %v402, %v459
    %v469 = vmul.f32 %v404, %v461
    %v470 = vpack.c.bf16 %v466, %v462
    %v471 = vpack.c.bf16 %v467, %v463
    %v472 = vpack.c.bf16 %v468, %v464
    %v473 = vpack.c.bf16 %v469, %v465
    %v474 = vld [vmem:[%s5] sm:$0xf]
    %v475 = vld [vmem:[%s5 + $0x4] sm:$0xf]
    %v476 = vld [vmem:[%s5 + $0x8] sm:$0xf]
    %v477 = vld [vmem:[%s5 + $0xc] sm:$0xf]
    %v478 = vld [vmem:[%s5 + $0x10] sm:$0xf]
    %v479 = vld [vmem:[%s5 + $0x14] sm:$0xf]
    %v480 = vld [vmem:[%s5 + $0x18] sm:$0xf]
    %v481 = vld [vmem:[%s5 + $0x1c] sm:$0xf]
    %v482 = vld [vmem:[%s5 + $0x20] sm:$0xf]
    %v483 = vld [vmem:[%s5 + $0x24] sm:$0xf]
    %v484 = vld [vmem:[%s5 + $0x28] sm:$0xf]
    %v485 = vld [vmem:[%s5 + $0x2c] sm:$0xf]
    %v486 = vld [vmem:[%s5 + $0x30] sm:$0xf]
    %v487 = vld [vmem:[%s5 + $0x34] sm:$0xf]
    %v488 = vld [vmem:[%s5 + $0x38] sm:$0xf]
    %v489 = vld [vmem:[%s5 + $0x3c] sm:$0xf]
    %v490 = vld [vmem:[%s5 + $0x40] sm:$0xf]
    %v491 = vld [vmem:[%s5 + $0x44] sm:$0xf]
    %v492 = vld [vmem:[%s5 + $0x48] sm:$0xf]
    %v493 = vld [vmem:[%s5 + $0x4c] sm:$0xf]
    %v494 = vld [vmem:[%s5 + $0x50] sm:$0xf]
    %v495 = vld [vmem:[%s5 + $0x54] sm:$0xf]
    %v496 = vld [vmem:[%s5 + $0x58] sm:$0xf]
    %v497 = vld [vmem:[%s5 + $0x5c] sm:$0xf]
    %v498 = vld [vmem:[%s5 + $0x60] sm:$0xf]
    %v499 = vld [vmem:[%s5 + $0x64] sm:$0xf]
    %v500 = vld [vmem:[%s5 + $0x68] sm:$0xf]
    %v501 = vld [vmem:[%s5 + $0x6c] sm:$0xf]
    %v502 = vld [vmem:[%s5 + $0x70] sm:$0xf]
    %v503 = vld [vmem:[%s5 + $0x74] sm:$0xf]
    %v504 = vld [vmem:[%s5 + $0x78] sm:$0xf]
    %v505 = vld [vmem:[%s5 + $0x7c] sm:$0xf]
    %v506 = vld [vmem:[%s5 + $0x80] sm:$0xf]
    %v507 = vld [vmem:[%s5 + $0x84] sm:$0xf]
    %v508 = vld [vmem:[%s5 + $0x88] sm:$0xf]
    %v509 = vld [vmem:[%s5 + $0x8c] sm:$0xf]
    %v510 = vld [vmem:[%s5 + $0x90] sm:$0xf]
    %v511 = vld [vmem:[%s5 + $0x94] sm:$0xf]
    %v512 = vld [vmem:[%s5 + $0x98] sm:$0xf]
    %v513 = vld [vmem:[%s5 + $0x9c] sm:$0xf]
    %v514 = vld [vmem:[%s5 + $0xa0] sm:$0xf]
    %v515 = vld [vmem:[%s5 + $0xa4] sm:$0xf]
    %v516 = vld [vmem:[%s5 + $0xa8] sm:$0xf]
    %v517 = vld [vmem:[%s5 + $0xac] sm:$0xf]
    %v518 = vld [vmem:[%s5 + $0xb0] sm:$0xf]
    %v519 = vld [vmem:[%s5 + $0xb4] sm:$0xf]
    %v520 = vld [vmem:[%s5 + $0xb8] sm:$0xf]
    %v521 = vld [vmem:[%s5 + $0xbc] sm:$0xf]
    %v522 = vld [vmem:[%s5 + $0xc0] sm:$0xf]
    %v523 = vld [vmem:[%s5 + $0xc4] sm:$0xf]
    %v524 = vld [vmem:[%s5 + $0xc8] sm:$0xf]
    %v525 = vld [vmem:[%s5 + $0xcc] sm:$0xf]
    %v526 = vld [vmem:[%s5 + $0xd0] sm:$0xf]
    %v527 = vld [vmem:[%s5 + $0xd4] sm:$0xf]
    %v528 = vld [vmem:[%s5 + $0xd8] sm:$0xf]
    %v529 = vld [vmem:[%s5 + $0xdc] sm:$0xf]
    %v530 = vld [vmem:[%s5 + $0xe0] sm:$0xf]
    %v531 = vld [vmem:[%s5 + $0xe4] sm:$0xf]
    %v532 = vld [vmem:[%s5 + $0xe8] sm:$0xf]
    %v533 = vld [vmem:[%s5 + $0xec] sm:$0xf]
    %v534 = vld [vmem:[%s5 + $0xf0] sm:$0xf]
    %v535 = vld [vmem:[%s5 + $0xf4] sm:$0xf]
    %v536 = vld [vmem:[%s5 + $0xf8] sm:$0xf]
    %v537 = vld [vmem:[%s5 + $0xfc] sm:$0xf]
    %v538 = vld [vmem:[%s6] sm:$0x1]
    %v540 = vlaneseq
    %v541 = vshrl.u32 %v540, 7
    %v542 = vsub.s32 0, %v541
    %v543 = vrot.slane %v538, %v542
    %v609 = vunpack.c.l.b16 %v474
    %v610 = vunpack.c.l.b16 %v475
    %v611 = vunpack.c.l.b16 %v476
    %v612 = vunpack.c.l.b16 %v477
    %v613 = vunpack.c.l.b16 %v478
    %v614 = vunpack.c.l.b16 %v479
    %v615 = vunpack.c.l.b16 %v480
    %v616 = vunpack.c.l.b16 %v481
    %v617 = vunpack.c.l.b16 %v482
    %v618 = vunpack.c.l.b16 %v483
    %v619 = vunpack.c.l.b16 %v484
    %v620 = vunpack.c.l.b16 %v485
    %v621 = vunpack.c.l.b16 %v486
    %v622 = vunpack.c.l.b16 %v487
    %v623 = vunpack.c.l.b16 %v488
    %v624 = vunpack.c.l.b16 %v489
    %v625 = vunpack.c.l.b16 %v490
    %v626 = vunpack.c.l.b16 %v491
    %v627 = vunpack.c.l.b16 %v492
    %v628 = vunpack.c.l.b16 %v493
    %v629 = vunpack.c.l.b16 %v494
    %v630 = vunpack.c.l.b16 %v495
    %v631 = vunpack.c.l.b16 %v496
    %v632 = vunpack.c.l.b16 %v497
    %v633 = vunpack.c.l.b16 %v498
    %v634 = vunpack.c.l.b16 %v499
    %v635 = vunpack.c.l.b16 %v500
    %v636 = vunpack.c.l.b16 %v501
    %v637 = vunpack.c.l.b16 %v502
    %v638 = vunpack.c.l.b16 %v503
    %v639 = vunpack.c.l.b16 %v504
    %v640 = vunpack.c.l.b16 %v505
    %v641 = vunpack.c.l.b16 %v506
    %v642 = vunpack.c.l.b16 %v507
    %v643 = vunpack.c.l.b16 %v508
    %v644 = vunpack.c.l.b16 %v509
    %v645 = vunpack.c.l.b16 %v510
    %v646 = vunpack.c.l.b16 %v511
    %v647 = vunpack.c.l.b16 %v512
    %v648 = vunpack.c.l.b16 %v513
    %v649 = vunpack.c.l.b16 %v514
    %v650 = vunpack.c.l.b16 %v515
    %v651 = vunpack.c.l.b16 %v516
    %v652 = vunpack.c.l.b16 %v517
    %v653 = vunpack.c.l.b16 %v518
    %v654 = vunpack.c.l.b16 %v519
    %v655 = vunpack.c.l.b16 %v520
    %v656 = vunpack.c.l.b16 %v521
    %v657 = vunpack.c.l.b16 %v522
    %v658 = vunpack.c.l.b16 %v523
    %v659 = vunpack.c.l.b16 %v524
    %v660 = vunpack.c.l.b16 %v525
    %v661 = vunpack.c.l.b16 %v526
    %v662 = vunpack.c.l.b16 %v527
    %v663 = vunpack.c.l.b16 %v528
    %v664 = vunpack.c.l.b16 %v529
    %v665 = vunpack.c.l.b16 %v530
    %v666 = vunpack.c.l.b16 %v531
    %v667 = vunpack.c.l.b16 %v532
    %v668 = vunpack.c.l.b16 %v533
    %v669 = vunpack.c.l.b16 %v534
    %v670 = vunpack.c.l.b16 %v535
    %v671 = vunpack.c.l.b16 %v536
    %v672 = vunpack.c.l.b16 %v537
    %v673 = vpack.c.b16 %v610, %v609
    %v674 = vpack.c.b16 %v612, %v611
    %v675 = vpack.c.b16 %v614, %v613
    %v676 = vpack.c.b16 %v616, %v615
    %v677 = vpack.c.b16 %v618, %v617
    %v678 = vpack.c.b16 %v620, %v619
    %v679 = vpack.c.b16 %v622, %v621
    %v680 = vpack.c.b16 %v624, %v623
    %v681 = vpack.c.b16 %v626, %v625
    %v682 = vpack.c.b16 %v628, %v627
    %v683 = vpack.c.b16 %v630, %v629
    %v684 = vpack.c.b16 %v632, %v631
    %v685 = vpack.c.b16 %v634, %v633
    %v686 = vpack.c.b16 %v636, %v635
    %v687 = vpack.c.b16 %v638, %v637
    %v688 = vpack.c.b16 %v640, %v639
    %v689 = vpack.c.b16 %v642, %v641
    %v690 = vpack.c.b16 %v644, %v643
    %v691 = vpack.c.b16 %v646, %v645
    %v692 = vpack.c.b16 %v648, %v647
    %v693 = vpack.c.b16 %v650, %v649
    %v694 = vpack.c.b16 %v652, %v651
    %v695 = vpack.c.b16 %v654, %v653
    %v696 = vpack.c.b16 %v656, %v655
    %v697 = vpack.c.b16 %v658, %v657
    %v698 = vpack.c.b16 %v660, %v659
    %v699 = vpack.c.b16 %v662, %v661
    %v700 = vpack.c.b16 %v664, %v663
    %v701 = vpack.c.b16 %v666, %v665
    %v702 = vpack.c.b16 %v668, %v667
    %v703 = vpack.c.b16 %v670, %v669
    %v704 = vpack.c.b16 %v672, %v671
    %737 = vmatprep.subr.bf16.mxu0 0
    %738 = vmatpush1.bf16.msra.mxu0 %v680
    %739 = vmatprep.subr.bf16.mxu0 0
    %740 = vmatpush1.bf16.msra.mxu0 %v679
    %741 = vmatprep.subr.bf16.mxu0 0
    %742 = vmatpush1.bf16.msra.mxu0 %v678
    %743 = vmatprep.subr.bf16.mxu0 0
    %744 = vmatpush1.bf16.msra.mxu0 %v677
    %745 = vmatprep.subr.bf16.mxu0 0
    %746 = vmatpush1.bf16.msra.mxu0 %v676
    %747 = vmatprep.subr.bf16.mxu0 0
    %748 = vmatpush1.bf16.msra.mxu0 %v675
    %749 = vmatprep.subr.bf16.mxu0 0
    %750 = vmatpush1.bf16.msra.mxu0 %v674
    %751 = vmatprep.subr.bf16.mxu0 0
    %752 = vmatpush1.bf16.msra.mxu0 %v673
    %753 = vmatprep.subr.bf16.mxu0 0
    %754 = vmatpush2.bf16.msra.mxu0 %v688
    %755 = vmatprep.subr.bf16.mxu0 0
    %756 = vmatpush2.bf16.msra.mxu0 %v687
    %757 = vmatprep.subr.bf16.mxu0 0
    %758 = vmatpush2.bf16.msra.mxu0 %v686
    %759 = vmatprep.subr.bf16.mxu0 0
    %760 = vmatpush2.bf16.msra.mxu0 %v685
    %761 = vmatprep.subr.bf16.mxu0 0
    %762 = vmatpush2.bf16.msra.mxu0 %v684
    %763 = vmatprep.subr.bf16.mxu0 0
    %764 = vmatpush2.bf16.msra.mxu0 %v683
    %765 = vmatprep.subr.bf16.mxu0 0
    %766 = vmatpush2.bf16.msra.mxu0 %v682
    %767 = vmatprep.subr.bf16.mxu0 0
    %768 = vmatpush2.bf16.msra.mxu0 %v681
    %769 = vmatprep.mubr.bf16.mxu0 %v471
    %770 = vmatmul.mubr.bf16.gmra.mxu0 %v470
    %v771 = vpop.f32.mrf.mxu0
    %v772 = vadd.f32 %v543, %v771
    %v773 = vpop.f32.mrf.mxu0
    %v774 = vpop.f32.mrf.mxu0
    %v775 = vadd.f32 %v543, %v774
    %v776 = vpop.f32.mrf.mxu0
    %777 = vdwg.mxu0
    %778 = vmatprep.subr.bf16.mxu0 0
    %779 = vmatpush1.bf16.msra.mxu0 %v696
    %780 = vmatprep.subr.bf16.mxu0 0
    %781 = vmatpush1.bf16.msra.mxu0 %v695
    %782 = vmatprep.subr.bf16.mxu0 0
    %783 = vmatpush1.bf16.msra.mxu0 %v694
    %784 = vmatprep.subr.bf16.mxu0 0
    %785 = vmatpush1.bf16.msra.mxu0 %v693
    %786 = vmatprep.subr.bf16.mxu0 0
    %787 = vmatpush1.bf16.msra.mxu0 %v692
    %788 = vmatprep.subr.bf16.mxu0 0
    %789 = vmatpush1.bf16.msra.mxu0 %v691
    %790 = vmatprep.subr.bf16.mxu0 0
    %791 = vmatpush1.bf16.msra.mxu0 %v690
    %792 = vmatprep.subr.bf16.mxu0 0
    %793 = vmatpush1.bf16.msra.mxu0 %v689
    %794 = vmatprep.subr.bf16.mxu0 0
    %795 = vmatpush2.bf16.msra.mxu0 %v704
    %796 = vmatprep.subr.bf16.mxu0 0
    %797 = vmatpush2.bf16.msra.mxu0 %v703
    %798 = vmatprep.subr.bf16.mxu0 0
    %799 = vmatpush2.bf16.msra.mxu0 %v702
    %800 = vmatprep.subr.bf16.mxu0 0
    %801 = vmatpush2.bf16.msra.mxu0 %v701
    %802 = vmatprep.subr.bf16.mxu0 0
    %803 = vmatpush2.bf16.msra.mxu0 %v700
    %804 = vmatprep.subr.bf16.mxu0 0
    %805 = vmatpush2.bf16.msra.mxu0 %v699
    %806 = vmatprep.subr.bf16.mxu0 0
    %807 = vmatpush2.bf16.msra.mxu0 %v698
    %808 = vmatprep.subr.bf16.mxu0 0
    %809 = vmatpush2.bf16.msra.mxu0 %v697
    %810 = vmatprep.mubr.bf16.mxu0 %v473
    %811 = vmatmul.mubr.bf16.gmra.mxu0 %v472
    %v812 = vpop.f32.mrf.mxu0
    %v813 = vadd.f32 %v772, %v812
    %v814 = vpop.f32.mrf.mxu0
    %v815 = vpop.f32.mrf.mxu0
    %v816 = vadd.f32 %v775, %v815
    %v817 = vpop.f32.mrf.mxu0
    %818 = vdwg.mxu0
    %v819 = vadd.f32 %v62, %v813
    %v820 = vadd.f32 %v63, %v816
    %821 = vst [vmem:[%s7] sm:$0xff] %v819
    %822 = vst [vmem:[%s7 + $0x8] sm:$0xff] %v820
    // Predicated region
    $region42: #{clip_forward.27} parent=1 // pred_check
      _
    $region43: #{clip_forward.27} parent=1 // pred_check_branch
      %824 = sbr.rel (0) target = $region45
    $region44: #{clip_forward.27} parent=1 // pred_region
      _
    $region45: #{clip_forward.27} parent=1 // pred_fallthru
      _
    // Predicated region
    $region46: #{clip_forward.27} parent=1 // pred_check
      _
    $region47: #{clip_forward.27} parent=1 // pred_check_branch
      %826 = sbr.rel (0) target = $region49
    $region48: #{clip_forward.27} parent=1 // pred_region
      _
    $region49: #{clip_forward.27} parent=1 // pred_fallthru
      _
    %827 = vsyncpa [#allocation3], 1
    %828 = vsyncpa [#allocation5], 1

// kernel: clip_forward.31
$region0: #{clip_forward.31}
  #allocation0 [shape = 'u32[]', space=smem, size = 0x4, offset = 0x4, fixed_abs, tag = 'smem constant byte address 0x4 - core index']
  #allocation1 [shape = 'u32[144,128]{1,0:T(1,128)}', space=vmem, size = 0x12000, scoped, tag = 'internal scratch']
  %s0 = inlined_call_operand.vmem [shape: f32[16,128], index: 0, kind: input, shape index: {}]
  %s1 = inlined_call_operand.vmem [shape: f32[1,128], index: 1, kind: input, shape index: {}]
  %s2 = inlined_call_operand.vmem [shape: f32[1,128], index: 2, kind: input, shape index: {}]
  %s3 = inlined_call_operand.vmem [shape: bf16[128,128], index: 3, kind: input, shape index: {}]
  %s4 = inlined_call_operand.vmem [shape: f32[1,128], index: 4, kind: input, shape index: {}]
  %s5 = inlined_call_operand.hbm [shape: f32[16,128], index: 5, kind: output, shape index: {}]
  %s6 = sld [smem:[#allocation0]]
  $region30: #{clip_forward.31} parent=0
    _
  %s8 = ssub.s32 1, %s6
  %s9 = scalar_select 0, %s8, %s6
  $region1: #{clip_forward.31} parent=0
    #allocation2 [shape = 'u8[8192]{0}', space=vmem, size = 0x2000, scoped, tag = 'output window, operand 0, single buffered']
    #allocation3 [shape = 's32[1]{0}', space=sflag, size = 0x4, scoped, tag = 'scoped memory for clip_forward.31']
    %10 = vsyncpa [#allocation3], 0
    // Predicated region
    $region2: #{clip_forward.31} parent=1 // pred_check
      _
    $region3: #{clip_forward.31} parent=1 // pred_check_branch
      %12 = sbr.rel (0) target = $region5
    $region4: #{clip_forward.31} parent=1 // pred_region
      _
    $region5: #{clip_forward.31} parent=1 // pred_fallthru
      _
    // Predicated region
    $region6: #{clip_forward.31} parent=1 // pred_check
      _
    $region7: #{clip_forward.31} parent=1 // pred_check_branch
      %14 = sbr.rel (0) target = $region9
    $region8: #{clip_forward.31} parent=1 // pred_region
      _
    $region9: #{clip_forward.31} parent=1 // pred_fallthru
      _
    // Predicated region
    $region10: #{clip_forward.31} parent=1 // pred_check
      _
    $region11: #{clip_forward.31} parent=1 // pred_check_branch
      %16 = sbr.rel (0) target = $region13
    $region12: #{clip_forward.31} parent=1 // pred_region
      _
    $region13: #{clip_forward.31} parent=1 // pred_fallthru
      _
    // Predicated region
    $region14: #{clip_forward.31} parent=1 // pred_check
      _
    $region15: #{clip_forward.31} parent=1 // pred_check_branch
      %18 = sbr.rel (0) target = $region17
    $region16: #{clip_forward.31} parent=1 // pred_region
      _
    $region17: #{clip_forward.31} parent=1 // pred_fallthru
      _
    // Predicated region
    $region18: #{clip_forward.31} parent=1 // pred_check
      _
    $region19: #{clip_forward.31} parent=1 // pred_check_branch
      %20 = sbr.rel (0) target = $region21
    $region20: #{clip_forward.31} parent=1 // pred_region
      _
    $region21: #{clip_forward.31} parent=1 // pred_fallthru
      _
    %v22 = vld [vmem:[%s0] sm:$0xff]
    %v23 = vld [vmem:[%s0 + $0x8] sm:$0xff]
    %24 = vadd.xlane.f32.xlu0 %v22
    %v25 = vpop.xlane.xlu0 %24
    %26 = vadd.xlane.f32.xlu0 %v23
    %v27 = vpop.xlane.xlu0 %26
    %v28 = vrcp.pop 128.0
    %v29 = vmul.f32 %v25, %v28
    %v30 = vmul.f32 %v27, %v28
    %v31 = vsub.f32 %v22, %v29
    %v32 = vsub.f32 %v23, %v30
    %v33 = vmul.f32 %v31, %v31
    %v34 = vmul.f32 %v32, %v32
    %35 = vadd.xlane.f32.xlu0 %v33
    %v36 = vpop.xlane.xlu0 %35
    %37 = vadd.xlane.f32.xlu0 %v34
    %v38 = vpop.xlane.xlu0 %37
    %v39 = vmul.f32 %v36, %v28
    %v40 = vmul.f32 %v38, %v28
    %v41 = vadd.f32 %v39, 1e-05
    %v42 = vadd.f32 %v40, 1e-05
    %v43 = vrsqrt.pop %v41
    %v44 = vrsqrt.pop %v42
    %v45 = vmul.f32 %v31, %v43
    %v46 = vmul.f32 %v32, %v44
    %v47 = vld [vmem:[%s1] sm:$0x1]
    %v49 = vlaneseq
    %v50 = vshrl.u32 %v49, 7
    %v51 = vsub.s32 0, %v50
    %v52 = vrot.slane %v47, %v51
    %v54 = vmul.f32 %v45, %v52
    %v55 = vmul.f32 %v46, %v52
    %v56 = vld [vmem:[%s2] sm:$0x1]
    %v58 = vlaneseq
    %v59 = vshrl.u32 %v58, 7
    %v60 = vsub.s32 0, %v59
    %v61 = vrot.slane %v56, %v60
    %v63 = vadd.f32 %v54, %v61
    %v64 = vadd.f32 %v55, %v61
    %v65 = vpack.c.bf16 %v64, %v63
    %v66 = vld [vmem:[%s3] sm:$0xf]
    %v67 = vld [vmem:[%s3 + $0x4] sm:$0xf]
    %v68 = vld [vmem:[%s3 + $0x8] sm:$0xf]
    %v69 = vld [vmem:[%s3 + $0xc] sm:$0xf]
    %v70 = vld [vmem:[%s3 + $0x10] sm:$0xf]
    %v71 = vld [vmem:[%s3 + $0x14] sm:$0xf]
    %v72 = vld [vmem:[%s3 + $0x18] sm:$0xf]
    %v73 = vld [vmem:[%s3 + $0x1c] sm:$0xf]
    %v74 = vld [vmem:[%s3 + $0x20] sm:$0xf]
    %v75 = vld [vmem:[%s3 + $0x24] sm:$0xf]
    %v76 = vld [vmem:[%s3 + $0x28] sm:$0xf]
    %v77 = vld [vmem:[%s3 + $0x2c] sm:$0xf]
    %v78 = vld [vmem:[%s3 + $0x30] sm:$0xf]
    %v79 = vld [vmem:[%s3 + $0x34] sm:$0xf]
    %v80 = vld [vmem:[%s3 + $0x38] sm:$0xf]
    %v81 = vld [vmem:[%s3 + $0x3c] sm:$0xf]
    %v82 = vld [vmem:[%s4] sm:$0x1]
    %v84 = vlaneseq
    %v85 = vshrl.u32 %v84, 7
    %v86 = vsub.s32 0, %v85
    %v87 = vrot.slane %v82, %v86
    %v105 = vunpack.c.l.b16 %v66
    %v106 = vunpack.c.l.b16 %v67
    %v107 = vunpack.c.l.b16 %v68
    %v108 = vunpack.c.l.b16 %v69
    %v109 = vunpack.c.l.b16 %v70
    %v110 = vunpack.c.l.b16 %v71
    %v111 = vunpack.c.l.b16 %v72
    %v112 = vunpack.c.l.b16 %v73
    %v113 = vunpack.c.l.b16 %v74
    %v114 = vunpack.c.l.b16 %v75
    %v115 = vunpack.c.l.b16 %v76
    %v116 = vunpack.c.l.b16 %v77
    %v117 = vunpack.c.l.b16 %v78
    %v118 = vunpack.c.l.b16 %v79
    %v119 = vunpack.c.l.b16 %v80
    %v120 = vunpack.c.l.b16 %v81
    %v121 = vpack.c.b16 %v106, %v105
    %v122 = vpack.c.b16 %v108, %v107
    %v123 = vpack.c.b16 %v110, %v109
    %v124 = vpack.c.b16 %v112, %v111
    %v125 = vpack.c.b16 %v114, %v113
    %v126 = vpack.c.b16 %v116, %v115
    %v127 = vpack.c.b16 %v118, %v117
    %v128 = vpack.c.b16 %v120, %v119
    %137 = vmatprep.subr.bf16.mxu0 0
    %138 = vmatpush1.bf16.msra.mxu0 %v128
    %139 = vmatprep.subr.bf16.mxu0 0
    %140 = vmatpush1.bf16.msra.mxu0 %v127
    %141 = vmatprep.subr.bf16.mxu0 0
    %142 = vmatpush1.bf16.msra.mxu0 %v126
    %143 = vmatprep.subr.bf16.mxu0 0
    %144 = vmatpush1.bf16.msra.mxu0 %v125
    %145 = vmatprep.subr.bf16.mxu0 0
    %146 = vmatpush1.bf16.msra.mxu0 %v124
    %147 = vmatprep.subr.bf16.mxu0 0
    %148 = vmatpush1.bf16.msra.mxu0 %v123
    %149 = vmatprep.subr.bf16.mxu0 0
    %150 = vmatpush1.bf16.msra.mxu0 %v122
    %151 = vmatprep.subr.bf16.mxu0 0
    %152 = vmatpush1.bf16.msra.mxu0 %v121
    %153 = vmatprep.subr.bf16.mxu0 0
    %154 = vmatpush2.bf16.msra.mxu0 0
    %155 = vmatprep.subr.bf16.mxu0 0
    %156 = vmatpush2.bf16.msra.mxu0 0
    %157 = vmatprep.subr.bf16.mxu0 0
    %158 = vmatpush2.bf16.msra.mxu0 0
    %159 = vmatprep.subr.bf16.mxu0 0
    %160 = vmatpush2.bf16.msra.mxu0 0
    %161 = vmatprep.subr.bf16.mxu0 0
    %162 = vmatpush2.bf16.msra.mxu0 0
    %163 = vmatprep.subr.bf16.mxu0 0
    %164 = vmatpush2.bf16.msra.mxu0 0
    %165 = vmatprep.subr.bf16.mxu0 0
    %166 = vmatpush2.bf16.msra.mxu0 0
    %167 = vmatprep.subr.bf16.mxu0 0
    %168 = vmatpush2.bf16.msra.mxu0 0
    %169 = vmatprep.mubr.bf16.mxu0 0
    %170 = vmatmul.mubr.bf16.gmra.mxu0 %v65
    %v171 = vpop.f32.mrf.mxu0
    %v172 = vadd.f32 %v87, %v171
    %v173 = vpop.f32.mrf.mxu0
    %v174 = vpop.f32.mrf.mxu0
    %v175 = vadd.f32 %v87, %v174
    %v176 = vpop.f32.mrf.mxu0
    %177 = vdwg.mxu0
    %178 = vst [vmem:[#allocation2] sm:$0xff] %v172
    %179 = vst [vmem:[#allocation2 + $0x8] sm:$0xff] %v175
    // Predicated region
    $region22: #{clip_forward.31} parent=1 // pred_check
      _
    $region23: #{clip_forward.31} parent=1 // pred_check_branch
      %181 = sbr.rel (0) target = $region25
    $region24: #{clip_forward.31} parent=1 // pred_region
      %s183 = ssub.s32 256, 256
      %184 = vsyncadd [#allocation3], %s183
      %s185 = sshll.u32 [#allocation2], 4
      %s186 = int_to_ptr.vmem [resolvable:$true] %s185
      %191 = dma.vmem_to_hbm [thread:$0]  %s186, 256, %s5, [#allocation3], 128, 128, 8
    $region25: #{clip_forward.31} parent=1 // pred_fallthru
      _
    // Predicated region
    $region26: #{clip_forward.31} parent=1 // pred_check
      _
    $region27: #{clip_forward.31} parent=1 // pred_check_branch
      %193 = sbr.rel (0) target = $region29
    $region28: #{clip_forward.31} parent=1 // pred_region
      %194 = dma.done [#allocation3], 256
    $region29: #{clip_forward.31} parent=1 // pred_fallthru
      _
    %195 = vsyncpa [#allocation3], 1

// kernel: clip_forward.30
$region0: #{clip_forward.30}
  #allocation0 [shape = 'u32[]', space=smem, size = 0x4, offset = 0x4, fixed_abs, tag = 'smem constant byte address 0x4 - core index']
  #allocation1 [shape = 'u32[144,128]{1,0:T(1,128)}', space=vmem, size = 0x12000, scoped, tag = 'internal scratch']
  %s0 = inlined_call_operand.vmem [shape: f32[16,128], index: 0, kind: input, shape index: {}]
  %s1 = inlined_call_operand.vmem [shape: f32[1,128], index: 1, kind: input, shape index: {}]
  %s2 = inlined_call_operand.vmem [shape: f32[1,128], index: 2, kind: input, shape index: {}]
  %s3 = inlined_call_operand.vmem [shape: bf16[128,512], index: 3, kind: input, shape index: {}]
  %s4 = inlined_call_operand.vmem [shape: f32[1,512], index: 4, kind: input, shape index: {}]
  %s5 = inlined_call_operand.vmem [shape: bf16[512,128], index: 5, kind: input, shape index: {}]
  %s6 = inlined_call_operand.vmem [shape: f32[1,128], index: 6, kind: input, shape index: {}]
  %s7 = inlined_call_operand.vmem [shape: f32[16,128], index: 7, kind: output, shape index: {}]
  %s8 = sld [smem:[#allocation0]]
  $region38: #{clip_forward.30} parent=0
    _
  %s10 = ssub.s32 1, %s8
  %s11 = scalar_select 0, %s10, %s8
  // Predicated region
  $region2: #{clip_forward.30} parent=0 // pred_check
    _
  $region3: #{clip_forward.30} parent=0 // pred_check_branch
    %13 = sbr.rel (0) target = $region5
  $region4: #{clip_forward.30} parent=0 // pred_region
    _
  $region5: #{clip_forward.30} parent=0 // pred_fallthru
    _
  // Predicated region
  $region6: #{clip_forward.30} parent=0 // pred_check
    _
  $region7: #{clip_forward.30} parent=0 // pred_check_branch
    %15 = sbr.rel (0) target = $region9
  $region8: #{clip_forward.30} parent=0 // pred_region
    _
  $region9: #{clip_forward.30} parent=0 // pred_fallthru
    _
  // Predicated region
  $region10: #{clip_forward.30} parent=0 // pred_check
    _
  $region11: #{clip_forward.30} parent=0 // pred_check_branch
    %17 = sbr.rel (0) target = $region13
  $region12: #{clip_forward.30} parent=0 // pred_region
    _
  $region13: #{clip_forward.30} parent=0 // pred_fallthru
    _
  // Predicated region
  $region14: #{clip_forward.30} parent=0 // pred_check
    _
  $region15: #{clip_forward.30} parent=0 // pred_check_branch
    %19 = sbr.rel (0) target = $region17
  $region16: #{clip_forward.30} parent=0 // pred_region
    _
  $region17: #{clip_forward.30} parent=0 // pred_fallthru
    _
  // Predicated region
  $region18: #{clip_forward.30} parent=0 // pred_check
    _
  $region19: #{clip_forward.30} parent=0 // pred_check_branch
    %21 = sbr.rel (0) target = $region21
  $region20: #{clip_forward.30} parent=0 // pred_region
    _
  $region21: #{clip_forward.30} parent=0 // pred_fallthru
    _
  // Predicated region
  $region22: #{clip_forward.30} parent=0 // pred_check
    _
  $region23: #{clip_forward.30} parent=0 // pred_check_branch
    %23 = sbr.rel (0) target = $region25
  $region24: #{clip_forward.30} parent=0 // pred_region
    _
  $region25: #{clip_forward.30} parent=0 // pred_fallthru
    _
  // Predicated region
  $region26: #{clip_forward.30} parent=0 // pred_check
    _
  $region27: #{clip_forward.30} parent=0 // pred_check_branch
    %25 = sbr.rel (0) target = $region29
  $region28: #{clip_forward.30} parent=0 // pred_region
    _
  $region29: #{clip_forward.30} parent=0 // pred_fallthru
    _
  %v27 = vld [vmem:[%s0] sm:$0xff]
  %v28 = vld [vmem:[%s0 + $0x8] sm:$0xff]
  %29 = vadd.xlane.f32.xlu0 %v27
  %v30 = vpop.xlane.xlu0 %29
  %31 = vadd.xlane.f32.xlu0 %v28
  %v32 = vpop.xlane.xlu0 %31
  %v33 = vrcp.pop 128.0
  %v34 = vmul.f32 %v30, %v33
  %v35 = vmul.f32 %v32, %v33
  %v36 = vsub.f32 %v27, %v34
  %v37 = vsub.f32 %v28, %v35
  %v38 = vmul.f32 %v36, %v36
  %v39 = vmul.f32 %v37, %v37
  %40 = vadd.xlane.f32.xlu0 %v38
  %v41 = vpop.xlane.xlu0 %40
  %42 = vadd.xlane.f32.xlu0 %v39
  %v43 = vpop.xlane.xlu0 %42
  %v44 = vmul.f32 %v41, %v33
  %v45 = vmul.f32 %v43, %v33
  %v46 = vadd.f32 %v44, 1e-05
  %v47 = vadd.f32 %v45, 1e-05
  %v48 = vrsqrt.pop %v46
  %v49 = vrsqrt.pop %v47
  %v50 = vmul.f32 %v36, %v48
  %v51 = vmul.f32 %v37, %v49
  %v52 = vld [vmem:[%s1] sm:$0x1]
  %v54 = vlaneseq
  %v55 = vshrl.u32 %v54, 7
  %v56 = vsub.s32 0, %v55
  %v57 = vrot.slane %v52, %v56
  %v59 = vmul.f32 %v50, %v57
  %v60 = vmul.f32 %v51, %v57
  %v61 = vld [vmem:[%s2] sm:$0x1]
  %v63 = vlaneseq
  %v64 = vshrl.u32 %v63, 7
  %v65 = vsub.s32 0, %v64
  %v66 = vrot.slane %v61, %v65
  %v68 = vadd.f32 %v59, %v66
  %v69 = vadd.f32 %v60, %v66
  %v70 = vpack.c.bf16 %v69, %v68
  %v71 = vld [vmem:[%s3] sm:$0xff]
  %v72 = vld [vmem:[%s3 + $0x8] sm:$0xff]
  %v73 = vld [vmem:[%s3 + $0x10] sm:$0xff]
  %v74 = vld [vmem:[%s3 + $0x18] sm:$0xff]
  %v75 = vld [vmem:[%s3 + $0x20] sm:$0xff]
  %v76 = vld [vmem:[%s3 + $0x28] sm:$0xff]
  %v77 = vld [vmem:[%s3 + $0x30] sm:$0xff]
  %v78 = vld [vmem:[%s3 + $0x38] sm:$0xff]
  %v79 = vld [vmem:[%s3 + $0x40] sm:$0xff]
  %v80 = vld [vmem:[%s3 + $0x48] sm:$0xff]
  %v81 = vld [vmem:[%s3 + $0x50] sm:$0xff]
  %v82 = vld [vmem:[%s3 + $0x58] sm:$0xff]
  %v83 = vld [vmem:[%s3 + $0x60] sm:$0xff]
  %v84 = vld [vmem:[%s3 + $0x68] sm:$0xff]
  %v85 = vld [vmem:[%s3 + $0x70] sm:$0xff]
  %v86 = vld [vmem:[%s3 + $0x78] sm:$0xff]
  %v87 = vld [vmem:[%s3 + $0x80] sm:$0xff]
  %v88 = vld [vmem:[%s3 + $0x88] sm:$0xff]
  %v89 = vld [vmem:[%s3 + $0x90] sm:$0xff]
  %v90 = vld [vmem:[%s3 + $0x98] sm:$0xff]
  %v91 = vld [vmem:[%s3 + $0xa0] sm:$0xff]
  %v92 = vld [vmem:[%s3 + $0xa8] sm:$0xff]
  %v93 = vld [vmem:[%s3 + $0xb0] sm:$0xff]
  %v94 = vld [vmem:[%s3 + $0xb8] sm:$0xff]
  %v95 = vld [vmem:[%s3 + $0xc0] sm:$0xff]
  %v96 = vld [vmem:[%s3 + $0xc8] sm:$0xff]
  %v97 = vld [vmem:[%s3 + $0xd0] sm:$0xff]
  %v98 = vld [vmem:[%s3 + $0xd8] sm:$0xff]
  %v99 = vld [vmem:[%s3 + $0xe0] sm:$0xff]
  %v100 = vld [vmem:[%s3 + $0xe8] sm:$0xff]
  %v101 = vld [vmem:[%s3 + $0xf0] sm:$0xff]
  %v102 = vld [vmem:[%s3 + $0xf8] sm:$0xff]
  %v103 = vld [vmem:[%s4] sm:$0xf]
  %v105 = vlaneseq
  %v106 = vshrl.u32 %v105, 7
  %v107 = vsub.s32 0, %v106
  %v108 = vrot.slane %v103, %v107
  %v109 = vlaneseq
  %v110 = vshrl.u32 %v109, 7
  %v111 = vsub.s32 1, %v110
  %v112 = vrot.slane %v103, %v111
  %v113 = vlaneseq
  %v114 = vshrl.u32 %v113, 7
  %v115 = vsub.s32 2, %v114
  %v116 = vrot.slane %v103, %v115
  %v117 = vlaneseq
  %v118 = vshrl.u32 %v117, 7
  %v119 = vsub.s32 3, %v118
  %v120 = vrot.slane %v103, %v119
  %v157 = vunpack.c.l.b16 %v71
  %v158 = vunpack.c.h.b16 %v71
  %v159 = vunpack.c.l.b16 %v72
  %v160 = vunpack.c.h.b16 %v72
  %v161 = vunpack.c.l.b16 %v73
  %v162 = vunpack.c.h.b16 %v73
  %v163 = vunpack.c.l.b16 %v74
  %v164 = vunpack.c.h.b16 %v74
  %v165 = vunpack.c.l.b16 %v75
  %v166 = vunpack.c.h.b16 %v75
  %v167 = vunpack.c.l.b16 %v76
  %v168 = vunpack.c.h.b16 %v76
  %v169 = vunpack.c.l.b16 %v77
  %v170 = vunpack.c.h.b16 %v77
  %v171 = vunpack.c.l.b16 %v78
  %v172 = vunpack.c.h.b16 %v78
  %v173 = vunpack.c.l.b16 %v79
  %v174 = vunpack.c.h.b16 %v79
  %v175 = vunpack.c.l.b16 %v80
  %v176 = vunpack.c.h.b16 %v80
  %v177 = vunpack.c.l.b16 %v81
  %v178 = vunpack.c.h.b16 %v81
  %v179 = vunpack.c.l.b16 %v82
  %v180 = vunpack.c.h.b16 %v82
  %v181 = vunpack.c.l.b16 %v83
  %v182 = vunpack.c.h.b16 %v83
  %v183 = vunpack.c.l.b16 %v84
  %v184 = vunpack.c.h.b16 %v84
  %v185 = vunpack.c.l.b16 %v85
  %v186 = vunpack.c.h.b16 %v85
  %v187 = vunpack.c.l.b16 %v86
  %v188 = vunpack.c.h.b16 %v86
  %v189 = vunpack.c.l.b16 %v87
  %v190 = vunpack.c.h.b16 %v87
  %v191 = vunpack.c.l.b16 %v88
  %v192 = vunpack.c.h.b16 %v88
  %v193 = vunpack.c.l.b16 %v89
  %v194 = vunpack.c.h.b16 %v89
  %v195 = vunpack.c.l.b16 %v90
  %v196 = vunpack.c.h.b16 %v90
  %v197 = vunpack.c.l.b16 %v91
  %v198 = vunpack.c.h.b16 %v91
  %v199 = vunpack.c.l.b16 %v92
  %v200 = vunpack.c.h.b16 %v92
  %v201 = vunpack.c.l.b16 %v93
  %v202 = vunpack.c.h.b16 %v93
  %v203 = vunpack.c.l.b16 %v94
  %v204 = vunpack.c.h.b16 %v94
  %v205 = vunpack.c.l.b16 %v95
  %v206 = vunpack.c.h.b16 %v95
  %v207 = vunpack.c.l.b16 %v96
  %v208 = vunpack.c.h.b16 %v96
  %v209 = vunpack.c.l.b16 %v97
  %v210 = vunpack.c.h.b16 %v97
  %v211 = vunpack.c.l.b16 %v98
  %v212 = vunpack.c.h.b16 %v98
  %v213 = vunpack.c.l.b16 %v99
  %v214 = vunpack.c.h.b16 %v99
  %v215 = vunpack.c.l.b16 %v100
  %v216 = vunpack.c.h.b16 %v100
  %v217 = vunpack.c.l.b16 %v101
  %v218 = vunpack.c.h.b16 %v101
  %v219 = vunpack.c.l.b16 %v102
  %v220 = vunpack.c.h.b16 %v102
  %v221 = vpack.c.b16 %v161, %v157
  %v222 = vpack.c.b16 %v162, %v158
  %v223 = vpack.c.b16 %v163, %v159
  %v224 = vpack.c.b16 %v164, %v160
  %v225 = vpack.c.b16 %v169, %v165
  %v226 = vpack.c.b16 %v170, %v166
  %v227 = vpack.c.b16 %v171, %v167
  %v228 = vpack.c.b16 %v172, %v168
  %v229 = vpack.c.b16 %v177, %v173
  %v230 = vpack.c.b16 %v178, %v174
  %v231 = vpack.c.b16 %v179, %v175
  %v232 = vpack.c.b16 %v180, %v176
  %v233 = vpack.c.b16 %v185, %v181
  %v234 = vpack.c.b16 %v186, %v182
  %v235 = vpack.c.b16 %v187, %v183
  %v236 = vpack.c.b16 %v188, %v184
  %v237 = vpack.c.b16 %v193, %v189
  %v238 = vpack.c.b16 %v194, %v190
  %v239 = vpack.c.b16 %v195, %v191
  %v240 = vpack.c.b16 %v196, %v192
  %v241 = vpack.c.b16 %v201, %v197
  %v242 = vpack.c.b16 %v202, %v198
  %v243 = vpack.c.b16 %v203, %v199
  %v244 = vpack.c.b16 %v204, %v200
  %v245 = vpack.c.b16 %v209, %v205
  %v246 = vpack.c.b16 %v210, %v206
  %v247 = vpack.c.b16 %v211, %v207
  %v248 = vpack.c.b16 %v212, %v208
  %v249 = vpack.c.b16 %v217, %v213
  %v250 = vpack.c.b16 %v218, %v214
  %v251 = vpack.c.b16 %v219, %v215
  %v252 = vpack.c.b16 %v220, %v216
  %285 = vmatprep.subr.bf16.mxu0 %v250
  %286 = vmatpush1.bf16.msra.mxu0 %v249
  %287 = vmatprep.subr.bf16.mxu0 %v246
  %288 = vmatpush1.bf16.msra.mxu0 %v245
  %289 = vmatprep.subr.bf16.mxu0 %v242
  %290 = vmatpush1.bf16.msra.mxu0 %v241
  %291 = vmatprep.subr.bf16.mxu0 %v238
  %292 = vmatpush1.bf16.msra.mxu0 %v237
  %293 = vmatprep.subr.bf16.mxu0 %v234
  %294 = vmatpush1.bf16.msra.mxu0 %v233
  %295 = vmatprep.subr.bf16.mxu0 %v230
  %296 = vmatpush1.bf16.msra.mxu0 %v229
  %297 = vmatprep.subr.bf16.mxu0 %v226
  %298 = vmatpush1.bf16.msra.mxu0 %v225
  %299 = vmatprep.subr.bf16.mxu0 %v222
  %300 = vmatpush1.bf16.msra.mxu0 %v221
  %301 = vmatprep.subr.bf16.mxu0 0
  %302 = vmatpush2.bf16.msra.mxu0 0
  %303 = vmatprep.subr.bf16.mxu0 0
  %304 = vmatpush2.bf16.msra.mxu0 0
  %305 = vmatprep.subr.bf16.mxu0 0
  %306 = vmatpush2.bf16.msra.mxu0 0
  %307 = vmatprep.subr.bf16.mxu0 0
  %308 = vmatpush2.bf16.msra.mxu0 0
  %309 = vmatprep.subr.bf16.mxu0 0
  %310 = vmatpush2.bf16.msra.mxu0 0
  %311 = vmatprep.subr.bf16.mxu0 0
  %312 = vmatpush2.bf16.msra.mxu0 0
  %313 = vmatprep.subr.bf16.mxu0 0
  %314 = vmatpush2.bf16.msra.mxu0 0
  %315 = vmatprep.subr.bf16.mxu0 0
  %316 = vmatpush2.bf16.msra.mxu0 0
  %317 = vmatprep.mubr.bf16.mxu0 0
  %318 = vmatmul.mubr.bf16.gmra.mxu0 %v70
  %v319 = vpop.f32.mrf.mxu0
  %v320 = vadd.f32 %v108, %v319
  %v321 = vpop.f32.mrf.mxu0
  %v322 = vadd.f32 %v112, %v321
  %v323 = vpop.f32.mrf.mxu0
  %v324 = vadd.f32 %v108, %v323
  %v325 = vpop.f32.mrf.mxu0
  %v326 = vadd.f32 %v112, %v325
  %327 = vdwg.mxu0
  %328 = vmatprep.subr.bf16.mxu0 %v252
  %329 = vmatpush1.bf16.msra.mxu0 %v251
  %330 = vmatprep.subr.bf16.mxu0 %v248
  %331 = vmatpush1.bf16.msra.mxu0 %v247
  %332 = vmatprep.subr.bf16.mxu0 %v244
  %333 = vmatpush1.bf16.msra.mxu0 %v243
  %334 = vmatprep.subr.bf16.mxu0 %v240
  %335 = vmatpush1.bf16.msra.mxu0 %v239
  %336 = vmatprep.subr.bf16.mxu0 %v236
  %337 = vmatpush1.bf16.msra.mxu0 %v235
  %338 = vmatprep.subr.bf16.mxu0 %v232
  %339 = vmatpush1.bf16.msra.mxu0 %v231
  %340 = vmatprep.subr.bf16.mxu0 %v228
  %341 = vmatpush1.bf16.msra.mxu0 %v227
  %342 = vmatprep.subr.bf16.mxu0 %v224
  %343 = vmatpush1.bf16.msra.mxu0 %v223
  %344 = vmatprep.subr.bf16.mxu0 0
  %345 = vmatpush2.bf16.msra.mxu0 0
  %346 = vmatprep.subr.bf16.mxu0 0
  %347 = vmatpush2.bf16.msra.mxu0 0
  %348 = vmatprep.subr.bf16.mxu0 0
  %349 = vmatpush2.bf16.msra.mxu0 0
  %350 = vmatprep.subr.bf16.mxu0 0
  %351 = vmatpush2.bf16.msra.mxu0 0
  %352 = vmatprep.subr.bf16.mxu0 0
  %353 = vmatpush2.bf16.msra.mxu0 0
  %354 = vmatprep.subr.bf16.mxu0 0
  %355 = vmatpush2.bf16.msra.mxu0 0
  %356 = vmatprep.subr.bf16.mxu0 0
  %357 = vmatpush2.bf16.msra.mxu0 0
  %358 = vmatprep.subr.bf16.mxu0 0
  %359 = vmatpush2.bf16.msra.mxu0 0
  %360 = vmatprep.mubr.bf16.mxu0 0
  %361 = vmatmul.mubr.bf16.gmra.mxu0 %v70
  %v362 = vpop.f32.mrf.mxu0
  %v363 = vadd.f32 %v116, %v362
  %v364 = vpop.f32.mrf.mxu0
  %v365 = vadd.f32 %v120, %v364
  %v366 = vpop.f32.mrf.mxu0
  %v367 = vadd.f32 %v116, %v366
  %v368 = vpop.f32.mrf.mxu0
  %v369 = vadd.f32 %v120, %v368
  %370 = vdwg.mxu0
  %v371 = vmul.f32 %v320, 1.702
  %v372 = vmul.f32 %v322, 1.702
  %v373 = vmul.f32 %v363, 1.702
  %v374 = vmul.f32 %v365, 1.702
  %v375 = vmul.f32 %v324, 1.702
  %v376 = vmul.f32 %v326, 1.702
  %v377 = vmul.f32 %v367, 1.702
  %v378 = vmul.f32 %v369, 1.702
  %v379 = vxor.u32 %v371, 2147483648
  %v380 = vxor.u32 %v372, 2147483648
  %v381 = vxor.u32 %v373, 2147483648
  %v382 = vxor.u32 %v374, 2147483648
  %v383 = vxor.u32 %v375, 2147483648
  %v384 = vxor.u32 %v376, 2147483648
  %v385 = vxor.u32 %v377, 2147483648
  %v386 = vxor.u32 %v378, 2147483648
  %v387 = vmul.f32 %v379, 1.442695
  %v388 = vpow.pop %v387
  %v389 = vmul.f32 %v380, 1.442695
  %v390 = vpow.pop %v389
  %v391 = vmul.f32 %v381, 1.442695
  %v392 = vpow.pop %v391
  %v393 = vmul.f32 %v382, 1.442695
  %v394 = vpow.pop %v393
  %v395 = vmul.f32 %v383, 1.442695
  %v396 = vpow.pop %v395
  %v397 = vmul.f32 %v384, 1.442695
  %v398 = vpow.pop %v397
  %v399 = vmul.f32 %v385, 1.442695
  %v400 = vpow.pop %v399
  %v401 = vmul.f32 %v386, 1.442695
  %v402 = vpow.pop %v401
  %v403 = vadd.f32 %v388, 1.0
  %v404 = vadd.f32 %v390, 1.0
  %v405 = vadd.f32 %v392, 1.0
  %v406 = vadd.f32 %v394, 1.0
  %v407 = vadd.f32 %v396, 1.0
  %v408 = vadd.f32 %v398, 1.0
  %v409 = vadd.f32 %v400, 1.0
  %v410 = vadd.f32 %v402, 1.0
  %v411 = vrcp.pop %v403
  %v412 = vmul.f32 1.0, %v411
  %v413 = vrcp.pop %v404
  %v414 = vmul.f32 1.0, %v413
  %v415 = vrcp.pop %v405
  %v416 = vmul.f32 1.0, %v415
  %v417 = vrcp.pop %v406
  %v418 = vmul.f32 1.0, %v417
  %v419 = vrcp.pop %v407
  %v420 = vmul.f32 1.0, %v419
  %v421 = vrcp.pop %v408
  %v422 = vmul.f32 1.0, %v421
  %v423 = vrcp.pop %v409
  %v424 = vmul.f32 1.0, %v423
  %v425 = vrcp.pop %v410
  %v426 = vmul.f32 1.0, %v425
  %v427 = vmul.f32 %v320, %v412
  %v428 = vmul.f32 %v322, %v414
  %v429 = vmul.f32 %v363, %v416
  %v430 = vmul.f32 %v365, %v418
  %v431 = vmul.f32 %v324, %v420
  %v432 = vmul.f32 %v326, %v422
  %v433 = vmul.f32 %v367, %v424
  %v434 = vmul.f32 %v369, %v426
  %v435 = vpack.c.bf16 %v431, %v427
  %v436 = vpack.c.bf16 %v432, %v428
  %v437 = vpack.c.bf16 %v433, %v429
  %v438 = vpack.c.bf16 %v434, %v430
  %v439 = vld [vmem:[%s5] sm:$0xf]
  %v440 = vld [vmem:[%s5 + $0x4] sm:$0xf]
  %v441 = vld [vmem:[%s5 + $0x8] sm:$0xf]
  %v442 = vld [vmem:[%s5 + $0xc] sm:$0xf]
  %v443 = vld [vmem:[%s5 + $0x10] sm:$0xf]
  %v444 = vld [vmem:[%s5 + $0x14] sm:$0xf]
  %v445 = vld [vmem:[%s5 + $0x18] sm:$0xf]
  %v446 = vld [vmem:[%s5 + $0x1c] sm:$0xf]
  %v447 = vld [vmem:[%s5 + $0x20] sm:$0xf]
  %v448 = vld [vmem:[%s5 + $0x24] sm:$0xf]
  %v449 = vld [vmem:[%s5 + $0x28] sm:$0xf]
  %v450 = vld [vmem:[%s5 + $0x2c] sm:$0xf]
  %v451 = vld [vmem:[%s5 + $0x30] sm:$0xf]
  %v452 = vld [vmem:[%s5 + $0x34] sm:$0xf]
  %v453 = vld [vmem:[%s5 + $0x38] sm:$0xf]
  %v454 = vld [vmem:[%s5 + $0x3c] sm:$0xf]
  %v455 = vld [vmem:[%s5 + $0x40] sm:$0xf]
  %v456 = vld [vmem:[%s5 + $0x44] sm:$0xf]
  %v457 = vld [vmem:[%s5 + $0x48] sm:$0xf]
  %v458 = vld [vmem:[%s5 + $0x4c] sm:$0xf]
  %v459 = vld [vmem:[%s5 + $0x50] sm:$0xf]
  %v460 = vld [vmem:[%s5 + $0x54] sm:$0xf]
  %v461 = vld [vmem:[%s5 + $0x58] sm:$0xf]
  %v462 = vld [vmem:[%s5 + $0x5c] sm:$0xf]
  %v463 = vld [vmem:[%s5 + $0x60] sm:$0xf]
  %v464 = vld [vmem:[%s5 + $0x64] sm:$0xf]
  %v465 = vld [vmem:[%s5 + $0x68] sm:$0xf]
  %v466 = vld [vmem:[%s5 + $0x6c] sm:$0xf]
  %v467 = vld [vmem:[%s5 + $0x70] sm:$0xf]
  %v468 = vld [vmem:[%s5 + $0x74] sm:$0xf]
  %v469 = vld [vmem:[%s5 + $0x78] sm:$0xf]
  %v470 = vld [vmem:[%s5 + $0x7c] sm:$0xf]
  %v471 = vld [vmem:[%s5 + $0x80] sm:$0xf]
  %v472 = vld [vmem:[%s5 + $0x84] sm:$0xf]
  %v473 = vld [vmem:[%s5 + $0x88] sm:$0xf]
  %v474 = vld [vmem:[%s5 + $0x8c] sm:$0xf]
  %v475 = vld [vmem:[%s5 + $0x90] sm:$0xf]
  %v476 = vld [vmem:[%s5 + $0x94] sm:$0xf]
  %v477 = vld [vmem:[%s5 + $0x98] sm:$0xf]
  %v478 = vld [vmem:[%s5 + $0x9c] sm:$0xf]
  %v479 = vld [vmem:[%s5 + $0xa0] sm:$0xf]
  %v480 = vld [vmem:[%s5 + $0xa4] sm:$0xf]
  %v481 = vld [vmem:[%s5 + $0xa8] sm:$0xf]
  %v482 = vld [vmem:[%s5 + $0xac] sm:$0xf]
  %v483 = vld [vmem:[%s5 + $0xb0] sm:$0xf]
  %v484 = vld [vmem:[%s5 + $0xb4] sm:$0xf]
  %v485 = vld [vmem:[%s5 + $0xb8] sm:$0xf]
  %v486 = vld [vmem:[%s5 + $0xbc] sm:$0xf]
  %v487 = vld [vmem:[%s5 + $0xc0] sm:$0xf]
  %v488 = vld [vmem:[%s5 + $0xc4] sm:$0xf]
  %v489 = vld [vmem:[%s5 + $0xc8] sm:$0xf]
  %v490 = vld [vmem:[%s5 + $0xcc] sm:$0xf]
  %v491 = vld [vmem:[%s5 + $0xd0] sm:$0xf]
  %v492 = vld [vmem:[%s5 + $0xd4] sm:$0xf]
  %v493 = vld [vmem:[%s5 + $0xd8] sm:$0xf]
  %v494 = vld [vmem:[%s5 + $0xdc] sm:$0xf]
  %v495 = vld [vmem:[%s5 + $0xe0] sm:$0xf]
  %v496 = vld [vmem:[%s5 + $0xe4] sm:$0xf]
  %v497 = vld [vmem:[%s5 + $0xe8] sm:$0xf]
  %v498 = vld [vmem:[%s5 + $0xec] sm:$0xf]
  %v499 = vld [vmem:[%s5 + $0xf0] sm:$0xf]
  %v500 = vld [vmem:[%s5 + $0xf4] sm:$0xf]
  %v501 = vld [vmem:[%s5 + $0xf8] sm:$0xf]
  %v502 = vld [vmem:[%s5 + $0xfc] sm:$0xf]
  %v503 = vld [vmem:[%s6] sm:$0x1]
  %v505 = vlaneseq
  %v506 = vshrl.u32 %v505, 7
  %v507 = vsub.s32 0, %v506
  %v508 = vrot.slane %v503, %v507
  %v574 = vunpack.c.l.b16 %v439
  %v575 = vunpack.c.l.b16 %v440
  %v576 = vunpack.c.l.b16 %v441
  %v577 = vunpack.c.l.b16 %v442
  %v578 = vunpack.c.l.b16 %v443
  %v579 = vunpack.c.l.b16 %v444
  %v580 = vunpack.c.l.b16 %v445
  %v581 = vunpack.c.l.b16 %v446
  %v582 = vunpack.c.l.b16 %v447
  %v583 = vunpack.c.l.b16 %v448
  %v584 = vunpack.c.l.b16 %v449
  %v585 = vunpack.c.l.b16 %v450
  %v586 = vunpack.c.l.b16 %v451
  %v587 = vunpack.c.l.b16 %v452
  %v588 = vunpack.c.l.b16 %v453
  %v589 = vunpack.c.l.b16 %v454
  %v590 = vunpack.c.l.b16 %v455
  %v591 = vunpack.c.l.b16 %v456
  %v592 = vunpack.c.l.b16 %v457
  %v593 = vunpack.c.l.b16 %v458
  %v594 = vunpack.c.l.b16 %v459
  %v595 = vunpack.c.l.b16 %v460
  %v596 = vunpack.c.l.b16 %v461
  %v597 = vunpack.c.l.b16 %v462
  %v598 = vunpack.c.l.b16 %v463
  %v599 = vunpack.c.l.b16 %v464
  %v600 = vunpack.c.l.b16 %v465
  %v601 = vunpack.c.l.b16 %v466
  %v602 = vunpack.c.l.b16 %v467
  %v603 = vunpack.c.l.b16 %v468
  %v604 = vunpack.c.l.b16 %v469
  %v605 = vunpack.c.l.b16 %v470
  %v606 = vunpack.c.l.b16 %v471
  %v607 = vunpack.c.l.b16 %v472
  %v608 = vunpack.c.l.b16 %v473
  %v609 = vunpack.c.l.b16 %v474
  %v610 = vunpack.c.l.b16 %v475
  %v611 = vunpack.c.l.b16 %v476
  %v612 = vunpack.c.l.b16 %v477
  %v613 = vunpack.c.l.b16 %v478
  %v614 = vunpack.c.l.b16 %v479
  %v615 = vunpack.c.l.b16 %v480
  %v616 = vunpack.c.l.b16 %v481
  %v617 = vunpack.c.l.b16 %v482
  %v618 = vunpack.c.l.b16 %v483
  %v619 = vunpack.c.l.b16 %v484
  %v620 = vunpack.c.l.b16 %v485
  %v621 = vunpack.c.l.b16 %v486
  %v622 = vunpack.c.l.b16 %v487
  %v623 = vunpack.c.l.b16 %v488
  %v624 = vunpack.c.l.b16 %v489
  %v625 = vunpack.c.l.b16 %v490
  %v626 = vunpack.c.l.b16 %v491
  %v627 = vunpack.c.l.b16 %v492
  %v628 = vunpack.c.l.b16 %v493
  %v629 = vunpack.c.l.b16 %v494
  %v630 = vunpack.c.l.b16 %v495
  %v631 = vunpack.c.l.b16 %v496
  %v632 = vunpack.c.l.b16 %v497
  %v633 = vunpack.c.l.b16 %v498
  %v634 = vunpack.c.l.b16 %v499
  %v635 = vunpack.c.l.b16 %v500
  %v636 = vunpack.c.l.b16 %v501
  %v637 = vunpack.c.l.b16 %v502
  %v638 = vpack.c.b16 %v575, %v574
  %v639 = vpack.c.b16 %v577, %v576
  %v640 = vpack.c.b16 %v579, %v578
  %v641 = vpack.c.b16 %v581, %v580
  %v642 = vpack.c.b16 %v583, %v582
  %v643 = vpack.c.b16 %v585, %v584
  %v644 = vpack.c.b16 %v587, %v586
  %v645 = vpack.c.b16 %v589, %v588
  %v646 = vpack.c.b16 %v591, %v590
  %v647 = vpack.c.b16 %v593, %v592
  %v648 = vpack.c.b16 %v595, %v594
  %v649 = vpack.c.b16 %v597, %v596
  %v650 = vpack.c.b16 %v599, %v598
  %v651 = vpack.c.b16 %v601, %v600
  %v652 = vpack.c.b16 %v603, %v602
  %v653 = vpack.c.b16 %v605, %v604
  %v654 = vpack.c.b16 %v607, %v606
  %v655 = vpack.c.b16 %v609, %v608
  %v656 = vpack.c.b16 %v611, %v610
  %v657 = vpack.c.b16 %v613, %v612
  %v658 = vpack.c.b16 %v615, %v614
  %v659 = vpack.c.b16 %v617, %v616
  %v660 = vpack.c.b16 %v619, %v618
  %v661 = vpack.c.b16 %v621, %v620
  %v662 = vpack.c.b16 %v623, %v622
  %v663 = vpack.c.b16 %v625, %v624
  %v664 = vpack.c.b16 %v627, %v626
  %v665 = vpack.c.b16 %v629, %v628
  %v666 = vpack.c.b16 %v631, %v630
  %v667 = vpack.c.b16 %v633, %v632
  %v668 = vpack.c.b16 %v635, %v634
  %v669 = vpack.c.b16 %v637, %v636
  %702 = vmatprep.subr.bf16.mxu0 0
  %703 = vmatpush1.bf16.msra.mxu0 %v645
  %704 = vmatprep.subr.bf16.mxu0 0
  %705 = vmatpush1.bf16.msra.mxu0 %v644
  %706 = vmatprep.subr.bf16.mxu0 0
  %707 = vmatpush1.bf16.msra.mxu0 %v643
  %708 = vmatprep.subr.bf16.mxu0 0
  %709 = vmatpush1.bf16.msra.mxu0 %v642
  %710 = vmatprep.subr.bf16.mxu0 0
  %711 = vmatpush1.bf16.msra.mxu0 %v641
  %712 = vmatprep.subr.bf16.mxu0 0
  %713 = vmatpush1.bf16.msra.mxu0 %v640
  %714 = vmatprep.subr.bf16.mxu0 0
  %715 = vmatpush1.bf16.msra.mxu0 %v639
  %716 = vmatprep.subr.bf16.mxu0 0
  %717 = vmatpush1.bf16.msra.mxu0 %v638
  %718 = vmatprep.subr.bf16.mxu0 0
  %719 = vmatpush2.bf16.msra.mxu0 %v653
  %720 = vmatprep.subr.bf16.mxu0 0
  %721 = vmatpush2.bf16.msra.mxu0 %v652
  %722 = vmatprep.subr.bf16.mxu0 0
  %723 = vmatpush2.bf16.msra.mxu0 %v651
  %724 = vmatprep.subr.bf16.mxu0 0
  %725 = vmatpush2.bf16.msra.mxu0 %v650
  %726 = vmatprep.subr.bf16.mxu0 0
  %727 = vmatpush2.bf16.msra.mxu0 %v649
  %728 = vmatprep.subr.bf16.mxu0 0
  %729 = vmatpush2.bf16.msra.mxu0 %v648
  %730 = vmatprep.subr.bf16.mxu0 0
  %731 = vmatpush2.bf16.msra.mxu0 %v647
  %732 = vmatprep.subr.bf16.mxu0 0
  %733 = vmatpush2.bf16.msra.mxu0 %v646
  %734 = vmatprep.mubr.bf16.mxu0 %v436
  %735 = vmatmul.mubr.bf16.gmra.mxu0 %v435
  %v736 = vpop.f32.mrf.mxu0
  %v737 = vadd.f32 %v508, %v736
  %v738 = vpop.f32.mrf.mxu0
  %v739 = vpop.f32.mrf.mxu0
  %v740 = vadd.f32 %v508, %v739
  %v741 = vpop.f32.mrf.mxu0
  %742 = vdwg.mxu0
  %743 = vmatprep.subr.bf16.mxu0 0
  %744 = vmatpush1.bf16.msra.mxu0 %v661
  %745 = vmatprep.subr.bf16.mxu0 0
  %746 = vmatpush1.bf16.msra.mxu0 %v660
  %747 = vmatprep.subr.bf16.mxu0 0
  %748 = vmatpush1.bf16.msra.mxu0 %v659
  %749 = vmatprep.subr.bf16.mxu0 0
  %750 = vmatpush1.bf16.msra.mxu0 %v658
  %751 = vmatprep.subr.bf16.mxu0 0
  %752 = vmatpush1.bf16.msra.mxu0 %v657
  %753 = vmatprep.subr.bf16.mxu0 0
  %754 = vmatpush1.bf16.msra.mxu0 %v656
  %755 = vmatprep.subr.bf16.mxu0 0
  %756 = vmatpush1.bf16.msra.mxu0 %v655
  %757 = vmatprep.subr.bf16.mxu0 0
  %758 = vmatpush1.bf16.msra.mxu0 %v654
  %759 = vmatprep.subr.bf16.mxu0 0
  %760 = vmatpush2.bf16.msra.mxu0 %v669
  %761 = vmatprep.subr.bf16.mxu0 0
  %762 = vmatpush2.bf16.msra.mxu0 %v668
  %763 = vmatprep.subr.bf16.mxu0 0
  %764 = vmatpush2.bf16.msra.mxu0 %v667
  %765 = vmatprep.subr.bf16.mxu0 0
  %766 = vmatpush2.bf16.msra.mxu0 %v666
  %767 = vmatprep.subr.bf16.mxu0 0
  %768 = vmatpush2.bf16.msra.mxu0 %v665
  %769 = vmatprep.subr.bf16.mxu0 0
  %770 = vmatpush2.bf16.msra.mxu0 %v664
  %771 = vmatprep.subr.bf16.mxu0 0
  %772 = vmatpush2.bf16.msra.mxu0 %v663
  %773 = vmatprep.subr.bf16.mxu0 0
  %774 = vmatpush2.bf16.msra.mxu0 %v662
  %775 = vmatprep.mubr.bf16.mxu0 %v438
  %776 = vmatmul.mubr.bf16.gmra.mxu0 %v437
  %v777 = vpop.f32.mrf.mxu0
  %v778 = vadd.f32 %v737, %v777
  %v779 = vpop.f32.mrf.mxu0
  %v780 = vpop.f32.mrf.mxu0
  %v781 = vadd.f32 %v740, %v780
  %v782 = vpop.f32.mrf.mxu0
  %783 = vdwg.mxu0
  %v784 = vadd.f32 %v27, %v778
  %v785 = vadd.f32 %v28, %v781
  %786 = vst [vmem:[%s7] sm:$0xff] %v784
  %787 = vst [vmem:[%s7 + $0x8] sm:$0xff] %v785
  // Predicated region
  $region30: #{clip_forward.30} parent=0 // pred_check
    _
  $region31: #{clip_forward.30} parent=0 // pred_check_branch
    %789 = sbr.rel (0) target = $region33
  $region32: #{clip_forward.30} parent=0 // pred_region
    _
  $region33: #{clip_forward.30} parent=0 // pred_fallthru
    _
  // Predicated region
  $region34: #{clip_forward.30} parent=0 // pred_check
    _
  $region35: #{clip_forward.30} parent=0 // pred_check_branch
    %791 = sbr.rel (0) target = $region37
  $region36: #{clip_forward.30} parent=0 // pred_region
    _
  $region37: #{clip_forward.30} parent=0 // pred_fallthru
    _

// kernel: clip_forward.29
$region0: #{clip_forward.29}
  #allocation0 [shape = 'u32[]', space=smem, size = 0x4, offset = 0x4, fixed_abs, tag = 'smem constant byte address 0x4 - core index']
  #allocation1 [shape = 'u32[144,128]{1,0:T(1,128)}', space=vmem, size = 0x12000, scoped, tag = 'internal scratch']
  %s0 = inlined_call_operand.vmem [shape: bf16[2,8,384], index: 0, kind: input, shape index: {}]
  %s1 = inlined_call_operand.vmem [shape: bf16[128,128], index: 1, kind: input, shape index: {}]
  %s2 = inlined_call_operand.vmem [shape: f32[1,128], index: 2, kind: input, shape index: {}]
  %s3 = inlined_call_operand.vmem [shape: f32[2,8,128], index: 3, kind: input, shape index: {}]
  %s4 = inlined_call_operand.vmem [shape: f32[2,8,128], index: 4, kind: output, shape index: {}]
  %s5 = sld [smem:[#allocation0]]
  $region49: #{clip_forward.29} parent=0
    _
  %s7 = ssub.s32 1, %s5
  %s8 = scalar_select 0, %s7, %s5
  loop: start=0, step=1, limit=4
  $region2: #{clip_forward.29} parent=0 // loop_pre_header
    _
  $region3: #{clip_forward.29} parent=0 // loop_header
    %s10 = sphi 0, %s14
    %p11 = scmp.ge.s32.totalorder %s10, 4
    %s20 = sphi 0, %s22
    %s23 = sphi 0, %s20
    %s24 = sphi 0, %s23
    %s40 = sphi 0, %s24
    %s44 = sphi 0, %s44
    %s46 = sphi 0, %s44
    %s47 = sphi 0, %s46
    %s61 = sphi 0, %s47
    %s65 = sphi 0, %s65
    %s67 = sphi 0, %s65
    %s68 = sphi 0, %s67
    %s82 = sphi 0, %s68
    %s88 = sphi 0, %s90
    %s91 = sphi 0, %s88
    %s92 = sphi 0, %s91
    %s108 = sphi 0, %s92
    %s114 = sphi 0, %s116
    %s117 = sphi 0, %s114
    %s118 = sphi 0, %s117
    %s134 = sphi 0, %s118
  $region4: #{clip_forward.29} parent=0 // loop_header_branch
    %13 = sbr.rel (%p11) target = $region8
  $region5: #{clip_forward.29} parent=0 // loop_body
    %s15 = ssub.s32 %s10, 1
    %s16 = ssub.s32 %s10, 2
    %s17 = sadd.s32 %s10, 1
    %s18 = ssub.s32 %s10, %s17
    %p19 = scmp.eq.s32.totalorder %s18, 0
    %s21 = sadd.s32 %s20, 1
    %s22 = scalar_select %p19, %s20, %s21
    %p25 = pneg %p19
    %p26 = scmp.eq.s32.totalorder %s10, 1
    %p27 = por %p25, %p26
    %p28 = scmp.ne.s32.totalorder %s20, %s23
    %p29 = scmp.eq.s32.totalorder %s10, 0
    %p30 = por %p28, %p29
    %p31 = scmp.ne.s32.totalorder %s20, %s23
    %p32 = scmp.eq.s32.totalorder %s15, 1
    %p33 = por %p31, %p32
    %p34 = scmp.ne.s32.totalorder %s23, %s24
    %p35 = scmp.eq.s32.totalorder %s15, 0
    %p36 = por %p34, %p35
    %p37 = scmp.ne.s32.totalorder %s23, %s24
    %p38 = scmp.eq.s32.totalorder %s16, 1
    %p39 = por %p37, %p38
    %p41 = scmp.ne.s32.totalorder %s24, %s40
    %p42 = scmp.eq.s32.totalorder %s16, 0
    %p43 = por %p41, %p42
    %s45 = sadd.s32 %s44, 1
    %p48 = scmp.eq.s32.totalorder %s10, 1
    %p49 = scmp.ne.s32.totalorder %s44, %s46
    %p50 = scmp.eq.s32.totalorder %s10, 0
    %p51 = por %p49, %p50
    %p52 = scmp.ne.s32.totalorder %s44, %s46
    %p53 = scmp.eq.s32.totalorder %s15, 1
    %p54 = por %p52, %p53
    %p55 = scmp.ne.s32.totalorder %s46, %s47
    %p56 = scmp.eq.s32.totalorder %s15, 0
    %p57 = por %p55, %p56
    %p58 = scmp.ne.s32.totalorder %s46, %s47
    %p59 = scmp.eq.s32.totalorder %s16, 1
    %p60 = por %p58, %p59
    %p62 = scmp.ne.s32.totalorder %s47, %s61
    %p63 = scmp.eq.s32.totalorder %s16, 0
    %p64 = por %p62, %p63
    %s66 = sadd.s32 %s65, 1
    %p69 = scmp.eq.s32.totalorder %s10, 1
    %p70 = scmp.ne.s32.totalorder %s65, %s67
    %p71 = scmp.eq.s32.totalorder %s10, 0
    %p72 = por %p70, %p71
    %p73 = scmp.ne.s32.totalorder %s65, %s67
    %p74 = scmp.eq.s32.totalorder %s15, 1
    %p75 = por %p73, %p74
    %p76 = scmp.ne.s32.totalorder %s67, %s68
    %p77 = scmp.eq.s32.totalorder %s15, 0
    %p78 = por %p76, %p77
    %p79 = scmp.ne.s32.totalorder %s67, %s68
    %p80 = scmp.eq.s32.totalorder %s16, 1
    %p81 = por %p79, %p80
    %p83 = scmp.ne.s32.totalorder %s68, %s82
    %p84 = scmp.eq.s32.totalorder %s16, 0
    %p85 = por %p83, %p84
    %s86 = ssub.s32 %s10, %s17
    %p87 = scmp.eq.s32.totalorder %s86, 0
    %s89 = sadd.s32 %s88, 1
    %s90 = scalar_select %p87, %s88, %s89
    %p93 = pneg %p87
    %p94 = scmp.eq.s32.totalorder %s10, 1
    %p95 = por %p93, %p94
    %p96 = scmp.ne.s32.totalorder %s88, %s91
    %p97 = scmp.eq.s32.totalorder %s10, 0
    %p98 = por %p96, %p97
    %p99 = scmp.ne.s32.totalorder %s88, %s91
    %p100 = scmp.eq.s32.totalorder %s15, 1
    %p101 = por %p99, %p100
    %p102 = scmp.ne.s32.totalorder %s91, %s92
    %p103 = scmp.eq.s32.totalorder %s15, 0
    %p104 = por %p102, %p103
    %p105 = scmp.ne.s32.totalorder %s91, %s92
    %p106 = scmp.eq.s32.totalorder %s16, 1
    %p107 = por %p105, %p106
    %p109 = scmp.ne.s32.totalorder %s92, %s108
    %p110 = scmp.eq.s32.totalorder %s16, 0
    %p111 = por %p109, %p110
    %s112 = ssub.s32 %s10, %s17
    %p113 = scmp.eq.s32.totalorder %s112, 0
    %s115 = sadd.s32 %s114, 1
    %s116 = scalar_select %p113, %s114, %s115
    %p119 = pneg %p113
    %p120 = scmp.eq.s32.totalorder %s10, 1
    %p121 = por %p119, %p120
    %p122 = scmp.ne.s32.totalorder %s114, %s117
    %p123 = scmp.eq.s32.totalorder %s10, 0
    %p124 = por %p122, %p123
    %p125 = scmp.ne.s32.totalorder %s114, %s117
    %p126 = scmp.eq.s32.totalorder %s15, 1
    %p127 = por %p125, %p126
    %p128 = scmp.ne.s32.totalorder %s117, %s118
    %p129 = scmp.eq.s32.totalorder %s15, 0
    %p130 = por %p128, %p129
    %p131 = scmp.ne.s32.totalorder %s117, %s118
    %p132 = scmp.eq.s32.totalorder %s16, 1
    %p133 = por %p131, %p132
    %p135 = scmp.ne.s32.totalorder %s118, %s134
    %p136 = scmp.eq.s32.totalorder %s16, 0
    %p137 = por %p135, %p136
    %p138 = scmp.le.s32.totalorder 1, %s10
    %p139 = scmp.lt.s32.totalorder %s10, 3
    %p140 = pnand %p138, %p139
    %p141 = pneg %p140
    // Predicated region
    $region9: #{clip_forward.29} parent=5 // pred_check
      _
    $region10: #{clip_forward.29} parent=5 // pred_check_branch
      %143 = sbr.rel (%p140) target = $region12
    $region11: #{clip_forward.29} parent=5 // pred_region
      %s144 = ssub.s32 %s10, 1
      // Predicated region
      $region13: #{clip_forward.29} parent=11 // pred_check
        %p145 = pneg %p57
      $region14: #{clip_forward.29} parent=11 // pred_check_branch
        %147 = sbr.rel (%p145) target = $region16
      $region15: #{clip_forward.29} parent=11 // pred_region
        _
      $region16: #{clip_forward.29} parent=11 // pred_fallthru
        _
      // Predicated region
      $region17: #{clip_forward.29} parent=11 // pred_check
        %p148 = pneg %p78
      $region18: #{clip_forward.29} parent=11 // pred_check_branch
        %150 = sbr.rel (%p148) target = $region20
      $region19: #{clip_forward.29} parent=11 // pred_region
        _
      $region20: #{clip_forward.29} parent=11 // pred_fallthru
        _
    $region12: #{clip_forward.29} parent=5 // pred_fallthru
      _
    %p151 = scmp.lt.s32.totalorder %s10, 2
    // Predicated region
    $region21: #{clip_forward.29} parent=5 // pred_check
      %p152 = pneg %p151
    $region22: #{clip_forward.29} parent=5 // pred_check_branch
      %154 = sbr.rel (%p152) target = $region24
    $region23: #{clip_forward.29} parent=5 // pred_region
      // Predicated region
      $region25: #{clip_forward.29} parent=23 // pred_check
        %p155 = pneg %p30
      $region26: #{clip_forward.29} parent=23 // pred_check_branch
        %157 = sbr.rel (%p155) target = $region28
      $region27: #{clip_forward.29} parent=23 // pred_region
        %p158 = scmp.lt.s32.totalorder %s10, 1
        %s159 = scalar_select %p158, %s10, 1
        %s160 = smul.addr %s159, 3
        %s161 = smul.addr %s160, 4
        %s162 = scalar_lea.vmem %s0, %s161
      $region28: #{clip_forward.29} parent=23 // pred_fallthru
        _
      // Predicated region
      $region29: #{clip_forward.29} parent=23 // pred_check
        %p163 = pneg %p98
      $region30: #{clip_forward.29} parent=23 // pred_check_branch
        %165 = sbr.rel (%p163) target = $region32
      $region31: #{clip_forward.29} parent=23 // pred_region
        %p166 = scmp.lt.s32.totalorder %s10, 1
        %s167 = scalar_select %p166, %s10, 1
        %s168 = smul.addr %s167, 8
        %s169 = scalar_lea.vmem %s3, %s168
      $region32: #{clip_forward.29} parent=23 // pred_fallthru
        _
    $region24: #{clip_forward.29} parent=5 // pred_fallthru
      _
    %p170 = scmp.le.s32.totalorder 1, %s10
    %p171 = scmp.lt.s32.totalorder %s10, 3
    %p172 = pnand %p170, %p171
    %p173 = pneg %p172
    // Predicated region
    $region33: #{clip_forward.29} parent=5 // pred_check
      _
    $region34: #{clip_forward.29} parent=5 // pred_check_branch
      %175 = sbr.rel (%p172) target = $region36
    $region35: #{clip_forward.29} parent=5 // pred_region
      %s176 = ssub.s32 %s10, 1
      %p177 = scmp.lt.s32.totalorder %s15, 1
      %s178 = scalar_select %p177, %s15, 1
      %s179 = smul.addr %s178, 3
      %s180 = smul.addr %s179, 4
      %s181 = scalar_lea.vmem %s0, %s180
      %p182 = pneg %p36
      %p183 = pneg %p33
      %p184 = pneg %p57
      %p185 = pneg %p54
      %p186 = pneg %p78
      %p187 = pneg %p75
      %p188 = scmp.lt.s32.totalorder %s15, 1
      %s189 = scalar_select %p188, %s15, 1
      %s190 = smul.addr %s189, 8
      %s191 = scalar_lea.vmem %s3, %s190
      %p192 = pneg %p104
      %p193 = pneg %p101
      %p194 = pneg %p130
      %p195 = pneg %p127
      %p196 = scmp.lt.s32.totalorder %s15, 1
      %s197 = scalar_select %p196, %s15, 1
      %s198 = smul.addr %s197, 8
      %s199 = scalar_lea.vmem %s4, %s198
      %p200 = scmp.lt.s32.totalorder %s15, 1
      %s201 = scalar_select %p200, %s15, 1
      %s202 = smul.addr %s201, 3
      %s203 = smul.addr %s202, 4
      %s204 = scalar_lea.vmem %s0, %s203
      %p205 = scmp.lt.s32.totalorder %s15, 1
      %s206 = scalar_select %p205, %s15, 1
      %s207 = smul.addr %s206, 8
      %s208 = scalar_lea.vmem %s3, %s207
      %p209 = scmp.lt.s32.totalorder %s15, 1
      %s210 = scalar_select %p209, %s15, 1
      %s211 = smul.addr %s210, 8
      %s212 = scalar_lea.vmem %s4, %s211
      %v214 = vld [vmem:[%s204] sm:$0xff]
      %v215 = vld [vmem:[%s204 + $0x8] sm:$0xf]
      %v216 = vlaneseq
      %v217 = vand.u32 %v216, 127
      %vm218 = vcmp.lt.s32.totalorder %v217, 8
      %v219 = vlaneseq
      %v220 = vshrl.u32 %v219, 7
      %vm221 = vcmp.le.s32.totalorder %v217, %v220
      %vm222 = vmand %vm218, %vm221
      %v223 = vsel %vm222, 0.0, -1e+30
      %v224 = vld [vmem:[%s208] sm:$0xff]
      %v225 = vld [vmem:[%s2] sm:$0x1]
      %v227 = vlaneseq
      %v228 = vshrl.u32 %v227, 7
      %v229 = vsub.s32 0, %v228
      %v230 = vrot.slane %v225, %v229
      %v232 = vadd.f32 %v224, %v230
      %v234 = vunpack.c.h.b16 %v214
      %v235 = vpack.c.b16 %v234, %v234
      %vm236 = vcmask 261120
      %v238 = vsel %vm236, %v214, 0
      %v241 = vsel %vm236, %v235, 0
      %243 = vmatprep.subr.bf16.mxu0 0
      %244 = vmatpush1.bf16.xpose.msra.mxu0 0
      %245 = vmatprep.subr.bf16.mxu0 0
      %246 = vmatpush1.bf16.xpose.msra.mxu0 0
      %247 = vmatprep.subr.bf16.mxu0 0
      %248 = vmatpush1.bf16.xpose.msra.mxu0 0
      %249 = vmatprep.subr.bf16.mxu0 0
      %250 = vmatpush1.bf16.xpose.msra.mxu0 0
      %251 = vmatprep.subr.bf16.mxu0 0
      %252 = vmatpush1.bf16.xpose.msra.mxu0 0
      %253 = vmatprep.subr.bf16.mxu0 0
      %254 = vmatpush1.bf16.xpose.msra.mxu0 0
      %255 = vmatprep.subr.bf16.mxu0 0
      %256 = vmatpush1.bf16.xpose.msra.mxu0 0
      %257 = vmatprep.subr.bf16.mxu0 0
      %258 = vmatpush1.bf16.xpose.msra.mxu0 %v241
      %259 = vmatprep.subr.bf16.mxu0 0
      %260 = vmatpush2.bf16.xpose.msra.mxu0 0
      %261 = vmatprep.subr.bf16.mxu0 0
      %262 = vmatpush2.bf16.xpose.msra.mxu0 0
      %263 = vmatprep.subr.bf16.mxu0 0
      %264 = vmatpush2.bf16.xpose.msra.mxu0 0
      %265 = vmatprep.subr.bf16.mxu0 0
      %266 = vmatpush2.bf16.xpose.msra.mxu0 0
      %267 = vmatprep.subr.bf16.mxu0 0
      %268 = vmatpush2.bf16.xpose.msra.mxu0 0
      %269 = vmatprep.subr.bf16.mxu0 0
      %270 = vmatpush2.bf16.xpose.msra.mxu0 0
      %271 = vmatprep.subr.bf16.mxu0 0
      %272 = vmatpush2.bf16.xpose.msra.mxu0 0
      %273 = vmatprep.subr.bf16.mxu0 0
      %274 = vmatpush2.bf16.xpose.msra.mxu0 0
      %275 = vmatprep.mubr.bf16.mxu0 0
      %276 = vmatmul.mubr.bf16.gmra.mxu0 %v238
      %v277 = vpop.f32.mrf.mxu0
      %v278 = vadd.f32 %v223, %v277
      %v279 = vpop.f32.mrf.mxu0
      %v280 = vpop.f32.mrf.mxu0
      %v281 = vpop.f32.mrf.mxu0
      %282 = vdwg.mxu0
      %vm283 = vcmask 64512
      %v284 = vsel %vm283, %v278, -inf
      %285 = vmax.xlane.f32.xlu0 %v284
      %v286 = vpop.xlane.xlu0 %285
      %v287 = vsub.f32 %v278, %v286
      %v288 = vmul.f32 %v287, 1.442695
      %v289 = vpow.pop %v288
      %v290 = vsel %vm283, %v289, 0.0
      %291 = vadd.xlane.f32.xlu0 %v290
      %v292 = vpop.xlane.xlu0 %291
      %v293 = vrcp.pop %v292
      %v294 = vmul.f32 %v289, %v293
      %v295 = vpack.c.bf16 %v294, %v294
      %v297 = vsel %vm283, %v295, 0
      %vm299 = vcmask 1043456
      %v301 = vsel %vm299, %v215, 0
      %303 = vmatprep.subr.bf16.mxu0 0
      %304 = vmatpush1.bf16.msra.mxu0 0
      %305 = vmatprep.subr.bf16.mxu0 0
      %306 = vmatpush1.bf16.msra.mxu0 0
      %307 = vmatprep.subr.bf16.mxu0 0
      %308 = vmatpush1.bf16.msra.mxu0 0
      %309 = vmatprep.subr.bf16.mxu0 0
      %310 = vmatpush1.bf16.msra.mxu0 0
      %311 = vmatprep.subr.bf16.mxu0 0
      %312 = vmatpush1.bf16.msra.mxu0 0
      %313 = vmatprep.subr.bf16.mxu0 0
      %314 = vmatpush1.bf16.msra.mxu0 0
      %315 = vmatprep.subr.bf16.mxu0 0
      %316 = vmatpush1.bf16.msra.mxu0 0
      %317 = vmatprep.subr.bf16.mxu0 0
      %318 = vmatpush1.bf16.msra.mxu0 %v301
      %319 = vmatprep.subr.bf16.mxu0 0
      %320 = vmatpush2.bf16.msra.mxu0 0
      %321 = vmatprep.subr.bf16.mxu0 0
      %322 = vmatpush2.bf16.msra.mxu0 0
      %323 = vmatprep.subr.bf16.mxu0 0
      %324 = vmatpush2.bf16.msra.mxu0 0
      %325 = vmatprep.subr.bf16.mxu0 0
      %326 = vmatpush2.bf16.msra.mxu0 0
      %327 = vmatprep.subr.bf16.mxu0 0
      %328 = vmatpush2.bf16.msra.mxu0 0
      %329 = vmatprep.subr.bf16.mxu0 0
      %330 = vmatpush2.bf16.msra.mxu0 0
      %331 = vmatprep.subr.bf16.mxu0 0
      %332 = vmatpush2.bf16.msra.mxu0 0
      %333 = vmatprep.subr.bf16.mxu0 0
      %334 = vmatpush2.bf16.msra.mxu0 0
      %335 = vmatprep.mubr.bf16.mxu0 0
      %336 = vmatmul.mubr.bf16.gmra.mxu0 %v297
      %v337 = vpop.f32.mrf.mxu0
      %v338 = vadd.f32 0.0, %v337
      %v339 = vpop.f32.mrf.mxu0
      %v340 = vpop.f32.mrf.mxu0
      %v341 = vpop.f32.mrf.mxu0
      %342 = vdwg.mxu0
      %v343 = vpack.c.bf16 %v338, %v338
      %v344 = vld [vmem:[%s1] sm:$0xf]
      %v345 = vld [vmem:[%s1 + $0x4] sm:$0xf]
      %v346 = vld [vmem:[%s1 + $0x8] sm:$0xf]
      %v347 = vld [vmem:[%s1 + $0xc] sm:$0xf]
      %v352 = vunpack.c.l.b16 %v344
      %v353 = vunpack.c.l.b16 %v345
      %v354 = vunpack.c.l.b16 %v346
      %v355 = vunpack.c.l.b16 %v347
      %v356 = vpack.c.b16 %v353, %v352
      %v357 = vpack.c.b16 %v355, %v354
      %v361 = vsel %vm236, %v343, 0
      %363 = vmatprep.subr.bf16.mxu0 0
      %364 = vmatpush1.bf16.msra.mxu0 0
      %365 = vmatprep.subr.bf16.mxu0 0
      %366 = vmatpush1.bf16.msra.mxu0 0
      %367 = vmatprep.subr.bf16.mxu0 0
      %368 = vmatpush1.bf16.msra.mxu0 0
      %369 = vmatprep.subr.bf16.mxu0 0
      %370 = vmatpush1.bf16.msra.mxu0 0
      %371 = vmatprep.subr.bf16.mxu0 0
      %372 = vmatpush1.bf16.msra.mxu0 0
      %373 = vmatprep.subr.bf16.mxu0 0
      %374 = vmatpush1.bf16.msra.mxu0 0
      %375 = vmatprep.subr.bf16.mxu0 0
      %376 = vmatpush1.bf16.msra.mxu0 %v357
      %377 = vmatprep.subr.bf16.mxu0 0
      %378 = vmatpush1.bf16.msra.mxu0 %v356
      %379 = vmatprep.subr.bf16.mxu0 0
      %380 = vmatpush2.bf16.msra.mxu0 0
      %381 = vmatprep.subr.bf16.mxu0 0
      %382 = vmatpush2.bf16.msra.mxu0 0
      %383 = vmatprep.subr.bf16.mxu0 0
      %384 = vmatpush2.bf16.msra.mxu0 0
      %385 = vmatprep.subr.bf16.mxu0 0
      %386 = vmatpush2.bf16.msra.mxu0 0
      %387 = vmatprep.subr.bf16.mxu0 0
      %388 = vmatpush2.bf16.msra.mxu0 0
      %389 = vmatprep.subr.bf16.mxu0 0
      %390 = vmatpush2.bf16.msra.mxu0 0
      %391 = vmatprep.subr.bf16.mxu0 0
      %392 = vmatpush2.bf16.msra.mxu0 0
      %393 = vmatprep.subr.bf16.mxu0 0
      %394 = vmatpush2.bf16.msra.mxu0 0
      %395 = vmatprep.mubr.bf16.mxu0 0
      %396 = vmatmul.mubr.bf16.gmra.mxu0 %v361
      %v397 = vpop.f32.mrf.mxu0
      %v398 = vadd.f32 0.0, %v397
      %v399 = vpop.f32.mrf.mxu0
      %v400 = vpop.f32.mrf.mxu0
      %v401 = vpop.f32.mrf.mxu0
      %402 = vdwg.mxu0
      %v403 = vadd.f32 %v232, %v398
      %v404 = vunpack.c.l.b16 %v214
      %v405 = vpack.c.b16 %v404, %v404
      %406 = vrot.lane.b32.xlu0 %v405, 96
      %v407 = vpop.permute.xlu0 %406
      %408 = vrot.lane.b32.xlu0 %v235, 96
      %v409 = vpop.permute.xlu0 %408
      %v411 = vsel %vm236, %v407, 0
      %v414 = vsel %vm236, %v409, 0
      %416 = vmatprep.subr.bf16.mxu0 0
      %417 = vmatpush1.bf16.xpose.msra.mxu0 0
      %418 = vmatprep.subr.bf16.mxu0 0
      %419 = vmatpush1.bf16.xpose.msra.mxu0 0
      %420 = vmatprep.subr.bf16.mxu0 0
      %421 = vmatpush1.bf16.xpose.msra.mxu0 0
      %422 = vmatprep.subr.bf16.mxu0 0
      %423 = vmatpush1.bf16.xpose.msra.mxu0 0
      %424 = vmatprep.subr.bf16.mxu0 0
      %425 = vmatpush1.bf16.xpose.msra.mxu0 0
      %426 = vmatprep.subr.bf16.mxu0 0
      %427 = vmatpush1.bf16.xpose.msra.mxu0 0
      %428 = vmatprep.subr.bf16.mxu0 0
      %429 = vmatpush1.bf16.xpose.msra.mxu0 0
      %430 = vmatprep.subr.bf16.mxu0 0
      %431 = vmatpush1.bf16.xpose.msra.mxu0 %v414
      %432 = vmatprep.subr.bf16.mxu0 0
      %433 = vmatpush2.bf16.xpose.msra.mxu0 0
      %434 = vmatprep.subr.bf16.mxu0 0
      %435 = vmatpush2.bf16.xpose.msra.mxu0 0
      %436 = vmatprep.subr.bf16.mxu0 0
      %437 = vmatpush2.bf16.xpose.msra.mxu0 0
      %438 = vmatprep.subr.bf16.mxu0 0
      %439 = vmatpush2.bf16.xpose.msra.mxu0 0
      %440 = vmatprep.subr.bf16.mxu0 0
      %441 = vmatpush2.bf16.xpose.msra.mxu0 0
      %442 = vmatprep.subr.bf16.mxu0 0
      %443 = vmatpush2.bf16.xpose.msra.mxu0 0
      %444 = vmatprep.subr.bf16.mxu0 0
      %445 = vmatpush2.bf16.xpose.msra.mxu0 0
      %446 = vmatprep.subr.bf16.mxu0 0
      %447 = vmatpush2.bf16.xpose.msra.mxu0 0
      %448 = vmatprep.mubr.bf16.mxu0 0
      %449 = vmatmul.mubr.bf16.gmra.mxu0 %v411
      %v450 = vpop.f32.mrf.mxu0
      %v451 = vadd.f32 %v223, %v450
      %v452 = vpop.f32.mrf.mxu0
      %v453 = vpop.f32.mrf.mxu0
      %v454 = vpop.f32.mrf.mxu0
      %455 = vdwg.mxu0
      %v456 = vsel %vm283, %v451, -inf
      %457 = vmax.xlane.f32.xlu0 %v456
      %v458 = vpop.xlane.xlu0 %457
      %v459 = vsub.f32 %v451, %v458
      %v460 = vmul.f32 %v459, 1.442695
      %v461 = vpow.pop %v460
      %v462 = vsel %vm283, %v461, 0.0
      %463 = vadd.xlane.f32.xlu0 %v462
      %v464 = vpop.xlane.xlu0 %463
      %v465 = vrcp.pop %v464
      %v466 = vmul.f32 %v461, %v465
      %v467 = vpack.c.bf16 %v466, %v466
      %v469 = vunpack.c.l.b16 %v215
      %v470 = vpack.c.b16 %v469, %v469
      %471 = vrot.lane.b32.xlu0 %v470, 96
      %v472 = vpop.permute.xlu0 %471
      %v474 = vsel %vm283, %v467, 0
      %v477 = vsel %vm299, %v472, 0
      %479 = vmatprep.subr.bf16.mxu0 0
      %480 = vmatpush1.bf16.msra.mxu0 0
      %481 = vmatprep.subr.bf16.mxu0 0
      %482 = vmatpush1.bf16.msra.mxu0 0
      %483 = vmatprep.subr.bf16.mxu0 0
      %484 = vmatpush1.bf16.msra.mxu0 0
      %485 = vmatprep.subr.bf16.mxu0 0
      %486 = vmatpush1.bf16.msra.mxu0 0
      %487 = vmatprep.subr.bf16.mxu0 0
      %488 = vmatpush1.bf16.msra.mxu0 0
      %489 = vmatprep.subr.bf16.mxu0 0
      %490 = vmatpush1.bf16.msra.mxu0 0
      %491 = vmatprep.subr.bf16.mxu0 0
      %492 = vmatpush1.bf16.msra.mxu0 0
      %493 = vmatprep.subr.bf16.mxu0 0
      %494 = vmatpush1.bf16.msra.mxu0 %v477
      %495 = vmatprep.subr.bf16.mxu0 0
      %496 = vmatpush2.bf16.msra.mxu0 0
      %497 = vmatprep.subr.bf16.mxu0 0
      %498 = vmatpush2.bf16.msra.mxu0 0
      %499 = vmatprep.subr.bf16.mxu0 0
      %500 = vmatpush2.bf16.msra.mxu0 0
      %501 = vmatprep.subr.bf16.mxu0 0
      %502 = vmatpush2.bf16.msra.mxu0 0
      %503 = vmatprep.subr.bf16.mxu0 0
      %504 = vmatpush2.bf16.msra.mxu0 0
      %505 = vmatprep.subr.bf16.mxu0 0
      %506 = vmatpush2.bf16.msra.mxu0 0
      %507 = vmatprep.subr.bf16.mxu0 0
      %508 = vmatpush2.bf16.msra.mxu0 0
      %509 = vmatprep.subr.bf16.mxu0 0
      %510 = vmatpush2.bf16.msra.mxu0 0
      %511 = vmatprep.mubr.bf16.mxu0 0
      %512 = vmatmul.mubr.bf16.gmra.mxu0 %v474
      %v513 = vpop.f32.mrf.mxu0
      %v514 = vadd.f32 0.0, %v513
      %v515 = vpop.f32.mrf.mxu0
      %v516 = vpop.f32.mrf.mxu0
      %v517 = vpop.f32.mrf.mxu0
      %518 = vdwg.mxu0
      %v519 = vpack.c.bf16 %v514, %v514
      %v520 = vld [vmem:[%s1 + $0x10] sm:$0xf]
      %v521 = vld [vmem:[%s1 + $0x14] sm:$0xf]
      %v522 = vld [vmem:[%s1 + $0x18] sm:$0xf]
      %v523 = vld [vmem:[%s1 + $0x1c] sm:$0xf]
      %v528 = vunpack.c.l.b16 %v520
      %v529 = vunpack.c.l.b16 %v521
      %v530 = vunpack.c.l.b16 %v522
      %v531 = vunpack.c.l.b16 %v523
      %v532 = vpack.c.b16 %v529, %v528
      %v533 = vpack.c.b16 %v531, %v530
      %v537 = vsel %vm236, %v519, 0
      %539 = vmatprep.subr.bf16.mxu0 0
      %540 = vmatpush1.bf16.msra.mxu0 0
      %541 = vmatprep.subr.bf16.mxu0 0
      %542 = vmatpush1.bf16.msra.mxu0 0
      %543 = vmatprep.subr.bf16.mxu0 0
      %544 = vmatpush1.bf16.msra.mxu0 0
      %545 = vmatprep.subr.bf16.mxu0 0
      %546 = vmatpush1.bf16.msra.mxu0 0
      %547 = vmatprep.subr.bf16.mxu0 0
      %548 = vmatpush1.bf16.msra.mxu0 0
      %549 = vmatprep.subr.bf16.mxu0 0
      %550 = vmatpush1.bf16.msra.mxu0 0
      %551 = vmatprep.subr.bf16.mxu0 0
      %552 = vmatpush1.bf16.msra.mxu0 %v533
      %553 = vmatprep.subr.bf16.mxu0 0
      %554 = vmatpush1.bf16.msra.mxu0 %v532
      %555 = vmatprep.subr.bf16.mxu0 0
      %556 = vmatpush2.bf16.msra.mxu0 0
      %557 = vmatprep.subr.bf16.mxu0 0
      %558 = vmatpush2.bf16.msra.mxu0 0
      %559 = vmatprep.subr.bf16.mxu0 0
      %560 = vmatpush2.bf16.msra.mxu0 0
      %561 = vmatprep.subr.bf16.mxu0 0
      %562 = vmatpush2.bf16.msra.mxu0 0
      %563 = vmatprep.subr.bf16.mxu0 0
      %564 = vmatpush2.bf16.msra.mxu0 0
      %565 = vmatprep.subr.bf16.mxu0 0
      %566 = vmatpush2.bf16.msra.mxu0 0
      %567 = vmatprep.subr.bf16.mxu0 0
      %568 = vmatpush2.bf16.msra.mxu0 0
      %569 = vmatprep.subr.bf16.mxu0 0
      %570 = vmatpush2.bf16.msra.mxu0 0
      %571 = vmatprep.mubr.bf16.mxu0 0
      %572 = vmatmul.mubr.bf16.gmra.mxu0 %v537
      %v573 = vpop.f32.mrf.mxu0
      %v574 = vadd.f32 0.0, %v573
      %v575 = vpop.f32.mrf.mxu0
      %v576 = vpop.f32.mrf.mxu0
      %v577 = vpop.f32.mrf.mxu0
      %578 = vdwg.mxu0
      %v579 = vadd.f32 %v403, %v574
      %580 = vrot.lane.b32.xlu0 %v405, 64
      %v581 = vpop.permute.xlu0 %580
      %582 = vrot.lane.b32.xlu0 %v235, 64
      %v583 = vpop.permute.xlu0 %582
      %v585 = vsel %vm236, %v581, 0
      %v588 = vsel %vm236, %v583, 0
      %590 = vmatprep.subr.bf16.mxu0 0
      %591 = vmatpush1.bf16.xpose.msra.mxu0 0
      %592 = vmatprep.subr.bf16.mxu0 0
      %593 = vmatpush1.bf16.xpose.msra.mxu0 0
      %594 = vmatprep.subr.bf16.mxu0 0
      %595 = vmatpush1.bf16.xpose.msra.mxu0 0
      %596 = vmatprep.subr.bf16.mxu0 0
      %597 = vmatpush1.bf16.xpose.msra.mxu0 0
      %598 = vmatprep.subr.bf16.mxu0 0
      %599 = vmatpush1.bf16.xpose.msra.mxu0 0
      %600 = vmatprep.subr.bf16.mxu0 0
      %601 = vmatpush1.bf16.xpose.msra.mxu0 0
      %602 = vmatprep.subr.bf16.mxu0 0
      %603 = vmatpush1.bf16.xpose.msra.mxu0 0
      %604 = vmatprep.subr.bf16.mxu0 0
      %605 = vmatpush1.bf16.xpose.msra.mxu0 %v588
      %606 = vmatprep.subr.bf16.mxu0 0
      %607 = vmatpush2.bf16.xpose.msra.mxu0 0
      %608 = vmatprep.subr.bf16.mxu0 0
      %609 = vmatpush2.bf16.xpose.msra.mxu0 0
      %610 = vmatprep.subr.bf16.mxu0 0
      %611 = vmatpush2.bf16.xpose.msra.mxu0 0
      %612 = vmatprep.subr.bf16.mxu0 0
      %613 = vmatpush2.bf16.xpose.msra.mxu0 0
      %614 = vmatprep.subr.bf16.mxu0 0
      %615 = vmatpush2.bf16.xpose.msra.mxu0 0
      %616 = vmatprep.subr.bf16.mxu0 0
      %617 = vmatpush2.bf16.xpose.msra.mxu0 0
      %618 = vmatprep.subr.bf16.mxu0 0
      %619 = vmatpush2.bf16.xpose.msra.mxu0 0
      %620 = vmatprep.subr.bf16.mxu0 0
      %621 = vmatpush2.bf16.xpose.msra.mxu0 0
      %622 = vmatprep.mubr.bf16.mxu0 0
      %623 = vmatmul.mubr.bf16.gmra.mxu0 %v585
      %v624 = vpop.f32.mrf.mxu0
      %v625 = vadd.f32 %v223, %v624
      %v626 = vpop.f32.mrf.mxu0
      %v627 = vpop.f32.mrf.mxu0
      %v628 = vpop.f32.mrf.mxu0
      %629 = vdwg.mxu0
      %v630 = vsel %vm283, %v625, -inf
      %631 = vmax.xlane.f32.xlu0 %v630
      %v632 = vpop.xlane.xlu0 %631
      %v633 = vsub.f32 %v625, %v632
      %v634 = vmul.f32 %v633, 1.442695
      %v635 = vpow.pop %v634
      %v636 = vsel %vm283, %v635, 0.0
      %637 = vadd.xlane.f32.xlu0 %v636
      %v638 = vpop.xlane.xlu0 %637
      %v639 = vrcp.pop %v638
      %v640 = vmul.f32 %v635, %v639
      %v641 = vpack.c.bf16 %v640, %v640
      %642 = vrot.lane.b32.xlu0 %v470, 64
      %v643 = vpop.permute.xlu0 %642
      %v645 = vsel %vm283, %v641, 0
      %v648 = vsel %vm299, %v643, 0
      %650 = vmatprep.subr.bf16.mxu0 0
      %651 = vmatpush1.bf16.msra.mxu0 0
      %652 = vmatprep.subr.bf16.mxu0 0
      %653 = vmatpush1.bf16.msra.mxu0 0
      %654 = vmatprep.subr.bf16.mxu0 0
      %655 = vmatpush1.bf16.msra.mxu0 0
      %656 = vmatprep.subr.bf16.mxu0 0
      %657 = vmatpush1.bf16.msra.mxu0 0
      %658 = vmatprep.subr.bf16.mxu0 0
      %659 = vmatpush1.bf16.msra.mxu0 0
      %660 = vmatprep.subr.bf16.mxu0 0
      %661 = vmatpush1.bf16.msra.mxu0 0
      %662 = vmatprep.subr.bf16.mxu0 0
      %663 = vmatpush1.bf16.msra.mxu0 0
      %664 = vmatprep.subr.bf16.mxu0 0
      %665 = vmatpush1.bf16.msra.mxu0 %v648
      %666 = vmatprep.subr.bf16.mxu0 0
      %667 = vmatpush2.bf16.msra.mxu0 0
      %668 = vmatprep.subr.bf16.mxu0 0
      %669 = vmatpush2.bf16.msra.mxu0 0
      %670 = vmatprep.subr.bf16.mxu0 0
      %671 = vmatpush2.bf16.msra.mxu0 0
      %672 = vmatprep.subr.bf16.mxu0 0
      %673 = vmatpush2.bf16.msra.mxu0 0
      %674 = vmatprep.subr.bf16.mxu0 0
      %675 = vmatpush2.bf16.msra.mxu0 0
      %676 = vmatprep.subr.bf16.mxu0 0
      %677 = vmatpush2.bf16.msra.mxu0 0
      %678 = vmatprep.subr.bf16.mxu0 0
      %679 = vmatpush2.bf16.msra.mxu0 0
      %680 = vmatprep.subr.bf16.mxu0 0
      %681 = vmatpush2.bf16.msra.mxu0 0
      %682 = vmatprep.mubr.bf16.mxu0 0
      %683 = vmatmul.mubr.bf16.gmra.mxu0 %v645
      %v684 = vpop.f32.mrf.mxu0
      %v685 = vadd.f32 0.0, %v684
      %v686 = vpop.f32.mrf.mxu0
      %v687 = vpop.f32.mrf.mxu0
      %v688 = vpop.f32.mrf.mxu0
      %689 = vdwg.mxu0
      %v690 = vpack.c.bf16 %v685, %v685
      %v691 = vld [vmem:[%s1 + $0x20] sm:$0xf]
      %v692 = vld [vmem:[%s1 + $0x24] sm:$0xf]
      %v693 = vld [vmem:[%s1 + $0x28] sm:$0xf]
      %v694 = vld [vmem:[%s1 + $0x2c] sm:$0xf]
      %v699 = vunpack.c.l.b16 %v691
      %v700 = vunpack.c.l.b16 %v692
      %v701 = vunpack.c.l.b16 %v693
      %v702 = vunpack.c.l.b16 %v694
      %v703 = vpack.c.b16 %v700, %v699
      %v704 = vpack.c.b16 %v702, %v701
      %v708 = vsel %vm236, %v690, 0
      %710 = vmatprep.subr.bf16.mxu0 0
      %711 = vmatpush1.bf16.msra.mxu0 0
      %712 = vmatprep.subr.bf16.mxu0 0
      %713 = vmatpush1.bf16.msra.mxu0 0
      %714 = vmatprep.subr.bf16.mxu0 0
      %715 = vmatpush1.bf16.msra.mxu0 0
      %716 = vmatprep.subr.bf16.mxu0 0
      %717 = vmatpush1.bf16.msra.mxu0 0
      %718 = vmatprep.subr.bf16.mxu0 0
      %719 = vmatpush1.bf16.msra.mxu0 0
      %720 = vmatprep.subr.bf16.mxu0 0
      %721 = vmatpush1.bf16.msra.mxu0 0
      %722 = vmatprep.subr.bf16.mxu0 0
      %723 = vmatpush1.bf16.msra.mxu0 %v704
      %724 = vmatprep.subr.bf16.mxu0 0
      %725 = vmatpush1.bf16.msra.mxu0 %v703
      %726 = vmatprep.subr.bf16.mxu0 0
      %727 = vmatpush2.bf16.msra.mxu0 0
      %728 = vmatprep.subr.bf16.mxu0 0
      %729 = vmatpush2.bf16.msra.mxu0 0
      %730 = vmatprep.subr.bf16.mxu0 0
      %731 = vmatpush2.bf16.msra.mxu0 0
      %732 = vmatprep.subr.bf16.mxu0 0
      %733 = vmatpush2.bf16.msra.mxu0 0
      %734 = vmatprep.subr.bf16.mxu0 0
      %735 = vmatpush2.bf16.msra.mxu0 0
      %736 = vmatprep.subr.bf16.mxu0 0
      %737 = vmatpush2.bf16.msra.mxu0 0
      %738 = vmatprep.subr.bf16.mxu0 0
      %739 = vmatpush2.bf16.msra.mxu0 0
      %740 = vmatprep.subr.bf16.mxu0 0
      %741 = vmatpush2.bf16.msra.mxu0 0
      %742 = vmatprep.mubr.bf16.mxu0 0
      %743 = vmatmul.mubr.bf16.gmra.mxu0 %v708
      %v744 = vpop.f32.mrf.mxu0
      %v745 = vadd.f32 0.0, %v744
      %v746 = vpop.f32.mrf.mxu0
      %v747 = vpop.f32.mrf.mxu0
      %v748 = vpop.f32.mrf.mxu0
      %749 = vdwg.mxu0
      %v750 = vadd.f32 %v579, %v745
      %751 = vrot.lane.b32.xlu0 %v405, 32
      %v752 = vpop.permute.xlu0 %751
      %753 = vrot.lane.b32.xlu0 %v235, 32
      %v754 = vpop.permute.xlu0 %753
      %v756 = vsel %vm236, %v752, 0
      %v759 = vsel %vm236, %v754, 0
      %761 = vmatprep.subr.bf16.mxu0 0
      %762 = vmatpush1.bf16.xpose.msra.mxu0 0
      %763 = vmatprep.subr.bf16.mxu0 0
      %764 = vmatpush1.bf16.xpose.msra.mxu0 0
      %765 = vmatprep.subr.bf16.mxu0 0
      %766 = vmatpush1.bf16.xpose.msra.mxu0 0
      %767 = vmatprep.subr.bf16.mxu0 0
      %768 = vmatpush1.bf16.xpose.msra.mxu0 0
      %769 = vmatprep.subr.bf16.mxu0 0
      %770 = vmatpush1.bf16.xpose.msra.mxu0 0
      %771 = vmatprep.subr.bf16.mxu0 0
      %772 = vmatpush1.bf16.xpose.msra.mxu0 0
      %773 = vmatprep.subr.bf16.mxu0 0
      %774 = vmatpush1.bf16.xpose.msra.mxu0 0
      %775 = vmatprep.subr.bf16.mxu0 0
      %776 = vmatpush1.bf16.xpose.msra.mxu0 %v759
      %777 = vmatprep.subr.bf16.mxu0 0
      %778 = vmatpush2.bf16.xpose.msra.mxu0 0
      %779 = vmatprep.subr.bf16.mxu0 0
      %780 = vmatpush2.bf16.xpose.msra.mxu0 0
      %781 = vmatprep.subr.bf16.mxu0 0
      %782 = vmatpush2.bf16.xpose.msra.mxu0 0
      %783 = vmatprep.subr.bf16.mxu0 0
      %784 = vmatpush2.bf16.xpose.msra.mxu0 0
      %785 = vmatprep.subr.bf16.mxu0 0
      %786 = vmatpush2.bf16.xpose.msra.mxu0 0
      %787 = vmatprep.subr.bf16.mxu0 0
      %788 = vmatpush2.bf16.xpose.msra.mxu0 0
      %789 = vmatprep.subr.bf16.mxu0 0
      %790 = vmatpush2.bf16.xpose.msra.mxu0 0
      %791 = vmatprep.subr.bf16.mxu0 0
      %792 = vmatpush2.bf16.xpose.msra.mxu0 0
      %793 = vmatprep.mubr.bf16.mxu0 0
      %794 = vmatmul.mubr.bf16.gmra.mxu0 %v756
      %v795 = vpop.f32.mrf.mxu0
      %v796 = vadd.f32 %v223, %v795
      %v797 = vpop.f32.mrf.mxu0
      %v798 = vpop.f32.mrf.mxu0
      %v799 = vpop.f32.mrf.mxu0
      %800 = vdwg.mxu0
      %v801 = vsel %vm283, %v796, -inf
      %802 = vmax.xlane.f32.xlu0 %v801
      %v803 = vpop.xlane.xlu0 %802
      %v804 = vsub.f32 %v796, %v803
      %v805 = vmul.f32 %v804, 1.442695
      %v806 = vpow.pop %v805
      %v807 = vsel %vm283, %v806, 0.0
      %808 = vadd.xlane.f32.xlu0 %v807
      %v809 = vpop.xlane.xlu0 %808
      %v810 = vrcp.pop %v809
      %v811 = vmul.f32 %v806, %v810
      %v812 = vpack.c.bf16 %v811, %v811
      %813 = vrot.lane.b32.xlu0 %v470, 32
      %v814 = vpop.permute.xlu0 %813
      %v816 = vsel %vm283, %v812, 0
      %v819 = vsel %vm299, %v814, 0
      %821 = vmatprep.subr.bf16.mxu0 0
      %822 = vmatpush1.bf16.msra.mxu0 0
      %823 = vmatprep.subr.bf16.mxu0 0
      %824 = vmatpush1.bf16.msra.mxu0 0
      %825 = vmatprep.subr.bf16.mxu0 0
      %826 = vmatpush1.bf16.msra.mxu0 0
      %827 = vmatprep.subr.bf16.mxu0 0
      %828 = vmatpush1.bf16.msra.mxu0 0
      %829 = vmatprep.subr.bf16.mxu0 0
      %830 = vmatpush1.bf16.msra.mxu0 0
      %831 = vmatprep.subr.bf16.mxu0 0
      %832 = vmatpush1.bf16.msra.mxu0 0
      %833 = vmatprep.subr.bf16.mxu0 0
      %834 = vmatpush1.bf16.msra.mxu0 0
      %835 = vmatprep.subr.bf16.mxu0 0
      %836 = vmatpush1.bf16.msra.mxu0 %v819
      %837 = vmatprep.subr.bf16.mxu0 0
      %838 = vmatpush2.bf16.msra.mxu0 0
      %839 = vmatprep.subr.bf16.mxu0 0
      %840 = vmatpush2.bf16.msra.mxu0 0
      %841 = vmatprep.subr.bf16.mxu0 0
      %842 = vmatpush2.bf16.msra.mxu0 0
      %843 = vmatprep.subr.bf16.mxu0 0
      %844 = vmatpush2.bf16.msra.mxu0 0
      %845 = vmatprep.subr.bf16.mxu0 0
      %846 = vmatpush2.bf16.msra.mxu0 0
      %847 = vmatprep.subr.bf16.mxu0 0
      %848 = vmatpush2.bf16.msra.mxu0 0
      %849 = vmatprep.subr.bf16.mxu0 0
      %850 = vmatpush2.bf16.msra.mxu0 0
      %851 = vmatprep.subr.bf16.mxu0 0
      %852 = vmatpush2.bf16.msra.mxu0 0
      %853 = vmatprep.mubr.bf16.mxu0 0
      %854 = vmatmul.mubr.bf16.gmra.mxu0 %v816
      %v855 = vpop.f32.mrf.mxu0
      %v856 = vadd.f32 0.0, %v855
      %v857 = vpop.f32.mrf.mxu0
      %v858 = vpop.f32.mrf.mxu0
      %v859 = vpop.f32.mrf.mxu0
      %860 = vdwg.mxu0
      %v861 = vpack.c.bf16 %v856, %v856
      %v862 = vld [vmem:[%s1 + $0x30] sm:$0xf]
      %v863 = vld [vmem:[%s1 + $0x34] sm:$0xf]
      %v864 = vld [vmem:[%s1 + $0x38] sm:$0xf]
      %v865 = vld [vmem:[%s1 + $0x3c] sm:$0xf]
      %v870 = vunpack.c.l.b16 %v862
      %v871 = vunpack.c.l.b16 %v863
      %v872 = vunpack.c.l.b16 %v864
      %v873 = vunpack.c.l.b16 %v865
      %v874 = vpack.c.b16 %v871, %v870
      %v875 = vpack.c.b16 %v873, %v872
      %v879 = vsel %vm236, %v861, 0
      %881 = vmatprep.subr.bf16.mxu0 0
      %882 = vmatpush1.bf16.msra.mxu0 0
      %883 = vmatprep.subr.bf16.mxu0 0
      %884 = vmatpush1.bf16.msra.mxu0 0
      %885 = vmatprep.subr.bf16.mxu0 0
      %886 = vmatpush1.bf16.msra.mxu0 0
      %887 = vmatprep.subr.bf16.mxu0 0
      %888 = vmatpush1.bf16.msra.mxu0 0
      %889 = vmatprep.subr.bf16.mxu0 0
      %890 = vmatpush1.bf16.msra.mxu0 0
      %891 = vmatprep.subr.bf16.mxu0 0
      %892 = vmatpush1.bf16.msra.mxu0 0
      %893 = vmatprep.subr.bf16.mxu0 0
      %894 = vmatpush1.bf16.msra.mxu0 %v875
      %895 = vmatprep.subr.bf16.mxu0 0
      %896 = vmatpush1.bf16.msra.mxu0 %v874
      %897 = vmatprep.subr.bf16.mxu0 0
      %898 = vmatpush2.bf16.msra.mxu0 0
      %899 = vmatprep.subr.bf16.mxu0 0
      %900 = vmatpush2.bf16.msra.mxu0 0
      %901 = vmatprep.subr.bf16.mxu0 0
      %902 = vmatpush2.bf16.msra.mxu0 0
      %903 = vmatprep.subr.bf16.mxu0 0
      %904 = vmatpush2.bf16.msra.mxu0 0
      %905 = vmatprep.subr.bf16.mxu0 0
      %906 = vmatpush2.bf16.msra.mxu0 0
      %907 = vmatprep.subr.bf16.mxu0 0
      %908 = vmatpush2.bf16.msra.mxu0 0
      %909 = vmatprep.subr.bf16.mxu0 0
      %910 = vmatpush2.bf16.msra.mxu0 0
      %911 = vmatprep.subr.bf16.mxu0 0
      %912 = vmatpush2.bf16.msra.mxu0 0
      %913 = vmatprep.mubr.bf16.mxu0 0
      %914 = vmatmul.mubr.bf16.gmra.mxu0 %v879
      %v915 = vpop.f32.mrf.mxu0
      %v916 = vadd.f32 0.0, %v915
      %v917 = vpop.f32.mrf.mxu0
      %v918 = vpop.f32.mrf.mxu0
      %v919 = vpop.f32.mrf.mxu0
      %920 = vdwg.mxu0
      %v921 = vadd.f32 %v750, %v916
      %922 = vst [vmem:[%s212] sm:$0xff] %v921
      %p923 = scmp.lt.s32.totalorder %s15, 1
      %s924 = scalar_select %p923, %s15, 1
      %s925 = smul.addr %s924, 8
      %s926 = scalar_lea.vmem %s4, %s925
      // Predicated region
      $region37: #{clip_forward.29} parent=35 // pred_check
        %p927 = pneg %p127
      $region38: #{clip_forward.29} parent=35 // pred_check_branch
        %929 = sbr.rel (%p927) target = $region40
      $region39: #{clip_forward.29} parent=35 // pred_region
        _
      $region40: #{clip_forward.29} parent=35 // pred_fallthru
        _
    $region36: #{clip_forward.29} parent=5 // pred_fallthru
      _
    %p930 = scmp.le.s32.totalorder 2, %s10
    // Predicated region
    $region41: #{clip_forward.29} parent=5 // pred_check
      %p931 = pneg %p930
    $region42: #{clip_forward.29} parent=5 // pred_check_branch
      %933 = sbr.rel (%p931) target = $region44
    $region43: #{clip_forward.29} parent=5 // pred_region
      %s934 = ssub.s32 %s10, 2
      // Predicated region
      $region45: #{clip_forward.29} parent=43 // pred_check
        %p935 = pneg %p133
      $region46: #{clip_forward.29} parent=43 // pred_check_branch
        %937 = sbr.rel (%p935) target = $region48
      $region47: #{clip_forward.29} parent=43 // pred_region
        %p938 = scmp.lt.s32.totalorder %s16, 1
        %s939 = scalar_select %p938, %s16, 1
        %s940 = smul.addr %s939, 8
        %s941 = scalar_lea.vmem %s4, %s940
      $region48: #{clip_forward.29} parent=43 // pred_fallthru
        _
    $region44: #{clip_forward.29} parent=5 // pred_fallthru
      _
  $region6: #{clip_forward.29} parent=0 // loop_footer
    %s14 = sadd.s32 1, %s10
  $region7: #{clip_forward.29} parent=0 // loop_footer_branch
    %9 = sbr.rel target = $region3
  $region8: #{clip_forward.29} parent=0 // loop_exit
    _

// kernel: clip_forward.16
$region0: #{clip_forward.16}
  #allocation0 [shape = 'u32[]', space=smem, size = 0x4, offset = 0x4, fixed_abs, tag = 'smem constant byte address 0x4 - core index']
  #allocation1 [shape = 'u32[144,128]{1,0:T(1,128)}', space=vmem, size = 0x12000, scoped, tag = 'internal scratch']
  %s0 = inlined_call_operand.vmem [shape: f32[8,192], index: 0, kind: input, shape index: {}]
  %s1 = inlined_call_operand.vmem [shape: bf16[192,128], index: 1, kind: input, shape index: {}]
  %s2 = inlined_call_operand.vmem [shape: f32[8,128], index: 2, kind: output, shape index: {}]
  %s3 = sld [smem:[#allocation0]]
  $region18: #{clip_forward.16} parent=0
    _
  %s5 = ssub.s32 1, %s3
  %s6 = scalar_select 0, %s5, %s3
  // Predicated region
  $region2: #{clip_forward.16} parent=0 // pred_check
    _
  $region3: #{clip_forward.16} parent=0 // pred_check_branch
    %8 = sbr.rel (0) target = $region5
  $region4: #{clip_forward.16} parent=0 // pred_region
    _
  $region5: #{clip_forward.16} parent=0 // pred_fallthru
    _
  // Predicated region
  $region6: #{clip_forward.16} parent=0 // pred_check
    _
  $region7: #{clip_forward.16} parent=0 // pred_check_branch
    %10 = sbr.rel (0) target = $region9
  $region8: #{clip_forward.16} parent=0 // pred_region
    _
  $region9: #{clip_forward.16} parent=0 // pred_fallthru
    _
  %v12 = vld [vmem:[%s0] sm:$0xff]
  %v13 = vld [vmem:[%s0 + $0x8] sm:$0xff]
  %v14 = vpack.c.bf16 %v12, %v12
  %v15 = vpack.c.bf16 %v13, %v13
  %v16 = vld [vmem:[%s1] sm:$0xf]
  %v17 = vld [vmem:[%s1 + $0x4] sm:$0xf]
  %v18 = vld [vmem:[%s1 + $0x8] sm:$0xf]
  %v19 = vld [vmem:[%s1 + $0xc] sm:$0xf]
  %v20 = vld [vmem:[%s1 + $0x10] sm:$0xf]
  %v21 = vld [vmem:[%s1 + $0x14] sm:$0xf]
  %v22 = vld [vmem:[%s1 + $0x18] sm:$0xf]
  %v23 = vld [vmem:[%s1 + $0x1c] sm:$0xf]
  %v24 = vld [vmem:[%s1 + $0x20] sm:$0xf]
  %v25 = vld [vmem:[%s1 + $0x24] sm:$0xf]
  %v26 = vld [vmem:[%s1 + $0x28] sm:$0xf]
  %v27 = vld [vmem:[%s1 + $0x2c] sm:$0xf]
  %v28 = vld [vmem:[%s1 + $0x30] sm:$0xf]
  %v29 = vld [vmem:[%s1 + $0x34] sm:$0xf]
  %v30 = vld [vmem:[%s1 + $0x38] sm:$0xf]
  %v31 = vld [vmem:[%s1 + $0x3c] sm:$0xf]
  %v32 = vld [vmem:[%s1 + $0x40] sm:$0xf]
  %v33 = vld [vmem:[%s1 + $0x44] sm:$0xf]
  %v34 = vld [vmem:[%s1 + $0x48] sm:$0xf]
  %v35 = vld [vmem:[%s1 + $0x4c] sm:$0xf]
  %v36 = vld [vmem:[%s1 + $0x50] sm:$0xf]
  %v37 = vld [vmem:[%s1 + $0x54] sm:$0xf]
  %v38 = vld [vmem:[%s1 + $0x58] sm:$0xf]
  %v39 = vld [vmem:[%s1 + $0x5c] sm:$0xf]
  %v64 = vunpack.c.l.b16 %v16
  %v65 = vunpack.c.l.b16 %v17
  %v66 = vunpack.c.l.b16 %v18
  %v67 = vunpack.c.l.b16 %v19
  %v68 = vunpack.c.l.b16 %v20
  %v69 = vunpack.c.l.b16 %v21
  %v70 = vunpack.c.l.b16 %v22
  %v71 = vunpack.c.l.b16 %v23
  %v72 = vunpack.c.l.b16 %v24
  %v73 = vunpack.c.l.b16 %v25
  %v74 = vunpack.c.l.b16 %v26
  %v75 = vunpack.c.l.b16 %v27
  %v76 = vunpack.c.l.b16 %v28
  %v77 = vunpack.c.l.b16 %v29
  %v78 = vunpack.c.l.b16 %v30
  %v79 = vunpack.c.l.b16 %v31
  %v80 = vunpack.c.l.b16 %v32
  %v81 = vunpack.c.l.b16 %v33
  %v82 = vunpack.c.l.b16 %v34
  %v83 = vunpack.c.l.b16 %v35
  %v84 = vunpack.c.l.b16 %v36
  %v85 = vunpack.c.l.b16 %v37
  %v86 = vunpack.c.l.b16 %v38
  %v87 = vunpack.c.l.b16 %v39
  %v88 = vpack.c.b16 %v65, %v64
  %v89 = vpack.c.b16 %v67, %v66
  %v90 = vpack.c.b16 %v69, %v68
  %v91 = vpack.c.b16 %v71, %v70
  %v92 = vpack.c.b16 %v73, %v72
  %v93 = vpack.c.b16 %v75, %v74
  %v94 = vpack.c.b16 %v77, %v76
  %v95 = vpack.c.b16 %v79, %v78
  %v96 = vpack.c.b16 %v81, %v80
  %v97 = vpack.c.b16 %v83, %v82
  %v98 = vpack.c.b16 %v85, %v84
  %v99 = vpack.c.b16 %v87, %v86
  %vm112 = vcmask 523264
  %v114 = vsel %vm112, %v15, 0
  %116 = vmatprep.subr.bf16.mxu0 0
  %117 = vmatpush1.bf16.msra.mxu0 %v95
  %118 = vmatprep.subr.bf16.mxu0 0
  %119 = vmatpush1.bf16.msra.mxu0 %v94
  %120 = vmatprep.subr.bf16.mxu0 0
  %121 = vmatpush1.bf16.msra.mxu0 %v93
  %122 = vmatprep.subr.bf16.mxu0 0
  %123 = vmatpush1.bf16.msra.mxu0 %v92
  %124 = vmatprep.subr.bf16.mxu0 0
  %125 = vmatpush1.bf16.msra.mxu0 %v91
  %126 = vmatprep.subr.bf16.mxu0 0
  %127 = vmatpush1.bf16.msra.mxu0 %v90
  %128 = vmatprep.subr.bf16.mxu0 0
  %129 = vmatpush1.bf16.msra.mxu0 %v89
  %130 = vmatprep.subr.bf16.mxu0 0
  %131 = vmatpush1.bf16.msra.mxu0 %v88
  %132 = vmatprep.subr.bf16.mxu0 0
  %133 = vmatpush2.bf16.msra.mxu0 0
  %134 = vmatprep.subr.bf16.mxu0 0
  %135 = vmatpush2.bf16.msra.mxu0 0
  %136 = vmatprep.subr.bf16.mxu0 0
  %137 = vmatpush2.bf16.msra.mxu0 0
  %138 = vmatprep.subr.bf16.mxu0 0
  %139 = vmatpush2.bf16.msra.mxu0 0
  %140 = vmatprep.subr.bf16.mxu0 0
  %141 = vmatpush2.bf16.msra.mxu0 %v99
  %142 = vmatprep.subr.bf16.mxu0 0
  %143 = vmatpush2.bf16.msra.mxu0 %v98
  %144 = vmatprep.subr.bf16.mxu0 0
  %145 = vmatpush2.bf16.msra.mxu0 %v97
  %146 = vmatprep.subr.bf16.mxu0 0
  %147 = vmatpush2.bf16.msra.mxu0 %v96
  %148 = vmatprep.mubr.bf16.mxu0 %v114
  %149 = vmatmul.mubr.bf16.gmra.mxu0 %v14
  %v150 = vpop.f32.mrf.mxu0
  %v151 = vadd.f32 0.0, %v150
  %v152 = vpop.f32.mrf.mxu0
  %v153 = vpop.f32.mrf.mxu0
  %v154 = vpop.f32.mrf.mxu0
  %155 = vdwg.mxu0
  %156 = vst [vmem:[%s2] sm:$0xff] %v151
  // Predicated region
  $region10: #{clip_forward.16} parent=0 // pred_check
    _
  $region11: #{clip_forward.16} parent=0 // pred_check_branch
    %158 = sbr.rel (0) target = $region13
  $region12: #{clip_forward.16} parent=0 // pred_region
    _
  $region13: #{clip_forward.16} parent=0 // pred_fallthru
    _
  // Predicated region
  $region14: #{clip_forward.16} parent=0 // pred_check
    _
  $region15: #{clip_forward.16} parent=0 // pred_check_branch
    %160 = sbr.rel (0) target = $region17
  $region16: #{clip_forward.16} parent=0 // pred_region
    _
  $region17: #{clip_forward.16} parent=0 // pred_fallthru
    _

// kernel: clip_forward.17
$region0: #{clip_forward.17}
  #allocation0 [shape = 'u32[]', space=smem, size = 0x4, offset = 0x4, fixed_abs, tag = 'smem constant byte address 0x4 - core index']
  #allocation1 [shape = 'u32[144,128]{1,0:T(1,128)}', space=vmem, size = 0x12000, scoped, tag = 'internal scratch']
  %s0 = inlined_call_operand.vmem [shape: f32[16,128], index: 0, kind: input, shape index: {}]
  %s1 = inlined_call_operand.vmem [shape: f32[1,128], index: 1, kind: input, shape index: {}]
  %s2 = inlined_call_operand.vmem [shape: f32[1,128], index: 2, kind: input, shape index: {}]
  %s3 = inlined_call_operand.vmem [shape: f32[16,128], index: 3, kind: output, shape index: {}]
  %s4 = sld [smem:[#allocation0]]
  $region22: #{clip_forward.17} parent=0
    _
  %s6 = ssub.s32 1, %s4
  %s7 = scalar_select 0, %s6, %s4
  // Predicated region
  $region2: #{clip_forward.17} parent=0 // pred_check
    _
  $region3: #{clip_forward.17} parent=0 // pred_check_branch
    %9 = sbr.rel (0) target = $region5
  $region4: #{clip_forward.17} parent=0 // pred_region
    _
  $region5: #{clip_forward.17} parent=0 // pred_fallthru
    _
  // Predicated region
  $region6: #{clip_forward.17} parent=0 // pred_check
    _
  $region7: #{clip_forward.17} parent=0 // pred_check_branch
    %11 = sbr.rel (0) target = $region9
  $region8: #{clip_forward.17} parent=0 // pred_region
    _
  $region9: #{clip_forward.17} parent=0 // pred_fallthru
    _
  // Predicated region
  $region10: #{clip_forward.17} parent=0 // pred_check
    _
  $region11: #{clip_forward.17} parent=0 // pred_check_branch
    %13 = sbr.rel (0) target = $region13
  $region12: #{clip_forward.17} parent=0 // pred_region
    _
  $region13: #{clip_forward.17} parent=0 // pred_fallthru
    _
  %v14 = vld [vmem:[%s0] sm:$0xff]
  %v15 = vld [vmem:[%s0 + $0x8] sm:$0xff]
  %16 = vadd.xlane.f32.xlu0 %v14
  %v17 = vpop.xlane.xlu0 %16
  %18 = vadd.xlane.f32.xlu0 %v15
  %v19 = vpop.xlane.xlu0 %18
  %v20 = vrcp.pop 128.0
  %v21 = vmul.f32 %v17, %v20
  %v22 = vmul.f32 %v19, %v20
  %v23 = vsub.f32 %v14, %v21
  %v24 = vsub.f32 %v15, %v22
  %v25 = vmul.f32 %v23, %v23
  %v26 = vmul.f32 %v24, %v24
  %27 = vadd.xlane.f32.xlu0 %v25
  %v28 = vpop.xlane.xlu0 %27
  %29 = vadd.xlane.f32.xlu0 %v26
  %v30 = vpop.xlane.xlu0 %29
  %v31 = vmul.f32 %v28, %v20
  %v32 = vmul.f32 %v30, %v20
  %v33 = vadd.f32 %v31, 1e-05
  %v34 = vadd.f32 %v32, 1e-05
  %v35 = vrsqrt.pop %v33
  %v36 = vrsqrt.pop %v34
  %v37 = vmul.f32 %v23, %v35
  %v38 = vmul.f32 %v24, %v36
  %v39 = vld [vmem:[%s1] sm:$0x1]
  %v41 = vlaneseq
  %v42 = vshrl.u32 %v41, 7
  %v43 = vsub.s32 0, %v42
  %v44 = vrot.slane %v39, %v43
  %v46 = vmul.f32 %v37, %v44
  %v47 = vmul.f32 %v38, %v44
  %v48 = vld [vmem:[%s2] sm:$0x1]
  %v50 = vlaneseq
  %v51 = vshrl.u32 %v50, 7
  %v52 = vsub.s32 0, %v51
  %v53 = vrot.slane %v48, %v52
  %v55 = vadd.f32 %v46, %v53
  %v56 = vadd.f32 %v47, %v53
  %57 = vst [vmem:[%s3] sm:$0xff] %v55
  %58 = vst [vmem:[%s3 + $0x8] sm:$0xff] %v56
  // Predicated region
  $region14: #{clip_forward.17} parent=0 // pred_check
    _
  $region15: #{clip_forward.17} parent=0 // pred_check_branch
    %60 = sbr.rel (0) target = $region17
  $region16: #{clip_forward.17} parent=0 // pred_region
    _
  $region17: #{clip_forward.17} parent=0 // pred_fallthru
    _
  // Predicated region
  $region18: #{clip_forward.17} parent=0 // pred_check
    _
  $region19: #{clip_forward.17} parent=0 // pred_check_branch
    %62 = sbr.rel (0) target = $region21
  $region20: #{clip_forward.17} parent=0 // pred_region
    _
  $region21: #{clip_forward.17} parent=0 // pred_fallthru
    _

// kernel: clip_forward.19
$region0: #{clip_forward.19}
  #allocation0 [shape = 'u32[]', space=smem, size = 0x4, offset = 0x4, fixed_abs, tag = 'smem constant byte address 0x4 - core index']
  #allocation1 [shape = 'u32[144,128]{1,0:T(1,128)}', space=vmem, size = 0x12000, scoped, tag = 'internal scratch']
  %s0 = inlined_call_operand.vmem [shape: bf16[2,8,384], index: 0, kind: input, shape index: {}]
  %s1 = inlined_call_operand.vmem [shape: bf16[128,128], index: 1, kind: input, shape index: {}]
  %s2 = inlined_call_operand.vmem [shape: f32[1,128], index: 2, kind: input, shape index: {}]
  %s3 = inlined_call_operand.vmem [shape: f32[2,8,128], index: 3, kind: input, shape index: {}]
  %s4 = inlined_call_operand.vmem [shape: f32[2,8,128], index: 4, kind: output, shape index: {}]
  %s5 = sld [smem:[#allocation0]]
  $region49: #{clip_forward.19} parent=0
    _
  %s7 = ssub.s32 1, %s5
  %s8 = scalar_select 0, %s7, %s5
  loop: start=0, step=1, limit=4
  $region2: #{clip_forward.19} parent=0 // loop_pre_header
    _
  $region3: #{clip_forward.19} parent=0 // loop_header
    %s10 = sphi 0, %s14
    %p11 = scmp.ge.s32.totalorder %s10, 4
    %s20 = sphi 0, %s22
    %s23 = sphi 0, %s20
    %s24 = sphi 0, %s23
    %s40 = sphi 0, %s24
    %s44 = sphi 0, %s44
    %s46 = sphi 0, %s44
    %s47 = sphi 0, %s46
    %s61 = sphi 0, %s47
    %s65 = sphi 0, %s65
    %s67 = sphi 0, %s65
    %s68 = sphi 0, %s67
    %s82 = sphi 0, %s68
    %s88 = sphi 0, %s90
    %s91 = sphi 0, %s88
    %s92 = sphi 0, %s91
    %s108 = sphi 0, %s92
    %s114 = sphi 0, %s116
    %s117 = sphi 0, %s114
    %s118 = sphi 0, %s117
    %s134 = sphi 0, %s118
  $region4: #{clip_forward.19} parent=0 // loop_header_branch
    %13 = sbr.rel (%p11) target = $region8
  $region5: #{clip_forward.19} parent=0 // loop_body
    %s15 = ssub.s32 %s10, 1
    %s16 = ssub.s32 %s10, 2
    %s17 = sadd.s32 %s10, 1
    %s18 = ssub.s32 %s10, %s17
    %p19 = scmp.eq.s32.totalorder %s18, 0
    %s21 = sadd.s32 %s20, 1
    %s22 = scalar_select %p19, %s20, %s21
    %p25 = pneg %p19
    %p26 = scmp.eq.s32.totalorder %s10, 1
    %p27 = por %p25, %p26
    %p28 = scmp.ne.s32.totalorder %s20, %s23
    %p29 = scmp.eq.s32.totalorder %s10, 0
    %p30 = por %p28, %p29
    %p31 = scmp.ne.s32.totalorder %s20, %s23
    %p32 = scmp.eq.s32.totalorder %s15, 1
    %p33 = por %p31, %p32
    %p34 = scmp.ne.s32.totalorder %s23, %s24
    %p35 = scmp.eq.s32.totalorder %s15, 0
    %p36 = por %p34, %p35
    %p37 = scmp.ne.s32.totalorder %s23, %s24
    %p38 = scmp.eq.s32.totalorder %s16, 1
    %p39 = por %p37, %p38
    %p41 = scmp.ne.s32.totalorder %s24, %s40
    %p42 = scmp.eq.s32.totalorder %s16, 0
    %p43 = por %p41, %p42
    %s45 = sadd.s32 %s44, 1
    %p48 = scmp.eq.s32.totalorder %s10, 1
    %p49 = scmp.ne.s32.totalorder %s44, %s46
    %p50 = scmp.eq.s32.totalorder %s10, 0
    %p51 = por %p49, %p50
    %p52 = scmp.ne.s32.totalorder %s44, %s46
    %p53 = scmp.eq.s32.totalorder %s15, 1
    %p54 = por %p52, %p53
    %p55 = scmp.ne.s32.totalorder %s46, %s47
    %p56 = scmp.eq.s32.totalorder %s15, 0
    %p57 = por %p55, %p56
    %p58 = scmp.ne.s32.totalorder %s46, %s47
    %p59 = scmp.eq.s32.totalorder %s16, 1
    %p60 = por %p58, %p59
    %p62 = scmp.ne.s32.totalorder %s47, %s61
    %p63 = scmp.eq.s32.totalorder %s16, 0
    %p64 = por %p62, %p63
    %s66 = sadd.s32 %s65, 1
    %p69 = scmp.eq.s32.totalorder %s10, 1
    %p70 = scmp.ne.s32.totalorder %s65, %s67
    %p71 = scmp.eq.s32.totalorder %s10, 0
    %p72 = por %p70, %p71
    %p73 = scmp.ne.s32.totalorder %s65, %s67
    %p74 = scmp.eq.s32.totalorder %s15, 1
    %p75 = por %p73, %p74
    %p76 = scmp.ne.s32.totalorder %s67, %s68
    %p77 = scmp.eq.s32.totalorder %s15, 0
    %p78 = por %p76, %p77
    %p79 = scmp.ne.s32.totalorder %s67, %s68
    %p80 = scmp.eq.s32.totalorder %s16, 1
    %p81 = por %p79, %p80
    %p83 = scmp.ne.s32.totalorder %s68, %s82
    %p84 = scmp.eq.s32.totalorder %s16, 0
    %p85 = por %p83, %p84
    %s86 = ssub.s32 %s10, %s17
    %p87 = scmp.eq.s32.totalorder %s86, 0
    %s89 = sadd.s32 %s88, 1
    %s90 = scalar_select %p87, %s88, %s89
    %p93 = pneg %p87
    %p94 = scmp.eq.s32.totalorder %s10, 1
    %p95 = por %p93, %p94
    %p96 = scmp.ne.s32.totalorder %s88, %s91
    %p97 = scmp.eq.s32.totalorder %s10, 0
    %p98 = por %p96, %p97
    %p99 = scmp.ne.s32.totalorder %s88, %s91
    %p100 = scmp.eq.s32.totalorder %s15, 1
    %p101 = por %p99, %p100
    %p102 = scmp.ne.s32.totalorder %s91, %s92
    %p103 = scmp.eq.s32.totalorder %s15, 0
    %p104 = por %p102, %p103
    %p105 = scmp.ne.s32.totalorder %s91, %s92
    %p106 = scmp.eq.s32.totalorder %s16, 1
    %p107 = por %p105, %p106
    %p109 = scmp.ne.s32.totalorder %s92, %s108
    %p110 = scmp.eq.s32.totalorder %s16, 0
    %p111 = por %p109, %p110
    %s112 = ssub.s32 %s10, %s17
    %p113 = scmp.eq.s32.totalorder %s112, 0
    %s115 = sadd.s32 %s114, 1
    %s116 = scalar_select %p113, %s114, %s115
    %p119 = pneg %p113
    %p120 = scmp.eq.s32.totalorder %s10, 1
    %p121 = por %p119, %p120
    %p122 = scmp.ne.s32.totalorder %s114, %s117
    %p123 = scmp.eq.s32.totalorder %s10, 0
    %p124 = por %p122, %p123
    %p125 = scmp.ne.s32.totalorder %s114, %s117
    %p126 = scmp.eq.s32.totalorder %s15, 1
    %p127 = por %p125, %p126
    %p128 = scmp.ne.s32.totalorder %s117, %s118
    %p129 = scmp.eq.s32.totalorder %s15, 0
    %p130 = por %p128, %p129
    %p131 = scmp.ne.s32.totalorder %s117, %s118
    %p132 = scmp.eq.s32.totalorder %s16, 1
    %p133 = por %p131, %p132
    %p135 = scmp.ne.s32.totalorder %s118, %s134
    %p136 = scmp.eq.s32.totalorder %s16, 0
    %p137 = por %p135, %p136
    %p138 = scmp.le.s32.totalorder 1, %s10
    %p139 = scmp.lt.s32.totalorder %s10, 3
    %p140 = pnand %p138, %p139
    %p141 = pneg %p140
    // Predicated region
    $region9: #{clip_forward.19} parent=5 // pred_check
      _
    $region10: #{clip_forward.19} parent=5 // pred_check_branch
      %143 = sbr.rel (%p140) target = $region12
    $region11: #{clip_forward.19} parent=5 // pred_region
      %s144 = ssub.s32 %s10, 1
      // Predicated region
      $region13: #{clip_forward.19} parent=11 // pred_check
        %p145 = pneg %p57
      $region14: #{clip_forward.19} parent=11 // pred_check_branch
        %147 = sbr.rel (%p145) target = $region16
      $region15: #{clip_forward.19} parent=11 // pred_region
        _
      $region16: #{clip_forward.19} parent=11 // pred_fallthru
        _
      // Predicated region
      $region17: #{clip_forward.19} parent=11 // pred_check
        %p148 = pneg %p78
      $region18: #{clip_forward.19} parent=11 // pred_check_branch
        %150 = sbr.rel (%p148) target = $region20
      $region19: #{clip_forward.19} parent=11 // pred_region
        _
      $region20: #{clip_forward.19} parent=11 // pred_fallthru
        _
    $region12: #{clip_forward.19} parent=5 // pred_fallthru
      _
    %p151 = scmp.lt.s32.totalorder %s10, 2
    // Predicated region
    $region21: #{clip_forward.19} parent=5 // pred_check
      %p152 = pneg %p151
    $region22: #{clip_forward.19} parent=5 // pred_check_branch
      %154 = sbr.rel (%p152) target = $region24
    $region23: #{clip_forward.19} parent=5 // pred_region
      // Predicated region
      $region25: #{clip_forward.19} parent=23 // pred_check
        %p155 = pneg %p30
      $region26: #{clip_forward.19} parent=23 // pred_check_branch
        %157 = sbr.rel (%p155) target = $region28
      $region27: #{clip_forward.19} parent=23 // pred_region
        %p158 = scmp.lt.s32.totalorder %s10, 1
        %s159 = scalar_select %p158, %s10, 1
        %s160 = smul.addr %s159, 3
        %s161 = smul.addr %s160, 4
        %s162 = scalar_lea.vmem %s0, %s161
      $region28: #{clip_forward.19} parent=23 // pred_fallthru
        _
      // Predicated region
      $region29: #{clip_forward.19} parent=23 // pred_check
        %p163 = pneg %p98
      $region30: #{clip_forward.19} parent=23 // pred_check_branch
        %165 = sbr.rel (%p163) target = $region32
      $region31: #{clip_forward.19} parent=23 // pred_region
        %p166 = scmp.lt.s32.totalorder %s10, 1
        %s167 = scalar_select %p166, %s10, 1
        %s168 = smul.addr %s167, 8
        %s169 = scalar_lea.vmem %s3, %s168
      $region32: #{clip_forward.19} parent=23 // pred_fallthru
        _
    $region24: #{clip_forward.19} parent=5 // pred_fallthru
      _
    %p170 = scmp.le.s32.totalorder 1, %s10
    %p171 = scmp.lt.s32.totalorder %s10, 3
    %p172 = pnand %p170, %p171
    %p173 = pneg %p172
    // Predicated region
    $region33: #{clip_forward.19} parent=5 // pred_check
      _
    $region34: #{clip_forward.19} parent=5 // pred_check_branch
      %175 = sbr.rel (%p172) target = $region36
    $region35: #{clip_forward.19} parent=5 // pred_region
      %s176 = ssub.s32 %s10, 1
      %p177 = scmp.lt.s32.totalorder %s15, 1
      %s178 = scalar_select %p177, %s15, 1
      %s179 = smul.addr %s178, 3
      %s180 = smul.addr %s179, 4
      %s181 = scalar_lea.vmem %s0, %s180
      %p182 = pneg %p36
      %p183 = pneg %p33
      %p184 = pneg %p57
      %p185 = pneg %p54
      %p186 = pneg %p78
      %p187 = pneg %p75
      %p188 = scmp.lt.s32.totalorder %s15, 1
      %s189 = scalar_select %p188, %s15, 1
      %s190 = smul.addr %s189, 8
      %s191 = scalar_lea.vmem %s3, %s190
      %p192 = pneg %p104
      %p193 = pneg %p101
      %p194 = pneg %p130
      %p195 = pneg %p127
      %p196 = scmp.lt.s32.totalorder %s15, 1
      %s197 = scalar_select %p196, %s15, 1
      %s198 = smul.addr %s197, 8
      %s199 = scalar_lea.vmem %s4, %s198
      %p200 = scmp.lt.s32.totalorder %s15, 1
      %s201 = scalar_select %p200, %s15, 1
      %s202 = smul.addr %s201, 3
      %s203 = smul.addr %s202, 4
      %s204 = scalar_lea.vmem %s0, %s203
      %p205 = scmp.lt.s32.totalorder %s15, 1
      %s206 = scalar_select %p205, %s15, 1
      %s207 = smul.addr %s206, 8
      %s208 = scalar_lea.vmem %s3, %s207
      %p209 = scmp.lt.s32.totalorder %s15, 1
      %s210 = scalar_select %p209, %s15, 1
      %s211 = smul.addr %s210, 8
      %s212 = scalar_lea.vmem %s4, %s211
      %v214 = vld [vmem:[%s204] sm:$0xff]
      %v215 = vld [vmem:[%s204 + $0x8] sm:$0xf]
      %v216 = vlaneseq
      %v217 = vand.u32 %v216, 127
      %vm218 = vcmp.lt.s32.totalorder %v217, 5
      %v219 = vsel %vm218, 0.0, -1e+30
      %v220 = vld [vmem:[%s208] sm:$0xff]
      %v221 = vld [vmem:[%s2] sm:$0x1]
      %v223 = vlaneseq
      %v224 = vshrl.u32 %v223, 7
      %v225 = vsub.s32 0, %v224
      %v226 = vrot.slane %v221, %v225
      %v228 = vadd.f32 %v220, %v226
      %v230 = vunpack.c.h.b16 %v214
      %v231 = vpack.c.b16 %v230, %v230
      %vm232 = vcmask 523264
      %v234 = vsel %vm232, %v214, 0
      %v237 = vsel %vm232, %v231, 0
      %239 = vmatprep.subr.bf16.mxu0 0
      %240 = vmatpush1.bf16.xpose.msra.mxu0 0
      %241 = vmatprep.subr.bf16.mxu0 0
      %242 = vmatpush1.bf16.xpose.msra.mxu0 0
      %243 = vmatprep.subr.bf16.mxu0 0
      %244 = vmatpush1.bf16.xpose.msra.mxu0 0
      %245 = vmatprep.subr.bf16.mxu0 0
      %246 = vmatpush1.bf16.xpose.msra.mxu0 0
      %247 = vmatprep.subr.bf16.mxu0 0
      %248 = vmatpush1.bf16.xpose.msra.mxu0 0
      %249 = vmatprep.subr.bf16.mxu0 0
      %250 = vmatpush1.bf16.xpose.msra.mxu0 0
      %251 = vmatprep.subr.bf16.mxu0 0
      %252 = vmatpush1.bf16.xpose.msra.mxu0 0
      %253 = vmatprep.subr.bf16.mxu0 0
      %254 = vmatpush1.bf16.xpose.msra.mxu0 %v237
      %255 = vmatprep.subr.bf16.mxu0 0
      %256 = vmatpush2.bf16.xpose.msra.mxu0 0
      %257 = vmatprep.subr.bf16.mxu0 0
      %258 = vmatpush2.bf16.xpose.msra.mxu0 0
      %259 = vmatprep.subr.bf16.mxu0 0
      %260 = vmatpush2.bf16.xpose.msra.mxu0 0
      %261 = vmatprep.subr.bf16.mxu0 0
      %262 = vmatpush2.bf16.xpose.msra.mxu0 0
      %263 = vmatprep.subr.bf16.mxu0 0
      %264 = vmatpush2.bf16.xpose.msra.mxu0 0
      %265 = vmatprep.subr.bf16.mxu0 0
      %266 = vmatpush2.bf16.xpose.msra.mxu0 0
      %267 = vmatprep.subr.bf16.mxu0 0
      %268 = vmatpush2.bf16.xpose.msra.mxu0 0
      %269 = vmatprep.subr.bf16.mxu0 0
      %270 = vmatpush2.bf16.xpose.msra.mxu0 0
      %271 = vmatprep.mubr.bf16.mxu0 0
      %272 = vmatmul.mubr.bf16.gmra.mxu0 %v234
      %v273 = vpop.f32.mrf.mxu0
      %v274 = vadd.f32 %v219, %v273
      %v275 = vpop.f32.mrf.mxu0
      %v276 = vpop.f32.mrf.mxu0
      %v277 = vpop.f32.mrf.mxu0
      %278 = vdwg.mxu0
      %vm279 = vcmask 64512
      %v280 = vsel %vm279, %v274, -inf
      %281 = vmax.xlane.f32.xlu0 %v280
      %v282 = vpop.xlane.xlu0 %281
      %v283 = vsub.f32 %v274, %v282
      %v284 = vmul.f32 %v283, 1.442695
      %v285 = vpow.pop %v284
      %v286 = vsel %vm279, %v285, 0.0
      %287 = vadd.xlane.f32.xlu0 %v286
      %v288 = vpop.xlane.xlu0 %287
      %v289 = vrcp.pop %v288
      %v290 = vmul.f32 %v285, %v289
      %v291 = vpack.c.bf16 %v290, %v290
      %v293 = vsel %vm279, %v291, 0
      %vm295 = vcmask 1043456
      %v297 = vsel %vm295, %v215, 0
      %299 = vmatprep.subr.bf16.mxu0 0
      %300 = vmatpush1.bf16.msra.mxu0 0
      %301 = vmatprep.subr.bf16.mxu0 0
      %302 = vmatpush1.bf16.msra.mxu0 0
      %303 = vmatprep.subr.bf16.mxu0 0
      %304 = vmatpush1.bf16.msra.mxu0 0
      %305 = vmatprep.subr.bf16.mxu0 0
      %306 = vmatpush1.bf16.msra.mxu0 0
      %307 = vmatprep.subr.bf16.mxu0 0
      %308 = vmatpush1.bf16.msra.mxu0 0
      %309 = vmatprep.subr.bf16.mxu0 0
      %310 = vmatpush1.bf16.msra.mxu0 0
      %311 = vmatprep.subr.bf16.mxu0 0
      %312 = vmatpush1.bf16.msra.mxu0 0
      %313 = vmatprep.subr.bf16.mxu0 0
      %314 = vmatpush1.bf16.msra.mxu0 %v297
      %315 = vmatprep.subr.bf16.mxu0 0
      %316 = vmatpush2.bf16.msra.mxu0 0
      %317 = vmatprep.subr.bf16.mxu0 0
      %318 = vmatpush2.bf16.msra.mxu0 0
      %319 = vmatprep.subr.bf16.mxu0 0
      %320 = vmatpush2.bf16.msra.mxu0 0
      %321 = vmatprep.subr.bf16.mxu0 0
      %322 = vmatpush2.bf16.msra.mxu0 0
      %323 = vmatprep.subr.bf16.mxu0 0
      %324 = vmatpush2.bf16.msra.mxu0 0
      %325 = vmatprep.subr.bf16.mxu0 0
      %326 = vmatpush2.bf16.msra.mxu0 0
      %327 = vmatprep.subr.bf16.mxu0 0
      %328 = vmatpush2.bf16.msra.mxu0 0
      %329 = vmatprep.subr.bf16.mxu0 0
      %330 = vmatpush2.bf16.msra.mxu0 0
      %331 = vmatprep.mubr.bf16.mxu0 0
      %332 = vmatmul.mubr.bf16.gmra.mxu0 %v293
      %v333 = vpop.f32.mrf.mxu0
      %v334 = vadd.f32 0.0, %v333
      %v335 = vpop.f32.mrf.mxu0
      %v336 = vpop.f32.mrf.mxu0
      %v337 = vpop.f32.mrf.mxu0
      %338 = vdwg.mxu0
      %v339 = vpack.c.bf16 %v334, %v334
      %v340 = vld [vmem:[%s1] sm:$0xf]
      %v341 = vld [vmem:[%s1 + $0x4] sm:$0xf]
      %v342 = vld [vmem:[%s1 + $0x8] sm:$0xf]
      %v343 = vld [vmem:[%s1 + $0xc] sm:$0xf]
      %v344 = vld [vmem:[%s1 + $0x10] sm:$0xf]
      %v345 = vld [vmem:[%s1 + $0x14] sm:$0xf]
      %v346 = vld [vmem:[%s1 + $0x18] sm:$0xf]
      %v347 = vld [vmem:[%s1 + $0x1c] sm:$0xf]
      %v356 = vunpack.c.l.b16 %v340
      %v357 = vunpack.c.l.b16 %v341
      %v358 = vunpack.c.l.b16 %v342
      %v359 = vunpack.c.l.b16 %v343
      %v360 = vunpack.c.l.b16 %v344
      %v361 = vunpack.c.l.b16 %v345
      %v362 = vunpack.c.l.b16 %v346
      %v363 = vunpack.c.l.b16 %v347
      %v364 = vpack.c.b16 %v357, %v356
      %v365 = vpack.c.b16 %v359, %v358
      %v366 = vpack.c.b16 %v361, %v360
      %v367 = vpack.c.b16 %v363, %v362
      %v373 = vsel %vm232, %v339, 0
      %375 = vmatprep.subr.bf16.mxu0 0
      %376 = vmatpush1.bf16.msra.mxu0 0
      %377 = vmatprep.subr.bf16.mxu0 0
      %378 = vmatpush1.bf16.msra.mxu0 0
      %379 = vmatprep.subr.bf16.mxu0 0
      %380 = vmatpush1.bf16.msra.mxu0 0
      %381 = vmatprep.subr.bf16.mxu0 0
      %382 = vmatpush1.bf16.msra.mxu0 0
      %383 = vmatprep.subr.bf16.mxu0 0
      %384 = vmatpush1.bf16.msra.mxu0 %v367
      %385 = vmatprep.subr.bf16.mxu0 0
      %386 = vmatpush1.bf16.msra.mxu0 %v366
      %387 = vmatprep.subr.bf16.mxu0 0
      %388 = vmatpush1.bf16.msra.mxu0 %v365
      %389 = vmatprep.subr.bf16.mxu0 0
      %390 = vmatpush1.bf16.msra.mxu0 %v364
      %391 = vmatprep.subr.bf16.mxu0 0
      %392 = vmatpush2.bf16.msra.mxu0 0
      %393 = vmatprep.subr.bf16.mxu0 0
      %394 = vmatpush2.bf16.msra.mxu0 0
      %395 = vmatprep.subr.bf16.mxu0 0
      %396 = vmatpush2.bf16.msra.mxu0 0
      %397 = vmatprep.subr.bf16.mxu0 0
      %398 = vmatpush2.bf16.msra.mxu0 0
      %399 = vmatprep.subr.bf16.mxu0 0
      %400 = vmatpush2.bf16.msra.mxu0 0
      %401 = vmatprep.subr.bf16.mxu0 0
      %402 = vmatpush2.bf16.msra.mxu0 0
      %403 = vmatprep.subr.bf16.mxu0 0
      %404 = vmatpush2.bf16.msra.mxu0 0
      %405 = vmatprep.subr.bf16.mxu0 0
      %406 = vmatpush2.bf16.msra.mxu0 0
      %407 = vmatprep.mubr.bf16.mxu0 0
      %408 = vmatmul.mubr.bf16.gmra.mxu0 %v373
      %v409 = vpop.f32.mrf.mxu0
      %v410 = vadd.f32 0.0, %v409
      %v411 = vpop.f32.mrf.mxu0
      %v412 = vpop.f32.mrf.mxu0
      %v413 = vpop.f32.mrf.mxu0
      %414 = vdwg.mxu0
      %v415 = vadd.f32 %v228, %v410
      %v416 = vunpack.c.l.b16 %v214
      %v417 = vpack.c.b16 %v416, %v416
      %418 = vrot.lane.b32.xlu0 %v417, 64
      %v419 = vpop.permute.xlu0 %418
      %420 = vrot.lane.b32.xlu0 %v231, 64
      %v421 = vpop.permute.xlu0 %420
      %v423 = vsel %vm232, %v419, 0
      %v426 = vsel %vm232, %v421, 0
      %428 = vmatprep.subr.bf16.mxu0 0
      %429 = vmatpush1.bf16.xpose.msra.mxu0 0
      %430 = vmatprep.subr.bf16.mxu0 0
      %431 = vmatpush1.bf16.xpose.msra.mxu0 0
      %432 = vmatprep.subr.bf16.mxu0 0
      %433 = vmatpush1.bf16.xpose.msra.mxu0 0
      %434 = vmatprep.subr.bf16.mxu0 0
      %435 = vmatpush1.bf16.xpose.msra.mxu0 0
      %436 = vmatprep.subr.bf16.mxu0 0
      %437 = vmatpush1.bf16.xpose.msra.mxu0 0
      %438 = vmatprep.subr.bf16.mxu0 0
      %439 = vmatpush1.bf16.xpose.msra.mxu0 0
      %440 = vmatprep.subr.bf16.mxu0 0
      %441 = vmatpush1.bf16.xpose.msra.mxu0 0
      %442 = vmatprep.subr.bf16.mxu0 0
      %443 = vmatpush1.bf16.xpose.msra.mxu0 %v426
      %444 = vmatprep.subr.bf16.mxu0 0
      %445 = vmatpush2.bf16.xpose.msra.mxu0 0
      %446 = vmatprep.subr.bf16.mxu0 0
      %447 = vmatpush2.bf16.xpose.msra.mxu0 0
      %448 = vmatprep.subr.bf16.mxu0 0
      %449 = vmatpush2.bf16.xpose.msra.mxu0 0
      %450 = vmatprep.subr.bf16.mxu0 0
      %451 = vmatpush2.bf16.xpose.msra.mxu0 0
      %452 = vmatprep.subr.bf16.mxu0 0
      %453 = vmatpush2.bf16.xpose.msra.mxu0 0
      %454 = vmatprep.subr.bf16.mxu0 0
      %455 = vmatpush2.bf16.xpose.msra.mxu0 0
      %456 = vmatprep.subr.bf16.mxu0 0
      %457 = vmatpush2.bf16.xpose.msra.mxu0 0
      %458 = vmatprep.subr.bf16.mxu0 0
      %459 = vmatpush2.bf16.xpose.msra.mxu0 0
      %460 = vmatprep.mubr.bf16.mxu0 0
      %461 = vmatmul.mubr.bf16.gmra.mxu0 %v423
      %v462 = vpop.f32.mrf.mxu0
      %v463 = vadd.f32 %v219, %v462
      %v464 = vpop.f32.mrf.mxu0
      %v465 = vpop.f32.mrf.mxu0
      %v466 = vpop.f32.mrf.mxu0
      %467 = vdwg.mxu0
      %v468 = vsel %vm279, %v463, -inf
      %469 = vmax.xlane.f32.xlu0 %v468
      %v470 = vpop.xlane.xlu0 %469
      %v471 = vsub.f32 %v463, %v470
      %v472 = vmul.f32 %v471, 1.442695
      %v473 = vpow.pop %v472
      %v474 = vsel %vm279, %v473, 0.0
      %475 = vadd.xlane.f32.xlu0 %v474
      %v476 = vpop.xlane.xlu0 %475
      %v477 = vrcp.pop %v476
      %v478 = vmul.f32 %v473, %v477
      %v479 = vpack.c.bf16 %v478, %v478
      %v481 = vunpack.c.l.b16 %v215
      %v482 = vpack.c.b16 %v481, %v481
      %483 = vrot.lane.b32.xlu0 %v482, 64
      %v484 = vpop.permute.xlu0 %483
      %v486 = vsel %vm279, %v479, 0
      %v489 = vsel %vm295, %v484, 0
      %491 = vmatprep.subr.bf16.mxu0 0
      %492 = vmatpush1.bf16.msra.mxu0 0
      %493 = vmatprep.subr.bf16.mxu0 0
      %494 = vmatpush1.bf16.msra.mxu0 0
      %495 = vmatprep.subr.bf16.mxu0 0
      %496 = vmatpush1.bf16.msra.mxu0 0
      %497 = vmatprep.subr.bf16.mxu0 0
      %498 = vmatpush1.bf16.msra.mxu0 0
      %499 = vmatprep.subr.bf16.mxu0 0
      %500 = vmatpush1.bf16.msra.mxu0 0
      %501 = vmatprep.subr.bf16.mxu0 0
      %502 = vmatpush1.bf16.msra.mxu0 0
      %503 = vmatprep.subr.bf16.mxu0 0
      %504 = vmatpush1.bf16.msra.mxu0 0
      %505 = vmatprep.subr.bf16.mxu0 0
      %506 = vmatpush1.bf16.msra.mxu0 %v489
      %507 = vmatprep.subr.bf16.mxu0 0
      %508 = vmatpush2.bf16.msra.mxu0 0
      %509 = vmatprep.subr.bf16.mxu0 0
      %510 = vmatpush2.bf16.msra.mxu0 0
      %511 = vmatprep.subr.bf16.mxu0 0
      %512 = vmatpush2.bf16.msra.mxu0 0
      %513 = vmatprep.subr.bf16.mxu0 0
      %514 = vmatpush2.bf16.msra.mxu0 0
      %515 = vmatprep.subr.bf16.mxu0 0
      %516 = vmatpush2.bf16.msra.mxu0 0
      %517 = vmatprep.subr.bf16.mxu0 0
      %518 = vmatpush2.bf16.msra.mxu0 0
      %519 = vmatprep.subr.bf16.mxu0 0
      %520 = vmatpush2.bf16.msra.mxu0 0
      %521 = vmatprep.subr.bf16.mxu0 0
      %522 = vmatpush2.bf16.msra.mxu0 0
      %523 = vmatprep.mubr.bf16.mxu0 0
      %524 = vmatmul.mubr.bf16.gmra.mxu0 %v486
      %v525 = vpop.f32.mrf.mxu0
      %v526 = vadd.f32 0.0, %v525
      %v527 = vpop.f32.mrf.mxu0
      %v528 = vpop.f32.mrf.mxu0
      %v529 = vpop.f32.mrf.mxu0
      %530 = vdwg.mxu0
      %v531 = vpack.c.bf16 %v526, %v526
      %v532 = vld [vmem:[%s1 + $0x20] sm:$0xf]
      %v533 = vld [vmem:[%s1 + $0x24] sm:$0xf]
      %v534 = vld [vmem:[%s1 + $0x28] sm:$0xf]
      %v535 = vld [vmem:[%s1 + $0x2c] sm:$0xf]
      %v536 = vld [vmem:[%s1 + $0x30] sm:$0xf]
      %v537 = vld [vmem:[%s1 + $0x34] sm:$0xf]
      %v538 = vld [vmem:[%s1 + $0x38] sm:$0xf]
      %v539 = vld [vmem:[%s1 + $0x3c] sm:$0xf]
      %v548 = vunpack.c.l.b16 %v532
      %v549 = vunpack.c.l.b16 %v533
      %v550 = vunpack.c.l.b16 %v534
      %v551 = vunpack.c.l.b16 %v535
      %v552 = vunpack.c.l.b16 %v536
      %v553 = vunpack.c.l.b16 %v537
      %v554 = vunpack.c.l.b16 %v538
      %v555 = vunpack.c.l.b16 %v539
      %v556 = vpack.c.b16 %v549, %v548
      %v557 = vpack.c.b16 %v551, %v550
      %v558 = vpack.c.b16 %v553, %v552
      %v559 = vpack.c.b16 %v555, %v554
      %v565 = vsel %vm232, %v531, 0
      %567 = vmatprep.subr.bf16.mxu0 0
      %568 = vmatpush1.bf16.msra.mxu0 0
      %569 = vmatprep.subr.bf16.mxu0 0
      %570 = vmatpush1.bf16.msra.mxu0 0
      %571 = vmatprep.subr.bf16.mxu0 0
      %572 = vmatpush1.bf16.msra.mxu0 0
      %573 = vmatprep.subr.bf16.mxu0 0
      %574 = vmatpush1.bf16.msra.mxu0 0
      %575 = vmatprep.subr.bf16.mxu0 0
      %576 = vmatpush1.bf16.msra.mxu0 %v559
      %577 = vmatprep.subr.bf16.mxu0 0
      %578 = vmatpush1.bf16.msra.mxu0 %v558
      %579 = vmatprep.subr.bf16.mxu0 0
      %580 = vmatpush1.bf16.msra.mxu0 %v557
      %581 = vmatprep.subr.bf16.mxu0 0
      %582 = vmatpush1.bf16.msra.mxu0 %v556
      %583 = vmatprep.subr.bf16.mxu0 0
      %584 = vmatpush2.bf16.msra.mxu0 0
      %585 = vmatprep.subr.bf16.mxu0 0
      %586 = vmatpush2.bf16.msra.mxu0 0
      %587 = vmatprep.subr.bf16.mxu0 0
      %588 = vmatpush2.bf16.msra.mxu0 0
      %589 = vmatprep.subr.bf16.mxu0 0
      %590 = vmatpush2.bf16.msra.mxu0 0
      %591 = vmatprep.subr.bf16.mxu0 0
      %592 = vmatpush2.bf16.msra.mxu0 0
      %593 = vmatprep.subr.bf16.mxu0 0
      %594 = vmatpush2.bf16.msra.mxu0 0
      %595 = vmatprep.subr.bf16.mxu0 0
      %596 = vmatpush2.bf16.msra.mxu0 0
      %597 = vmatprep.subr.bf16.mxu0 0
      %598 = vmatpush2.bf16.msra.mxu0 0
      %599 = vmatprep.mubr.bf16.mxu0 0
      %600 = vmatmul.mubr.bf16.gmra.mxu0 %v565
      %v601 = vpop.f32.mrf.mxu0
      %v602 = vadd.f32 0.0, %v601
      %v603 = vpop.f32.mrf.mxu0
      %v604 = vpop.f32.mrf.mxu0
      %v605 = vpop.f32.mrf.mxu0
      %606 = vdwg.mxu0
      %v607 = vadd.f32 %v415, %v602
      %608 = vst [vmem:[%s212] sm:$0xff] %v607
      %p609 = scmp.lt.s32.totalorder %s15, 1
      %s610 = scalar_select %p609, %s15, 1
      %s611 = smul.addr %s610, 8
      %s612 = scalar_lea.vmem %s4, %s611
      // Predicated region
      $region37: #{clip_forward.19} parent=35 // pred_check
        %p613 = pneg %p127
      $region38: #{clip_forward.19} parent=35 // pred_check_branch
        %615 = sbr.rel (%p613) target = $region40
      $region39: #{clip_forward.19} parent=35 // pred_region
        _
      $region40: #{clip_forward.19} parent=35 // pred_fallthru
        _
    $region36: #{clip_forward.19} parent=5 // pred_fallthru
      _
    %p616 = scmp.le.s32.totalorder 2, %s10
    // Predicated region
    $region41: #{clip_forward.19} parent=5 // pred_check
      %p617 = pneg %p616
    $region42: #{clip_forward.19} parent=5 // pred_check_branch
      %619 = sbr.rel (%p617) target = $region44
    $region43: #{clip_forward.19} parent=5 // pred_region
      %s620 = ssub.s32 %s10, 2
      // Predicated region
      $region45: #{clip_forward.19} parent=43 // pred_check
        %p621 = pneg %p133
      $region46: #{clip_forward.19} parent=43 // pred_check_branch
        %623 = sbr.rel (%p621) target = $region48
      $region47: #{clip_forward.19} parent=43 // pred_region
        %p624 = scmp.lt.s32.totalorder %s16, 1
        %s625 = scalar_select %p624, %s16, 1
        %s626 = smul.addr %s625, 8
        %s627 = scalar_lea.vmem %s4, %s626
      $region48: #{clip_forward.19} parent=43 // pred_fallthru
        _
    $region44: #{clip_forward.19} parent=5 // pred_fallthru
      _
  $region6: #{clip_forward.19} parent=0 // loop_footer
    %s14 = sadd.s32 1, %s10
  $region7: #{clip_forward.19} parent=0 // loop_footer_branch
    %9 = sbr.rel target = $region3
  $region8: #{clip_forward.19} parent=0 // loop_exit
    _

// kernel: clip_forward.24
$region0: #{clip_forward.24}
  #allocation0 [shape = 'u32[]', space=smem, size = 0x4, offset = 0x4, fixed_abs, tag = 'smem constant byte address 0x4 - core index']
  #allocation1 [shape = 'u32[144,128]{1,0:T(1,128)}', space=vmem, size = 0x12000, scoped, tag = 'internal scratch']
  %s0 = inlined_call_operand.vmem [shape: f32[16,128], index: 0, kind: input, shape index: {}]
  %s1 = inlined_call_operand.vmem [shape: f32[1,128], index: 1, kind: input, shape index: {}]
  %s2 = inlined_call_operand.vmem [shape: f32[1,128], index: 2, kind: input, shape index: {}]
  %s3 = inlined_call_operand.vmem [shape: bf16[128,128], index: 3, kind: input, shape index: {}]
  %s4 = inlined_call_operand.vmem [shape: f32[1,128], index: 4, kind: input, shape index: {}]
  %s5 = inlined_call_operand.vmem [shape: f32[16,128], index: 5, kind: output, shape index: {}]
  %s6 = sld [smem:[#allocation0]]
  $region30: #{clip_forward.24} parent=0
    _
  %s8 = ssub.s32 1, %s6
  %s9 = scalar_select 0, %s8, %s6
  // Predicated region
  $region2: #{clip_forward.24} parent=0 // pred_check
    _
  $region3: #{clip_forward.24} parent=0 // pred_check_branch
    %11 = sbr.rel (0) target = $region5
  $region4: #{clip_forward.24} parent=0 // pred_region
    _
  $region5: #{clip_forward.24} parent=0 // pred_fallthru
    _
  // Predicated region
  $region6: #{clip_forward.24} parent=0 // pred_check
    _
  $region7: #{clip_forward.24} parent=0 // pred_check_branch
    %13 = sbr.rel (0) target = $region9
  $region8: #{clip_forward.24} parent=0 // pred_region
    _
  $region9: #{clip_forward.24} parent=0 // pred_fallthru
    _
  // Predicated region
  $region10: #{clip_forward.24} parent=0 // pred_check
    _
  $region11: #{clip_forward.24} parent=0 // pred_check_branch
    %15 = sbr.rel (0) target = $region13
  $region12: #{clip_forward.24} parent=0 // pred_region
    _
  $region13: #{clip_forward.24} parent=0 // pred_fallthru
    _
  // Predicated region
  $region14: #{clip_forward.24} parent=0 // pred_check
    _
  $region15: #{clip_forward.24} parent=0 // pred_check_branch
    %17 = sbr.rel (0) target = $region17
  $region16: #{clip_forward.24} parent=0 // pred_region
    _
  $region17: #{clip_forward.24} parent=0 // pred_fallthru
    _
  // Predicated region
  $region18: #{clip_forward.24} parent=0 // pred_check
    _
  $region19: #{clip_forward.24} parent=0 // pred_check_branch
    %19 = sbr.rel (0) target = $region21
  $region20: #{clip_forward.24} parent=0 // pred_region
    _
  $region21: #{clip_forward.24} parent=0 // pred_fallthru
    _
  %v21 = vld [vmem:[%s0] sm:$0xff]
  %v22 = vld [vmem:[%s0 + $0x8] sm:$0xff]
  %23 = vadd.xlane.f32.xlu0 %v21
  %v24 = vpop.xlane.xlu0 %23
  %25 = vadd.xlane.f32.xlu0 %v22
  %v26 = vpop.xlane.xlu0 %25
  %v27 = vrcp.pop 128.0
  %v28 = vmul.f32 %v24, %v27
  %v29 = vmul.f32 %v26, %v27
  %v30 = vsub.f32 %v21, %v28
  %v31 = vsub.f32 %v22, %v29
  %v32 = vmul.f32 %v30, %v30
  %v33 = vmul.f32 %v31, %v31
  %34 = vadd.xlane.f32.xlu0 %v32
  %v35 = vpop.xlane.xlu0 %34
  %36 = vadd.xlane.f32.xlu0 %v33
  %v37 = vpop.xlane.xlu0 %36
  %v38 = vmul.f32 %v35, %v27
  %v39 = vmul.f32 %v37, %v27
  %v40 = vadd.f32 %v38, 1e-05
  %v41 = vadd.f32 %v39, 1e-05
  %v42 = vrsqrt.pop %v40
  %v43 = vrsqrt.pop %v41
  %v44 = vmul.f32 %v30, %v42
  %v45 = vmul.f32 %v31, %v43
  %v46 = vld [vmem:[%s1] sm:$0x1]
  %v48 = vlaneseq
  %v49 = vshrl.u32 %v48, 7
  %v50 = vsub.s32 0, %v49
  %v51 = vrot.slane %v46, %v50
  %v53 = vmul.f32 %v44, %v51
  %v54 = vmul.f32 %v45, %v51
  %v55 = vld [vmem:[%s2] sm:$0x1]
  %v57 = vlaneseq
  %v58 = vshrl.u32 %v57, 7
  %v59 = vsub.s32 0, %v58
  %v60 = vrot.slane %v55, %v59
  %v62 = vadd.f32 %v53, %v60
  %v63 = vadd.f32 %v54, %v60
  %v64 = vpack.c.bf16 %v63, %v62
  %v65 = vld [vmem:[%s3] sm:$0xf]
  %v66 = vld [vmem:[%s3 + $0x4] sm:$0xf]
  %v67 = vld [vmem:[%s3 + $0x8] sm:$0xf]
  %v68 = vld [vmem:[%s3 + $0xc] sm:$0xf]
  %v69 = vld [vmem:[%s3 + $0x10] sm:$0xf]
  %v70 = vld [vmem:[%s3 + $0x14] sm:$0xf]
  %v71 = vld [vmem:[%s3 + $0x18] sm:$0xf]
  %v72 = vld [vmem:[%s3 + $0x1c] sm:$0xf]
  %v73 = vld [vmem:[%s3 + $0x20] sm:$0xf]
  %v74 = vld [vmem:[%s3 + $0x24] sm:$0xf]
  %v75 = vld [vmem:[%s3 + $0x28] sm:$0xf]
  %v76 = vld [vmem:[%s3 + $0x2c] sm:$0xf]
  %v77 = vld [vmem:[%s3 + $0x30] sm:$0xf]
  %v78 = vld [vmem:[%s3 + $0x34] sm:$0xf]
  %v79 = vld [vmem:[%s3 + $0x38] sm:$0xf]
  %v80 = vld [vmem:[%s3 + $0x3c] sm:$0xf]
  %v81 = vld [vmem:[%s4] sm:$0x1]
  %v83 = vlaneseq
  %v84 = vshrl.u32 %v83, 7
  %v85 = vsub.s32 0, %v84
  %v86 = vrot.slane %v81, %v85
  %v104 = vunpack.c.l.b16 %v65
  %v105 = vunpack.c.l.b16 %v66
  %v106 = vunpack.c.l.b16 %v67
  %v107 = vunpack.c.l.b16 %v68
  %v108 = vunpack.c.l.b16 %v69
  %v109 = vunpack.c.l.b16 %v70
  %v110 = vunpack.c.l.b16 %v71
  %v111 = vunpack.c.l.b16 %v72
  %v112 = vunpack.c.l.b16 %v73
  %v113 = vunpack.c.l.b16 %v74
  %v114 = vunpack.c.l.b16 %v75
  %v115 = vunpack.c.l.b16 %v76
  %v116 = vunpack.c.l.b16 %v77
  %v117 = vunpack.c.l.b16 %v78
  %v118 = vunpack.c.l.b16 %v79
  %v119 = vunpack.c.l.b16 %v80
  %v120 = vpack.c.b16 %v105, %v104
  %v121 = vpack.c.b16 %v107, %v106
  %v122 = vpack.c.b16 %v109, %v108
  %v123 = vpack.c.b16 %v111, %v110
  %v124 = vpack.c.b16 %v113, %v112
  %v125 = vpack.c.b16 %v115, %v114
  %v126 = vpack.c.b16 %v117, %v116
  %v127 = vpack.c.b16 %v119, %v118
  %136 = vmatprep.subr.bf16.mxu0 0
  %137 = vmatpush1.bf16.msra.mxu0 %v127
  %138 = vmatprep.subr.bf16.mxu0 0
  %139 = vmatpush1.bf16.msra.mxu0 %v126
  %140 = vmatprep.subr.bf16.mxu0 0
  %141 = vmatpush1.bf16.msra.mxu0 %v125
  %142 = vmatprep.subr.bf16.mxu0 0
  %143 = vmatpush1.bf16.msra.mxu0 %v124
  %144 = vmatprep.subr.bf16.mxu0 0
  %145 = vmatpush1.bf16.msra.mxu0 %v123
  %146 = vmatprep.subr.bf16.mxu0 0
  %147 = vmatpush1.bf16.msra.mxu0 %v122
  %148 = vmatprep.subr.bf16.mxu0 0
  %149 = vmatpush1.bf16.msra.mxu0 %v121
  %150 = vmatprep.subr.bf16.mxu0 0
  %151 = vmatpush1.bf16.msra.mxu0 %v120
  %152 = vmatprep.subr.bf16.mxu0 0
  %153 = vmatpush2.bf16.msra.mxu0 0
  %154 = vmatprep.subr.bf16.mxu0 0
  %155 = vmatpush2.bf16.msra.mxu0 0
  %156 = vmatprep.subr.bf16.mxu0 0
  %157 = vmatpush2.bf16.msra.mxu0 0
  %158 = vmatprep.subr.bf16.mxu0 0
  %159 = vmatpush2.bf16.msra.mxu0 0
  %160 = vmatprep.subr.bf16.mxu0 0
  %161 = vmatpush2.bf16.msra.mxu0 0
  %162 = vmatprep.subr.bf16.mxu0 0
  %163 = vmatpush2.bf16.msra.mxu0 0
  %164 = vmatprep.subr.bf16.mxu0 0
  %165 = vmatpush2.bf16.msra.mxu0 0
  %166 = vmatprep.subr.bf16.mxu0 0
  %167 = vmatpush2.bf16.msra.mxu0 0
  %168 = vmatprep.mubr.bf16.mxu0 0
  %169 = vmatmul.mubr.bf16.gmra.mxu0 %v64
  %v170 = vpop.f32.mrf.mxu0
  %v171 = vadd.f32 %v86, %v170
  %v172 = vpop.f32.mrf.mxu0
  %v173 = vpop.f32.mrf.mxu0
  %v174 = vadd.f32 %v86, %v173
  %v175 = vpop.f32.mrf.mxu0
  %176 = vdwg.mxu0
  %177 = vst [vmem:[%s5] sm:$0xff] %v171
  %178 = vst [vmem:[%s5 + $0x8] sm:$0xff] %v174
  // Predicated region
  $region22: #{clip_forward.24} parent=0 // pred_check
    _
  $region23: #{clip_forward.24} parent=0 // pred_check_branch
    %180 = sbr.rel (0) target = $region25
  $region24: #{clip_forward.24} parent=0 // pred_region
    _
  $region25: #{clip_forward.24} parent=0 // pred_fallthru
    _
  // Predicated region
  $region26: #{clip_forward.24} parent=0 // pred_check
    _
  $region27: #{clip_forward.24} parent=0 // pred_check_branch
    %182 = sbr.rel (0) target = $region29
  $region28: #{clip_forward.24} parent=0 // pred_region
    _
  $region29: #{clip_forward.24} parent=0 // pred_fallthru
    _

</llo_original>
